<compile_context>
chip_gen: v6e
topology: v6e:2x2x1
jax: 0.10.0
libtpu: 0.0.40
codegen_flags: <defaults>
</compile_context>

<pallas_src>
import numpy as np
import jax
import jax.numpy as jnp
from jax.experimental import pallas as pl
from jax.experimental.pallas import tpu as pltpu


# ---------------------------------------------------------------------------
# Trace-time weight preparation (folded BN, packed/banded layouts).
# These run on the params (captured as constants under jit) and are
# const-folded by XLA.
# ---------------------------------------------------------------------------
def _fold_bn(gamma, beta, mean, var, eps):
    scale = gamma / jnp.sqrt(var + eps)
    return scale, beta - mean * scale


def _bias_row(bias, reps):
    """(C,) -> (1, reps*C) f32 row, matching the packed (W*C) lane layout."""
    return jnp.tile(bias, reps)[None, :].astype(jnp.float32)


def _banded_conv3x3_s1(w, scale, Wo):
    """3x3 / stride 1 / pad 1 conv as 3 banded matrices (one per dy).

    w: (Cout, Cin, 3, 3) PyTorch layout; BN scale folded into output channels.
    Returns (3, (Wo+2)*Cin, Wo*Cout) bf16 so that
      out[i, j*Cout+co] = sum_dy  xp[i+dy, :] @ W[dy]   (xp packed, padded).
    """
    cin, cout = w.shape[1], w.shape[0]
    ws = (w * scale[:, None, None, None]).astype(jnp.float32)
    mats = []
    for dy in range(3):
        m = jnp.zeros(((Wo + 2) * cin, Wo * cout), jnp.float32)
        for dx in range(3):
            e = jnp.asarray(np.eye(Wo + 2, Wo, k=-dx), jnp.float32)
            m = m + jnp.kron(e, ws[:, :, dy, dx].T)
        mats.append(m)
    return jnp.stack(mats).astype(jnp.bfloat16)


def _banded_conv3x3_s2(w, scale, Wo):
    """3x3 / stride 2 / pad 1 conv against row/col parity planes of the padded
    input.  Returns (6, (Wo+1)*Cin, Wo*Cout) bf16, indexed by dy*2 + col_parity."""
    cin, cout = w.shape[1], w.shape[0]
    ws = (w * scale[:, None, None, None]).astype(jnp.float32)
    mats = []
    for dy in range(3):
        for cp in range(2):
            m = jnp.zeros(((Wo + 1) * cin, Wo * cout), jnp.float32)
            for dx in range(cp, 3, 2):
                e = jnp.asarray(np.eye(Wo + 1, Wo, k=-(dx // 2)), jnp.float32)
                m = m + jnp.kron(e, ws[:, :, dy, dx].T)
            mats.append(m)
    return jnp.stack(mats).astype(jnp.bfloat16)


def _downsample_weight(w, scale, Wo, stride):
    """1x1 downsample conv (stride 1 or 2) as a single banded matrix."""
    wm = (w[:, :, 0, 0] * scale[:, None]).T.astype(jnp.float32)     # (Cin, Cout)
    if stride == 2:
        e = jnp.asarray(np.eye(Wo + 1, Wo), jnp.float32)            # plane (rp=1, cp=1)
    else:
        e = jnp.asarray(np.eye(Wo + 2, Wo, k=-1), jnp.float32)      # padded interior
    return jnp.kron(e, wm).astype(jnp.bfloat16)


def _deconv_weights(w, scale, Ww, k):
    """ConvTranspose2d(k, stride=k, bias=False) weight (Cin, Cout, k, k) ->
    (k, Ww*Cin, k*Ww*Cout) bf16.  Matrix kh produces output rows k*i + kh with
    columns ordered (j, kw, co) so the store is a dense (Hh, k*Ww*Cout) tile."""
    cin, cout = w.shape[0], w.shape[1]
    ws = (w * scale[None, :, None, None]).astype(jnp.float32)
    mats = []
    for kh in range(k):
        m = jnp.zeros((Ww * cin, k * Ww * cout), jnp.float32)
        for kw in range(k):
            e = np.zeros((Ww, k * Ww), np.float32)
            e[np.arange(Ww), k * np.arange(Ww) + kw] = 1.0
            m = m + jnp.kron(jnp.asarray(e), ws[:, :, kh, kw])
        mats.append(m)
    return jnp.stack(mats).astype(jnp.bfloat16)


# ---------------------------------------------------------------------------
# In-kernel helpers (operate on packed (H, W*C) bf16 values).
# ---------------------------------------------------------------------------
def _pad_packed(x, C):
    """(Hh, Ww*C) -> (Hh+2, (Ww+2)*C) with a zero 1-pixel halo, in registers."""
    Hh = x.shape[0]
    zc = jnp.zeros((Hh, C), x.dtype)
    x = jnp.concatenate([zc, x, zc], axis=1)
    zr = jnp.zeros((1, x.shape[1]), x.dtype)
    return jnp.concatenate([zr, x, zr], axis=0)


def _conv3x3_s1(xp, w_ref, b_ref, Ho):
    """xp: (Ho+2, (Wo+2)*Cin) bf16; w_ref: (3, (Wo+2)*Cin, Wo*Cout) banded."""
    acc = b_ref[...]
    for dy in range(3):
        acc = acc + jnp.dot(xp[dy:dy + Ho, :], w_ref[dy],
                            preferred_element_type=jnp.float32)
    return acc                                                     # (Ho, Wo*Cout) f32


def _conv3x3_s2(planes, w_ref, b_ref, Ho):
    """planes[(rp,cp)]: (Ho+1, (Wo+1)*Cin) bf16; w_ref: (6, (Wo+1)*Cin, Wo*Cout)."""
    acc = b_ref[...]
    for dy in range(3):
        for cp in range(2):
            src = planes[(dy % 2, cp)]
            acc = acc + jnp.dot(src[dy // 2:dy // 2 + Ho, :], w_ref[dy * 2 + cp],
                                preferred_element_type=jnp.float32)
    return acc


# ---------------------------------------------------------------------------
# Fused per-level kernel: all BasicBlocks + the deblock of one level.
# ---------------------------------------------------------------------------
def _make_level_kernel(cfg):
    first_stride = cfg['first_stride']
    blocks = cfg['blocks']
    Ho, Wo = cfg['Ho'], cfg['Wo']
    k_up = cfg['k_up']
    emit_feat = cfg['emit_feat']
    n_act = 4 if first_stride == 2 else 1

    def kernel(*refs):
        it = iter(refs)
        acts = [next(it) for _ in range(n_act)]
        if first_stride == 2:
            planes = {(0, 0): acts[0][0], (0, 1): acts[1][0],
                      (1, 0): acts[2][0], (1, 1): acts[3][0]}
            x_padded = None
        else:
            planes = None
            x_padded = acts[0][0]                       # (Ho+2, (Wo+2)*Cin) bf16

        feat = None
        for bi, b in enumerate(blocks):
            cin, cout, stride, down = b['cin'], b['cout'], b['stride'], b['down']
            w1 = next(it); b1 = next(it)
            if down:
                wd = next(it); bd = next(it)
            w2 = next(it); b2 = next(it)

            if bi == 0 and stride == 2:
                z1 = _conv3x3_s2(planes, w1, b1, Ho)
                identity = (jnp.dot(planes[(1, 1)][0:Ho, :], wd[...],
                                    preferred_element_type=jnp.float32) + bd[...])
            else:
                xp = x_padded if bi == 0 else _pad_packed(feat, cin)
                z1 = _conv3x3_s1(xp, w1, b1, Ho)
                if down:
                    identity = (jnp.dot(xp[1:Ho + 1, :], wd[...],
                                        preferred_element_type=jnp.float32) + bd[...])
                elif bi == 0:
                    identity = x_padded[1:Ho + 1, cin:cin + Wo * cin].astype(jnp.float32)
                else:
                    identity = feat.astype(jnp.float32)

            h = jnp.maximum(z1, 0.0).astype(jnp.bfloat16)           # (Ho, Wo*cout) bf16
            z2 = _conv3x3_s1(_pad_packed(h, cout), w2, b2, Ho)
            feat = jnp.maximum(z2 + identity, 0.0).astype(jnp.bfloat16)

        # Deblock: ConvTranspose2d(k, stride=k, bias=False) + folded BN + ReLU.
        w_up = next(it); b_up = next(it)
        outs = list(it)
        o_i = 0
        if emit_feat:
            outs[0][0] = feat                                       # (Ho, Wo*Cf) dense
            o_i = 1
        up_ref = outs[o_i]
        for kh in range(k_up):
            r = jnp.dot(feat, w_up[kh], preferred_element_type=jnp.float32) + b_up[...]
            up_ref[0, kh] = jnp.maximum(r, 0.0).astype(jnp.bfloat16)

    return kernel


def _level_forward(feat, level_params, deblock_params, k_up, cup, emit_feat):
    """feat: (N, H, W, Cin) bf16 NHWC.  Returns (next_feat or None, up), NHWC bf16."""
    N, H, W, Cin = feat.shape
    stride0 = level_params[0]['stride']
    assert stride0 in (1, 2)
    Ho, Wo = H // stride0, W // stride0

    # Activation inputs (lane-dense packed layout), prepared by one fused XLA pass.
    fpad = jnp.pad(feat, ((0, 0), (1, 1), (1, 1), (0, 0)))
    if stride0 == 2:
        assert H % 2 == 0 and W % 2 == 0
        acts = [fpad[:, rp::2, cp::2, :].reshape(N, (H + 2) // 2, ((W + 2) // 2) * Cin)
                for rp in (0, 1) for cp in (0, 1)]
    else:
        acts = [fpad.reshape(N, H + 2, (W + 2) * Cin)]

    # Weights: folded BN, packed/banded layouts, bf16.
    weights = []
    blocks_cfg = []
    cin = Cin
    for bp in level_params:
        cout = bp['conv1_w'].shape[0]
        stride = bp['stride']
        s1, bb1 = _fold_bn(bp['bn1_g'], bp['bn1_b'], bp['bn1_m'], bp['bn1_v'], 1e-5)
        s2, bb2 = _fold_bn(bp['bn2_g'], bp['bn2_b'], bp['bn2_m'], bp['bn2_v'], 1e-5)
        if stride == 2:
            weights += [_banded_conv3x3_s2(bp['conv1_w'], s1, Wo), _bias_row(bb1, Wo)]
        else:
            weights += [_banded_conv3x3_s1(bp['conv1_w'], s1, Wo), _bias_row(bb1, Wo)]
        down = 'down_w' in bp
        if down:
            sd, bbd = _fold_bn(bp['dbn_g'], bp['dbn_b'], bp['dbn_m'], bp['dbn_v'], 1e-5)
            weights += [_downsample_weight(bp['down_w'], sd, Wo, stride), _bias_row(bbd, Wo)]
        weights += [_banded_conv3x3_s1(bp['conv2_w'], s2, Wo), _bias_row(bb2, Wo)]
        blocks_cfg.append(dict(cin=cin, cout=cout, stride=stride, down=down))
        cin = cout
    Cf = cin

    su, bu = _fold_bn(deblock_params['bn_g'], deblock_params['bn_b'],
                      deblock_params['bn_m'], deblock_params['bn_v'], 1e-3)
    weights += [_deconv_weights(deblock_params['w'], su, Wo, k_up),
                _bias_row(bu, k_up * Wo)]

    cfg = dict(first_stride=stride0, blocks=blocks_cfg, Ho=Ho, Wo=Wo,
               k_up=k_up, emit_feat=emit_feat)
    kernel = _make_level_kernel(cfg)

    in_specs = [pl.BlockSpec((1,) + a.shape[1:], lambda n: (n, 0, 0)) for a in acts]
    in_specs += [pl.BlockSpec(w.shape, lambda n, _nd=w.ndim: (0,) * _nd) for w in weights]

    out_shapes, out_specs = [], []
    if emit_feat:
        out_shapes.append(jax.ShapeDtypeStruct((N, Ho, Wo * Cf), jnp.bfloat16))
        out_specs.append(pl.BlockSpec((1, Ho, Wo * Cf), lambda n: (n, 0, 0)))
    out_shapes.append(jax.ShapeDtypeStruct((N, k_up, Ho, k_up * Wo * cup), jnp.bfloat16))
    out_specs.append(pl.BlockSpec((1, k_up, Ho, k_up * Wo * cup), lambda n: (n, 0, 0, 0)))

    res = pl.pallas_call(
        kernel,
        grid=(N,),
        in_specs=in_specs,
        out_specs=tuple(out_specs),
        out_shape=tuple(out_shapes),
        compiler_params=pltpu.CompilerParams(dimension_semantics=("parallel",)),
    )(*acts, *weights)

    if emit_feat:
        feat_pk, up_raw = res
        next_feat = feat_pk.reshape(N, Ho, Wo, Cf)
    else:
        up_raw = res[0]
        next_feat = None

    # k x k pixel-shuffle + unpack; XLA fuses this with the final concat / NCHW pass.
    up = up_raw.reshape(N, k_up, Ho, Wo, k_up, cup)
    up = jnp.transpose(up, (0, 2, 1, 3, 4, 5)).reshape(N, Ho * k_up, Wo * k_up, cup)
    return next_feat, up


# ---------------------------------------------------------------------------
# Transform normalization (glue, matches get_normalized_transformation)
# ---------------------------------------------------------------------------
def get_normalized_transformation(H, W, t, discrete_ratio, downsample_rate=1):
    m = t[..., [0, 1], :][..., [0, 1, 3]]                          # (B, L, L, 2, 3)
    m = m.at[..., 0, 1].multiply(H / W)
    m = m.at[..., 1, 0].multiply(W / H)
    m = m.at[..., 0, 2].set(m[..., 0, 2] / (downsample_rate * discrete_ratio * W) * 2)
    m = m.at[..., 1, 2].set(m[..., 1, 2] / (downsample_rate * discrete_ratio * H) * 2)
    return m


# ---------------------------------------------------------------------------
# DeforResNetBEVBackbone.forward (multi_scale = False path)
# ---------------------------------------------------------------------------
def defor_resnet_bev_backbone_forward(data_dict, params, cfg):
    spatial_features = data_dict['spatial_features']               # NCHW (PyTorch layout)
    record_len = data_dict['record_len']                           # noqa: F841 (used by DeforEncoder)
    pairwise_t_matrix = data_dict['pairwise_t_matrix']
    N, C, H, W = spatial_features.shape

    ptm_n = get_normalized_transformation(H, W, pairwise_t_matrix, cfg['voxel_size'][0])

    feat = jnp.transpose(spatial_features, (0, 2, 3, 1)).astype(jnp.bfloat16)   # NHWC bf16
    num_levels = len(cfg['layer_nums'])
    ups = []
    for li in range(num_levels):
        emit = li + 1 < num_levels
        feat, up = _level_forward(feat, params['resnet'][li], params['deblocks'][li],
                                  cfg['upsample_strides'][li],
                                  cfg['num_upsample_filter'][li], emit)
        ups.append(up)

    x = jnp.concatenate(ups, axis=-1) if len(ups) > 1 else ups[0]
    # len(upsample_strides) == num_levels here, so no trailing deblock is applied.
    single_features = jnp.transpose(x, (0, 3, 1, 2)).astype(jnp.float32)        # NCHW

    out = dict(data_dict)
    out['single_features'] = single_features
    # TODO(synk): DeforEncoder (deformable attention fusion) source is not part of the
    # provided module; fused_features is passed through unchanged instead of faked.
    out['fused_features'] = single_features
    out['pairwise_t_matrix_normalized'] = ptm_n
    return out


# ---------------------------------------------------------------------------
# Parameter initialization (deterministic, synthetic, PyTorch layouts;
# BN stored as gamma/beta/running_mean/running_var and folded at trace time).
# ---------------------------------------------------------------------------
class ParamGen:
    def __init__(self, key):
        self.key = key

    def normal(self, shape, scale=0.1):
        self.key, sub = jax.random.split(self.key)
        return scale * jax.random.normal(sub, shape, dtype=jnp.float32)


def _bn_params(pg, c, prefix):
    return {prefix + '_g': 1.0 + pg.normal((c,)),
            prefix + '_b': pg.normal((c,)),
            prefix + '_m': pg.normal((c,)),
            prefix + '_v': jnp.abs(1.0 + pg.normal((c,)))}


def make_block_params(pg, inplanes, planes, stride):
    p = {'stride': stride,
         'conv1_w': pg.normal((planes, inplanes, 3, 3)),
         'conv2_w': pg.normal((planes, planes, 3, 3))}
    p.update(_bn_params(pg, planes, 'bn1'))
    p.update(_bn_params(pg, planes, 'bn2'))
    if stride != 1 or inplanes != planes:
        p['down_w'] = pg.normal((planes, inplanes, 1, 1))
        p.update(_bn_params(pg, planes, 'dbn'))
    return p


def init_params(key, cfg):
    pg = ParamGen(key)
    inplanes = cfg.get('inplanes', 64)
    resnet = []
    for lvl in range(len(cfg['layer_nums'])):
        planes = cfg['num_filters'][lvl]
        stride = cfg['layer_strides'][lvl]
        blocks = [make_block_params(pg, inplanes, planes, stride)]
        inplanes = planes
        for _ in range(1, cfg['layer_nums'][lvl]):
            blocks.append(make_block_params(pg, inplanes, planes, 1))
        resnet.append(blocks)
    deblocks = []
    for idx in range(len(cfg['layer_nums'])):
        k = cfg['upsample_strides'][idx]
        cin, cout = cfg['num_filters'][idx], cfg['num_upsample_filter'][idx]
        d = {'w': pg.normal((cin, cout, k, k))}                     # ConvTranspose2d layout
        d.update(_bn_params(pg, cout, 'bn'))
        deblocks.append(d)
    return {'resnet': resnet, 'deblocks': deblocks}


# ---------------------------------------------------------------------------
# Main
# ---------------------------------------------------------------------------
if __name__ == "__main__":
    MODEL_CFG = {
        'voxel_size': [0.4, 0.4, 4],
        'layer_nums': [2, 2],
        'layer_strides': [1, 2],
        'num_filters': [16, 32],
        'upsample_strides': [1, 2],
        'num_upsample_filter': [16, 16],
        'inplanes': 16,
    }

    key = jax.random.PRNGKey(0)
    k_in, k_param = jax.random.split(key)

    N, C, H, W = 2, MODEL_CFG['inplanes'], 16, 16
    spatial_features = jax.random.normal(k_in, (N, C, H, W), dtype=jnp.float32)
    record_len = jnp.array([2], dtype=jnp.int32)
    pairwise_t_matrix = jnp.broadcast_to(jnp.eye(4, dtype=jnp.float32),
                                         (1, 2, 2, 4, 4))

    params = init_params(k_param, MODEL_CFG)

    @jax.jit
    def run(sf, ptm, rlen):
        return defor_resnet_bev_backbone_forward(
            {'spatial_features': sf, 'record_len': rlen, 'pairwise_t_matrix': ptm},
            params, MODEL_CFG)

    out = run(spatial_features, pairwise_t_matrix, record_len)
    jax.block_until_ready(out['single_features'])
    jax.block_until_ready(out['fused_features'])

    # sanity: c_in = sum(num_upsample_filter) = 32, spatial restored to (H, W)
    assert out['single_features'].shape == (N, sum(MODEL_CFG['num_upsample_filter']), H, W)
    assert out['pairwise_t_matrix_normalized'].shape == (1, 2, 2, 2, 3)
    assert bool(jnp.all(jnp.isfinite(out['single_features'])))

    print("KERNEL_OK")
</pallas_src>

<mosaic_0001>
module attributes {stable_mosaic.version = 11 : i64} {
  func.func @kernel(%arg0: i32, %arg1: memref<1x18x288xbf16, #tpu.memory_space<vmem>>, %arg2: memref<3x288x256xbf16, #tpu.memory_space<vmem>>, %arg3: memref<1x256xf32, #tpu.memory_space<vmem>>, %arg4: memref<3x288x256xbf16, #tpu.memory_space<vmem>>, %arg5: memref<1x256xf32, #tpu.memory_space<vmem>>, %arg6: memref<3x288x256xbf16, #tpu.memory_space<vmem>>, %arg7: memref<1x256xf32, #tpu.memory_space<vmem>>, %arg8: memref<3x288x256xbf16, #tpu.memory_space<vmem>>, %arg9: memref<1x256xf32, #tpu.memory_space<vmem>>, %arg10: memref<1x256x256xbf16, #tpu.memory_space<vmem>>, %arg11: memref<1x256xf32, #tpu.memory_space<vmem>>, %arg12: memref<1x16x256xbf16, #tpu.memory_space<vmem>>, %arg13: memref<1x1x16x256xbf16, #tpu.memory_space<vmem>>) attributes {dimension_semantics = [#tpu.dimension_semantics<parallel>], iteration_bounds = array<i64: 2>, scalar_prefetch = 0 : i64, scratch_operands = 0 : i64, tpu.core_type = #tpu.core_type<tc>, window_params = [{transform_indices = @transform_0, window_bounds = array<i64: 1, 18, 288>}, {pipeline_mode = #tpu.pipeline_mode<synchronous>, transform_indices = @transform_1, window_bounds = array<i64: 3, 288, 256>}, {pipeline_mode = #tpu.pipeline_mode<synchronous>, transform_indices = @transform_2, window_bounds = array<i64: 1, 256>}, {pipeline_mode = #tpu.pipeline_mode<synchronous>, transform_indices = @transform_3, window_bounds = array<i64: 3, 288, 256>}, {pipeline_mode = #tpu.pipeline_mode<synchronous>, transform_indices = @transform_4, window_bounds = array<i64: 1, 256>}, {pipeline_mode = #tpu.pipeline_mode<synchronous>, transform_indices = @transform_5, window_bounds = array<i64: 3, 288, 256>}, {pipeline_mode = #tpu.pipeline_mode<synchronous>, transform_indices = @transform_6, window_bounds = array<i64: 1, 256>}, {pipeline_mode = #tpu.pipeline_mode<synchronous>, transform_indices = @transform_7, window_bounds = array<i64: 3, 288, 256>}, {pipeline_mode = #tpu.pipeline_mode<synchronous>, transform_indices = @transform_8, window_bounds = array<i64: 1, 256>}, {pipeline_mode = #tpu.pipeline_mode<synchronous>, transform_indices = @transform_9, window_bounds = array<i64: 1, 256, 256>}, {pipeline_mode = #tpu.pipeline_mode<synchronous>, transform_indices = @transform_10, window_bounds = array<i64: 1, 256>}, {transform_indices = @transform_11, window_bounds = array<i64: 1, 16, 256>}, {transform_indices = @transform_12, window_bounds = array<i64: 1, 1, 16, 256>}]} {
    %c0 = arith.constant 0 : index
    %c0_0 = arith.constant 0 : index
    %c0_1 = arith.constant 0 : index
    %0 = vector.load %arg1[%c0, %c0_0, %c0_1] : memref<1x18x288xbf16, #tpu.memory_space<vmem>>, vector<1x18x288xbf16>
    %1 = vector.shape_cast %0 : vector<1x18x288xbf16> to vector<18x288xbf16>
    %c0_2 = arith.constant 0 : index
    %c0_3 = arith.constant 0 : index
    %2 = vector.load %arg3[%c0_2, %c0_3] : memref<1x256xf32, #tpu.memory_space<vmem>>, vector<1x256xf32>
    %3 = vector.extract_strided_slice %1 {offsets = [0, 0], sizes = [16, 288], strides = [1, 1]} : vector<18x288xbf16> to vector<16x288xbf16>
    %c0_4 = arith.constant 0 : index
    %c0_5 = arith.constant 0 : index
    %c0_6 = arith.constant 0 : index
    %4 = vector.load %arg2[%c0_4, %c0_5, %c0_6] : memref<3x288x256xbf16, #tpu.memory_space<vmem>>, vector<1x288x256xbf16>
    %5 = vector.shape_cast %4 : vector<1x288x256xbf16> to vector<288x256xbf16>
    %cst = arith.constant dense<0.000000e+00> : vector<16x256xf32>
    %6 = tpu.matmul %3, %5, %cst {dimension_numbers = #tpu.dot_dimension_numbers<[1], [0], [0], [1], [0, 0, 1, 1], [], []>} : vector<16x288xbf16>, vector<288x256xbf16>, vector<16x256xf32> -> vector<16x256xf32>
    %7 = vector.broadcast %2 : vector<1x256xf32> to vector<16x256xf32>
    %8 = arith.addf %7, %6 : vector<16x256xf32>
    %9 = vector.extract_strided_slice %1 {offsets = [1, 0], sizes = [16, 288], strides = [1, 1]} : vector<18x288xbf16> to vector<16x288xbf16>
    %c1 = arith.constant 1 : index
    %c0_7 = arith.constant 0 : index
    %c0_8 = arith.constant 0 : index
    %10 = vector.load %arg2[%c1, %c0_7, %c0_8] : memref<3x288x256xbf16, #tpu.memory_space<vmem>>, vector<1x288x256xbf16>
    %11 = vector.shape_cast %10 : vector<1x288x256xbf16> to vector<288x256xbf16>
    %cst_9 = arith.constant dense<0.000000e+00> : vector<16x256xf32>
    %12 = tpu.matmul %9, %11, %cst_9 {dimension_numbers = #tpu.dot_dimension_numbers<[1], [0], [0], [1], [0, 0, 1, 1], [], []>} : vector<16x288xbf16>, vector<288x256xbf16>, vector<16x256xf32> -> vector<16x256xf32>
    %13 = arith.addf %8, %12 : vector<16x256xf32>
    %14 = vector.extract_strided_slice %1 {offsets = [2, 0], sizes = [16, 288], strides = [1, 1]} : vector<18x288xbf16> to vector<16x288xbf16>
    %c2 = arith.constant 2 : index
    %c0_10 = arith.constant 0 : index
    %c0_11 = arith.constant 0 : index
    %15 = vector.load %arg2[%c2, %c0_10, %c0_11] : memref<3x288x256xbf16, #tpu.memory_space<vmem>>, vector<1x288x256xbf16>
    %16 = vector.shape_cast %15 : vector<1x288x256xbf16> to vector<288x256xbf16>
    %cst_12 = arith.constant dense<0.000000e+00> : vector<16x256xf32>
    %17 = tpu.matmul %14, %16, %cst_12 {dimension_numbers = #tpu.dot_dimension_numbers<[1], [0], [0], [1], [0, 0, 1, 1], [], []>} : vector<16x288xbf16>, vector<288x256xbf16>, vector<16x256xf32> -> vector<16x256xf32>
    %18 = arith.addf %13, %17 : vector<16x256xf32>
    %19 = vector.extract_strided_slice %1 {offsets = [1, 16], sizes = [16, 256], strides = [1, 1]} : vector<18x288xbf16> to vector<16x256xbf16>
    %20 = arith.extf %19 : vector<16x256xbf16> to vector<16x256xf32>
    %cst_13 = arith.constant 0.000000e+00 : f32
    %21 = vector.broadcast %cst_13 : f32 to vector<16x256xf32>
    %22 = arith.maximumf %18, %21 : vector<16x256xf32>
    %23 = arith.truncf %22 : vector<16x256xf32> to vector<16x256xbf16>
    %cst_14 = arith.constant 0.000000e+00 : bf16
    %24 = vector.broadcast %cst_14 : bf16 to vector<16x16xbf16>
    %25 = tpu.concatenate %24, %23, %24 in 1 : vector<16x16xbf16>, vector<16x256xbf16>, vector<16x16xbf16> -> vector<16x288xbf16>
    %cst_15 = arith.constant 0.000000e+00 : bf16
    %26 = vector.broadcast %cst_15 : bf16 to vector<1x288xbf16>
    %27 = tpu.concatenate %26, %25, %26 in 0 : vector<1x288xbf16>, vector<16x288xbf16>, vector<1x288xbf16> -> vector<18x288xbf16>
    %c0_16 = arith.constant 0 : index
    %c0_17 = arith.constant 0 : index
    %28 = vector.load %arg5[%c0_16, %c0_17] : memref<1x256xf32, #tpu.memory_space<vmem>>, vector<1x256xf32>
    %29 = vector.extract_strided_slice %27 {offsets = [0, 0], sizes = [16, 288], strides = [1, 1]} : vector<18x288xbf16> to vector<16x288xbf16>
    %c0_18 = arith.constant 0 : index
    %c0_19 = arith.constant 0 : index
    %c0_20 = arith.constant 0 : index
    %30 = vector.load %arg4[%c0_18, %c0_19, %c0_20] : memref<3x288x256xbf16, #tpu.memory_space<vmem>>, vector<1x288x256xbf16>
    %31 = vector.shape_cast %30 : vector<1x288x256xbf16> to vector<288x256xbf16>
    %cst_21 = arith.constant dense<0.000000e+00> : vector<16x256xf32>
    %32 = tpu.matmul %29, %31, %cst_21 {dimension_numbers = #tpu.dot_dimension_numbers<[1], [0], [0], [1], [0, 0, 1, 1], [], []>} : vector<16x288xbf16>, vector<288x256xbf16>, vector<16x256xf32> -> vector<16x256xf32>
    %33 = vector.broadcast %28 : vector<1x256xf32> to vector<16x256xf32>
    %34 = arith.addf %33, %32 : vector<16x256xf32>
    %35 = vector.extract_strided_slice %27 {offsets = [1, 0], sizes = [16, 288], strides = [1, 1]} : vector<18x288xbf16> to vector<16x288xbf16>
    %c1_22 = arith.constant 1 : index
    %c0_23 = arith.constant 0 : index
    %c0_24 = arith.constant 0 : index
    %36 = vector.load %arg4[%c1_22, %c0_23, %c0_24] : memref<3x288x256xbf16, #tpu.memory_space<vmem>>, vector<1x288x256xbf16>
    %37 = vector.shape_cast %36 : vector<1x288x256xbf16> to vector<288x256xbf16>
    %cst_25 = arith.constant dense<0.000000e+00> : vector<16x256xf32>
    %38 = tpu.matmul %35, %37, %cst_25 {dimension_numbers = #tpu.dot_dimension_numbers<[1], [0], [0], [1], [0, 0, 1, 1], [], []>} : vector<16x288xbf16>, vector<288x256xbf16>, vector<16x256xf32> -> vector<16x256xf32>
    %39 = arith.addf %34, %38 : vector<16x256xf32>
    %40 = vector.extract_strided_slice %27 {offsets = [2, 0], sizes = [16, 288], strides = [1, 1]} : vector<18x288xbf16> to vector<16x288xbf16>
    %c2_26 = arith.constant 2 : index
    %c0_27 = arith.constant 0 : index
    %c0_28 = arith.constant 0 : index
    %41 = vector.load %arg4[%c2_26, %c0_27, %c0_28] : memref<3x288x256xbf16, #tpu.memory_space<vmem>>, vector<1x288x256xbf16>
    %42 = vector.shape_cast %41 : vector<1x288x256xbf16> to vector<288x256xbf16>
    %cst_29 = arith.constant dense<0.000000e+00> : vector<16x256xf32>
    %43 = tpu.matmul %40, %42, %cst_29 {dimension_numbers = #tpu.dot_dimension_numbers<[1], [0], [0], [1], [0, 0, 1, 1], [], []>} : vector<16x288xbf16>, vector<288x256xbf16>, vector<16x256xf32> -> vector<16x256xf32>
    %44 = arith.addf %39, %43 : vector<16x256xf32>
    %45 = arith.addf %44, %20 : vector<16x256xf32>
    %cst_30 = arith.constant 0.000000e+00 : f32
    %46 = vector.broadcast %cst_30 : f32 to vector<16x256xf32>
    %47 = arith.maximumf %45, %46 : vector<16x256xf32>
    %48 = arith.truncf %47 : vector<16x256xf32> to vector<16x256xbf16>
    %cst_31 = arith.constant 0.000000e+00 : bf16
    %49 = vector.broadcast %cst_31 : bf16 to vector<16x16xbf16>
    %50 = tpu.concatenate %49, %48, %49 in 1 : vector<16x16xbf16>, vector<16x256xbf16>, vector<16x16xbf16> -> vector<16x288xbf16>
    %cst_32 = arith.constant 0.000000e+00 : bf16
    %51 = vector.broadcast %cst_32 : bf16 to vector<1x288xbf16>
    %52 = tpu.concatenate %51, %50, %51 in 0 : vector<1x288xbf16>, vector<16x288xbf16>, vector<1x288xbf16> -> vector<18x288xbf16>
    %c0_33 = arith.constant 0 : index
    %c0_34 = arith.constant 0 : index
    %53 = vector.load %arg7[%c0_33, %c0_34] : memref<1x256xf32, #tpu.memory_space<vmem>>, vector<1x256xf32>
    %54 = vector.extract_strided_slice %52 {offsets = [0, 0], sizes = [16, 288], strides = [1, 1]} : vector<18x288xbf16> to vector<16x288xbf16>
    %c0_35 = arith.constant 0 : index
    %c0_36 = arith.constant 0 : index
    %c0_37 = arith.constant 0 : index
    %55 = vector.load %arg6[%c0_35, %c0_36, %c0_37] : memref<3x288x256xbf16, #tpu.memory_space<vmem>>, vector<1x288x256xbf16>
    %56 = vector.shape_cast %55 : vector<1x288x256xbf16> to vector<288x256xbf16>
    %cst_38 = arith.constant dense<0.000000e+00> : vector<16x256xf32>
    %57 = tpu.matmul %54, %56, %cst_38 {dimension_numbers = #tpu.dot_dimension_numbers<[1], [0], [0], [1], [0, 0, 1, 1], [], []>} : vector<16x288xbf16>, vector<288x256xbf16>, vector<16x256xf32> -> vector<16x256xf32>
    %58 = vector.broadcast %53 : vector<1x256xf32> to vector<16x256xf32>
    %59 = arith.addf %58, %57 : vector<16x256xf32>
    %60 = vector.extract_strided_slice %52 {offsets = [1, 0], sizes = [16, 288], strides = [1, 1]} : vector<18x288xbf16> to vector<16x288xbf16>
    %c1_39 = arith.constant 1 : index
    %c0_40 = arith.constant 0 : index
    %c0_41 = arith.constant 0 : index
    %61 = vector.load %arg6[%c1_39, %c0_40, %c0_41] : memref<3x288x256xbf16, #tpu.memory_space<vmem>>, vector<1x288x256xbf16>
    %62 = vector.shape_cast %61 : vector<1x288x256xbf16> to vector<288x256xbf16>
    %cst_42 = arith.constant dense<0.000000e+00> : vector<16x256xf32>
    %63 = tpu.matmul %60, %62, %cst_42 {dimension_numbers = #tpu.dot_dimension_numbers<[1], [0], [0], [1], [0, 0, 1, 1], [], []>} : vector<16x288xbf16>, vector<288x256xbf16>, vector<16x256xf32> -> vector<16x256xf32>
    %64 = arith.addf %59, %63 : vector<16x256xf32>
    %65 = vector.extract_strided_slice %52 {offsets = [2, 0], sizes = [16, 288], strides = [1, 1]} : vector<18x288xbf16> to vector<16x288xbf16>
    %c2_43 = arith.constant 2 : index
    %c0_44 = arith.constant 0 : index
    %c0_45 = arith.constant 0 : index
    %66 = vector.load %arg6[%c2_43, %c0_44, %c0_45] : memref<3x288x256xbf16, #tpu.memory_space<vmem>>, vector<1x288x256xbf16>
    %67 = vector.shape_cast %66 : vector<1x288x256xbf16> to vector<288x256xbf16>
    %cst_46 = arith.constant dense<0.000000e+00> : vector<16x256xf32>
    %68 = tpu.matmul %65, %67, %cst_46 {dimension_numbers = #tpu.dot_dimension_numbers<[1], [0], [0], [1], [0, 0, 1, 1], [], []>} : vector<16x288xbf16>, vector<288x256xbf16>, vector<16x256xf32> -> vector<16x256xf32>
    %69 = arith.addf %64, %68 : vector<16x256xf32>
    %70 = arith.extf %48 : vector<16x256xbf16> to vector<16x256xf32>
    %cst_47 = arith.constant 0.000000e+00 : f32
    %71 = vector.broadcast %cst_47 : f32 to vector<16x256xf32>
    %72 = arith.maximumf %69, %71 : vector<16x256xf32>
    %73 = arith.truncf %72 : vector<16x256xf32> to vector<16x256xbf16>
    %cst_48 = arith.constant 0.000000e+00 : bf16
    %74 = vector.broadcast %cst_48 : bf16 to vector<16x16xbf16>
    %75 = tpu.concatenate %74, %73, %74 in 1 : vector<16x16xbf16>, vector<16x256xbf16>, vector<16x16xbf16> -> vector<16x288xbf16>
    %cst_49 = arith.constant 0.000000e+00 : bf16
    %76 = vector.broadcast %cst_49 : bf16 to vector<1x288xbf16>
    %77 = tpu.concatenate %76, %75, %76 in 0 : vector<1x288xbf16>, vector<16x288xbf16>, vector<1x288xbf16> -> vector<18x288xbf16>
    %c0_50 = arith.constant 0 : index
    %c0_51 = arith.constant 0 : index
    %78 = vector.load %arg9[%c0_50, %c0_51] : memref<1x256xf32, #tpu.memory_space<vmem>>, vector<1x256xf32>
    %79 = vector.extract_strided_slice %77 {offsets = [0, 0], sizes = [16, 288], strides = [1, 1]} : vector<18x288xbf16> to vector<16x288xbf16>
    %c0_52 = arith.constant 0 : index
    %c0_53 = arith.constant 0 : index
    %c0_54 = arith.constant 0 : index
    %80 = vector.load %arg8[%c0_52, %c0_53, %c0_54] : memref<3x288x256xbf16, #tpu.memory_space<vmem>>, vector<1x288x256xbf16>
    %81 = vector.shape_cast %80 : vector<1x288x256xbf16> to vector<288x256xbf16>
    %cst_55 = arith.constant dense<0.000000e+00> : vector<16x256xf32>
    %82 = tpu.matmul %79, %81, %cst_55 {dimension_numbers = #tpu.dot_dimension_numbers<[1], [0], [0], [1], [0, 0, 1, 1], [], []>} : vector<16x288xbf16>, vector<288x256xbf16>, vector<16x256xf32> -> vector<16x256xf32>
    %83 = vector.broadcast %78 : vector<1x256xf32> to vector<16x256xf32>
    %84 = arith.addf %83, %82 : vector<16x256xf32>
    %85 = vector.extract_strided_slice %77 {offsets = [1, 0], sizes = [16, 288], strides = [1, 1]} : vector<18x288xbf16> to vector<16x288xbf16>
    %c1_56 = arith.constant 1 : index
    %c0_57 = arith.constant 0 : index
    %c0_58 = arith.constant 0 : index
    %86 = vector.load %arg8[%c1_56, %c0_57, %c0_58] : memref<3x288x256xbf16, #tpu.memory_space<vmem>>, vector<1x288x256xbf16>
    %87 = vector.shape_cast %86 : vector<1x288x256xbf16> to vector<288x256xbf16>
    %cst_59 = arith.constant dense<0.000000e+00> : vector<16x256xf32>
    %88 = tpu.matmul %85, %87, %cst_59 {dimension_numbers = #tpu.dot_dimension_numbers<[1], [0], [0], [1], [0, 0, 1, 1], [], []>} : vector<16x288xbf16>, vector<288x256xbf16>, vector<16x256xf32> -> vector<16x256xf32>
    %89 = arith.addf %84, %88 : vector<16x256xf32>
    %90 = vector.extract_strided_slice %77 {offsets = [2, 0], sizes = [16, 288], strides = [1, 1]} : vector<18x288xbf16> to vector<16x288xbf16>
    %c2_60 = arith.constant 2 : index
    %c0_61 = arith.constant 0 : index
    %c0_62 = arith.constant 0 : index
    %91 = vector.load %arg8[%c2_60, %c0_61, %c0_62] : memref<3x288x256xbf16, #tpu.memory_space<vmem>>, vector<1x288x256xbf16>
    %92 = vector.shape_cast %91 : vector<1x288x256xbf16> to vector<288x256xbf16>
    %cst_63 = arith.constant dense<0.000000e+00> : vector<16x256xf32>
    %93 = tpu.matmul %90, %92, %cst_63 {dimension_numbers = #tpu.dot_dimension_numbers<[1], [0], [0], [1], [0, 0, 1, 1], [], []>} : vector<16x288xbf16>, vector<288x256xbf16>, vector<16x256xf32> -> vector<16x256xf32>
    %94 = arith.addf %89, %93 : vector<16x256xf32>
    %95 = arith.addf %94, %70 : vector<16x256xf32>
    %cst_64 = arith.constant 0.000000e+00 : f32
    %96 = vector.broadcast %cst_64 : f32 to vector<16x256xf32>
    %97 = arith.maximumf %95, %96 : vector<16x256xf32>
    %98 = arith.truncf %97 : vector<16x256xf32> to vector<16x256xbf16>
    %c0_65 = arith.constant 0 : index
    %c0_66 = arith.constant 0 : index
    %c0_67 = arith.constant 0 : index
    %99 = vector.load %arg12[%c0_65, %c0_66, %c0_67] : memref<1x16x256xbf16, #tpu.memory_space<vmem>>, vector<1x16x256xbf16>
    %100 = vector.shape_cast %99 : vector<1x16x256xbf16> to vector<16x256xbf16>
    %101 = vector.shape_cast %98 : vector<16x256xbf16> to vector<1x16x256xbf16>
    tpu.vector_store %arg12[%c0_65, %c0_66, %c0_67], %101 {strides = array<i32>} : memref<1x16x256xbf16, #tpu.memory_space<vmem>>, vector<1x16x256xbf16>,
    %c0_68 = arith.constant 0 : index
    %c0_69 = arith.constant 0 : index
    %c0_70 = arith.constant 0 : index
    %102 = vector.load %arg10[%c0_68, %c0_69, %c0_70] : memref<1x256x256xbf16, #tpu.memory_space<vmem>>, vector<1x256x256xbf16>
    %103 = vector.shape_cast %102 : vector<1x256x256xbf16> to vector<256x256xbf16>
    %cst_71 = arith.constant dense<0.000000e+00> : vector<16x256xf32>
    %104 = tpu.matmul %98, %103, %cst_71 {dimension_numbers = #tpu.dot_dimension_numbers<[1], [0], [0], [1], [0, 0, 1, 1], [], []>} : vector<16x256xbf16>, vector<256x256xbf16>, vector<16x256xf32> -> vector<16x256xf32>
    %c0_72 = arith.constant 0 : index
    %c0_73 = arith.constant 0 : index
    %105 = vector.load %arg11[%c0_72, %c0_73] : memref<1x256xf32, #tpu.memory_space<vmem>>, vector<1x256xf32>
    %106 = vector.broadcast %105 : vector<1x256xf32> to vector<16x256xf32>
    %107 = arith.addf %104, %106 : vector<16x256xf32>
    %cst_74 = arith.constant 0.000000e+00 : f32
    %108 = vector.broadcast %cst_74 : f32 to vector<16x256xf32>
    %109 = arith.maximumf %107, %108 : vector<16x256xf32>
    %110 = arith.truncf %109 : vector<16x256xf32> to vector<16x256xbf16>
    %c0_75 = arith.constant 0 : index
    %c0_76 = arith.constant 0 : index
    %c0_77 = arith.constant 0 : index
    %c0_78 = arith.constant 0 : index
    %111 = vector.load %arg13[%c0_75, %c0_76, %c0_77, %c0_78] : memref<1x1x16x256xbf16, #tpu.memory_space<vmem>>, vector<1x1x16x256xbf16>
    %112 = vector.shape_cast %111 : vector<1x1x16x256xbf16> to vector<16x256xbf16>
    %113 = vector.shape_cast %110 : vector<16x256xbf16> to vector<1x1x16x256xbf16>
    tpu.vector_store %arg13[%c0_75, %c0_76, %c0_77, %c0_78], %113 {strides = array<i32>} : memref<1x1x16x256xbf16, #tpu.memory_space<vmem>>, vector<1x1x16x256xbf16>,
    return
  }
  func.func @transform_0(%arg0: i32) -> (i32, i32, i32) {
    %c0_i32 = arith.constant 0 : i32
    %c0_i32_0 = arith.constant 0 : i32
    %c0_i32_1 = arith.constant 0 : i32
    return %arg0, %c0_i32, %c0_i32_0 : i32, i32, i32
  }
  func.func @transform_1(%arg0: i32) -> (i32, i32, i32) {
    %c0_i32 = arith.constant 0 : i32
    %c0_i32_0 = arith.constant 0 : i32
    %c0_i32_1 = arith.constant 0 : i32
    %c0_i32_2 = arith.constant 0 : i32
    return %c0_i32, %c0_i32_0, %c0_i32_1 : i32, i32, i32
  }
  func.func @transform_2(%arg0: i32) -> (i32, i32) {
    %c0_i32 = arith.constant 0 : i32
    %c0_i32_0 = arith.constant 0 : i32
    %c0_i32_1 = arith.constant 0 : i32
    return %c0_i32, %c0_i32_0 : i32, i32
  }
  func.func @transform_3(%arg0: i32) -> (i32, i32, i32) {
    %c0_i32 = arith.constant 0 : i32
    %c0_i32_0 = arith.constant 0 : i32
    %c0_i32_1 = arith.constant 0 : i32
    %c0_i32_2 = arith.constant 0 : i32
    return %c0_i32, %c0_i32_0, %c0_i32_1 : i32, i32, i32
  }
  func.func @transform_4(%arg0: i32) -> (i32, i32) {
    %c0_i32 = arith.constant 0 : i32
    %c0_i32_0 = arith.constant 0 : i32
    %c0_i32_1 = arith.constant 0 : i32
    return %c0_i32, %c0_i32_0 : i32, i32
  }
  func.func @transform_5(%arg0: i32) -> (i32, i32, i32) {
    %c0_i32 = arith.constant 0 : i32
    %c0_i32_0 = arith.constant 0 : i32
    %c0_i32_1 = arith.constant 0 : i32
    %c0_i32_2 = arith.constant 0 : i32
    return %c0_i32, %c0_i32_0, %c0_i32_1 : i32, i32, i32
  }
  func.func @transform_6(%arg0: i32) -> (i32, i32) {
    %c0_i32 = arith.constant 0 : i32
    %c0_i32_0 = arith.constant 0 : i32
    %c0_i32_1 = arith.constant 0 : i32
    return %c0_i32, %c0_i32_0 : i32, i32
  }
  func.func @transform_7(%arg0: i32) -> (i32, i32, i32) {
    %c0_i32 = arith.constant 0 : i32
    %c0_i32_0 = arith.constant 0 : i32
    %c0_i32_1 = arith.constant 0 : i32
    %c0_i32_2 = arith.constant 0 : i32
    return %c0_i32, %c0_i32_0, %c0_i32_1 : i32, i32, i32
  }
  func.func @transform_8(%arg0: i32) -> (i32, i32) {
    %c0_i32 = arith.constant 0 : i32
    %c0_i32_0 = arith.constant 0 : i32
    %c0_i32_1 = arith.constant 0 : i32
    return %c0_i32, %c0_i32_0 : i32, i32
  }
  func.func @transform_9(%arg0: i32) -> (i32, i32, i32) {
    %c0_i32 = arith.constant 0 : i32
    %c0_i32_0 = arith.constant 0 : i32
    %c0_i32_1 = arith.constant 0 : i32
    %c0_i32_2 = arith.constant 0 : i32
    return %c0_i32, %c0_i32_0, %c0_i32_1 : i32, i32, i32
  }
  func.func @transform_10(%arg0: i32) -> (i32, i32) {
    %c0_i32 = arith.constant 0 : i32
    %c0_i32_0 = arith.constant 0 : i32
    %c0_i32_1 = arith.constant 0 : i32
    return %c0_i32, %c0_i32_0 : i32, i32
  }
  func.func @transform_11(%arg0: i32) -> (i32, i32, i32) {
    %c0_i32 = arith.constant 0 : i32
    %c0_i32_0 = arith.constant 0 : i32
    %c0_i32_1 = arith.constant 0 : i32
    return %arg0, %c0_i32, %c0_i32_0 : i32, i32, i32
  }
  func.func @transform_12(%arg0: i32) -> (i32, i32, i32, i32) {
    %c0_i32 = arith.constant 0 : i32
    %c0_i32_0 = arith.constant 0 : i32
    %c0_i32_1 = arith.constant 0 : i32
    %c0_i32_2 = arith.constant 0 : i32
    return %arg0, %c0_i32, %c0_i32_0, %c0_i32_1 : i32, i32, i32, i32
  }
}

module attributes {stable_mosaic.version = 11 : i64} {
  func.func @kernel(%arg0: i32, %arg1: memref<1x9x144xbf16, #tpu.memory_space<vmem>>, %arg2: memref<1x9x144xbf16, #tpu.memory_space<vmem>>, %arg3: memref<1x9x144xbf16, #tpu.memory_space<vmem>>, %arg4: memref<1x9x144xbf16, #tpu.memory_space<vmem>>, %arg5: memref<6x144x256xbf16, #tpu.memory_space<vmem>>, %arg6: memref<1x256xf32, #tpu.memory_space<vmem>>, %arg7: memref<144x256xbf16, #tpu.memory_space<vmem>>, %arg8: memref<1x256xf32, #tpu.memory_space<vmem>>, %arg9: memref<3x320x256xbf16, #tpu.memory_space<vmem>>, %arg10: memref<1x256xf32, #tpu.memory_space<vmem>>, %arg11: memref<3x320x256xbf16, #tpu.memory_space<vmem>>, %arg12: memref<1x256xf32, #tpu.memory_space<vmem>>, %arg13: memref<3x320x256xbf16, #tpu.memory_space<vmem>>, %arg14: memref<1x256xf32, #tpu.memory_space<vmem>>, %arg15: memref<2x256x256xbf16, #tpu.memory_space<vmem>>, %arg16: memref<1x256xf32, #tpu.memory_space<vmem>>, %arg17: memref<1x2x8x256xbf16, #tpu.memory_space<vmem>>) attributes {dimension_semantics = [#tpu.dimension_semantics<parallel>], iteration_bounds = array<i64: 2>, scalar_prefetch = 0 : i64, scratch_operands = 0 : i64, tpu.core_type = #tpu.core_type<tc>, window_params = [{transform_indices = @transform_0, window_bounds = array<i64: 1, 9, 144>}, {transform_indices = @transform_1, window_bounds = array<i64: 1, 9, 144>}, {transform_indices = @transform_2, window_bounds = array<i64: 1, 9, 144>}, {transform_indices = @transform_3, window_bounds = array<i64: 1, 9, 144>}, {pipeline_mode = #tpu.pipeline_mode<synchronous>, transform_indices = @transform_4, window_bounds = array<i64: 6, 144, 256>}, {pipeline_mode = #tpu.pipeline_mode<synchronous>, transform_indices = @transform_5, window_bounds = array<i64: 1, 256>}, {pipeline_mode = #tpu.pipeline_mode<synchronous>, transform_indices = @transform_6, window_bounds = array<i64: 144, 256>}, {pipeline_mode = #tpu.pipeline_mode<synchronous>, transform_indices = @transform_7, window_bounds = array<i64: 1, 256>}, {pipeline_mode = #tpu.pipeline_mode<synchronous>, transform_indices = @transform_8, window_bounds = array<i64: 3, 320, 256>}, {pipeline_mode = #tpu.pipeline_mode<synchronous>, transform_indices = @transform_9, window_bounds = array<i64: 1, 256>}, {pipeline_mode = #tpu.pipeline_mode<synchronous>, transform_indices = @transform_10, window_bounds = array<i64: 3, 320, 256>}, {pipeline_mode = #tpu.pipeline_mode<synchronous>, transform_indices = @transform_11, window_bounds = array<i64: 1, 256>}, {pipeline_mode = #tpu.pipeline_mode<synchronous>, transform_indices = @transform_12, window_bounds = array<i64: 3, 320, 256>}, {pipeline_mode = #tpu.pipeline_mode<synchronous>, transform_indices = @transform_13, window_bounds = array<i64: 1, 256>}, {pipeline_mode = #tpu.pipeline_mode<synchronous>, transform_indices = @transform_14, window_bounds = array<i64: 2, 256, 256>}, {pipeline_mode = #tpu.pipeline_mode<synchronous>, transform_indices = @transform_15, window_bounds = array<i64: 1, 256>}, {transform_indices = @transform_16, window_bounds = array<i64: 1, 2, 8, 256>}]} {
    %c0 = arith.constant 0 : index
    %c0_0 = arith.constant 0 : index
    %c0_1 = arith.constant 0 : index
    %0 = vector.load %arg1[%c0, %c0_0, %c0_1] : memref<1x9x144xbf16, #tpu.memory_space<vmem>>, vector<1x9x144xbf16>
    %1 = vector.shape_cast %0 : vector<1x9x144xbf16> to vector<9x144xbf16>
    %c0_2 = arith.constant 0 : index
    %c0_3 = arith.constant 0 : index
    %c0_4 = arith.constant 0 : index
    %2 = vector.load %arg2[%c0_2, %c0_3, %c0_4] : memref<1x9x144xbf16, #tpu.memory_space<vmem>>, vector<1x9x144xbf16>
    %3 = vector.shape_cast %2 : vector<1x9x144xbf16> to vector<9x144xbf16>
    %c0_5 = arith.constant 0 : index
    %c0_6 = arith.constant 0 : index
    %c0_7 = arith.constant 0 : index
    %4 = vector.load %arg3[%c0_5, %c0_6, %c0_7] : memref<1x9x144xbf16, #tpu.memory_space<vmem>>, vector<1x9x144xbf16>
    %5 = vector.shape_cast %4 : vector<1x9x144xbf16> to vector<9x144xbf16>
    %c0_8 = arith.constant 0 : index
    %c0_9 = arith.constant 0 : index
    %c0_10 = arith.constant 0 : index
    %6 = vector.load %arg4[%c0_8, %c0_9, %c0_10] : memref<1x9x144xbf16, #tpu.memory_space<vmem>>, vector<1x9x144xbf16>
    %7 = vector.shape_cast %6 : vector<1x9x144xbf16> to vector<9x144xbf16>
    %c0_11 = arith.constant 0 : index
    %c0_12 = arith.constant 0 : index
    %8 = vector.load %arg6[%c0_11, %c0_12] : memref<1x256xf32, #tpu.memory_space<vmem>>, vector<1x256xf32>
    %9 = vector.extract_strided_slice %1 {offsets = [0, 0], sizes = [8, 144], strides = [1, 1]} : vector<9x144xbf16> to vector<8x144xbf16>
    %c0_13 = arith.constant 0 : index
    %c0_14 = arith.constant 0 : index
    %c0_15 = arith.constant 0 : index
    %10 = vector.load %arg5[%c0_13, %c0_14, %c0_15] : memref<6x144x256xbf16, #tpu.memory_space<vmem>>, vector<1x144x256xbf16>
    %11 = vector.shape_cast %10 : vector<1x144x256xbf16> to vector<144x256xbf16>
    %cst = arith.constant dense<0.000000e+00> : vector<8x256xf32>
    %12 = tpu.matmul %9, %11, %cst {dimension_numbers = #tpu.dot_dimension_numbers<[1], [0], [0], [1], [0, 0, 1, 1], [], []>} : vector<8x144xbf16>, vector<144x256xbf16>, vector<8x256xf32> -> vector<8x256xf32>
    %13 = vector.broadcast %8 : vector<1x256xf32> to vector<8x256xf32>
    %14 = arith.addf %13, %12 : vector<8x256xf32>
    %15 = vector.extract_strided_slice %3 {offsets = [0, 0], sizes = [8, 144], strides = [1, 1]} : vector<9x144xbf16> to vector<8x144xbf16>
    %c1 = arith.constant 1 : index
    %c0_16 = arith.constant 0 : index
    %c0_17 = arith.constant 0 : index
    %16 = vector.load %arg5[%c1, %c0_16, %c0_17] : memref<6x144x256xbf16, #tpu.memory_space<vmem>>, vector<1x144x256xbf16>
    %17 = vector.shape_cast %16 : vector<1x144x256xbf16> to vector<144x256xbf16>
    %cst_18 = arith.constant dense<0.000000e+00> : vector<8x256xf32>
    %18 = tpu.matmul %15, %17, %cst_18 {dimension_numbers = #tpu.dot_dimension_numbers<[1], [0], [0], [1], [0, 0, 1, 1], [], []>} : vector<8x144xbf16>, vector<144x256xbf16>, vector<8x256xf32> -> vector<8x256xf32>
    %19 = arith.addf %14, %18 : vector<8x256xf32>
    %20 = vector.extract_strided_slice %5 {offsets = [0, 0], sizes = [8, 144], strides = [1, 1]} : vector<9x144xbf16> to vector<8x144xbf16>
    %c2 = arith.constant 2 : index
    %c0_19 = arith.constant 0 : index
    %c0_20 = arith.constant 0 : index
    %21 = vector.load %arg5[%c2, %c0_19, %c0_20] : memref<6x144x256xbf16, #tpu.memory_space<vmem>>, vector<1x144x256xbf16>
    %22 = vector.shape_cast %21 : vector<1x144x256xbf16> to vector<144x256xbf16>
    %cst_21 = arith.constant dense<0.000000e+00> : vector<8x256xf32>
    %23 = tpu.matmul %20, %22, %cst_21 {dimension_numbers = #tpu.dot_dimension_numbers<[1], [0], [0], [1], [0, 0, 1, 1], [], []>} : vector<8x144xbf16>, vector<144x256xbf16>, vector<8x256xf32> -> vector<8x256xf32>
    %24 = arith.addf %19, %23 : vector<8x256xf32>
    %25 = vector.extract_strided_slice %7 {offsets = [0, 0], sizes = [8, 144], strides = [1, 1]} : vector<9x144xbf16> to vector<8x144xbf16>
    %c3 = arith.constant 3 : index
    %c0_22 = arith.constant 0 : index
    %c0_23 = arith.constant 0 : index
    %26 = vector.load %arg5[%c3, %c0_22, %c0_23] : memref<6x144x256xbf16, #tpu.memory_space<vmem>>, vector<1x144x256xbf16>
    %27 = vector.shape_cast %26 : vector<1x144x256xbf16> to vector<144x256xbf16>
    %cst_24 = arith.constant dense<0.000000e+00> : vector<8x256xf32>
    %28 = tpu.matmul %25, %27, %cst_24 {dimension_numbers = #tpu.dot_dimension_numbers<[1], [0], [0], [1], [0, 0, 1, 1], [], []>} : vector<8x144xbf16>, vector<144x256xbf16>, vector<8x256xf32> -> vector<8x256xf32>
    %29 = arith.addf %24, %28 : vector<8x256xf32>
    %30 = vector.extract_strided_slice %1 {offsets = [1, 0], sizes = [8, 144], strides = [1, 1]} : vector<9x144xbf16> to vector<8x144xbf16>
    %c4 = arith.constant 4 : index
    %c0_25 = arith.constant 0 : index
    %c0_26 = arith.constant 0 : index
    %31 = vector.load %arg5[%c4, %c0_25, %c0_26] : memref<6x144x256xbf16, #tpu.memory_space<vmem>>, vector<1x144x256xbf16>
    %32 = vector.shape_cast %31 : vector<1x144x256xbf16> to vector<144x256xbf16>
    %cst_27 = arith.constant dense<0.000000e+00> : vector<8x256xf32>
    %33 = tpu.matmul %30, %32, %cst_27 {dimension_numbers = #tpu.dot_dimension_numbers<[1], [0], [0], [1], [0, 0, 1, 1], [], []>} : vector<8x144xbf16>, vector<144x256xbf16>, vector<8x256xf32> -> vector<8x256xf32>
    %34 = arith.addf %29, %33 : vector<8x256xf32>
    %35 = vector.extract_strided_slice %3 {offsets = [1, 0], sizes = [8, 144], strides = [1, 1]} : vector<9x144xbf16> to vector<8x144xbf16>
    %c5 = arith.constant 5 : index
    %c0_28 = arith.constant 0 : index
    %c0_29 = arith.constant 0 : index
    %36 = vector.load %arg5[%c5, %c0_28, %c0_29] : memref<6x144x256xbf16, #tpu.memory_space<vmem>>, vector<1x144x256xbf16>
    %37 = vector.shape_cast %36 : vector<1x144x256xbf16> to vector<144x256xbf16>
    %cst_30 = arith.constant dense<0.000000e+00> : vector<8x256xf32>
    %38 = tpu.matmul %35, %37, %cst_30 {dimension_numbers = #tpu.dot_dimension_numbers<[1], [0], [0], [1], [0, 0, 1, 1], [], []>} : vector<8x144xbf16>, vector<144x256xbf16>, vector<8x256xf32> -> vector<8x256xf32>
    %39 = arith.addf %34, %38 : vector<8x256xf32>
    %40 = vector.extract_strided_slice %7 {offsets = [0, 0], sizes = [8, 144], strides = [1, 1]} : vector<9x144xbf16> to vector<8x144xbf16>
    %c0_31 = arith.constant 0 : index
    %c0_32 = arith.constant 0 : index
    %41 = vector.load %arg7[%c0_31, %c0_32] : memref<144x256xbf16, #tpu.memory_space<vmem>>, vector<144x256xbf16>
    %cst_33 = arith.constant dense<0.000000e+00> : vector<8x256xf32>
    %42 = tpu.matmul %40, %41, %cst_33 {dimension_numbers = #tpu.dot_dimension_numbers<[1], [0], [0], [1], [0, 0, 1, 1], [], []>} : vector<8x144xbf16>, vector<144x256xbf16>, vector<8x256xf32> -> vector<8x256xf32>
    %c0_34 = arith.constant 0 : index
    %c0_35 = arith.constant 0 : index
    %43 = vector.load %arg8[%c0_34, %c0_35] : memref<1x256xf32, #tpu.memory_space<vmem>>, vector<1x256xf32>
    %44 = vector.broadcast %43 : vector<1x256xf32> to vector<8x256xf32>
    %45 = arith.addf %42, %44 : vector<8x256xf32>
    %cst_36 = arith.constant 0.000000e+00 : f32
    %46 = vector.broadcast %cst_36 : f32 to vector<8x256xf32>
    %47 = arith.maximumf %39, %46 : vector<8x256xf32>
    %48 = arith.truncf %47 : vector<8x256xf32> to vector<8x256xbf16>
    %cst_37 = arith.constant 0.000000e+00 : bf16
    %49 = vector.broadcast %cst_37 : bf16 to vector<8x32xbf16>
    %50 = tpu.concatenate %49, %48, %49 in 1 : vector<8x32xbf16>, vector<8x256xbf16>, vector<8x32xbf16> -> vector<8x320xbf16>
    %cst_38 = arith.constant 0.000000e+00 : bf16
    %51 = vector.broadcast %cst_38 : bf16 to vector<1x320xbf16>
    %52 = tpu.concatenate %51, %50, %51 in 0 : vector<1x320xbf16>, vector<8x320xbf16>, vector<1x320xbf16> -> vector<10x320xbf16>
    %c0_39 = arith.constant 0 : index
    %c0_40 = arith.constant 0 : index
    %53 = vector.load %arg10[%c0_39, %c0_40] : memref<1x256xf32, #tpu.memory_space<vmem>>, vector<1x256xf32>
    %54 = vector.extract_strided_slice %52 {offsets = [0, 0], sizes = [8, 320], strides = [1, 1]} : vector<10x320xbf16> to vector<8x320xbf16>
    %c0_41 = arith.constant 0 : index
    %c0_42 = arith.constant 0 : index
    %c0_43 = arith.constant 0 : index
    %55 = vector.load %arg9[%c0_41, %c0_42, %c0_43] : memref<3x320x256xbf16, #tpu.memory_space<vmem>>, vector<1x320x256xbf16>
    %56 = vector.shape_cast %55 : vector<1x320x256xbf16> to vector<320x256xbf16>
    %cst_44 = arith.constant dense<0.000000e+00> : vector<8x256xf32>
    %57 = tpu.matmul %54, %56, %cst_44 {dimension_numbers = #tpu.dot_dimension_numbers<[1], [0], [0], [1], [0, 0, 1, 1], [], []>} : vector<8x320xbf16>, vector<320x256xbf16>, vector<8x256xf32> -> vector<8x256xf32>
    %58 = vector.broadcast %53 : vector<1x256xf32> to vector<8x256xf32>
    %59 = arith.addf %58, %57 : vector<8x256xf32>
    %60 = vector.extract_strided_slice %52 {offsets = [1, 0], sizes = [8, 320], strides = [1, 1]} : vector<10x320xbf16> to vector<8x320xbf16>
    %c1_45 = arith.constant 1 : index
    %c0_46 = arith.constant 0 : index
    %c0_47 = arith.constant 0 : index
    %61 = vector.load %arg9[%c1_45, %c0_46, %c0_47] : memref<3x320x256xbf16, #tpu.memory_space<vmem>>, vector<1x320x256xbf16>
    %62 = vector.shape_cast %61 : vector<1x320x256xbf16> to vector<320x256xbf16>
    %cst_48 = arith.constant dense<0.000000e+00> : vector<8x256xf32>
    %63 = tpu.matmul %60, %62, %cst_48 {dimension_numbers = #tpu.dot_dimension_numbers<[1], [0], [0], [1], [0, 0, 1, 1], [], []>} : vector<8x320xbf16>, vector<320x256xbf16>, vector<8x256xf32> -> vector<8x256xf32>
    %64 = arith.addf %59, %63 : vector<8x256xf32>
    %65 = vector.extract_strided_slice %52 {offsets = [2, 0], sizes = [8, 320], strides = [1, 1]} : vector<10x320xbf16> to vector<8x320xbf16>
    %c2_49 = arith.constant 2 : index
    %c0_50 = arith.constant 0 : index
    %c0_51 = arith.constant 0 : index
    %66 = vector.load %arg9[%c2_49, %c0_50, %c0_51] : memref<3x320x256xbf16, #tpu.memory_space<vmem>>, vector<1x320x256xbf16>
    %67 = vector.shape_cast %66 : vector<1x320x256xbf16> to vector<320x256xbf16>
    %cst_52 = arith.constant dense<0.000000e+00> : vector<8x256xf32>
    %68 = tpu.matmul %65, %67, %cst_52 {dimension_numbers = #tpu.dot_dimension_numbers<[1], [0], [0], [1], [0, 0, 1, 1], [], []>} : vector<8x320xbf16>, vector<320x256xbf16>, vector<8x256xf32> -> vector<8x256xf32>
    %69 = arith.addf %64, %68 : vector<8x256xf32>
    %70 = arith.addf %69, %45 : vector<8x256xf32>
    %cst_53 = arith.constant 0.000000e+00 : f32
    %71 = vector.broadcast %cst_53 : f32 to vector<8x256xf32>
    %72 = arith.maximumf %70, %71 : vector<8x256xf32>
    %73 = arith.truncf %72 : vector<8x256xf32> to vector<8x256xbf16>
    %cst_54 = arith.constant 0.000000e+00 : bf16
    %74 = vector.broadcast %cst_54 : bf16 to vector<8x32xbf16>
    %75 = tpu.concatenate %74, %73, %74 in 1 : vector<8x32xbf16>, vector<8x256xbf16>, vector<8x32xbf16> -> vector<8x320xbf16>
    %cst_55 = arith.constant 0.000000e+00 : bf16
    %76 = vector.broadcast %cst_55 : bf16 to vector<1x320xbf16>
    %77 = tpu.concatenate %76, %75, %76 in 0 : vector<1x320xbf16>, vector<8x320xbf16>, vector<1x320xbf16> -> vector<10x320xbf16>
    %c0_56 = arith.constant 0 : index
    %c0_57 = arith.constant 0 : index
    %78 = vector.load %arg12[%c0_56, %c0_57] : memref<1x256xf32, #tpu.memory_space<vmem>>, vector<1x256xf32>
    %79 = vector.extract_strided_slice %77 {offsets = [0, 0], sizes = [8, 320], strides = [1, 1]} : vector<10x320xbf16> to vector<8x320xbf16>
    %c0_58 = arith.constant 0 : index
    %c0_59 = arith.constant 0 : index
    %c0_60 = arith.constant 0 : index
    %80 = vector.load %arg11[%c0_58, %c0_59, %c0_60] : memref<3x320x256xbf16, #tpu.memory_space<vmem>>, vector<1x320x256xbf16>
    %81 = vector.shape_cast %80 : vector<1x320x256xbf16> to vector<320x256xbf16>
    %cst_61 = arith.constant dense<0.000000e+00> : vector<8x256xf32>
    %82 = tpu.matmul %79, %81, %cst_61 {dimension_numbers = #tpu.dot_dimension_numbers<[1], [0], [0], [1], [0, 0, 1, 1], [], []>} : vector<8x320xbf16>, vector<320x256xbf16>, vector<8x256xf32> -> vector<8x256xf32>
    %83 = vector.broadcast %78 : vector<1x256xf32> to vector<8x256xf32>
    %84 = arith.addf %83, %82 : vector<8x256xf32>
    %85 = vector.extract_strided_slice %77 {offsets = [1, 0], sizes = [8, 320], strides = [1, 1]} : vector<10x320xbf16> to vector<8x320xbf16>
    %c1_62 = arith.constant 1 : index
    %c0_63 = arith.constant 0 : index
    %c0_64 = arith.constant 0 : index
    %86 = vector.load %arg11[%c1_62, %c0_63, %c0_64] : memref<3x320x256xbf16, #tpu.memory_space<vmem>>, vector<1x320x256xbf16>
    %87 = vector.shape_cast %86 : vector<1x320x256xbf16> to vector<320x256xbf16>
    %cst_65 = arith.constant dense<0.000000e+00> : vector<8x256xf32>
    %88 = tpu.matmul %85, %87, %cst_65 {dimension_numbers = #tpu.dot_dimension_numbers<[1], [0], [0], [1], [0, 0, 1, 1], [], []>} : vector<8x320xbf16>, vector<320x256xbf16>, vector<8x256xf32> -> vector<8x256xf32>
    %89 = arith.addf %84, %88 : vector<8x256xf32>
    %90 = vector.extract_strided_slice %77 {offsets = [2, 0], sizes = [8, 320], strides = [1, 1]} : vector<10x320xbf16> to vector<8x320xbf16>
    %c2_66 = arith.constant 2 : index
    %c0_67 = arith.constant 0 : index
    %c0_68 = arith.constant 0 : index
    %91 = vector.load %arg11[%c2_66, %c0_67, %c0_68] : memref<3x320x256xbf16, #tpu.memory_space<vmem>>, vector<1x320x256xbf16>
    %92 = vector.shape_cast %91 : vector<1x320x256xbf16> to vector<320x256xbf16>
    %cst_69 = arith.constant dense<0.000000e+00> : vector<8x256xf32>
    %93 = tpu.matmul %90, %92, %cst_69 {dimension_numbers = #tpu.dot_dimension_numbers<[1], [0], [0], [1], [0, 0, 1, 1], [], []>} : vector<8x320xbf16>, vector<320x256xbf16>, vector<8x256xf32> -> vector<8x256xf32>
    %94 = arith.addf %89, %93 : vector<8x256xf32>
    %95 = arith.extf %73 : vector<8x256xbf16> to vector<8x256xf32>
    %cst_70 = arith.constant 0.000000e+00 : f32
    %96 = vector.broadcast %cst_70 : f32 to vector<8x256xf32>
    %97 = arith.maximumf %94, %96 : vector<8x256xf32>
    %98 = arith.truncf %97 : vector<8x256xf32> to vector<8x256xbf16>
    %cst_71 = arith.constant 0.000000e+00 : bf16
    %99 = vector.broadcast %cst_71 : bf16 to vector<8x32xbf16>
    %100 = tpu.concatenate %99, %98, %99 in 1 : vector<8x32xbf16>, vector<8x256xbf16>, vector<8x32xbf16> -> vector<8x320xbf16>
    %cst_72 = arith.constant 0.000000e+00 : bf16
    %101 = vector.broadcast %cst_72 : bf16 to vector<1x320xbf16>
    %102 = tpu.concatenate %101, %100, %101 in 0 : vector<1x320xbf16>, vector<8x320xbf16>, vector<1x320xbf16> -> vector<10x320xbf16>
    %c0_73 = arith.constant 0 : index
    %c0_74 = arith.constant 0 : index
    %103 = vector.load %arg14[%c0_73, %c0_74] : memref<1x256xf32, #tpu.memory_space<vmem>>, vector<1x256xf32>
    %104 = vector.extract_strided_slice %102 {offsets = [0, 0], sizes = [8, 320], strides = [1, 1]} : vector<10x320xbf16> to vector<8x320xbf16>
    %c0_75 = arith.constant 0 : index
    %c0_76 = arith.constant 0 : index
    %c0_77 = arith.constant 0 : index
    %105 = vector.load %arg13[%c0_75, %c0_76, %c0_77] : memref<3x320x256xbf16, #tpu.memory_space<vmem>>, vector<1x320x256xbf16>
    %106 = vector.shape_cast %105 : vector<1x320x256xbf16> to vector<320x256xbf16>
    %cst_78 = arith.constant dense<0.000000e+00> : vector<8x256xf32>
    %107 = tpu.matmul %104, %106, %cst_78 {dimension_numbers = #tpu.dot_dimension_numbers<[1], [0], [0], [1], [0, 0, 1, 1], [], []>} : vector<8x320xbf16>, vector<320x256xbf16>, vector<8x256xf32> -> vector<8x256xf32>
    %108 = vector.broadcast %103 : vector<1x256xf32> to vector<8x256xf32>
    %109 = arith.addf %108, %107 : vector<8x256xf32>
    %110 = vector.extract_strided_slice %102 {offsets = [1, 0], sizes = [8, 320], strides = [1, 1]} : vector<10x320xbf16> to vector<8x320xbf16>
    %c1_79 = arith.constant 1 : index
    %c0_80 = arith.constant 0 : index
    %c0_81 = arith.constant 0 : index
    %111 = vector.load %arg13[%c1_79, %c0_80, %c0_81] : memref<3x320x256xbf16, #tpu.memory_space<vmem>>, vector<1x320x256xbf16>
    %112 = vector.shape_cast %111 : vector<1x320x256xbf16> to vector<320x256xbf16>
    %cst_82 = arith.constant dense<0.000000e+00> : vector<8x256xf32>
    %113 = tpu.matmul %110, %112, %cst_82 {dimension_numbers = #tpu.dot_dimension_numbers<[1], [0], [0], [1], [0, 0, 1, 1], [], []>} : vector<8x320xbf16>, vector<320x256xbf16>, vector<8x256xf32> -> vector<8x256xf32>
    %114 = arith.addf %109, %113 : vector<8x256xf32>
    %115 = vector.extract_strided_slice %102 {offsets = [2, 0], sizes = [8, 320], strides = [1, 1]} : vector<10x320xbf16> to vector<8x320xbf16>
    %c2_83 = arith.constant 2 : index
    %c0_84 = arith.constant 0 : index
    %c0_85 = arith.constant 0 : index
    %116 = vector.load %arg13[%c2_83, %c0_84, %c0_85] : memref<3x320x256xbf16, #tpu.memory_space<vmem>>, vector<1x320x256xbf16>
    %117 = vector.shape_cast %116 : vector<1x320x256xbf16> to vector<320x256xbf16>
    %cst_86 = arith.constant dense<0.000000e+00> : vector<8x256xf32>
    %118 = tpu.matmul %115, %117, %cst_86 {dimension_numbers = #tpu.dot_dimension_numbers<[1], [0], [0], [1], [0, 0, 1, 1], [], []>} : vector<8x320xbf16>, vector<320x256xbf16>, vector<8x256xf32> -> vector<8x256xf32>
    %119 = arith.addf %114, %118 : vector<8x256xf32>
    %120 = arith.addf %119, %95 : vector<8x256xf32>
    %cst_87 = arith.constant 0.000000e+00 : f32
    %121 = vector.broadcast %cst_87 : f32 to vector<8x256xf32>
    %122 = arith.maximumf %120, %121 : vector<8x256xf32>
    %123 = arith.truncf %122 : vector<8x256xf32> to vector<8x256xbf16>
    %c0_88 = arith.constant 0 : index
    %c0_89 = arith.constant 0 : index
    %c0_90 = arith.constant 0 : index
    %124 = vector.load %arg15[%c0_88, %c0_89, %c0_90] : memref<2x256x256xbf16, #tpu.memory_space<vmem>>, vector<1x256x256xbf16>
    %125 = vector.shape_cast %124 : vector<1x256x256xbf16> to vector<256x256xbf16>
    %cst_91 = arith.constant dense<0.000000e+00> : vector<8x256xf32>
    %126 = tpu.matmul %123, %125, %cst_91 {dimension_numbers = #tpu.dot_dimension_numbers<[1], [0], [0], [1], [0, 0, 1, 1], [], []>} : vector<8x256xbf16>, vector<256x256xbf16>, vector<8x256xf32> -> vector<8x256xf32>
    %c0_92 = arith.constant 0 : index
    %c0_93 = arith.constant 0 : index
    %127 = vector.load %arg16[%c0_92, %c0_93] : memref<1x256xf32, #tpu.memory_space<vmem>>, vector<1x256xf32>
    %128 = vector.broadcast %127 : vector<1x256xf32> to vector<8x256xf32>
    %129 = arith.addf %126, %128 : vector<8x256xf32>
    %cst_94 = arith.constant 0.000000e+00 : f32
    %130 = vector.broadcast %cst_94 : f32 to vector<8x256xf32>
    %131 = arith.maximumf %129, %130 : vector<8x256xf32>
    %132 = arith.truncf %131 : vector<8x256xf32> to vector<8x256xbf16>
    %c0_95 = arith.constant 0 : index
    %c0_96 = arith.constant 0 : index
    %c0_97 = arith.constant 0 : index
    %c0_98 = arith.constant 0 : index
    %133 = vector.load %arg17[%c0_95, %c0_96, %c0_97, %c0_98] : memref<1x2x8x256xbf16, #tpu.memory_space<vmem>>, vector<1x1x8x256xbf16>
    %134 = vector.shape_cast %133 : vector<1x1x8x256xbf16> to vector<8x256xbf16>
    %135 = vector.shape_cast %132 : vector<8x256xbf16> to vector<1x1x8x256xbf16>
    tpu.vector_store %arg17[%c0_95, %c0_96, %c0_97, %c0_98], %135 {strides = array<i32>} : memref<1x2x8x256xbf16, #tpu.memory_space<vmem>>, vector<1x1x8x256xbf16>,
    %c1_99 = arith.constant 1 : index
    %c0_100 = arith.constant 0 : index
    %c0_101 = arith.constant 0 : index
    %136 = vector.load %arg15[%c1_99, %c0_100, %c0_101] : memref<2x256x256xbf16, #tpu.memory_space<vmem>>, vector<1x256x256xbf16>
    %137 = vector.shape_cast %136 : vector<1x256x256xbf16> to vector<256x256xbf16>
    %cst_102 = arith.constant dense<0.000000e+00> : vector<8x256xf32>
    %138 = tpu.matmul %123, %137, %cst_102 {dimension_numbers = #tpu.dot_dimension_numbers<[1], [0], [0], [1], [0, 0, 1, 1], [], []>} : vector<8x256xbf16>, vector<256x256xbf16>, vector<8x256xf32> -> vector<8x256xf32>
    %c0_103 = arith.constant 0 : index
    %c0_104 = arith.constant 0 : index
    %139 = vector.load %arg16[%c0_103, %c0_104] : memref<1x256xf32, #tpu.memory_space<vmem>>, vector<1x256xf32>
    %140 = vector.broadcast %139 : vector<1x256xf32> to vector<8x256xf32>
    %141 = arith.addf %138, %140 : vector<8x256xf32>
    %cst_105 = arith.constant 0.000000e+00 : f32
    %142 = vector.broadcast %cst_105 : f32 to vector<8x256xf32>
    %143 = arith.maximumf %141, %142 : vector<8x256xf32>
    %144 = arith.truncf %143 : vector<8x256xf32> to vector<8x256xbf16>
    %c0_106 = arith.constant 0 : index
    %c1_107 = arith.constant 1 : index
    %c0_108 = arith.constant 0 : index
    %c0_109 = arith.constant 0 : index
    %145 = vector.load %arg17[%c0_106, %c1_107, %c0_108, %c0_109] : memref<1x2x8x256xbf16, #tpu.memory_space<vmem>>, vector<1x1x8x256xbf16>
    %146 = vector.shape_cast %145 : vector<1x1x8x256xbf16> to vector<8x256xbf16>
    %147 = vector.shape_cast %144 : vector<8x256xbf16> to vector<1x1x8x256xbf16>
    tpu.vector_store %arg17[%c0_106, %c1_107, %c0_108, %c0_109], %147 {strides = array<i32>} : memref<1x2x8x256xbf16, #tpu.memory_space<vmem>>, vector<1x1x8x256xbf16>,
    return
  }
  func.func @transform_0(%arg0: i32) -> (i32, i32, i32) {
    %c0_i32 = arith.constant 0 : i32
    %c0_i32_0 = arith.constant 0 : i32
    %c0_i32_1 = arith.constant 0 : i32
    return %arg0, %c0_i32, %c0_i32_0 : i32, i32, i32
  }
  func.func @transform_1(%arg0: i32) -> (i32, i32, i32) {
    %c0_i32 = arith.constant 0 : i32
    %c0_i32_0 = arith.constant 0 : i32
    %c0_i32_1 = arith.constant 0 : i32
    return %arg0, %c0_i32, %c0_i32_0 : i32, i32, i32
  }
  func.func @transform_2(%arg0: i32) -> (i32, i32, i32) {
    %c0_i32 = arith.constant 0 : i32
    %c0_i32_0 = arith.constant 0 : i32
    %c0_i32_1 = arith.constant 0 : i32
    return %arg0, %c0_i32, %c0_i32_0 : i32, i32, i32
  }
  func.func @transform_3(%arg0: i32) -> (i32, i32, i32) {
    %c0_i32 = arith.constant 0 : i32
    %c0_i32_0 = arith.constant 0 : i32
    %c0_i32_1 = arith.constant 0 : i32
    return %arg0, %c0_i32, %c0_i32_0 : i32, i32, i32
  }
  func.func @transform_4(%arg0: i32) -> (i32, i32, i32) {
    %c0_i32 = arith.constant 0 : i32
    %c0_i32_0 = arith.constant 0 : i32
    %c0_i32_1 = arith.constant 0 : i32
    %c0_i32_2 = arith.constant 0 : i32
    return %c0_i32, %c0_i32_0, %c0_i32_1 : i32, i32, i32
  }
  func.func @transform_5(%arg0: i32) -> (i32, i32) {
    %c0_i32 = arith.constant 0 : i32
    %c0_i32_0 = arith.constant 0 : i32
    %c0_i32_1 = arith.constant 0 : i32
    return %c0_i32, %c0_i32_0 : i32, i32
  }
  func.func @transform_6(%arg0: i32) -> (i32, i32) {
    %c0_i32 = arith.constant 0 : i32
    %c0_i32_0 = arith.constant 0 : i32
    %c0_i32_1 = arith.constant 0 : i32
    return %c0_i32, %c0_i32_0 : i32, i32
  }
  func.func @transform_7(%arg0: i32) -> (i32, i32) {
    %c0_i32 = arith.constant 0 : i32
    %c0_i32_0 = arith.constant 0 : i32
    %c0_i32_1 = arith.constant 0 : i32
    return %c0_i32, %c0_i32_0 : i32, i32
  }
  func.func @transform_8(%arg0: i32) -> (i32, i32, i32) {
    %c0_i32 = arith.constant 0 : i32
    %c0_i32_0 = arith.constant 0 : i32
    %c0_i32_1 = arith.constant 0 : i32
    %c0_i32_2 = arith.constant 0 : i32
    return %c0_i32, %c0_i32_0, %c0_i32_1 : i32, i32, i32
  }
  func.func @transform_9(%arg0: i32) -> (i32, i32) {
    %c0_i32 = arith.constant 0 : i32
    %c0_i32_0 = arith.constant 0 : i32
    %c0_i32_1 = arith.constant 0 : i32
    return %c0_i32, %c0_i32_0 : i32, i32
  }
  func.func @transform_10(%arg0: i32) -> (i32, i32, i32) {
    %c0_i32 = arith.constant 0 : i32
    %c0_i32_0 = arith.constant 0 : i32
    %c0_i32_1 = arith.constant 0 : i32
    %c0_i32_2 = arith.constant 0 : i32
    return %c0_i32, %c0_i32_0, %c0_i32_1 : i32, i32, i32
  }
  func.func @transform_11(%arg0: i32) -> (i32, i32) {
    %c0_i32 = arith.constant 0 : i32
    %c0_i32_0 = arith.constant 0 : i32
    %c0_i32_1 = arith.constant 0 : i32
    return %c0_i32, %c0_i32_0 : i32, i32
  }
  func.func @transform_12(%arg0: i32) -> (i32, i32, i32) {
    %c0_i32 = arith.constant 0 : i32
    %c0_i32_0 = arith.constant 0 : i32
    %c0_i32_1 = arith.constant 0 : i32
    %c0_i32_2 = arith.constant 0 : i32
    return %c0_i32, %c0_i32_0, %c0_i32_1 : i32, i32, i32
  }
  func.func @transform_13(%arg0: i32) -> (i32, i32) {
    %c0_i32 = arith.constant 0 : i32
    %c0_i32_0 = arith.constant 0 : i32
    %c0_i32_1 = arith.constant 0 : i32
    return %c0_i32, %c0_i32_0 : i32, i32
  }
  func.func @transform_14(%arg0: i32) -> (i32, i32, i32) {
    %c0_i32 = arith.constant 0 : i32
    %c0_i32_0 = arith.constant 0 : i32
    %c0_i32_1 = arith.constant 0 : i32
    %c0_i32_2 = arith.constant 0 : i32
    return %c0_i32, %c0_i32_0, %c0_i32_1 : i32, i32, i32
  }
  func.func @transform_15(%arg0: i32) -> (i32, i32) {
    %c0_i32 = arith.constant 0 : i32
    %c0_i32_0 = arith.constant 0 : i32
    %c0_i32_1 = arith.constant 0 : i32
    return %c0_i32, %c0_i32_0 : i32, i32
  }
  func.func @transform_16(%arg0: i32) -> (i32, i32, i32, i32) {
    %c0_i32 = arith.constant 0 : i32
    %c0_i32_0 = arith.constant 0 : i32
    %c0_i32_1 = arith.constant 0 : i32
    %c0_i32_2 = arith.constant 0 : i32
    return %arg0, %c0_i32, %c0_i32_0, %c0_i32_1 : i32, i32, i32, i32
  }
}

</mosaic_0001>

<llo_original>
// kernel: tile.46
$region0: #{tile.46}
  #allocation0 [shape = 's32[1]{0}', space=sflag, size = 0x4, scoped, tag = 'scoped memory for tile.46']
  %s0 = inlined_call_operand.vmem [shape: f32[16], index: 0, kind: input, shape index: {}]
  %s1 = inlined_call_operand.vmem [shape: f32[16,16], index: 1, kind: output, shape index: {}]
  // Predicated region
  $region2: #{tile.46} parent=0 // pred_check
    _
  $region3: #{tile.46} parent=0 // pred_check_branch
    %3 = sbr.rel (0) target = $region5
  $region4: #{tile.46} parent=0 // pred_region
    _
  $region5: #{tile.46} parent=0 // pred_fallthru
    _
  %v4 = vld [vmem:[%s0] ss:$0 sm:$0xff]
  %5 = vst [vmem:[%s1] sm:$0xff] %v4
  %s6 = scalar_lea.vmem %s1, 8
  %7 = vst [vmem:[%s6] sm:$0xff] %v4

// kernel: tile.47
$region0: #{tile.47}
  %s0 = inlined_call_operand.vmem [shape: f32[16,16], index: 0, kind: input, shape index: {}]
  %s1 = inlined_call_operand.vmem [shape: f32[1,256], index: 1, kind: output, shape index: {}]
  $region1: #{tile.47} parent=0
    #allocation0 [shape = 'u8[8192]{0}', space=vmem, size = 0x2000, scoped, tag = 'scoped mem for output reshape']
    %s2 = smov 3
    %v3 = vld [vmem:[%s0] ss:$8 sm:%s2]
    %vm4 = vcmask 130048
    %5 = vst.msk [vmem:[#allocation0] ss:$8 sm:$0x3] %vm4, %v3
    %s6 = scalar_lea.vmem %s0, 7
    %s7 = smov 3
    %v8 = vld [vmem:[%s6] ss:$8 sm:%s7]
    %9 = vrot.lane.b32.xlu0 %v8, 112
    %v10 = vpop.permute.xlu0 %9
    %vm11 = vcmask 1048448
    %12 = vst.msk [vmem:[#allocation0] ss:$8 sm:$0x3] %vm11, %v10
    %s13 = scalar_lea.vmem %s0, 6
    %s14 = smov 3
    %v15 = vld [vmem:[%s13] ss:$8 sm:%s14]
    %16 = vrot.lane.b32.xlu0 %v15, 96
    %v17 = vpop.permute.xlu0 %16
    %vm18 = vcmask 917248
    %19 = vst.msk [vmem:[#allocation0] ss:$8 sm:$0x3] %vm18, %v17
    %s20 = scalar_lea.vmem %s0, 5
    %s21 = smov 3
    %v22 = vld [vmem:[%s20] ss:$8 sm:%s21]
    %23 = vrot.lane.b32.xlu0 %v22, 80
    %v24 = vpop.permute.xlu0 %23
    %vm25 = vcmask 786048
    %26 = vst.msk [vmem:[#allocation0] ss:$8 sm:$0x3] %vm25, %v24
    %s27 = scalar_lea.vmem %s0, 4
    %s28 = smov 3
    %v29 = vld [vmem:[%s27] ss:$8 sm:%s28]
    %30 = vrot.lane.b32.xlu0 %v29, 64
    %v31 = vpop.permute.xlu0 %30
    %vm32 = vcmask 654848
    %33 = vst.msk [vmem:[#allocation0] ss:$8 sm:$0x3] %vm32, %v31
    %s34 = scalar_lea.vmem %s0, 3
    %s35 = smov 3
    %v36 = vld [vmem:[%s34] ss:$8 sm:%s35]
    %37 = vrot.lane.b32.xlu0 %v36, 48
    %v38 = vpop.permute.xlu0 %37
    %vm39 = vcmask 523648
    %40 = vst.msk [vmem:[#allocation0] ss:$8 sm:$0x3] %vm39, %v38
    %s41 = scalar_lea.vmem %s0, 2
    %s42 = smov 3
    %v43 = vld [vmem:[%s41] ss:$8 sm:%s42]
    %44 = vrot.lane.b32.xlu0 %v43, 32
    %v45 = vpop.permute.xlu0 %44
    %vm46 = vcmask 392448
    %47 = vst.msk [vmem:[#allocation0] ss:$8 sm:$0x3] %vm46, %v45
    %s48 = scalar_lea.vmem %s0, 1
    %s49 = smov 3
    %v50 = vld [vmem:[%s48] ss:$8 sm:%s49]
    %51 = vrot.lane.b32.xlu0 %v50, 16
    %v52 = vpop.permute.xlu0 %51
    %vm53 = vcmask 261248
    %54 = vst.msk [vmem:[#allocation0] ss:$8 sm:$0x3] %vm53, %v52
    %s56 = sshll.u32 1, 1
    %s57 = ssub.s32 %s56, 1
    %v59 = vld [vmem:[#allocation0] sm:%s57]
    %s60 = sshll.u32 1, 1
    %s61 = ssub.s32 %s60, 1
    %62 = vst [vmem:[%s1] sm:%s61] %v59
    %s63 = scalar_lea.vmem [#allocation0], 8
    %v64 = vld [vmem:[%s63] sm:%s57]
    %s65 = sshll.u32 1, 1
    %s66 = ssub.s32 %s65, 1
    %s67 = scalar_lea.vmem %s1, 1
    %68 = vst [vmem:[%s67] sm:%s66] %v64

// kernel: run.2
$region0: #{run.2}
  #allocation0 [shape = 'u32[]', space=smem, size = 0x4, offset = 0x4, fixed_abs, tag = 'smem constant byte address 0x4 - core index']
  #allocation1 [shape = 'u32[144,128]{1,0:T(1,128)}', space=vmem, size = 0x12000, scoped, tag = 'internal scratch']
  %s0 = inlined_call_operand.vmem [shape: bf16[2,18,288], index: 0, kind: input, shape index: {}]
  %s1 = inlined_call_operand.vmem [shape: bf16[3,288,256], index: 1, kind: input, shape index: {}]
  %s2 = inlined_call_operand.vmem [shape: f32[1,256], index: 2, kind: input, shape index: {}]
  %s3 = inlined_call_operand.vmem [shape: bf16[3,288,256], index: 3, kind: input, shape index: {}]
  %s4 = inlined_call_operand.vmem [shape: f32[1,256], index: 4, kind: input, shape index: {}]
  %s5 = inlined_call_operand.vmem [shape: bf16[3,288,256], index: 5, kind: input, shape index: {}]
  %s6 = inlined_call_operand.vmem [shape: f32[1,256], index: 6, kind: input, shape index: {}]
  %s7 = inlined_call_operand.vmem [shape: bf16[3,288,256], index: 7, kind: input, shape index: {}]
  %s8 = inlined_call_operand.vmem [shape: f32[1,256], index: 8, kind: input, shape index: {}]
  %s9 = inlined_call_operand.vmem [shape: bf16[1,256,256], index: 9, kind: input, shape index: {}]
  %s10 = inlined_call_operand.vmem [shape: f32[1,256], index: 10, kind: input, shape index: {}]
  %s11 = inlined_call_operand.vmem [shape: bf16[2,16,256], index: 11, kind: output, shape index: {0}]
  %s12 = inlined_call_operand.vmem [shape: bf16[2,1,16,256], index: 12, kind: output, shape index: {1}]
  %13 = xla_tuple %s11, %s12
  %s14 = sld [smem:[#allocation0]]
  $region85: #{run.2} parent=0
    _
  %s16 = ssub.s32 1, %s14
  %s17 = scalar_select 0, %s16, %s14
  loop: start=0, step=1, limit=4
  $region2: #{run.2} parent=0 // loop_pre_header
    _
  $region3: #{run.2} parent=0 // loop_header
    %s19 = sphi 0, %s23
    %p20 = scmp.ge.s32.totalorder %s19, 4
    %s29 = sphi 0, %s31
    %s32 = sphi 0, %s29
    %s33 = sphi 0, %s32
    %s49 = sphi 0, %s33
    %s53 = sphi 0, %s53
    %s55 = sphi 0, %s53
    %s56 = sphi 0, %s55
    %s70 = sphi 0, %s56
    %s74 = sphi 0, %s74
    %s76 = sphi 0, %s74
    %s77 = sphi 0, %s76
    %s91 = sphi 0, %s77
    %s95 = sphi 0, %s95
    %s97 = sphi 0, %s95
    %s98 = sphi 0, %s97
    %s112 = sphi 0, %s98
    %s116 = sphi 0, %s116
    %s118 = sphi 0, %s116
    %s119 = sphi 0, %s118
    %s133 = sphi 0, %s119
    %s137 = sphi 0, %s137
    %s139 = sphi 0, %s137
    %s140 = sphi 0, %s139
    %s154 = sphi 0, %s140
    %s158 = sphi 0, %s158
    %s160 = sphi 0, %s158
    %s161 = sphi 0, %s160
    %s175 = sphi 0, %s161
    %s179 = sphi 0, %s179
    %s181 = sphi 0, %s179
    %s182 = sphi 0, %s181
    %s196 = sphi 0, %s182
    %s200 = sphi 0, %s200
    %s202 = sphi 0, %s200
    %s203 = sphi 0, %s202
    %s217 = sphi 0, %s203
    %s221 = sphi 0, %s221
    %s223 = sphi 0, %s221
    %s224 = sphi 0, %s223
    %s238 = sphi 0, %s224
    %s242 = sphi 0, %s242
    %s244 = sphi 0, %s242
    %s245 = sphi 0, %s244
    %s259 = sphi 0, %s245
    %s265 = sphi 0, %s267
    %s268 = sphi 0, %s265
    %s269 = sphi 0, %s268
    %s285 = sphi 0, %s269
    %s291 = sphi 0, %s293
    %s294 = sphi 0, %s291
    %s295 = sphi 0, %s294
    %s311 = sphi 0, %s295
  $region4: #{run.2} parent=0 // loop_header_branch
    %22 = sbr.rel (%p20) target = $region8
  $region5: #{run.2} parent=0 // loop_body
    %s24 = ssub.s32 %s19, 1
    %s25 = ssub.s32 %s19, 2
    %s26 = sadd.s32 %s19, 1
    %s27 = ssub.s32 %s19, %s26
    %p28 = scmp.eq.s32.totalorder %s27, 0
    %s30 = sadd.s32 %s29, 1
    %s31 = scalar_select %p28, %s29, %s30
    %p34 = pneg %p28
    %p35 = scmp.eq.s32.totalorder %s19, 1
    %p36 = por %p34, %p35
    %p37 = scmp.ne.s32.totalorder %s29, %s32
    %p38 = scmp.eq.s32.totalorder %s19, 0
    %p39 = por %p37, %p38
    %p40 = scmp.ne.s32.totalorder %s29, %s32
    %p41 = scmp.eq.s32.totalorder %s24, 1
    %p42 = por %p40, %p41
    %p43 = scmp.ne.s32.totalorder %s32, %s33
    %p44 = scmp.eq.s32.totalorder %s24, 0
    %p45 = por %p43, %p44
    %p46 = scmp.ne.s32.totalorder %s32, %s33
    %p47 = scmp.eq.s32.totalorder %s25, 1
    %p48 = por %p46, %p47
    %p50 = scmp.ne.s32.totalorder %s33, %s49
    %p51 = scmp.eq.s32.totalorder %s25, 0
    %p52 = por %p50, %p51
    %s54 = sadd.s32 %s53, 1
    %p57 = scmp.eq.s32.totalorder %s19, 1
    %p58 = scmp.ne.s32.totalorder %s53, %s55
    %p59 = scmp.eq.s32.totalorder %s19, 0
    %p60 = por %p58, %p59
    %p61 = scmp.ne.s32.totalorder %s53, %s55
    %p62 = scmp.eq.s32.totalorder %s24, 1
    %p63 = por %p61, %p62
    %p64 = scmp.ne.s32.totalorder %s55, %s56
    %p65 = scmp.eq.s32.totalorder %s24, 0
    %p66 = por %p64, %p65
    %p67 = scmp.ne.s32.totalorder %s55, %s56
    %p68 = scmp.eq.s32.totalorder %s25, 1
    %p69 = por %p67, %p68
    %p71 = scmp.ne.s32.totalorder %s56, %s70
    %p72 = scmp.eq.s32.totalorder %s25, 0
    %p73 = por %p71, %p72
    %s75 = sadd.s32 %s74, 1
    %p78 = scmp.eq.s32.totalorder %s19, 1
    %p79 = scmp.ne.s32.totalorder %s74, %s76
    %p80 = scmp.eq.s32.totalorder %s19, 0
    %p81 = por %p79, %p80
    %p82 = scmp.ne.s32.totalorder %s74, %s76
    %p83 = scmp.eq.s32.totalorder %s24, 1
    %p84 = por %p82, %p83
    %p85 = scmp.ne.s32.totalorder %s76, %s77
    %p86 = scmp.eq.s32.totalorder %s24, 0
    %p87 = por %p85, %p86
    %p88 = scmp.ne.s32.totalorder %s76, %s77
    %p89 = scmp.eq.s32.totalorder %s25, 1
    %p90 = por %p88, %p89
    %p92 = scmp.ne.s32.totalorder %s77, %s91
    %p93 = scmp.eq.s32.totalorder %s25, 0
    %p94 = por %p92, %p93
    %s96 = sadd.s32 %s95, 1
    %p99 = scmp.eq.s32.totalorder %s19, 1
    %p100 = scmp.ne.s32.totalorder %s95, %s97
    %p101 = scmp.eq.s32.totalorder %s19, 0
    %p102 = por %p100, %p101
    %p103 = scmp.ne.s32.totalorder %s95, %s97
    %p104 = scmp.eq.s32.totalorder %s24, 1
    %p105 = por %p103, %p104
    %p106 = scmp.ne.s32.totalorder %s97, %s98
    %p107 = scmp.eq.s32.totalorder %s24, 0
    %p108 = por %p106, %p107
    %p109 = scmp.ne.s32.totalorder %s97, %s98
    %p110 = scmp.eq.s32.totalorder %s25, 1
    %p111 = por %p109, %p110
    %p113 = scmp.ne.s32.totalorder %s98, %s112
    %p114 = scmp.eq.s32.totalorder %s25, 0
    %p115 = por %p113, %p114
    %s117 = sadd.s32 %s116, 1
    %p120 = scmp.eq.s32.totalorder %s19, 1
    %p121 = scmp.ne.s32.totalorder %s116, %s118
    %p122 = scmp.eq.s32.totalorder %s19, 0
    %p123 = por %p121, %p122
    %p124 = scmp.ne.s32.totalorder %s116, %s118
    %p125 = scmp.eq.s32.totalorder %s24, 1
    %p126 = por %p124, %p125
    %p127 = scmp.ne.s32.totalorder %s118, %s119
    %p128 = scmp.eq.s32.totalorder %s24, 0
    %p129 = por %p127, %p128
    %p130 = scmp.ne.s32.totalorder %s118, %s119
    %p131 = scmp.eq.s32.totalorder %s25, 1
    %p132 = por %p130, %p131
    %p134 = scmp.ne.s32.totalorder %s119, %s133
    %p135 = scmp.eq.s32.totalorder %s25, 0
    %p136 = por %p134, %p135
    %s138 = sadd.s32 %s137, 1
    %p141 = scmp.eq.s32.totalorder %s19, 1
    %p142 = scmp.ne.s32.totalorder %s137, %s139
    %p143 = scmp.eq.s32.totalorder %s19, 0
    %p144 = por %p142, %p143
    %p145 = scmp.ne.s32.totalorder %s137, %s139
    %p146 = scmp.eq.s32.totalorder %s24, 1
    %p147 = por %p145, %p146
    %p148 = scmp.ne.s32.totalorder %s139, %s140
    %p149 = scmp.eq.s32.totalorder %s24, 0
    %p150 = por %p148, %p149
    %p151 = scmp.ne.s32.totalorder %s139, %s140
    %p152 = scmp.eq.s32.totalorder %s25, 1
    %p153 = por %p151, %p152
    %p155 = scmp.ne.s32.totalorder %s140, %s154
    %p156 = scmp.eq.s32.totalorder %s25, 0
    %p157 = por %p155, %p156
    %s159 = sadd.s32 %s158, 1
    %p162 = scmp.eq.s32.totalorder %s19, 1
    %p163 = scmp.ne.s32.totalorder %s158, %s160
    %p164 = scmp.eq.s32.totalorder %s19, 0
    %p165 = por %p163, %p164
    %p166 = scmp.ne.s32.totalorder %s158, %s160
    %p167 = scmp.eq.s32.totalorder %s24, 1
    %p168 = por %p166, %p167
    %p169 = scmp.ne.s32.totalorder %s160, %s161
    %p170 = scmp.eq.s32.totalorder %s24, 0
    %p171 = por %p169, %p170
    %p172 = scmp.ne.s32.totalorder %s160, %s161
    %p173 = scmp.eq.s32.totalorder %s25, 1
    %p174 = por %p172, %p173
    %p176 = scmp.ne.s32.totalorder %s161, %s175
    %p177 = scmp.eq.s32.totalorder %s25, 0
    %p178 = por %p176, %p177
    %s180 = sadd.s32 %s179, 1
    %p183 = scmp.eq.s32.totalorder %s19, 1
    %p184 = scmp.ne.s32.totalorder %s179, %s181
    %p185 = scmp.eq.s32.totalorder %s19, 0
    %p186 = por %p184, %p185
    %p187 = scmp.ne.s32.totalorder %s179, %s181
    %p188 = scmp.eq.s32.totalorder %s24, 1
    %p189 = por %p187, %p188
    %p190 = scmp.ne.s32.totalorder %s181, %s182
    %p191 = scmp.eq.s32.totalorder %s24, 0
    %p192 = por %p190, %p191
    %p193 = scmp.ne.s32.totalorder %s181, %s182
    %p194 = scmp.eq.s32.totalorder %s25, 1
    %p195 = por %p193, %p194
    %p197 = scmp.ne.s32.totalorder %s182, %s196
    %p198 = scmp.eq.s32.totalorder %s25, 0
    %p199 = por %p197, %p198
    %s201 = sadd.s32 %s200, 1
    %p204 = scmp.eq.s32.totalorder %s19, 1
    %p205 = scmp.ne.s32.totalorder %s200, %s202
    %p206 = scmp.eq.s32.totalorder %s19, 0
    %p207 = por %p205, %p206
    %p208 = scmp.ne.s32.totalorder %s200, %s202
    %p209 = scmp.eq.s32.totalorder %s24, 1
    %p210 = por %p208, %p209
    %p211 = scmp.ne.s32.totalorder %s202, %s203
    %p212 = scmp.eq.s32.totalorder %s24, 0
    %p213 = por %p211, %p212
    %p214 = scmp.ne.s32.totalorder %s202, %s203
    %p215 = scmp.eq.s32.totalorder %s25, 1
    %p216 = por %p214, %p215
    %p218 = scmp.ne.s32.totalorder %s203, %s217
    %p219 = scmp.eq.s32.totalorder %s25, 0
    %p220 = por %p218, %p219
    %s222 = sadd.s32 %s221, 1
    %p225 = scmp.eq.s32.totalorder %s19, 1
    %p226 = scmp.ne.s32.totalorder %s221, %s223
    %p227 = scmp.eq.s32.totalorder %s19, 0
    %p228 = por %p226, %p227
    %p229 = scmp.ne.s32.totalorder %s221, %s223
    %p230 = scmp.eq.s32.totalorder %s24, 1
    %p231 = por %p229, %p230
    %p232 = scmp.ne.s32.totalorder %s223, %s224
    %p233 = scmp.eq.s32.totalorder %s24, 0
    %p234 = por %p232, %p233
    %p235 = scmp.ne.s32.totalorder %s223, %s224
    %p236 = scmp.eq.s32.totalorder %s25, 1
    %p237 = por %p235, %p236
    %p239 = scmp.ne.s32.totalorder %s224, %s238
    %p240 = scmp.eq.s32.totalorder %s25, 0
    %p241 = por %p239, %p240
    %s243 = sadd.s32 %s242, 1
    %p246 = scmp.eq.s32.totalorder %s19, 1
    %p247 = scmp.ne.s32.totalorder %s242, %s244
    %p248 = scmp.eq.s32.totalorder %s19, 0
    %p249 = por %p247, %p248
    %p250 = scmp.ne.s32.totalorder %s242, %s244
    %p251 = scmp.eq.s32.totalorder %s24, 1
    %p252 = por %p250, %p251
    %p253 = scmp.ne.s32.totalorder %s244, %s245
    %p254 = scmp.eq.s32.totalorder %s24, 0
    %p255 = por %p253, %p254
    %p256 = scmp.ne.s32.totalorder %s244, %s245
    %p257 = scmp.eq.s32.totalorder %s25, 1
    %p258 = por %p256, %p257
    %p260 = scmp.ne.s32.totalorder %s245, %s259
    %p261 = scmp.eq.s32.totalorder %s25, 0
    %p262 = por %p260, %p261
    %s263 = ssub.s32 %s19, %s26
    %p264 = scmp.eq.s32.totalorder %s263, 0
    %s266 = sadd.s32 %s265, 1
    %s267 = scalar_select %p264, %s265, %s266
    %p270 = pneg %p264
    %p271 = scmp.eq.s32.totalorder %s19, 1
    %p272 = por %p270, %p271
    %p273 = scmp.ne.s32.totalorder %s265, %s268
    %p274 = scmp.eq.s32.totalorder %s19, 0
    %p275 = por %p273, %p274
    %p276 = scmp.ne.s32.totalorder %s265, %s268
    %p277 = scmp.eq.s32.totalorder %s24, 1
    %p278 = por %p276, %p277
    %p279 = scmp.ne.s32.totalorder %s268, %s269
    %p280 = scmp.eq.s32.totalorder %s24, 0
    %p281 = por %p279, %p280
    %p282 = scmp.ne.s32.totalorder %s268, %s269
    %p283 = scmp.eq.s32.totalorder %s25, 1
    %p284 = por %p282, %p283
    %p286 = scmp.ne.s32.totalorder %s269, %s285
    %p287 = scmp.eq.s32.totalorder %s25, 0
    %p288 = por %p286, %p287
    %s289 = ssub.s32 %s19, %s26
    %p290 = scmp.eq.s32.totalorder %s289, 0
    %s292 = sadd.s32 %s291, 1
    %s293 = scalar_select %p290, %s291, %s292
    %p296 = pneg %p290
    %p297 = scmp.eq.s32.totalorder %s19, 1
    %p298 = por %p296, %p297
    %p299 = scmp.ne.s32.totalorder %s291, %s294
    %p300 = scmp.eq.s32.totalorder %s19, 0
    %p301 = por %p299, %p300
    %p302 = scmp.ne.s32.totalorder %s291, %s294
    %p303 = scmp.eq.s32.totalorder %s24, 1
    %p304 = por %p302, %p303
    %p305 = scmp.ne.s32.totalorder %s294, %s295
    %p306 = scmp.eq.s32.totalorder %s24, 0
    %p307 = por %p305, %p306
    %p308 = scmp.ne.s32.totalorder %s294, %s295
    %p309 = scmp.eq.s32.totalorder %s25, 1
    %p310 = por %p308, %p309
    %p312 = scmp.ne.s32.totalorder %s295, %s311
    %p313 = scmp.eq.s32.totalorder %s25, 0
    %p314 = por %p312, %p313
    %p315 = scmp.le.s32.totalorder 1, %s19
    %p316 = scmp.lt.s32.totalorder %s19, 3
    %p317 = pnand %p315, %p316
    %p318 = pneg %p317
    // Predicated region
    $region9: #{run.2} parent=5 // pred_check
      _
    $region10: #{run.2} parent=5 // pred_check_branch
      %320 = sbr.rel (%p317) target = $region12
    $region11: #{run.2} parent=5 // pred_region
      %s321 = ssub.s32 %s19, 1
      // Predicated region
      $region13: #{run.2} parent=11 // pred_check
        %p322 = pneg %p66
      $region14: #{run.2} parent=11 // pred_check_branch
        %324 = sbr.rel (%p322) target = $region16
      $region15: #{run.2} parent=11 // pred_region
        _
      $region16: #{run.2} parent=11 // pred_fallthru
        _
      // Predicated region
      $region17: #{run.2} parent=11 // pred_check
        %p325 = pneg %p87
      $region18: #{run.2} parent=11 // pred_check_branch
        %327 = sbr.rel (%p325) target = $region20
      $region19: #{run.2} parent=11 // pred_region
        _
      $region20: #{run.2} parent=11 // pred_fallthru
        _
      // Predicated region
      $region21: #{run.2} parent=11 // pred_check
        %p328 = pneg %p108
      $region22: #{run.2} parent=11 // pred_check_branch
        %330 = sbr.rel (%p328) target = $region24
      $region23: #{run.2} parent=11 // pred_region
        _
      $region24: #{run.2} parent=11 // pred_fallthru
        _
      // Predicated region
      $region25: #{run.2} parent=11 // pred_check
        %p331 = pneg %p129
      $region26: #{run.2} parent=11 // pred_check_branch
        %333 = sbr.rel (%p331) target = $region28
      $region27: #{run.2} parent=11 // pred_region
        _
      $region28: #{run.2} parent=11 // pred_fallthru
        _
      // Predicated region
      $region29: #{run.2} parent=11 // pred_check
        %p334 = pneg %p150
      $region30: #{run.2} parent=11 // pred_check_branch
        %336 = sbr.rel (%p334) target = $region32
      $region31: #{run.2} parent=11 // pred_region
        _
      $region32: #{run.2} parent=11 // pred_fallthru
        _
      // Predicated region
      $region33: #{run.2} parent=11 // pred_check
        %p337 = pneg %p171
      $region34: #{run.2} parent=11 // pred_check_branch
        %339 = sbr.rel (%p337) target = $region36
      $region35: #{run.2} parent=11 // pred_region
        _
      $region36: #{run.2} parent=11 // pred_fallthru
        _
      // Predicated region
      $region37: #{run.2} parent=11 // pred_check
        %p340 = pneg %p192
      $region38: #{run.2} parent=11 // pred_check_branch
        %342 = sbr.rel (%p340) target = $region40
      $region39: #{run.2} parent=11 // pred_region
        _
      $region40: #{run.2} parent=11 // pred_fallthru
        _
      // Predicated region
      $region41: #{run.2} parent=11 // pred_check
        %p343 = pneg %p213
      $region42: #{run.2} parent=11 // pred_check_branch
        %345 = sbr.rel (%p343) target = $region44
      $region43: #{run.2} parent=11 // pred_region
        _
      $region44: #{run.2} parent=11 // pred_fallthru
        _
      // Predicated region
      $region45: #{run.2} parent=11 // pred_check
        %p346 = pneg %p234
      $region46: #{run.2} parent=11 // pred_check_branch
        %348 = sbr.rel (%p346) target = $region48
      $region47: #{run.2} parent=11 // pred_region
        _
      $region48: #{run.2} parent=11 // pred_fallthru
        _
      // Predicated region
      $region49: #{run.2} parent=11 // pred_check
        %p349 = pneg %p255
      $region50: #{run.2} parent=11 // pred_check_branch
        %351 = sbr.rel (%p349) target = $region52
      $region51: #{run.2} parent=11 // pred_region
        _
      $region52: #{run.2} parent=11 // pred_fallthru
        _
    $region12: #{run.2} parent=5 // pred_fallthru
      _
    %p352 = scmp.lt.s32.totalorder %s19, 2
    // Predicated region
    $region53: #{run.2} parent=5 // pred_check
      %p353 = pneg %p352
    $region54: #{run.2} parent=5 // pred_check_branch
      %355 = sbr.rel (%p353) target = $region56
    $region55: #{run.2} parent=5 // pred_region
      // Predicated region
      $region57: #{run.2} parent=55 // pred_check
        %p356 = pneg %p39
      $region58: #{run.2} parent=55 // pred_check_branch
        %358 = sbr.rel (%p356) target = $region60
      $region59: #{run.2} parent=55 // pred_region
        %p359 = scmp.lt.s32.totalorder %s19, 1
        %s360 = scalar_select %p359, %s19, 1
        %s361 = smul.addr %s360, 9
        %s362 = smul.addr %s361, 4
        %s363 = scalar_lea.vmem %s0, %s362
      $region60: #{run.2} parent=55 // pred_fallthru
        _
    $region56: #{run.2} parent=5 // pred_fallthru
      _
    %p364 = scmp.le.s32.totalorder 1, %s19
    %p365 = scmp.lt.s32.totalorder %s19, 3
    %p366 = pnand %p364, %p365
    %p367 = pneg %p366
    // Predicated region
    $region61: #{run.2} parent=5 // pred_check
      _
    $region62: #{run.2} parent=5 // pred_check_branch
      %369 = sbr.rel (%p366) target = $region64
    $region63: #{run.2} parent=5 // pred_region
      %s370 = ssub.s32 %s19, 1
      %p371 = scmp.lt.s32.totalorder %s24, 1
      %s372 = scalar_select %p371, %s24, 1
      %s373 = smul.addr %s372, 9
      %s374 = smul.addr %s373, 4
      %s375 = scalar_lea.vmem %s0, %s374
      %p376 = pneg %p45
      %p377 = pneg %p42
      %p378 = pneg %p66
      %p379 = pneg %p63
      %p380 = pneg %p87
      %p381 = pneg %p84
      %p382 = pneg %p108
      %p383 = pneg %p105
      %p384 = pneg %p129
      %p385 = pneg %p126
      %p386 = pneg %p150
      %p387 = pneg %p147
      %p388 = pneg %p171
      %p389 = pneg %p168
      %p390 = pneg %p192
      %p391 = pneg %p189
      %p392 = pneg %p213
      %p393 = pneg %p210
      %p394 = pneg %p234
      %p395 = pneg %p231
      %p396 = pneg %p255
      %p397 = pneg %p252
      %p398 = pneg %p281
      %p399 = pneg %p278
      %p400 = scmp.lt.s32.totalorder %s24, 1
      %s401 = scalar_select %p400, %s24, 1
      %s402 = smul.addr %s401, 4
      %s403 = smul.addr %s402, 4
      %s404 = scalar_lea.vmem %s11, %s403
      %p405 = pneg %p307
      %p406 = pneg %p304
      %p407 = scmp.lt.s32.totalorder %s24, 1
      %s408 = scalar_select %p407, %s24, 1
      %s409 = smul.addr %s408, 4
      %s410 = smul.addr %s409, 4
      %s411 = scalar_lea.vmem %s12, %s410
      %p412 = scmp.lt.s32.totalorder %s24, 1
      %s413 = scalar_select %p412, %s24, 1
      %s414 = smul.addr %s413, 9
      %s415 = smul.addr %s414, 4
      %s416 = scalar_lea.vmem %s0, %s415
      %p417 = scmp.lt.s32.totalorder %s24, 1
      %s418 = scalar_select %p417, %s24, 1
      %s419 = smul.addr %s418, 4
      %s420 = smul.addr %s419, 4
      %s421 = scalar_lea.vmem %s11, %s420
      %p422 = scmp.lt.s32.totalorder %s24, 1
      %s423 = scalar_select %p422, %s24, 1
      %s424 = smul.addr %s423, 4
      %s425 = smul.addr %s424, 4
      %s426 = scalar_lea.vmem %s12, %s425
      %v428 = vld [vmem:[%s416] sm:$0xff]
      %v429 = vld [vmem:[%s416 + $0x8] sm:$0xf]
      %v430 = vld [vmem:[%s416 + $0xc] sm:$0xff]
      %v431 = vld [vmem:[%s416 + $0x14] sm:$0xf]
      %v432 = vld [vmem:[%s416 + $0x18] sm:$0x11]
      %v433 = vld [vmem:[%s416 + $0x20] sm:$0x1]
      %v434 = vld [vmem:[%s2] sm:$0x3]
      %v435 = vld [vmem:[%s1] sm:$0xff]
      %v436 = vld [vmem:[%s1 + $0x8] sm:$0xff]
      %v437 = vld [vmem:[%s1 + $0x10] sm:$0xff]
      %v438 = vld [vmem:[%s1 + $0x18] sm:$0xff]
      %v439 = vld [vmem:[%s1 + $0x20] sm:$0xff]
      %v440 = vld [vmem:[%s1 + $0x28] sm:$0xff]
      %v441 = vld [vmem:[%s1 + $0x30] sm:$0xff]
      %v442 = vld [vmem:[%s1 + $0x38] sm:$0xff]
      %v443 = vld [vmem:[%s1 + $0x40] sm:$0xff]
      %v444 = vld [vmem:[%s1 + $0x48] sm:$0xff]
      %v445 = vld [vmem:[%s1 + $0x50] sm:$0xff]
      %v446 = vld [vmem:[%s1 + $0x58] sm:$0xff]
      %v447 = vld [vmem:[%s1 + $0x60] sm:$0xff]
      %v448 = vld [vmem:[%s1 + $0x68] sm:$0xff]
      %v449 = vld [vmem:[%s1 + $0x70] sm:$0xff]
      %v450 = vld [vmem:[%s1 + $0x78] sm:$0xff]
      %v451 = vld [vmem:[%s1 + $0x80] sm:$0xff]
      %v452 = vld [vmem:[%s1 + $0x88] sm:$0xff]
      %v453 = vld [vmem:[%s1 + $0x90] sm:$0xff]
      %v454 = vld [vmem:[%s1 + $0x98] sm:$0xff]
      %v455 = vld [vmem:[%s1 + $0xa0] sm:$0xff]
      %v456 = vld [vmem:[%s1 + $0xa8] sm:$0xff]
      %v457 = vld [vmem:[%s1 + $0xb0] sm:$0xff]
      %v458 = vld [vmem:[%s1 + $0xb8] sm:$0xff]
      %v459 = vld [vmem:[%s1 + $0xc0] sm:$0xff]
      %v460 = vld [vmem:[%s1 + $0xc8] sm:$0xff]
      %v461 = vld [vmem:[%s1 + $0xd0] sm:$0xff]
      %v462 = vld [vmem:[%s1 + $0xd8] sm:$0xff]
      %v463 = vld [vmem:[%s1 + $0xe0] sm:$0xff]
      %v464 = vld [vmem:[%s1 + $0xe8] sm:$0xff]
      %v465 = vld [vmem:[%s1 + $0xf0] sm:$0xff]
      %v466 = vld [vmem:[%s1 + $0xf8] sm:$0xff]
      %v467 = vld [vmem:[%s1 + $0x100] sm:$0xff]
      %v468 = vld [vmem:[%s1 + $0x108] sm:$0xff]
      %v469 = vld [vmem:[%s1 + $0x110] sm:$0xff]
      %v470 = vld [vmem:[%s1 + $0x118] sm:$0xff]
      %v475 = vunpack.c.l.b16 %v428
      %v476 = vunpack.c.h.b16 %v428
      %v477 = vunpack.c.l.b16 %v429
      %v478 = vunpack.c.l.b16 %v430
      %v479 = vunpack.c.h.b16 %v430
      %v480 = vunpack.c.l.b16 %v431
      %v481 = vpack.c.b16 %v478, %v475
      %v482 = vpack.c.b16 %v479, %v476
      %v483 = vpack.c.b16 %v480, %v477
      %v522 = vunpack.c.l.b16 %v435
      %v523 = vunpack.c.h.b16 %v435
      %v524 = vunpack.c.l.b16 %v436
      %v525 = vunpack.c.h.b16 %v436
      %v526 = vunpack.c.l.b16 %v437
      %v527 = vunpack.c.h.b16 %v437
      %v528 = vunpack.c.l.b16 %v438
      %v529 = vunpack.c.h.b16 %v438
      %v530 = vunpack.c.l.b16 %v439
      %v531 = vunpack.c.h.b16 %v439
      %v532 = vunpack.c.l.b16 %v440
      %v533 = vunpack.c.h.b16 %v440
      %v534 = vunpack.c.l.b16 %v441
      %v535 = vunpack.c.h.b16 %v441
      %v536 = vunpack.c.l.b16 %v442
      %v537 = vunpack.c.h.b16 %v442
      %v538 = vunpack.c.l.b16 %v443
      %v539 = vunpack.c.h.b16 %v443
      %v540 = vunpack.c.l.b16 %v444
      %v541 = vunpack.c.h.b16 %v444
      %v542 = vunpack.c.l.b16 %v445
      %v543 = vunpack.c.h.b16 %v445
      %v544 = vunpack.c.l.b16 %v446
      %v545 = vunpack.c.h.b16 %v446
      %v546 = vunpack.c.l.b16 %v447
      %v547 = vunpack.c.h.b16 %v447
      %v548 = vunpack.c.l.b16 %v448
      %v549 = vunpack.c.h.b16 %v448
      %v550 = vunpack.c.l.b16 %v449
      %v551 = vunpack.c.h.b16 %v449
      %v552 = vunpack.c.l.b16 %v450
      %v553 = vunpack.c.h.b16 %v450
      %v554 = vunpack.c.l.b16 %v451
      %v555 = vunpack.c.h.b16 %v451
      %v556 = vunpack.c.l.b16 %v452
      %v557 = vunpack.c.h.b16 %v452
      %v558 = vunpack.c.l.b16 %v453
      %v559 = vunpack.c.h.b16 %v453
      %v560 = vunpack.c.l.b16 %v454
      %v561 = vunpack.c.h.b16 %v454
      %v562 = vunpack.c.l.b16 %v455
      %v563 = vunpack.c.h.b16 %v455
      %v564 = vunpack.c.l.b16 %v456
      %v565 = vunpack.c.h.b16 %v456
      %v566 = vunpack.c.l.b16 %v457
      %v567 = vunpack.c.h.b16 %v457
      %v568 = vunpack.c.l.b16 %v458
      %v569 = vunpack.c.h.b16 %v458
      %v570 = vunpack.c.l.b16 %v459
      %v571 = vunpack.c.h.b16 %v459
      %v572 = vunpack.c.l.b16 %v460
      %v573 = vunpack.c.h.b16 %v460
      %v574 = vunpack.c.l.b16 %v461
      %v575 = vunpack.c.h.b16 %v461
      %v576 = vunpack.c.l.b16 %v462
      %v577 = vunpack.c.h.b16 %v462
      %v578 = vunpack.c.l.b16 %v463
      %v579 = vunpack.c.h.b16 %v463
      %v580 = vunpack.c.l.b16 %v464
      %v581 = vunpack.c.h.b16 %v464
      %v582 = vunpack.c.l.b16 %v465
      %v583 = vunpack.c.h.b16 %v465
      %v584 = vunpack.c.l.b16 %v466
      %v585 = vunpack.c.h.b16 %v466
      %v586 = vunpack.c.l.b16 %v467
      %v587 = vunpack.c.h.b16 %v467
      %v588 = vunpack.c.l.b16 %v468
      %v589 = vunpack.c.h.b16 %v468
      %v590 = vunpack.c.l.b16 %v469
      %v591 = vunpack.c.h.b16 %v469
      %v592 = vunpack.c.l.b16 %v470
      %v593 = vunpack.c.h.b16 %v470
      %v594 = vpack.c.b16 %v524, %v522
      %v595 = vpack.c.b16 %v525, %v523
      %v596 = vpack.c.b16 %v528, %v526
      %v597 = vpack.c.b16 %v529, %v527
      %v598 = vpack.c.b16 %v532, %v530
      %v599 = vpack.c.b16 %v533, %v531
      %v600 = vpack.c.b16 %v536, %v534
      %v601 = vpack.c.b16 %v537, %v535
      %v602 = vpack.c.b16 %v540, %v538
      %v603 = vpack.c.b16 %v541, %v539
      %v604 = vpack.c.b16 %v544, %v542
      %v605 = vpack.c.b16 %v545, %v543
      %v606 = vpack.c.b16 %v548, %v546
      %v607 = vpack.c.b16 %v549, %v547
      %v608 = vpack.c.b16 %v552, %v550
      %v609 = vpack.c.b16 %v553, %v551
      %v610 = vpack.c.b16 %v556, %v554
      %v611 = vpack.c.b16 %v557, %v555
      %v612 = vpack.c.b16 %v560, %v558
      %v613 = vpack.c.b16 %v561, %v559
      %v614 = vpack.c.b16 %v564, %v562
      %v615 = vpack.c.b16 %v565, %v563
      %v616 = vpack.c.b16 %v568, %v566
      %v617 = vpack.c.b16 %v569, %v567
      %v618 = vpack.c.b16 %v572, %v570
      %v619 = vpack.c.b16 %v573, %v571
      %v620 = vpack.c.b16 %v576, %v574
      %v621 = vpack.c.b16 %v577, %v575
      %v622 = vpack.c.b16 %v580, %v578
      %v623 = vpack.c.b16 %v581, %v579
      %v624 = vpack.c.b16 %v584, %v582
      %v625 = vpack.c.b16 %v585, %v583
      %v626 = vpack.c.b16 %v588, %v586
      %v627 = vpack.c.b16 %v589, %v587
      %v628 = vpack.c.b16 %v592, %v590
      %v629 = vpack.c.b16 %v593, %v591
      %vm666 = vcmask 261120
      %v668 = vsel %vm666, %v483, 0
      %670 = vmatprep.subr.bf16.mxu0 %v609
      %671 = vmatpush1.bf16.msra.mxu0 %v608
      %672 = vmatprep.subr.bf16.mxu0 %v607
      %673 = vmatpush1.bf16.msra.mxu0 %v606
      %674 = vmatprep.subr.bf16.mxu0 %v605
      %675 = vmatpush1.bf16.msra.mxu0 %v604
      %676 = vmatprep.subr.bf16.mxu0 %v603
      %677 = vmatpush1.bf16.msra.mxu0 %v602
      %678 = vmatprep.subr.bf16.mxu0 %v601
      %679 = vmatpush1.bf16.msra.mxu0 %v600
      %680 = vmatprep.subr.bf16.mxu0 %v599
      %681 = vmatpush1.bf16.msra.mxu0 %v598
      %682 = vmatprep.subr.bf16.mxu0 %v597
      %683 = vmatpush1.bf16.msra.mxu0 %v596
      %684 = vmatprep.subr.bf16.mxu0 %v595
      %685 = vmatpush1.bf16.msra.mxu0 %v594
      %686 = vmatprep.subr.bf16.mxu0 %v625
      %687 = vmatpush2.bf16.msra.mxu0 %v624
      %688 = vmatprep.subr.bf16.mxu0 %v623
      %689 = vmatpush2.bf16.msra.mxu0 %v622
      %690 = vmatprep.subr.bf16.mxu0 %v621
      %691 = vmatpush2.bf16.msra.mxu0 %v620
      %692 = vmatprep.subr.bf16.mxu0 %v619
      %693 = vmatpush2.bf16.msra.mxu0 %v618
      %694 = vmatprep.subr.bf16.mxu0 %v617
      %695 = vmatpush2.bf16.msra.mxu0 %v616
      %696 = vmatprep.subr.bf16.mxu0 %v615
      %697 = vmatpush2.bf16.msra.mxu0 %v614
      %698 = vmatprep.subr.bf16.mxu0 %v613
      %699 = vmatpush2.bf16.msra.mxu0 %v612
      %700 = vmatprep.subr.bf16.mxu0 %v611
      %701 = vmatpush2.bf16.msra.mxu0 %v610
      %702 = vmatprep.mubr.bf16.mxu0 %v482
      %703 = vmatmul.mubr.bf16.gmra.mxu0 %v481
      %v704 = vpop.f32.mrf.mxu0
      %v705 = vadd.f32 0.0, %v704
      %v706 = vpop.f32.mrf.mxu0
      %v707 = vadd.f32 0.0, %v706
      %v708 = vpop.f32.mrf.mxu0
      %v709 = vadd.f32 0.0, %v708
      %v710 = vpop.f32.mrf.mxu0
      %v711 = vadd.f32 0.0, %v710
      %712 = vdwg.mxu0
      %713 = vmatprep.subr.bf16.mxu0 0
      %714 = vmatpush1.bf16.msra.mxu0 0
      %715 = vmatprep.subr.bf16.mxu0 0
      %716 = vmatpush1.bf16.msra.mxu0 0
      %717 = vmatprep.subr.bf16.mxu0 0
      %718 = vmatpush1.bf16.msra.mxu0 0
      %719 = vmatprep.subr.bf16.mxu0 0
      %720 = vmatpush1.bf16.msra.mxu0 0
      %721 = vmatprep.subr.bf16.mxu0 0
      %722 = vmatpush1.bf16.msra.mxu0 0
      %723 = vmatprep.subr.bf16.mxu0 0
      %724 = vmatpush1.bf16.msra.mxu0 0
      %725 = vmatprep.subr.bf16.mxu0 %v629
      %726 = vmatpush1.bf16.msra.mxu0 %v628
      %727 = vmatprep.subr.bf16.mxu0 %v627
      %728 = vmatpush1.bf16.msra.mxu0 %v626
      %729 = vmatprep.subr.bf16.mxu0 0
      %730 = vmatpush2.bf16.msra.mxu0 0
      %731 = vmatprep.subr.bf16.mxu0 0
      %732 = vmatpush2.bf16.msra.mxu0 0
      %733 = vmatprep.subr.bf16.mxu0 0
      %734 = vmatpush2.bf16.msra.mxu0 0
      %735 = vmatprep.subr.bf16.mxu0 0
      %736 = vmatpush2.bf16.msra.mxu0 0
      %737 = vmatprep.subr.bf16.mxu0 0
      %738 = vmatpush2.bf16.msra.mxu0 0
      %739 = vmatprep.subr.bf16.mxu0 0
      %740 = vmatpush2.bf16.msra.mxu0 0
      %741 = vmatprep.subr.bf16.mxu0 0
      %742 = vmatpush2.bf16.msra.mxu0 0
      %743 = vmatprep.subr.bf16.mxu0 0
      %744 = vmatpush2.bf16.msra.mxu0 0
      %745 = vmatprep.mubr.bf16.mxu0 0
      %746 = vmatmul.mubr.bf16.gmra.mxu0 %v668
      %v747 = vpop.f32.mrf.mxu0
      %v748 = vadd.f32 %v705, %v747
      %v749 = vpop.f32.mrf.mxu0
      %v750 = vadd.f32 %v707, %v749
      %v751 = vpop.f32.mrf.mxu0
      %v752 = vadd.f32 %v709, %v751
      %v753 = vpop.f32.mrf.mxu0
      %v754 = vadd.f32 %v711, %v753
      %755 = vdwg.mxu0
      %v757 = vlaneseq
      %v758 = vshrl.u32 %v757, 7
      %v759 = vsub.s32 0, %v758
      %v760 = vrot.slane %v434, %v759
      %v761 = vlaneseq
      %v762 = vshrl.u32 %v761, 7
      %v763 = vsub.s32 1, %v762
      %v764 = vrot.slane %v434, %v763
      %v767 = vadd.f32 %v760, %v748
      %v768 = vadd.f32 %v764, %v750
      %v769 = vadd.f32 %v760, %v752
      %v770 = vadd.f32 %v764, %v754
      %s771 = scalar_lea.vmem %s1, 288
      %v772 = vld [vmem:[%s771] sm:$0xff]
      %v773 = vld [vmem:[%s771 + $0x8] sm:$0xff]
      %v774 = vld [vmem:[%s771 + $0x10] sm:$0xff]
      %v775 = vld [vmem:[%s771 + $0x18] sm:$0xff]
      %v776 = vld [vmem:[%s771 + $0x20] sm:$0xff]
      %v777 = vld [vmem:[%s771 + $0x28] sm:$0xff]
      %v778 = vld [vmem:[%s771 + $0x30] sm:$0xff]
      %v779 = vld [vmem:[%s771 + $0x38] sm:$0xff]
      %v780 = vld [vmem:[%s771 + $0x40] sm:$0xff]
      %v781 = vld [vmem:[%s771 + $0x48] sm:$0xff]
      %v782 = vld [vmem:[%s771 + $0x50] sm:$0xff]
      %v783 = vld [vmem:[%s771 + $0x58] sm:$0xff]
      %v784 = vld [vmem:[%s771 + $0x60] sm:$0xff]
      %v785 = vld [vmem:[%s771 + $0x68] sm:$0xff]
      %v786 = vld [vmem:[%s771 + $0x70] sm:$0xff]
      %v787 = vld [vmem:[%s771 + $0x78] sm:$0xff]
      %v788 = vld [vmem:[%s771 + $0x80] sm:$0xff]
      %v789 = vld [vmem:[%s771 + $0x88] sm:$0xff]
      %v790 = vld [vmem:[%s771 + $0x90] sm:$0xff]
      %v791 = vld [vmem:[%s771 + $0x98] sm:$0xff]
      %v792 = vld [vmem:[%s771 + $0xa0] sm:$0xff]
      %v793 = vld [vmem:[%s771 + $0xa8] sm:$0xff]
      %v794 = vld [vmem:[%s771 + $0xb0] sm:$0xff]
      %v795 = vld [vmem:[%s771 + $0xb8] sm:$0xff]
      %v796 = vld [vmem:[%s771 + $0xc0] sm:$0xff]
      %v797 = vld [vmem:[%s771 + $0xc8] sm:$0xff]
      %v798 = vld [vmem:[%s771 + $0xd0] sm:$0xff]
      %v799 = vld [vmem:[%s771 + $0xd8] sm:$0xff]
      %v800 = vld [vmem:[%s771 + $0xe0] sm:$0xff]
      %v801 = vld [vmem:[%s771 + $0xe8] sm:$0xff]
      %v802 = vld [vmem:[%s771 + $0xf0] sm:$0xff]
      %v803 = vld [vmem:[%s771 + $0xf8] sm:$0xff]
      %v804 = vld [vmem:[%s771 + $0x100] sm:$0xff]
      %v805 = vld [vmem:[%s771 + $0x108] sm:$0xff]
      %v806 = vld [vmem:[%s771 + $0x110] sm:$0xff]
      %v807 = vld [vmem:[%s771 + $0x118] sm:$0xff]
      %v810 = vunpack.c.l.b16 %v432
      %v811 = vunpack.c.h.b16 %v432
      %v812 = vunpack.c.l.b16 %v433
      %v813 = vpack.c.b16 %v810, %v810
      %v814 = vpack.c.b16 %v811, %v811
      %v815 = vpack.c.b16 %v812, %v812
      %vm816 = vsmask.f32 7424
      %v818 = vshrl.u32 %v481, 16
      %v820 = vshll.u32 %v481, 16
      %v822 = vrot.slane %v820, 1
      %v823 = vor.u32 %v818, %v822
      %v825 = vshll.u32 %v813, 16
      %v827 = vrot.slane %v825, 1
      %v828 = vsel %vm816, %v823, %v827
      %v830 = vshrl.u32 %v482, 16
      %v832 = vshll.u32 %v482, 16
      %v834 = vrot.slane %v832, 1
      %v835 = vor.u32 %v830, %v834
      %v837 = vshll.u32 %v814, 16
      %v839 = vrot.slane %v837, 1
      %v840 = vsel %vm816, %v835, %v839
      %v841 = vshrl.u32 %v483, 16
      %v843 = vshll.u32 %v483, 16
      %v845 = vrot.slane %v843, 1
      %v846 = vor.u32 %v841, %v845
      %v848 = vshll.u32 %v815, 16
      %v850 = vrot.slane %v848, 1
      %v851 = vsel %vm816, %v846, %v850
      %v890 = vunpack.c.l.b16 %v772
      %v891 = vunpack.c.h.b16 %v772
      %v892 = vunpack.c.l.b16 %v773
      %v893 = vunpack.c.h.b16 %v773
      %v894 = vunpack.c.l.b16 %v774
      %v895 = vunpack.c.h.b16 %v774
      %v896 = vunpack.c.l.b16 %v775
      %v897 = vunpack.c.h.b16 %v775
      %v898 = vunpack.c.l.b16 %v776
      %v899 = vunpack.c.h.b16 %v776
      %v900 = vunpack.c.l.b16 %v777
      %v901 = vunpack.c.h.b16 %v777
      %v902 = vunpack.c.l.b16 %v778
      %v903 = vunpack.c.h.b16 %v778
      %v904 = vunpack.c.l.b16 %v779
      %v905 = vunpack.c.h.b16 %v779
      %v906 = vunpack.c.l.b16 %v780
      %v907 = vunpack.c.h.b16 %v780
      %v908 = vunpack.c.l.b16 %v781
      %v909 = vunpack.c.h.b16 %v781
      %v910 = vunpack.c.l.b16 %v782
      %v911 = vunpack.c.h.b16 %v782
      %v912 = vunpack.c.l.b16 %v783
      %v913 = vunpack.c.h.b16 %v783
      %v914 = vunpack.c.l.b16 %v784
      %v915 = vunpack.c.h.b16 %v784
      %v916 = vunpack.c.l.b16 %v785
      %v917 = vunpack.c.h.b16 %v785
      %v918 = vunpack.c.l.b16 %v786
      %v919 = vunpack.c.h.b16 %v786
      %v920 = vunpack.c.l.b16 %v787
      %v921 = vunpack.c.h.b16 %v787
      %v922 = vunpack.c.l.b16 %v788
      %v923 = vunpack.c.h.b16 %v788
      %v924 = vunpack.c.l.b16 %v789
      %v925 = vunpack.c.h.b16 %v789
      %v926 = vunpack.c.l.b16 %v790
      %v927 = vunpack.c.h.b16 %v790
      %v928 = vunpack.c.l.b16 %v791
      %v929 = vunpack.c.h.b16 %v791
      %v930 = vunpack.c.l.b16 %v792
      %v931 = vunpack.c.h.b16 %v792
      %v932 = vunpack.c.l.b16 %v793
      %v933 = vunpack.c.h.b16 %v793
      %v934 = vunpack.c.l.b16 %v794
      %v935 = vunpack.c.h.b16 %v794
      %v936 = vunpack.c.l.b16 %v795
      %v937 = vunpack.c.h.b16 %v795
      %v938 = vunpack.c.l.b16 %v796
      %v939 = vunpack.c.h.b16 %v796
      %v940 = vunpack.c.l.b16 %v797
      %v941 = vunpack.c.h.b16 %v797
      %v942 = vunpack.c.l.b16 %v798
      %v943 = vunpack.c.h.b16 %v798
      %v944 = vunpack.c.l.b16 %v799
      %v945 = vunpack.c.h.b16 %v799
      %v946 = vunpack.c.l.b16 %v800
      %v947 = vunpack.c.h.b16 %v800
      %v948 = vunpack.c.l.b16 %v801
      %v949 = vunpack.c.h.b16 %v801
      %v950 = vunpack.c.l.b16 %v802
      %v951 = vunpack.c.h.b16 %v802
      %v952 = vunpack.c.l.b16 %v803
      %v953 = vunpack.c.h.b16 %v803
      %v954 = vunpack.c.l.b16 %v804
      %v955 = vunpack.c.h.b16 %v804
      %v956 = vunpack.c.l.b16 %v805
      %v957 = vunpack.c.h.b16 %v805
      %v958 = vunpack.c.l.b16 %v806
      %v959 = vunpack.c.h.b16 %v806
      %v960 = vunpack.c.l.b16 %v807
      %v961 = vunpack.c.h.b16 %v807
      %v962 = vpack.c.b16 %v892, %v890
      %v963 = vpack.c.b16 %v893, %v891
      %v964 = vpack.c.b16 %v896, %v894
      %v965 = vpack.c.b16 %v897, %v895
      %v966 = vpack.c.b16 %v900, %v898
      %v967 = vpack.c.b16 %v901, %v899
      %v968 = vpack.c.b16 %v904, %v902
      %v969 = vpack.c.b16 %v905, %v903
      %v970 = vpack.c.b16 %v908, %v906
      %v971 = vpack.c.b16 %v909, %v907
      %v972 = vpack.c.b16 %v912, %v910
      %v973 = vpack.c.b16 %v913, %v911
      %v974 = vpack.c.b16 %v916, %v914
      %v975 = vpack.c.b16 %v917, %v915
      %v976 = vpack.c.b16 %v920, %v918
      %v977 = vpack.c.b16 %v921, %v919
      %v978 = vpack.c.b16 %v924, %v922
      %v979 = vpack.c.b16 %v925, %v923
      %v980 = vpack.c.b16 %v928, %v926
      %v981 = vpack.c.b16 %v929, %v927
      %v982 = vpack.c.b16 %v932, %v930
      %v983 = vpack.c.b16 %v933, %v931
      %v984 = vpack.c.b16 %v936, %v934
      %v985 = vpack.c.b16 %v937, %v935
      %v986 = vpack.c.b16 %v940, %v938
      %v987 = vpack.c.b16 %v941, %v939
      %v988 = vpack.c.b16 %v944, %v942
      %v989 = vpack.c.b16 %v945, %v943
      %v990 = vpack.c.b16 %v948, %v946
      %v991 = vpack.c.b16 %v949, %v947
      %v992 = vpack.c.b16 %v952, %v950
      %v993 = vpack.c.b16 %v953, %v951
      %v994 = vpack.c.b16 %v956, %v954
      %v995 = vpack.c.b16 %v957, %v955
      %v996 = vpack.c.b16 %v960, %v958
      %v997 = vpack.c.b16 %v961, %v959
      %v1035 = vsel %vm666, %v851, 0
      %1037 = vmatprep.subr.bf16.mxu0 %v977
      %1038 = vmatpush1.bf16.msra.mxu0 %v976
      %1039 = vmatprep.subr.bf16.mxu0 %v975
      %1040 = vmatpush1.bf16.msra.mxu0 %v974
      %1041 = vmatprep.subr.bf16.mxu0 %v973
      %1042 = vmatpush1.bf16.msra.mxu0 %v972
      %1043 = vmatprep.subr.bf16.mxu0 %v971
      %1044 = vmatpush1.bf16.msra.mxu0 %v970
      %1045 = vmatprep.subr.bf16.mxu0 %v969
      %1046 = vmatpush1.bf16.msra.mxu0 %v968
      %1047 = vmatprep.subr.bf16.mxu0 %v967
      %1048 = vmatpush1.bf16.msra.mxu0 %v966
      %1049 = vmatprep.subr.bf16.mxu0 %v965
      %1050 = vmatpush1.bf16.msra.mxu0 %v964
      %1051 = vmatprep.subr.bf16.mxu0 %v963
      %1052 = vmatpush1.bf16.msra.mxu0 %v962
      %1053 = vmatprep.subr.bf16.mxu0 %v993
      %1054 = vmatpush2.bf16.msra.mxu0 %v992
      %1055 = vmatprep.subr.bf16.mxu0 %v991
      %1056 = vmatpush2.bf16.msra.mxu0 %v990
      %1057 = vmatprep.subr.bf16.mxu0 %v989
      %1058 = vmatpush2.bf16.msra.mxu0 %v988
      %1059 = vmatprep.subr.bf16.mxu0 %v987
      %1060 = vmatpush2.bf16.msra.mxu0 %v986
      %1061 = vmatprep.subr.bf16.mxu0 %v985
      %1062 = vmatpush2.bf16.msra.mxu0 %v984
      %1063 = vmatprep.subr.bf16.mxu0 %v983
      %1064 = vmatpush2.bf16.msra.mxu0 %v982
      %1065 = vmatprep.subr.bf16.mxu0 %v981
      %1066 = vmatpush2.bf16.msra.mxu0 %v980
      %1067 = vmatprep.subr.bf16.mxu0 %v979
      %1068 = vmatpush2.bf16.msra.mxu0 %v978
      %1069 = vmatprep.mubr.bf16.mxu0 %v840
      %1070 = vmatmul.mubr.bf16.gmra.mxu0 %v828
      %v1071 = vpop.f32.mrf.mxu0
      %v1072 = vadd.f32 0.0, %v1071
      %v1073 = vpop.f32.mrf.mxu0
      %v1074 = vadd.f32 0.0, %v1073
      %v1075 = vpop.f32.mrf.mxu0
      %v1076 = vadd.f32 0.0, %v1075
      %v1077 = vpop.f32.mrf.mxu0
      %v1078 = vadd.f32 0.0, %v1077
      %1079 = vdwg.mxu0
      %1080 = vmatprep.subr.bf16.mxu0 0
      %1081 = vmatpush1.bf16.msra.mxu0 0
      %1082 = vmatprep.subr.bf16.mxu0 0
      %1083 = vmatpush1.bf16.msra.mxu0 0
      %1084 = vmatprep.subr.bf16.mxu0 0
      %1085 = vmatpush1.bf16.msra.mxu0 0
      %1086 = vmatprep.subr.bf16.mxu0 0
      %1087 = vmatpush1.bf16.msra.mxu0 0
      %1088 = vmatprep.subr.bf16.mxu0 0
      %1089 = vmatpush1.bf16.msra.mxu0 0
      %1090 = vmatprep.subr.bf16.mxu0 0
      %1091 = vmatpush1.bf16.msra.mxu0 0
      %1092 = vmatprep.subr.bf16.mxu0 %v997
      %1093 = vmatpush1.bf16.msra.mxu0 %v996
      %1094 = vmatprep.subr.bf16.mxu0 %v995
      %1095 = vmatpush1.bf16.msra.mxu0 %v994
      %1096 = vmatprep.subr.bf16.mxu0 0
      %1097 = vmatpush2.bf16.msra.mxu0 0
      %1098 = vmatprep.subr.bf16.mxu0 0
      %1099 = vmatpush2.bf16.msra.mxu0 0
      %1100 = vmatprep.subr.bf16.mxu0 0
      %1101 = vmatpush2.bf16.msra.mxu0 0
      %1102 = vmatprep.subr.bf16.mxu0 0
      %1103 = vmatpush2.bf16.msra.mxu0 0
      %1104 = vmatprep.subr.bf16.mxu0 0
      %1105 = vmatpush2.bf16.msra.mxu0 0
      %1106 = vmatprep.subr.bf16.mxu0 0
      %1107 = vmatpush2.bf16.msra.mxu0 0
      %1108 = vmatprep.subr.bf16.mxu0 0
      %1109 = vmatpush2.bf16.msra.mxu0 0
      %1110 = vmatprep.subr.bf16.mxu0 0
      %1111 = vmatpush2.bf16.msra.mxu0 0
      %1112 = vmatprep.mubr.bf16.mxu0 0
      %1113 = vmatmul.mubr.bf16.gmra.mxu0 %v1035
      %v1114 = vpop.f32.mrf.mxu0
      %v1115 = vadd.f32 %v1072, %v1114
      %v1116 = vpop.f32.mrf.mxu0
      %v1117 = vadd.f32 %v1074, %v1116
      %v1118 = vpop.f32.mrf.mxu0
      %v1119 = vadd.f32 %v1076, %v1118
      %v1120 = vpop.f32.mrf.mxu0
      %v1121 = vadd.f32 %v1078, %v1120
      %1122 = vdwg.mxu0
      %v1123 = vadd.f32 %v767, %v1115
      %v1124 = vadd.f32 %v768, %v1117
      %v1125 = vadd.f32 %v769, %v1119
      %v1126 = vadd.f32 %v770, %v1121
      %s1127 = scalar_lea.vmem %s1, 576
      %v1128 = vld [vmem:[%s1127] sm:$0xff]
      %v1129 = vld [vmem:[%s1127 + $0x8] sm:$0xff]
      %v1130 = vld [vmem:[%s1127 + $0x10] sm:$0xff]
      %v1131 = vld [vmem:[%s1127 + $0x18] sm:$0xff]
      %v1132 = vld [vmem:[%s1127 + $0x20] sm:$0xff]
      %v1133 = vld [vmem:[%s1127 + $0x28] sm:$0xff]
      %v1134 = vld [vmem:[%s1127 + $0x30] sm:$0xff]
      %v1135 = vld [vmem:[%s1127 + $0x38] sm:$0xff]
      %v1136 = vld [vmem:[%s1127 + $0x40] sm:$0xff]
      %v1137 = vld [vmem:[%s1127 + $0x48] sm:$0xff]
      %v1138 = vld [vmem:[%s1127 + $0x50] sm:$0xff]
      %v1139 = vld [vmem:[%s1127 + $0x58] sm:$0xff]
      %v1140 = vld [vmem:[%s1127 + $0x60] sm:$0xff]
      %v1141 = vld [vmem:[%s1127 + $0x68] sm:$0xff]
      %v1142 = vld [vmem:[%s1127 + $0x70] sm:$0xff]
      %v1143 = vld [vmem:[%s1127 + $0x78] sm:$0xff]
      %v1144 = vld [vmem:[%s1127 + $0x80] sm:$0xff]
      %v1145 = vld [vmem:[%s1127 + $0x88] sm:$0xff]
      %v1146 = vld [vmem:[%s1127 + $0x90] sm:$0xff]
      %v1147 = vld [vmem:[%s1127 + $0x98] sm:$0xff]
      %v1148 = vld [vmem:[%s1127 + $0xa0] sm:$0xff]
      %v1149 = vld [vmem:[%s1127 + $0xa8] sm:$0xff]
      %v1150 = vld [vmem:[%s1127 + $0xb0] sm:$0xff]
      %v1151 = vld [vmem:[%s1127 + $0xb8] sm:$0xff]
      %v1152 = vld [vmem:[%s1127 + $0xc0] sm:$0xff]
      %v1153 = vld [vmem:[%s1127 + $0xc8] sm:$0xff]
      %v1154 = vld [vmem:[%s1127 + $0xd0] sm:$0xff]
      %v1155 = vld [vmem:[%s1127 + $0xd8] sm:$0xff]
      %v1156 = vld [vmem:[%s1127 + $0xe0] sm:$0xff]
      %v1157 = vld [vmem:[%s1127 + $0xe8] sm:$0xff]
      %v1158 = vld [vmem:[%s1127 + $0xf0] sm:$0xff]
      %v1159 = vld [vmem:[%s1127 + $0xf8] sm:$0xff]
      %v1160 = vld [vmem:[%s1127 + $0x100] sm:$0xff]
      %v1161 = vld [vmem:[%s1127 + $0x108] sm:$0xff]
      %v1162 = vld [vmem:[%s1127 + $0x110] sm:$0xff]
      %v1163 = vld [vmem:[%s1127 + $0x118] sm:$0xff]
      %vm1164 = vcmask 1046528
      %v1165 = vrot.slane %v481, 1
      %v1166 = vrot.slane %v813, 1
      %v1167 = vsel %vm1164, %v1165, %v1166
      %v1168 = vrot.slane %v482, 1
      %v1169 = vrot.slane %v814, 1
      %v1170 = vsel %vm1164, %v1168, %v1169
      %v1171 = vrot.slane %v483, 1
      %v1172 = vrot.slane %v815, 1
      %v1173 = vsel %vm1164, %v1171, %v1172
      %v1212 = vunpack.c.l.b16 %v1128
      %v1213 = vunpack.c.h.b16 %v1128
      %v1214 = vunpack.c.l.b16 %v1129
      %v1215 = vunpack.c.h.b16 %v1129
      %v1216 = vunpack.c.l.b16 %v1130
      %v1217 = vunpack.c.h.b16 %v1130
      %v1218 = vunpack.c.l.b16 %v1131
      %v1219 = vunpack.c.h.b16 %v1131
      %v1220 = vunpack.c.l.b16 %v1132
      %v1221 = vunpack.c.h.b16 %v1132
      %v1222 = vunpack.c.l.b16 %v1133
      %v1223 = vunpack.c.h.b16 %v1133
      %v1224 = vunpack.c.l.b16 %v1134
      %v1225 = vunpack.c.h.b16 %v1134
      %v1226 = vunpack.c.l.b16 %v1135
      %v1227 = vunpack.c.h.b16 %v1135
      %v1228 = vunpack.c.l.b16 %v1136
      %v1229 = vunpack.c.h.b16 %v1136
      %v1230 = vunpack.c.l.b16 %v1137
      %v1231 = vunpack.c.h.b16 %v1137
      %v1232 = vunpack.c.l.b16 %v1138
      %v1233 = vunpack.c.h.b16 %v1138
      %v1234 = vunpack.c.l.b16 %v1139
      %v1235 = vunpack.c.h.b16 %v1139
      %v1236 = vunpack.c.l.b16 %v1140
      %v1237 = vunpack.c.h.b16 %v1140
      %v1238 = vunpack.c.l.b16 %v1141
      %v1239 = vunpack.c.h.b16 %v1141
      %v1240 = vunpack.c.l.b16 %v1142
      %v1241 = vunpack.c.h.b16 %v1142
      %v1242 = vunpack.c.l.b16 %v1143
      %v1243 = vunpack.c.h.b16 %v1143
      %v1244 = vunpack.c.l.b16 %v1144
      %v1245 = vunpack.c.h.b16 %v1144
      %v1246 = vunpack.c.l.b16 %v1145
      %v1247 = vunpack.c.h.b16 %v1145
      %v1248 = vunpack.c.l.b16 %v1146
      %v1249 = vunpack.c.h.b16 %v1146
      %v1250 = vunpack.c.l.b16 %v1147
      %v1251 = vunpack.c.h.b16 %v1147
      %v1252 = vunpack.c.l.b16 %v1148
      %v1253 = vunpack.c.h.b16 %v1148
      %v1254 = vunpack.c.l.b16 %v1149
      %v1255 = vunpack.c.h.b16 %v1149
      %v1256 = vunpack.c.l.b16 %v1150
      %v1257 = vunpack.c.h.b16 %v1150
      %v1258 = vunpack.c.l.b16 %v1151
      %v1259 = vunpack.c.h.b16 %v1151
      %v1260 = vunpack.c.l.b16 %v1152
      %v1261 = vunpack.c.h.b16 %v1152
      %v1262 = vunpack.c.l.b16 %v1153
      %v1263 = vunpack.c.h.b16 %v1153
      %v1264 = vunpack.c.l.b16 %v1154
      %v1265 = vunpack.c.h.b16 %v1154
      %v1266 = vunpack.c.l.b16 %v1155
      %v1267 = vunpack.c.h.b16 %v1155
      %v1268 = vunpack.c.l.b16 %v1156
      %v1269 = vunpack.c.h.b16 %v1156
      %v1270 = vunpack.c.l.b16 %v1157
      %v1271 = vunpack.c.h.b16 %v1157
      %v1272 = vunpack.c.l.b16 %v1158
      %v1273 = vunpack.c.h.b16 %v1158
      %v1274 = vunpack.c.l.b16 %v1159
      %v1275 = vunpack.c.h.b16 %v1159
      %v1276 = vunpack.c.l.b16 %v1160
      %v1277 = vunpack.c.h.b16 %v1160
      %v1278 = vunpack.c.l.b16 %v1161
      %v1279 = vunpack.c.h.b16 %v1161
      %v1280 = vunpack.c.l.b16 %v1162
      %v1281 = vunpack.c.h.b16 %v1162
      %v1282 = vunpack.c.l.b16 %v1163
      %v1283 = vunpack.c.h.b16 %v1163
      %v1284 = vpack.c.b16 %v1214, %v1212
      %v1285 = vpack.c.b16 %v1215, %v1213
      %v1286 = vpack.c.b16 %v1218, %v1216
      %v1287 = vpack.c.b16 %v1219, %v1217
      %v1288 = vpack.c.b16 %v1222, %v1220
      %v1289 = vpack.c.b16 %v1223, %v1221
      %v1290 = vpack.c.b16 %v1226, %v1224
      %v1291 = vpack.c.b16 %v1227, %v1225
      %v1292 = vpack.c.b16 %v1230, %v1228
      %v1293 = vpack.c.b16 %v1231, %v1229
      %v1294 = vpack.c.b16 %v1234, %v1232
      %v1295 = vpack.c.b16 %v1235, %v1233
      %v1296 = vpack.c.b16 %v1238, %v1236
      %v1297 = vpack.c.b16 %v1239, %v1237
      %v1298 = vpack.c.b16 %v1242, %v1240
      %v1299 = vpack.c.b16 %v1243, %v1241
      %v1300 = vpack.c.b16 %v1246, %v1244
      %v1301 = vpack.c.b16 %v1247, %v1245
      %v1302 = vpack.c.b16 %v1250, %v1248
      %v1303 = vpack.c.b16 %v1251, %v1249
      %v1304 = vpack.c.b16 %v1254, %v1252
      %v1305 = vpack.c.b16 %v1255, %v1253
      %v1306 = vpack.c.b16 %v1258, %v1256
      %v1307 = vpack.c.b16 %v1259, %v1257
      %v1308 = vpack.c.b16 %v1262, %v1260
      %v1309 = vpack.c.b16 %v1263, %v1261
      %v1310 = vpack.c.b16 %v1266, %v1264
      %v1311 = vpack.c.b16 %v1267, %v1265
      %v1312 = vpack.c.b16 %v1270, %v1268
      %v1313 = vpack.c.b16 %v1271, %v1269
      %v1314 = vpack.c.b16 %v1274, %v1272
      %v1315 = vpack.c.b16 %v1275, %v1273
      %v1316 = vpack.c.b16 %v1278, %v1276
      %v1317 = vpack.c.b16 %v1279, %v1277
      %v1318 = vpack.c.b16 %v1282, %v1280
      %v1319 = vpack.c.b16 %v1283, %v1281
      %v1357 = vsel %vm666, %v1173, 0
      %1359 = vmatprep.subr.bf16.mxu0 %v1299
      %1360 = vmatpush1.bf16.msra.mxu0 %v1298
      %1361 = vmatprep.subr.bf16.mxu0 %v1297
      %1362 = vmatpush1.bf16.msra.mxu0 %v1296
      %1363 = vmatprep.subr.bf16.mxu0 %v1295
      %1364 = vmatpush1.bf16.msra.mxu0 %v1294
      %1365 = vmatprep.subr.bf16.mxu0 %v1293
      %1366 = vmatpush1.bf16.msra.mxu0 %v1292
      %1367 = vmatprep.subr.bf16.mxu0 %v1291
      %1368 = vmatpush1.bf16.msra.mxu0 %v1290
      %1369 = vmatprep.subr.bf16.mxu0 %v1289
      %1370 = vmatpush1.bf16.msra.mxu0 %v1288
      %1371 = vmatprep.subr.bf16.mxu0 %v1287
      %1372 = vmatpush1.bf16.msra.mxu0 %v1286
      %1373 = vmatprep.subr.bf16.mxu0 %v1285
      %1374 = vmatpush1.bf16.msra.mxu0 %v1284
      %1375 = vmatprep.subr.bf16.mxu0 %v1315
      %1376 = vmatpush2.bf16.msra.mxu0 %v1314
      %1377 = vmatprep.subr.bf16.mxu0 %v1313
      %1378 = vmatpush2.bf16.msra.mxu0 %v1312
      %1379 = vmatprep.subr.bf16.mxu0 %v1311
      %1380 = vmatpush2.bf16.msra.mxu0 %v1310
      %1381 = vmatprep.subr.bf16.mxu0 %v1309
      %1382 = vmatpush2.bf16.msra.mxu0 %v1308
      %1383 = vmatprep.subr.bf16.mxu0 %v1307
      %1384 = vmatpush2.bf16.msra.mxu0 %v1306
      %1385 = vmatprep.subr.bf16.mxu0 %v1305
      %1386 = vmatpush2.bf16.msra.mxu0 %v1304
      %1387 = vmatprep.subr.bf16.mxu0 %v1303
      %1388 = vmatpush2.bf16.msra.mxu0 %v1302
      %1389 = vmatprep.subr.bf16.mxu0 %v1301
      %1390 = vmatpush2.bf16.msra.mxu0 %v1300
      %1391 = vmatprep.mubr.bf16.mxu0 %v1170
      %1392 = vmatmul.mubr.bf16.gmra.mxu0 %v1167
      %v1393 = vpop.f32.mrf.mxu0
      %v1394 = vadd.f32 0.0, %v1393
      %v1395 = vpop.f32.mrf.mxu0
      %v1396 = vadd.f32 0.0, %v1395
      %v1397 = vpop.f32.mrf.mxu0
      %v1398 = vadd.f32 0.0, %v1397
      %v1399 = vpop.f32.mrf.mxu0
      %v1400 = vadd.f32 0.0, %v1399
      %1401 = vdwg.mxu0
      %1402 = vmatprep.subr.bf16.mxu0 0
      %1403 = vmatpush1.bf16.msra.mxu0 0
      %1404 = vmatprep.subr.bf16.mxu0 0
      %1405 = vmatpush1.bf16.msra.mxu0 0
      %1406 = vmatprep.subr.bf16.mxu0 0
      %1407 = vmatpush1.bf16.msra.mxu0 0
      %1408 = vmatprep.subr.bf16.mxu0 0
      %1409 = vmatpush1.bf16.msra.mxu0 0
      %1410 = vmatprep.subr.bf16.mxu0 0
      %1411 = vmatpush1.bf16.msra.mxu0 0
      %1412 = vmatprep.subr.bf16.mxu0 0
      %1413 = vmatpush1.bf16.msra.mxu0 0
      %1414 = vmatprep.subr.bf16.mxu0 %v1319
      %1415 = vmatpush1.bf16.msra.mxu0 %v1318
      %1416 = vmatprep.subr.bf16.mxu0 %v1317
      %1417 = vmatpush1.bf16.msra.mxu0 %v1316
      %1418 = vmatprep.subr.bf16.mxu0 0
      %1419 = vmatpush2.bf16.msra.mxu0 0
      %1420 = vmatprep.subr.bf16.mxu0 0
      %1421 = vmatpush2.bf16.msra.mxu0 0
      %1422 = vmatprep.subr.bf16.mxu0 0
      %1423 = vmatpush2.bf16.msra.mxu0 0
      %1424 = vmatprep.subr.bf16.mxu0 0
      %1425 = vmatpush2.bf16.msra.mxu0 0
      %1426 = vmatprep.subr.bf16.mxu0 0
      %1427 = vmatpush2.bf16.msra.mxu0 0
      %1428 = vmatprep.subr.bf16.mxu0 0
      %1429 = vmatpush2.bf16.msra.mxu0 0
      %1430 = vmatprep.subr.bf16.mxu0 0
      %1431 = vmatpush2.bf16.msra.mxu0 0
      %1432 = vmatprep.subr.bf16.mxu0 0
      %1433 = vmatpush2.bf16.msra.mxu0 0
      %1434 = vmatprep.mubr.bf16.mxu0 0
      %1435 = vmatmul.mubr.bf16.gmra.mxu0 %v1357
      %v1436 = vpop.f32.mrf.mxu0
      %v1437 = vadd.f32 %v1394, %v1436
      %v1438 = vpop.f32.mrf.mxu0
      %v1439 = vadd.f32 %v1396, %v1438
      %v1440 = vpop.f32.mrf.mxu0
      %v1441 = vadd.f32 %v1398, %v1440
      %v1442 = vpop.f32.mrf.mxu0
      %v1443 = vadd.f32 %v1400, %v1442
      %1444 = vdwg.mxu0
      %v1445 = vadd.f32 %v1123, %v1437
      %v1446 = vadd.f32 %v1124, %v1439
      %v1447 = vadd.f32 %v1125, %v1441
      %v1448 = vadd.f32 %v1126, %v1443
      %v1449 = vunpack.c.l.bf16 %v428
      %v1450 = vunpack.c.h.bf16 %v428
      %v1451 = vunpack.c.l.bf16 %v429
      %v1452 = vunpack.c.l.bf16 %v430
      %v1453 = vunpack.c.h.bf16 %v430
      %v1454 = vunpack.c.l.bf16 %v431
      %v1455 = vunpack.c.l.bf16 %v432
      %v1456 = vunpack.c.h.bf16 %v432
      %v1457 = vunpack.c.l.bf16 %v433
      %v1458 = vmax.f32 %v1445, 0.0
      %v1459 = vmax.f32 %v1446, 0.0
      %v1460 = vmax.f32 %v1447, 0.0
      %v1461 = vmax.f32 %v1448, 0.0
      %v1462 = vpack.c.bf16 %v1460, %v1458
      %v1463 = vpack.c.bf16 %v1461, %v1459
      %1466 = vrot.lane.b32.xlu0 %v1462, 16
      %v1467 = vpop.permute.xlu0 %1466
      %1468 = vrot.lane.b32.xlu0 %v1463, 16
      %v1469 = vpop.permute.xlu0 %1468
      %vm1470 = vcmask 130048
      %v1471 = vsel %vm1470, %v1467, %v1469
      %vm1472 = vcmask 130048
      %v1475 = vsel %vm1472, 0, %v1467
      %v1477 = vsel %vm1472, %v1469, 0
      %v1478 = vshrl.u32 %v1475, 16
      %v1480 = vrot.slane %v1478, 7
      %v1481 = vshll.u32 %v1475, 16
      %v1483 = vor.u32 %v1480, %v1481
      %v1485 = vshrl.u32 %v1471, 16
      %v1487 = vrot.slane %v1485, 7
      %v1488 = vshll.u32 %v1471, 16
      %v1490 = vor.u32 %v1487, %v1488
      %v1491 = vshrl.u32 %v1477, 16
      %v1493 = vrot.slane %v1491, 7
      %v1494 = vshll.u32 %v1477, 16
      %v1496 = vor.u32 %v1493, %v1494
      %vm1503 = vcmask 1040384
      %vm1504 = vsmask.f32 256
      %vm1505 = vmand %vm1503, %vm1504
      %v1506 = vsel %vm1505, 0, %v1483
      %v1507 = vsel %vm1505, 0, %v1490
      %v1508 = vsel %vm1505, 0, %v1496
      %v1509 = vsel %vm1505, %v1480, 0
      %v1510 = vsel %vm1505, %v1487, 0
      %v1511 = vsel %vm1505, %v1493, 0
      %v1512 = vld [vmem:[%s4] sm:$0x3]
      %v1513 = vld [vmem:[%s3] sm:$0xff]
      %v1514 = vld [vmem:[%s3 + $0x8] sm:$0xff]
      %v1515 = vld [vmem:[%s3 + $0x10] sm:$0xff]
      %v1516 = vld [vmem:[%s3 + $0x18] sm:$0xff]
      %v1517 = vld [vmem:[%s3 + $0x20] sm:$0xff]
      %v1518 = vld [vmem:[%s3 + $0x28] sm:$0xff]
      %v1519 = vld [vmem:[%s3 + $0x30] sm:$0xff]
      %v1520 = vld [vmem:[%s3 + $0x38] sm:$0xff]
      %v1521 = vld [vmem:[%s3 + $0x40] sm:$0xff]
      %v1522 = vld [vmem:[%s3 + $0x48] sm:$0xff]
      %v1523 = vld [vmem:[%s3 + $0x50] sm:$0xff]
      %v1524 = vld [vmem:[%s3 + $0x58] sm:$0xff]
      %v1525 = vld [vmem:[%s3 + $0x60] sm:$0xff]
      %v1526 = vld [vmem:[%s3 + $0x68] sm:$0xff]
      %v1527 = vld [vmem:[%s3 + $0x70] sm:$0xff]
      %v1528 = vld [vmem:[%s3 + $0x78] sm:$0xff]
      %v1529 = vld [vmem:[%s3 + $0x80] sm:$0xff]
      %v1530 = vld [vmem:[%s3 + $0x88] sm:$0xff]
      %v1531 = vld [vmem:[%s3 + $0x90] sm:$0xff]
      %v1532 = vld [vmem:[%s3 + $0x98] sm:$0xff]
      %v1533 = vld [vmem:[%s3 + $0xa0] sm:$0xff]
      %v1534 = vld [vmem:[%s3 + $0xa8] sm:$0xff]
      %v1535 = vld [vmem:[%s3 + $0xb0] sm:$0xff]
      %v1536 = vld [vmem:[%s3 + $0xb8] sm:$0xff]
      %v1537 = vld [vmem:[%s3 + $0xc0] sm:$0xff]
      %v1538 = vld [vmem:[%s3 + $0xc8] sm:$0xff]
      %v1539 = vld [vmem:[%s3 + $0xd0] sm:$0xff]
      %v1540 = vld [vmem:[%s3 + $0xd8] sm:$0xff]
      %v1541 = vld [vmem:[%s3 + $0xe0] sm:$0xff]
      %v1542 = vld [vmem:[%s3 + $0xe8] sm:$0xff]
      %v1543 = vld [vmem:[%s3 + $0xf0] sm:$0xff]
      %v1544 = vld [vmem:[%s3 + $0xf8] sm:$0xff]
      %v1545 = vld [vmem:[%s3 + $0x100] sm:$0xff]
      %v1546 = vld [vmem:[%s3 + $0x108] sm:$0xff]
      %v1547 = vld [vmem:[%s3 + $0x110] sm:$0xff]
      %v1548 = vld [vmem:[%s3 + $0x118] sm:$0xff]
      %v1585 = vunpack.c.l.b16 %v1513
      %v1586 = vunpack.c.h.b16 %v1513
      %v1587 = vunpack.c.l.b16 %v1514
      %v1588 = vunpack.c.h.b16 %v1514
      %v1589 = vunpack.c.l.b16 %v1515
      %v1590 = vunpack.c.h.b16 %v1515
      %v1591 = vunpack.c.l.b16 %v1516
      %v1592 = vunpack.c.h.b16 %v1516
      %v1593 = vunpack.c.l.b16 %v1517
      %v1594 = vunpack.c.h.b16 %v1517
      %v1595 = vunpack.c.l.b16 %v1518
      %v1596 = vunpack.c.h.b16 %v1518
      %v1597 = vunpack.c.l.b16 %v1519
      %v1598 = vunpack.c.h.b16 %v1519
      %v1599 = vunpack.c.l.b16 %v1520
      %v1600 = vunpack.c.h.b16 %v1520
      %v1601 = vunpack.c.l.b16 %v1521
      %v1602 = vunpack.c.h.b16 %v1521
      %v1603 = vunpack.c.l.b16 %v1522
      %v1604 = vunpack.c.h.b16 %v1522
      %v1605 = vunpack.c.l.b16 %v1523
      %v1606 = vunpack.c.h.b16 %v1523
      %v1607 = vunpack.c.l.b16 %v1524
      %v1608 = vunpack.c.h.b16 %v1524
      %v1609 = vunpack.c.l.b16 %v1525
      %v1610 = vunpack.c.h.b16 %v1525
      %v1611 = vunpack.c.l.b16 %v1526
      %v1612 = vunpack.c.h.b16 %v1526
      %v1613 = vunpack.c.l.b16 %v1527
      %v1614 = vunpack.c.h.b16 %v1527
      %v1615 = vunpack.c.l.b16 %v1528
      %v1616 = vunpack.c.h.b16 %v1528
      %v1617 = vunpack.c.l.b16 %v1529
      %v1618 = vunpack.c.h.b16 %v1529
      %v1619 = vunpack.c.l.b16 %v1530
      %v1620 = vunpack.c.h.b16 %v1530
      %v1621 = vunpack.c.l.b16 %v1531
      %v1622 = vunpack.c.h.b16 %v1531
      %v1623 = vunpack.c.l.b16 %v1532
      %v1624 = vunpack.c.h.b16 %v1532
      %v1625 = vunpack.c.l.b16 %v1533
      %v1626 = vunpack.c.h.b16 %v1533
      %v1627 = vunpack.c.l.b16 %v1534
      %v1628 = vunpack.c.h.b16 %v1534
      %v1629 = vunpack.c.l.b16 %v1535
      %v1630 = vunpack.c.h.b16 %v1535
      %v1631 = vunpack.c.l.b16 %v1536
      %v1632 = vunpack.c.h.b16 %v1536
      %v1633 = vunpack.c.l.b16 %v1537
      %v1634 = vunpack.c.h.b16 %v1537
      %v1635 = vunpack.c.l.b16 %v1538
      %v1636 = vunpack.c.h.b16 %v1538
      %v1637 = vunpack.c.l.b16 %v1539
      %v1638 = vunpack.c.h.b16 %v1539
      %v1639 = vunpack.c.l.b16 %v1540
      %v1640 = vunpack.c.h.b16 %v1540
      %v1641 = vunpack.c.l.b16 %v1541
      %v1642 = vunpack.c.h.b16 %v1541
      %v1643 = vunpack.c.l.b16 %v1542
      %v1644 = vunpack.c.h.b16 %v1542
      %v1645 = vunpack.c.l.b16 %v1543
      %v1646 = vunpack.c.h.b16 %v1543
      %v1647 = vunpack.c.l.b16 %v1544
      %v1648 = vunpack.c.h.b16 %v1544
      %v1649 = vunpack.c.l.b16 %v1545
      %v1650 = vunpack.c.h.b16 %v1545
      %v1651 = vunpack.c.l.b16 %v1546
      %v1652 = vunpack.c.h.b16 %v1546
      %v1653 = vunpack.c.l.b16 %v1547
      %v1654 = vunpack.c.h.b16 %v1547
      %v1655 = vunpack.c.l.b16 %v1548
      %v1656 = vunpack.c.h.b16 %v1548
      %v1657 = vpack.c.b16 %v1587, %v1585
      %v1658 = vpack.c.b16 %v1588, %v1586
      %v1659 = vpack.c.b16 %v1591, %v1589
      %v1660 = vpack.c.b16 %v1592, %v1590
      %v1661 = vpack.c.b16 %v1595, %v1593
      %v1662 = vpack.c.b16 %v1596, %v1594
      %v1663 = vpack.c.b16 %v1599, %v1597
      %v1664 = vpack.c.b16 %v1600, %v1598
      %v1665 = vpack.c.b16 %v1603, %v1601
      %v1666 = vpack.c.b16 %v1604, %v1602
      %v1667 = vpack.c.b16 %v1607, %v1605
      %v1668 = vpack.c.b16 %v1608, %v1606
      %v1669 = vpack.c.b16 %v1611, %v1609
      %v1670 = vpack.c.b16 %v1612, %v1610
      %v1671 = vpack.c.b16 %v1615, %v1613
      %v1672 = vpack.c.b16 %v1616, %v1614
      %v1673 = vpack.c.b16 %v1619, %v1617
      %v1674 = vpack.c.b16 %v1620, %v1618
      %v1675 = vpack.c.b16 %v1623, %v1621
      %v1676 = vpack.c.b16 %v1624, %v1622
      %v1677 = vpack.c.b16 %v1627, %v1625
      %v1678 = vpack.c.b16 %v1628, %v1626
      %v1679 = vpack.c.b16 %v1631, %v1629
      %v1680 = vpack.c.b16 %v1632, %v1630
      %v1681 = vpack.c.b16 %v1635, %v1633
      %v1682 = vpack.c.b16 %v1636, %v1634
      %v1683 = vpack.c.b16 %v1639, %v1637
      %v1684 = vpack.c.b16 %v1640, %v1638
      %v1685 = vpack.c.b16 %v1643, %v1641
      %v1686 = vpack.c.b16 %v1644, %v1642
      %v1687 = vpack.c.b16 %v1647, %v1645
      %v1688 = vpack.c.b16 %v1648, %v1646
      %v1689 = vpack.c.b16 %v1651, %v1649
      %v1690 = vpack.c.b16 %v1652, %v1650
      %v1691 = vpack.c.b16 %v1655, %v1653
      %v1692 = vpack.c.b16 %v1656, %v1654
      %v1730 = vsel %vm666, %v1508, 0
      %1732 = vmatprep.subr.bf16.mxu0 %v1672
      %1733 = vmatpush1.bf16.msra.mxu0 %v1671
      %1734 = vmatprep.subr.bf16.mxu0 %v1670
      %1735 = vmatpush1.bf16.msra.mxu0 %v1669
      %1736 = vmatprep.subr.bf16.mxu0 %v1668
      %1737 = vmatpush1.bf16.msra.mxu0 %v1667
      %1738 = vmatprep.subr.bf16.mxu0 %v1666
      %1739 = vmatpush1.bf16.msra.mxu0 %v1665
      %1740 = vmatprep.subr.bf16.mxu0 %v1664
      %1741 = vmatpush1.bf16.msra.mxu0 %v1663
      %1742 = vmatprep.subr.bf16.mxu0 %v1662
      %1743 = vmatpush1.bf16.msra.mxu0 %v1661
      %1744 = vmatprep.subr.bf16.mxu0 %v1660
      %1745 = vmatpush1.bf16.msra.mxu0 %v1659
      %1746 = vmatprep.subr.bf16.mxu0 %v1658
      %1747 = vmatpush1.bf16.msra.mxu0 %v1657
      %1748 = vmatprep.subr.bf16.mxu0 %v1688
      %1749 = vmatpush2.bf16.msra.mxu0 %v1687
      %1750 = vmatprep.subr.bf16.mxu0 %v1686
      %1751 = vmatpush2.bf16.msra.mxu0 %v1685
      %1752 = vmatprep.subr.bf16.mxu0 %v1684
      %1753 = vmatpush2.bf16.msra.mxu0 %v1683
      %1754 = vmatprep.subr.bf16.mxu0 %v1682
      %1755 = vmatpush2.bf16.msra.mxu0 %v1681
      %1756 = vmatprep.subr.bf16.mxu0 %v1680
      %1757 = vmatpush2.bf16.msra.mxu0 %v1679
      %1758 = vmatprep.subr.bf16.mxu0 %v1678
      %1759 = vmatpush2.bf16.msra.mxu0 %v1677
      %1760 = vmatprep.subr.bf16.mxu0 %v1676
      %1761 = vmatpush2.bf16.msra.mxu0 %v1675
      %1762 = vmatprep.subr.bf16.mxu0 %v1674
      %1763 = vmatpush2.bf16.msra.mxu0 %v1673
      %1764 = vmatprep.mubr.bf16.mxu0 %v1507
      %1765 = vmatmul.mubr.bf16.gmra.mxu0 %v1506
      %v1766 = vpop.f32.mrf.mxu0
      %v1767 = vadd.f32 0.0, %v1766
      %v1768 = vpop.f32.mrf.mxu0
      %v1769 = vadd.f32 0.0, %v1768
      %v1770 = vpop.f32.mrf.mxu0
      %v1771 = vadd.f32 0.0, %v1770
      %v1772 = vpop.f32.mrf.mxu0
      %v1773 = vadd.f32 0.0, %v1772
      %1774 = vdwg.mxu0
      %1775 = vmatprep.subr.bf16.mxu0 0
      %1776 = vmatpush1.bf16.msra.mxu0 0
      %1777 = vmatprep.subr.bf16.mxu0 0
      %1778 = vmatpush1.bf16.msra.mxu0 0
      %1779 = vmatprep.subr.bf16.mxu0 0
      %1780 = vmatpush1.bf16.msra.mxu0 0
      %1781 = vmatprep.subr.bf16.mxu0 0
      %1782 = vmatpush1.bf16.msra.mxu0 0
      %1783 = vmatprep.subr.bf16.mxu0 0
      %1784 = vmatpush1.bf16.msra.mxu0 0
      %1785 = vmatprep.subr.bf16.mxu0 0
      %1786 = vmatpush1.bf16.msra.mxu0 0
      %1787 = vmatprep.subr.bf16.mxu0 %v1692
      %1788 = vmatpush1.bf16.msra.mxu0 %v1691
      %1789 = vmatprep.subr.bf16.mxu0 %v1690
      %1790 = vmatpush1.bf16.msra.mxu0 %v1689
      %1791 = vmatprep.subr.bf16.mxu0 0
      %1792 = vmatpush2.bf16.msra.mxu0 0
      %1793 = vmatprep.subr.bf16.mxu0 0
      %1794 = vmatpush2.bf16.msra.mxu0 0
      %1795 = vmatprep.subr.bf16.mxu0 0
      %1796 = vmatpush2.bf16.msra.mxu0 0
      %1797 = vmatprep.subr.bf16.mxu0 0
      %1798 = vmatpush2.bf16.msra.mxu0 0
      %1799 = vmatprep.subr.bf16.mxu0 0
      %1800 = vmatpush2.bf16.msra.mxu0 0
      %1801 = vmatprep.subr.bf16.mxu0 0
      %1802 = vmatpush2.bf16.msra.mxu0 0
      %1803 = vmatprep.subr.bf16.mxu0 0
      %1804 = vmatpush2.bf16.msra.mxu0 0
      %1805 = vmatprep.subr.bf16.mxu0 0
      %1806 = vmatpush2.bf16.msra.mxu0 0
      %1807 = vmatprep.mubr.bf16.mxu0 0
      %1808 = vmatmul.mubr.bf16.gmra.mxu0 %v1730
      %v1809 = vpop.f32.mrf.mxu0
      %v1810 = vadd.f32 %v1767, %v1809
      %v1811 = vpop.f32.mrf.mxu0
      %v1812 = vadd.f32 %v1769, %v1811
      %v1813 = vpop.f32.mrf.mxu0
      %v1814 = vadd.f32 %v1771, %v1813
      %v1815 = vpop.f32.mrf.mxu0
      %v1816 = vadd.f32 %v1773, %v1815
      %1817 = vdwg.mxu0
      %v1819 = vlaneseq
      %v1820 = vshrl.u32 %v1819, 7
      %v1821 = vsub.s32 0, %v1820
      %v1822 = vrot.slane %v1512, %v1821
      %v1823 = vlaneseq
      %v1824 = vshrl.u32 %v1823, 7
      %v1825 = vsub.s32 1, %v1824
      %v1826 = vrot.slane %v1512, %v1825
      %v1829 = vadd.f32 %v1822, %v1810
      %v1830 = vadd.f32 %v1826, %v1812
      %v1831 = vadd.f32 %v1822, %v1814
      %v1832 = vadd.f32 %v1826, %v1816
      %s1833 = scalar_lea.vmem %s3, 288
      %v1834 = vld [vmem:[%s1833] sm:$0xff]
      %v1835 = vld [vmem:[%s1833 + $0x8] sm:$0xff]
      %v1836 = vld [vmem:[%s1833 + $0x10] sm:$0xff]
      %v1837 = vld [vmem:[%s1833 + $0x18] sm:$0xff]
      %v1838 = vld [vmem:[%s1833 + $0x20] sm:$0xff]
      %v1839 = vld [vmem:[%s1833 + $0x28] sm:$0xff]
      %v1840 = vld [vmem:[%s1833 + $0x30] sm:$0xff]
      %v1841 = vld [vmem:[%s1833 + $0x38] sm:$0xff]
      %v1842 = vld [vmem:[%s1833 + $0x40] sm:$0xff]
      %v1843 = vld [vmem:[%s1833 + $0x48] sm:$0xff]
      %v1844 = vld [vmem:[%s1833 + $0x50] sm:$0xff]
      %v1845 = vld [vmem:[%s1833 + $0x58] sm:$0xff]
      %v1846 = vld [vmem:[%s1833 + $0x60] sm:$0xff]
      %v1847 = vld [vmem:[%s1833 + $0x68] sm:$0xff]
      %v1848 = vld [vmem:[%s1833 + $0x70] sm:$0xff]
      %v1849 = vld [vmem:[%s1833 + $0x78] sm:$0xff]
      %v1850 = vld [vmem:[%s1833 + $0x80] sm:$0xff]
      %v1851 = vld [vmem:[%s1833 + $0x88] sm:$0xff]
      %v1852 = vld [vmem:[%s1833 + $0x90] sm:$0xff]
      %v1853 = vld [vmem:[%s1833 + $0x98] sm:$0xff]
      %v1854 = vld [vmem:[%s1833 + $0xa0] sm:$0xff]
      %v1855 = vld [vmem:[%s1833 + $0xa8] sm:$0xff]
      %v1856 = vld [vmem:[%s1833 + $0xb0] sm:$0xff]
      %v1857 = vld [vmem:[%s1833 + $0xb8] sm:$0xff]
      %v1858 = vld [vmem:[%s1833 + $0xc0] sm:$0xff]
      %v1859 = vld [vmem:[%s1833 + $0xc8] sm:$0xff]
      %v1860 = vld [vmem:[%s1833 + $0xd0] sm:$0xff]
      %v1861 = vld [vmem:[%s1833 + $0xd8] sm:$0xff]
      %v1862 = vld [vmem:[%s1833 + $0xe0] sm:$0xff]
      %v1863 = vld [vmem:[%s1833 + $0xe8] sm:$0xff]
      %v1864 = vld [vmem:[%s1833 + $0xf0] sm:$0xff]
      %v1865 = vld [vmem:[%s1833 + $0xf8] sm:$0xff]
      %v1866 = vld [vmem:[%s1833 + $0x100] sm:$0xff]
      %v1867 = vld [vmem:[%s1833 + $0x108] sm:$0xff]
      %v1868 = vld [vmem:[%s1833 + $0x110] sm:$0xff]
      %v1869 = vld [vmem:[%s1833 + $0x118] sm:$0xff]
      %v1871 = vshrl.u32 %v1506, 16
      %v1873 = vshll.u32 %v1506, 16
      %v1875 = vrot.slane %v1873, 1
      %v1876 = vor.u32 %v1871, %v1875
      %v1878 = vshll.u32 %v1509, 16
      %v1880 = vrot.slane %v1878, 1
      %v1881 = vsel %vm816, %v1876, %v1880
      %v1883 = vshrl.u32 %v1507, 16
      %v1885 = vshll.u32 %v1507, 16
      %v1887 = vrot.slane %v1885, 1
      %v1888 = vor.u32 %v1883, %v1887
      %v1890 = vshll.u32 %v1510, 16
      %v1892 = vrot.slane %v1890, 1
      %v1893 = vsel %vm816, %v1888, %v1892
      %v1894 = vshrl.u32 %v1508, 16
      %v1896 = vshll.u32 %v1508, 16
      %v1898 = vrot.slane %v1896, 1
      %v1899 = vor.u32 %v1894, %v1898
      %v1901 = vshll.u32 %v1511, 16
      %v1903 = vrot.slane %v1901, 1
      %v1904 = vsel %vm816, %v1899, %v1903
      %v1943 = vunpack.c.l.b16 %v1834
      %v1944 = vunpack.c.h.b16 %v1834
      %v1945 = vunpack.c.l.b16 %v1835
      %v1946 = vunpack.c.h.b16 %v1835
      %v1947 = vunpack.c.l.b16 %v1836
      %v1948 = vunpack.c.h.b16 %v1836
      %v1949 = vunpack.c.l.b16 %v1837
      %v1950 = vunpack.c.h.b16 %v1837
      %v1951 = vunpack.c.l.b16 %v1838
      %v1952 = vunpack.c.h.b16 %v1838
      %v1953 = vunpack.c.l.b16 %v1839
      %v1954 = vunpack.c.h.b16 %v1839
      %v1955 = vunpack.c.l.b16 %v1840
      %v1956 = vunpack.c.h.b16 %v1840
      %v1957 = vunpack.c.l.b16 %v1841
      %v1958 = vunpack.c.h.b16 %v1841
      %v1959 = vunpack.c.l.b16 %v1842
      %v1960 = vunpack.c.h.b16 %v1842
      %v1961 = vunpack.c.l.b16 %v1843
      %v1962 = vunpack.c.h.b16 %v1843
      %v1963 = vunpack.c.l.b16 %v1844
      %v1964 = vunpack.c.h.b16 %v1844
      %v1965 = vunpack.c.l.b16 %v1845
      %v1966 = vunpack.c.h.b16 %v1845
      %v1967 = vunpack.c.l.b16 %v1846
      %v1968 = vunpack.c.h.b16 %v1846
      %v1969 = vunpack.c.l.b16 %v1847
      %v1970 = vunpack.c.h.b16 %v1847
      %v1971 = vunpack.c.l.b16 %v1848
      %v1972 = vunpack.c.h.b16 %v1848
      %v1973 = vunpack.c.l.b16 %v1849
      %v1974 = vunpack.c.h.b16 %v1849
      %v1975 = vunpack.c.l.b16 %v1850
      %v1976 = vunpack.c.h.b16 %v1850
      %v1977 = vunpack.c.l.b16 %v1851
      %v1978 = vunpack.c.h.b16 %v1851
      %v1979 = vunpack.c.l.b16 %v1852
      %v1980 = vunpack.c.h.b16 %v1852
      %v1981 = vunpack.c.l.b16 %v1853
      %v1982 = vunpack.c.h.b16 %v1853
      %v1983 = vunpack.c.l.b16 %v1854
      %v1984 = vunpack.c.h.b16 %v1854
      %v1985 = vunpack.c.l.b16 %v1855
      %v1986 = vunpack.c.h.b16 %v1855
      %v1987 = vunpack.c.l.b16 %v1856
      %v1988 = vunpack.c.h.b16 %v1856
      %v1989 = vunpack.c.l.b16 %v1857
      %v1990 = vunpack.c.h.b16 %v1857
      %v1991 = vunpack.c.l.b16 %v1858
      %v1992 = vunpack.c.h.b16 %v1858
      %v1993 = vunpack.c.l.b16 %v1859
      %v1994 = vunpack.c.h.b16 %v1859
      %v1995 = vunpack.c.l.b16 %v1860
      %v1996 = vunpack.c.h.b16 %v1860
      %v1997 = vunpack.c.l.b16 %v1861
      %v1998 = vunpack.c.h.b16 %v1861
      %v1999 = vunpack.c.l.b16 %v1862
      %v2000 = vunpack.c.h.b16 %v1862
      %v2001 = vunpack.c.l.b16 %v1863
      %v2002 = vunpack.c.h.b16 %v1863
      %v2003 = vunpack.c.l.b16 %v1864
      %v2004 = vunpack.c.h.b16 %v1864
      %v2005 = vunpack.c.l.b16 %v1865
      %v2006 = vunpack.c.h.b16 %v1865
      %v2007 = vunpack.c.l.b16 %v1866
      %v2008 = vunpack.c.h.b16 %v1866
      %v2009 = vunpack.c.l.b16 %v1867
      %v2010 = vunpack.c.h.b16 %v1867
      %v2011 = vunpack.c.l.b16 %v1868
      %v2012 = vunpack.c.h.b16 %v1868
      %v2013 = vunpack.c.l.b16 %v1869
      %v2014 = vunpack.c.h.b16 %v1869
      %v2015 = vpack.c.b16 %v1945, %v1943
      %v2016 = vpack.c.b16 %v1946, %v1944
      %v2017 = vpack.c.b16 %v1949, %v1947
      %v2018 = vpack.c.b16 %v1950, %v1948
      %v2019 = vpack.c.b16 %v1953, %v1951
      %v2020 = vpack.c.b16 %v1954, %v1952
      %v2021 = vpack.c.b16 %v1957, %v1955
      %v2022 = vpack.c.b16 %v1958, %v1956
      %v2023 = vpack.c.b16 %v1961, %v1959
      %v2024 = vpack.c.b16 %v1962, %v1960
      %v2025 = vpack.c.b16 %v1965, %v1963
      %v2026 = vpack.c.b16 %v1966, %v1964
      %v2027 = vpack.c.b16 %v1969, %v1967
      %v2028 = vpack.c.b16 %v1970, %v1968
      %v2029 = vpack.c.b16 %v1973, %v1971
      %v2030 = vpack.c.b16 %v1974, %v1972
      %v2031 = vpack.c.b16 %v1977, %v1975
      %v2032 = vpack.c.b16 %v1978, %v1976
      %v2033 = vpack.c.b16 %v1981, %v1979
      %v2034 = vpack.c.b16 %v1982, %v1980
      %v2035 = vpack.c.b16 %v1985, %v1983
      %v2036 = vpack.c.b16 %v1986, %v1984
      %v2037 = vpack.c.b16 %v1989, %v1987
      %v2038 = vpack.c.b16 %v1990, %v1988
      %v2039 = vpack.c.b16 %v1993, %v1991
      %v2040 = vpack.c.b16 %v1994, %v1992
      %v2041 = vpack.c.b16 %v1997, %v1995
      %v2042 = vpack.c.b16 %v1998, %v1996
      %v2043 = vpack.c.b16 %v2001, %v1999
      %v2044 = vpack.c.b16 %v2002, %v2000
      %v2045 = vpack.c.b16 %v2005, %v2003
      %v2046 = vpack.c.b16 %v2006, %v2004
      %v2047 = vpack.c.b16 %v2009, %v2007
      %v2048 = vpack.c.b16 %v2010, %v2008
      %v2049 = vpack.c.b16 %v2013, %v2011
      %v2050 = vpack.c.b16 %v2014, %v2012
      %v2088 = vsel %vm666, %v1904, 0
      %2090 = vmatprep.subr.bf16.mxu0 %v2030
      %2091 = vmatpush1.bf16.msra.mxu0 %v2029
      %2092 = vmatprep.subr.bf16.mxu0 %v2028
      %2093 = vmatpush1.bf16.msra.mxu0 %v2027
      %2094 = vmatprep.subr.bf16.mxu0 %v2026
      %2095 = vmatpush1.bf16.msra.mxu0 %v2025
      %2096 = vmatprep.subr.bf16.mxu0 %v2024
      %2097 = vmatpush1.bf16.msra.mxu0 %v2023
      %2098 = vmatprep.subr.bf16.mxu0 %v2022
      %2099 = vmatpush1.bf16.msra.mxu0 %v2021
      %2100 = vmatprep.subr.bf16.mxu0 %v2020
      %2101 = vmatpush1.bf16.msra.mxu0 %v2019
      %2102 = vmatprep.subr.bf16.mxu0 %v2018
      %2103 = vmatpush1.bf16.msra.mxu0 %v2017
      %2104 = vmatprep.subr.bf16.mxu0 %v2016
      %2105 = vmatpush1.bf16.msra.mxu0 %v2015
      %2106 = vmatprep.subr.bf16.mxu0 %v2046
      %2107 = vmatpush2.bf16.msra.mxu0 %v2045
      %2108 = vmatprep.subr.bf16.mxu0 %v2044
      %2109 = vmatpush2.bf16.msra.mxu0 %v2043
      %2110 = vmatprep.subr.bf16.mxu0 %v2042
      %2111 = vmatpush2.bf16.msra.mxu0 %v2041
      %2112 = vmatprep.subr.bf16.mxu0 %v2040
      %2113 = vmatpush2.bf16.msra.mxu0 %v2039
      %2114 = vmatprep.subr.bf16.mxu0 %v2038
      %2115 = vmatpush2.bf16.msra.mxu0 %v2037
      %2116 = vmatprep.subr.bf16.mxu0 %v2036
      %2117 = vmatpush2.bf16.msra.mxu0 %v2035
      %2118 = vmatprep.subr.bf16.mxu0 %v2034
      %2119 = vmatpush2.bf16.msra.mxu0 %v2033
      %2120 = vmatprep.subr.bf16.mxu0 %v2032
      %2121 = vmatpush2.bf16.msra.mxu0 %v2031
      %2122 = vmatprep.mubr.bf16.mxu0 %v1893
      %2123 = vmatmul.mubr.bf16.gmra.mxu0 %v1881
      %v2124 = vpop.f32.mrf.mxu0
      %v2125 = vadd.f32 0.0, %v2124
      %v2126 = vpop.f32.mrf.mxu0
      %v2127 = vadd.f32 0.0, %v2126
      %v2128 = vpop.f32.mrf.mxu0
      %v2129 = vadd.f32 0.0, %v2128
      %v2130 = vpop.f32.mrf.mxu0
      %v2131 = vadd.f32 0.0, %v2130
      %2132 = vdwg.mxu0
      %2133 = vmatprep.subr.bf16.mxu0 0
      %2134 = vmatpush1.bf16.msra.mxu0 0
      %2135 = vmatprep.subr.bf16.mxu0 0
      %2136 = vmatpush1.bf16.msra.mxu0 0
      %2137 = vmatprep.subr.bf16.mxu0 0
      %2138 = vmatpush1.bf16.msra.mxu0 0
      %2139 = vmatprep.subr.bf16.mxu0 0
      %2140 = vmatpush1.bf16.msra.mxu0 0
      %2141 = vmatprep.subr.bf16.mxu0 0
      %2142 = vmatpush1.bf16.msra.mxu0 0
      %2143 = vmatprep.subr.bf16.mxu0 0
      %2144 = vmatpush1.bf16.msra.mxu0 0
      %2145 = vmatprep.subr.bf16.mxu0 %v2050
      %2146 = vmatpush1.bf16.msra.mxu0 %v2049
      %2147 = vmatprep.subr.bf16.mxu0 %v2048
      %2148 = vmatpush1.bf16.msra.mxu0 %v2047
      %2149 = vmatprep.subr.bf16.mxu0 0
      %2150 = vmatpush2.bf16.msra.mxu0 0
      %2151 = vmatprep.subr.bf16.mxu0 0
      %2152 = vmatpush2.bf16.msra.mxu0 0
      %2153 = vmatprep.subr.bf16.mxu0 0
      %2154 = vmatpush2.bf16.msra.mxu0 0
      %2155 = vmatprep.subr.bf16.mxu0 0
      %2156 = vmatpush2.bf16.msra.mxu0 0
      %2157 = vmatprep.subr.bf16.mxu0 0
      %2158 = vmatpush2.bf16.msra.mxu0 0
      %2159 = vmatprep.subr.bf16.mxu0 0
      %2160 = vmatpush2.bf16.msra.mxu0 0
      %2161 = vmatprep.subr.bf16.mxu0 0
      %2162 = vmatpush2.bf16.msra.mxu0 0
      %2163 = vmatprep.subr.bf16.mxu0 0
      %2164 = vmatpush2.bf16.msra.mxu0 0
      %2165 = vmatprep.mubr.bf16.mxu0 0
      %2166 = vmatmul.mubr.bf16.gmra.mxu0 %v2088
      %v2167 = vpop.f32.mrf.mxu0
      %v2168 = vadd.f32 %v2125, %v2167
      %v2169 = vpop.f32.mrf.mxu0
      %v2170 = vadd.f32 %v2127, %v2169
      %v2171 = vpop.f32.mrf.mxu0
      %v2172 = vadd.f32 %v2129, %v2171
      %v2173 = vpop.f32.mrf.mxu0
      %v2174 = vadd.f32 %v2131, %v2173
      %2175 = vdwg.mxu0
      %v2176 = vadd.f32 %v1829, %v2168
      %v2177 = vadd.f32 %v1830, %v2170
      %v2178 = vadd.f32 %v1831, %v2172
      %v2179 = vadd.f32 %v1832, %v2174
      %s2180 = scalar_lea.vmem %s3, 576
      %v2181 = vld [vmem:[%s2180] sm:$0xff]
      %v2182 = vld [vmem:[%s2180 + $0x8] sm:$0xff]
      %v2183 = vld [vmem:[%s2180 + $0x10] sm:$0xff]
      %v2184 = vld [vmem:[%s2180 + $0x18] sm:$0xff]
      %v2185 = vld [vmem:[%s2180 + $0x20] sm:$0xff]
      %v2186 = vld [vmem:[%s2180 + $0x28] sm:$0xff]
      %v2187 = vld [vmem:[%s2180 + $0x30] sm:$0xff]
      %v2188 = vld [vmem:[%s2180 + $0x38] sm:$0xff]
      %v2189 = vld [vmem:[%s2180 + $0x40] sm:$0xff]
      %v2190 = vld [vmem:[%s2180 + $0x48] sm:$0xff]
      %v2191 = vld [vmem:[%s2180 + $0x50] sm:$0xff]
      %v2192 = vld [vmem:[%s2180 + $0x58] sm:$0xff]
      %v2193 = vld [vmem:[%s2180 + $0x60] sm:$0xff]
      %v2194 = vld [vmem:[%s2180 + $0x68] sm:$0xff]
      %v2195 = vld [vmem:[%s2180 + $0x70] sm:$0xff]
      %v2196 = vld [vmem:[%s2180 + $0x78] sm:$0xff]
      %v2197 = vld [vmem:[%s2180 + $0x80] sm:$0xff]
      %v2198 = vld [vmem:[%s2180 + $0x88] sm:$0xff]
      %v2199 = vld [vmem:[%s2180 + $0x90] sm:$0xff]
      %v2200 = vld [vmem:[%s2180 + $0x98] sm:$0xff]
      %v2201 = vld [vmem:[%s2180 + $0xa0] sm:$0xff]
      %v2202 = vld [vmem:[%s2180 + $0xa8] sm:$0xff]
      %v2203 = vld [vmem:[%s2180 + $0xb0] sm:$0xff]
      %v2204 = vld [vmem:[%s2180 + $0xb8] sm:$0xff]
      %v2205 = vld [vmem:[%s2180 + $0xc0] sm:$0xff]
      %v2206 = vld [vmem:[%s2180 + $0xc8] sm:$0xff]
      %v2207 = vld [vmem:[%s2180 + $0xd0] sm:$0xff]
      %v2208 = vld [vmem:[%s2180 + $0xd8] sm:$0xff]
      %v2209 = vld [vmem:[%s2180 + $0xe0] sm:$0xff]
      %v2210 = vld [vmem:[%s2180 + $0xe8] sm:$0xff]
      %v2211 = vld [vmem:[%s2180 + $0xf0] sm:$0xff]
      %v2212 = vld [vmem:[%s2180 + $0xf8] sm:$0xff]
      %v2213 = vld [vmem:[%s2180 + $0x100] sm:$0xff]
      %v2214 = vld [vmem:[%s2180 + $0x108] sm:$0xff]
      %v2215 = vld [vmem:[%s2180 + $0x110] sm:$0xff]
      %v2216 = vld [vmem:[%s2180 + $0x118] sm:$0xff]
      %v2223 = vrot.slane %v1506, 1
      %v2224 = vrot.slane %v1509, 1
      %v2225 = vsel %vm1164, %v2223, %v2224
      %v2226 = vrot.slane %v1507, 1
      %v2227 = vrot.slane %v1510, 1
      %v2228 = vsel %vm1164, %v2226, %v2227
      %v2229 = vrot.slane %v1508, 1
      %v2230 = vrot.slane %v1511, 1
      %v2231 = vsel %vm1164, %v2229, %v2230
      %v2270 = vunpack.c.l.b16 %v2181
      %v2271 = vunpack.c.h.b16 %v2181
      %v2272 = vunpack.c.l.b16 %v2182
      %v2273 = vunpack.c.h.b16 %v2182
      %v2274 = vunpack.c.l.b16 %v2183
      %v2275 = vunpack.c.h.b16 %v2183
      %v2276 = vunpack.c.l.b16 %v2184
      %v2277 = vunpack.c.h.b16 %v2184
      %v2278 = vunpack.c.l.b16 %v2185
      %v2279 = vunpack.c.h.b16 %v2185
      %v2280 = vunpack.c.l.b16 %v2186
      %v2281 = vunpack.c.h.b16 %v2186
      %v2282 = vunpack.c.l.b16 %v2187
      %v2283 = vunpack.c.h.b16 %v2187
      %v2284 = vunpack.c.l.b16 %v2188
      %v2285 = vunpack.c.h.b16 %v2188
      %v2286 = vunpack.c.l.b16 %v2189
      %v2287 = vunpack.c.h.b16 %v2189
      %v2288 = vunpack.c.l.b16 %v2190
      %v2289 = vunpack.c.h.b16 %v2190
      %v2290 = vunpack.c.l.b16 %v2191
      %v2291 = vunpack.c.h.b16 %v2191
      %v2292 = vunpack.c.l.b16 %v2192
      %v2293 = vunpack.c.h.b16 %v2192
      %v2294 = vunpack.c.l.b16 %v2193
      %v2295 = vunpack.c.h.b16 %v2193
      %v2296 = vunpack.c.l.b16 %v2194
      %v2297 = vunpack.c.h.b16 %v2194
      %v2298 = vunpack.c.l.b16 %v2195
      %v2299 = vunpack.c.h.b16 %v2195
      %v2300 = vunpack.c.l.b16 %v2196
      %v2301 = vunpack.c.h.b16 %v2196
      %v2302 = vunpack.c.l.b16 %v2197
      %v2303 = vunpack.c.h.b16 %v2197
      %v2304 = vunpack.c.l.b16 %v2198
      %v2305 = vunpack.c.h.b16 %v2198
      %v2306 = vunpack.c.l.b16 %v2199
      %v2307 = vunpack.c.h.b16 %v2199
      %v2308 = vunpack.c.l.b16 %v2200
      %v2309 = vunpack.c.h.b16 %v2200
      %v2310 = vunpack.c.l.b16 %v2201
      %v2311 = vunpack.c.h.b16 %v2201
      %v2312 = vunpack.c.l.b16 %v2202
      %v2313 = vunpack.c.h.b16 %v2202
      %v2314 = vunpack.c.l.b16 %v2203
      %v2315 = vunpack.c.h.b16 %v2203
      %v2316 = vunpack.c.l.b16 %v2204
      %v2317 = vunpack.c.h.b16 %v2204
      %v2318 = vunpack.c.l.b16 %v2205
      %v2319 = vunpack.c.h.b16 %v2205
      %v2320 = vunpack.c.l.b16 %v2206
      %v2321 = vunpack.c.h.b16 %v2206
      %v2322 = vunpack.c.l.b16 %v2207
      %v2323 = vunpack.c.h.b16 %v2207
      %v2324 = vunpack.c.l.b16 %v2208
      %v2325 = vunpack.c.h.b16 %v2208
      %v2326 = vunpack.c.l.b16 %v2209
      %v2327 = vunpack.c.h.b16 %v2209
      %v2328 = vunpack.c.l.b16 %v2210
      %v2329 = vunpack.c.h.b16 %v2210
      %v2330 = vunpack.c.l.b16 %v2211
      %v2331 = vunpack.c.h.b16 %v2211
      %v2332 = vunpack.c.l.b16 %v2212
      %v2333 = vunpack.c.h.b16 %v2212
      %v2334 = vunpack.c.l.b16 %v2213
      %v2335 = vunpack.c.h.b16 %v2213
      %v2336 = vunpack.c.l.b16 %v2214
      %v2337 = vunpack.c.h.b16 %v2214
      %v2338 = vunpack.c.l.b16 %v2215
      %v2339 = vunpack.c.h.b16 %v2215
      %v2340 = vunpack.c.l.b16 %v2216
      %v2341 = vunpack.c.h.b16 %v2216
      %v2342 = vpack.c.b16 %v2272, %v2270
      %v2343 = vpack.c.b16 %v2273, %v2271
      %v2344 = vpack.c.b16 %v2276, %v2274
      %v2345 = vpack.c.b16 %v2277, %v2275
      %v2346 = vpack.c.b16 %v2280, %v2278
      %v2347 = vpack.c.b16 %v2281, %v2279
      %v2348 = vpack.c.b16 %v2284, %v2282
      %v2349 = vpack.c.b16 %v2285, %v2283
      %v2350 = vpack.c.b16 %v2288, %v2286
      %v2351 = vpack.c.b16 %v2289, %v2287
      %v2352 = vpack.c.b16 %v2292, %v2290
      %v2353 = vpack.c.b16 %v2293, %v2291
      %v2354 = vpack.c.b16 %v2296, %v2294
      %v2355 = vpack.c.b16 %v2297, %v2295
      %v2356 = vpack.c.b16 %v2300, %v2298
      %v2357 = vpack.c.b16 %v2301, %v2299
      %v2358 = vpack.c.b16 %v2304, %v2302
      %v2359 = vpack.c.b16 %v2305, %v2303
      %v2360 = vpack.c.b16 %v2308, %v2306
      %v2361 = vpack.c.b16 %v2309, %v2307
      %v2362 = vpack.c.b16 %v2312, %v2310
      %v2363 = vpack.c.b16 %v2313, %v2311
      %v2364 = vpack.c.b16 %v2316, %v2314
      %v2365 = vpack.c.b16 %v2317, %v2315
      %v2366 = vpack.c.b16 %v2320, %v2318
      %v2367 = vpack.c.b16 %v2321, %v2319
      %v2368 = vpack.c.b16 %v2324, %v2322
      %v2369 = vpack.c.b16 %v2325, %v2323
      %v2370 = vpack.c.b16 %v2328, %v2326
      %v2371 = vpack.c.b16 %v2329, %v2327
      %v2372 = vpack.c.b16 %v2332, %v2330
      %v2373 = vpack.c.b16 %v2333, %v2331
      %v2374 = vpack.c.b16 %v2336, %v2334
      %v2375 = vpack.c.b16 %v2337, %v2335
      %v2376 = vpack.c.b16 %v2340, %v2338
      %v2377 = vpack.c.b16 %v2341, %v2339
      %v2415 = vsel %vm666, %v2231, 0
      %2417 = vmatprep.subr.bf16.mxu0 %v2357
      %2418 = vmatpush1.bf16.msra.mxu0 %v2356
      %2419 = vmatprep.subr.bf16.mxu0 %v2355
      %2420 = vmatpush1.bf16.msra.mxu0 %v2354
      %2421 = vmatprep.subr.bf16.mxu0 %v2353
      %2422 = vmatpush1.bf16.msra.mxu0 %v2352
      %2423 = vmatprep.subr.bf16.mxu0 %v2351
      %2424 = vmatpush1.bf16.msra.mxu0 %v2350
      %2425 = vmatprep.subr.bf16.mxu0 %v2349
      %2426 = vmatpush1.bf16.msra.mxu0 %v2348
      %2427 = vmatprep.subr.bf16.mxu0 %v2347
      %2428 = vmatpush1.bf16.msra.mxu0 %v2346
      %2429 = vmatprep.subr.bf16.mxu0 %v2345
      %2430 = vmatpush1.bf16.msra.mxu0 %v2344
      %2431 = vmatprep.subr.bf16.mxu0 %v2343
      %2432 = vmatpush1.bf16.msra.mxu0 %v2342
      %2433 = vmatprep.subr.bf16.mxu0 %v2373
      %2434 = vmatpush2.bf16.msra.mxu0 %v2372
      %2435 = vmatprep.subr.bf16.mxu0 %v2371
      %2436 = vmatpush2.bf16.msra.mxu0 %v2370
      %2437 = vmatprep.subr.bf16.mxu0 %v2369
      %2438 = vmatpush2.bf16.msra.mxu0 %v2368
      %2439 = vmatprep.subr.bf16.mxu0 %v2367
      %2440 = vmatpush2.bf16.msra.mxu0 %v2366
      %2441 = vmatprep.subr.bf16.mxu0 %v2365
      %2442 = vmatpush2.bf16.msra.mxu0 %v2364
      %2443 = vmatprep.subr.bf16.mxu0 %v2363
      %2444 = vmatpush2.bf16.msra.mxu0 %v2362
      %2445 = vmatprep.subr.bf16.mxu0 %v2361
      %2446 = vmatpush2.bf16.msra.mxu0 %v2360
      %2447 = vmatprep.subr.bf16.mxu0 %v2359
      %2448 = vmatpush2.bf16.msra.mxu0 %v2358
      %2449 = vmatprep.mubr.bf16.mxu0 %v2228
      %2450 = vmatmul.mubr.bf16.gmra.mxu0 %v2225
      %v2451 = vpop.f32.mrf.mxu0
      %v2452 = vadd.f32 0.0, %v2451
      %v2453 = vpop.f32.mrf.mxu0
      %v2454 = vadd.f32 0.0, %v2453
      %v2455 = vpop.f32.mrf.mxu0
      %v2456 = vadd.f32 0.0, %v2455
      %v2457 = vpop.f32.mrf.mxu0
      %v2458 = vadd.f32 0.0, %v2457
      %2459 = vdwg.mxu0
      %2460 = vmatprep.subr.bf16.mxu0 0
      %2461 = vmatpush1.bf16.msra.mxu0 0
      %2462 = vmatprep.subr.bf16.mxu0 0
      %2463 = vmatpush1.bf16.msra.mxu0 0
      %2464 = vmatprep.subr.bf16.mxu0 0
      %2465 = vmatpush1.bf16.msra.mxu0 0
      %2466 = vmatprep.subr.bf16.mxu0 0
      %2467 = vmatpush1.bf16.msra.mxu0 0
      %2468 = vmatprep.subr.bf16.mxu0 0
      %2469 = vmatpush1.bf16.msra.mxu0 0
      %2470 = vmatprep.subr.bf16.mxu0 0
      %2471 = vmatpush1.bf16.msra.mxu0 0
      %2472 = vmatprep.subr.bf16.mxu0 %v2377
      %2473 = vmatpush1.bf16.msra.mxu0 %v2376
      %2474 = vmatprep.subr.bf16.mxu0 %v2375
      %2475 = vmatpush1.bf16.msra.mxu0 %v2374
      %2476 = vmatprep.subr.bf16.mxu0 0
      %2477 = vmatpush2.bf16.msra.mxu0 0
      %2478 = vmatprep.subr.bf16.mxu0 0
      %2479 = vmatpush2.bf16.msra.mxu0 0
      %2480 = vmatprep.subr.bf16.mxu0 0
      %2481 = vmatpush2.bf16.msra.mxu0 0
      %2482 = vmatprep.subr.bf16.mxu0 0
      %2483 = vmatpush2.bf16.msra.mxu0 0
      %2484 = vmatprep.subr.bf16.mxu0 0
      %2485 = vmatpush2.bf16.msra.mxu0 0
      %2486 = vmatprep.subr.bf16.mxu0 0
      %2487 = vmatpush2.bf16.msra.mxu0 0
      %2488 = vmatprep.subr.bf16.mxu0 0
      %2489 = vmatpush2.bf16.msra.mxu0 0
      %2490 = vmatprep.subr.bf16.mxu0 0
      %2491 = vmatpush2.bf16.msra.mxu0 0
      %2492 = vmatprep.mubr.bf16.mxu0 0
      %2493 = vmatmul.mubr.bf16.gmra.mxu0 %v2415
      %v2494 = vpop.f32.mrf.mxu0
      %v2495 = vadd.f32 %v2452, %v2494
      %v2496 = vpop.f32.mrf.mxu0
      %v2497 = vadd.f32 %v2454, %v2496
      %v2498 = vpop.f32.mrf.mxu0
      %v2499 = vadd.f32 %v2456, %v2498
      %v2500 = vpop.f32.mrf.mxu0
      %v2501 = vadd.f32 %v2458, %v2500
      %2502 = vdwg.mxu0
      %v2503 = vadd.f32 %v2176, %v2495
      %v2504 = vadd.f32 %v2177, %v2497
      %v2505 = vadd.f32 %v2178, %v2499
      %v2506 = vadd.f32 %v2179, %v2501
      %vm2516 = vcmask 1046528
      %v2517 = vrot.slane %v1449, 1
      %v2518 = vrot.slane %v1452, 1
      %v2519 = vsel %vm2516, %v2517, %v2518
      %v2520 = vrot.slane %v1450, 1
      %v2521 = vrot.slane %v1453, 1
      %v2522 = vsel %vm2516, %v2520, %v2521
      %v2523 = vrot.slane %v1451, 1
      %v2524 = vrot.slane %v1454, 1
      %v2525 = vsel %vm2516, %v2523, %v2524
      %v2526 = vrot.slane %v1455, 1
      %v2527 = vsel %vm2516, %v2518, %v2526
      %v2528 = vrot.slane %v1456, 1
      %v2529 = vsel %vm2516, %v2521, %v2528
      %v2530 = vrot.slane %v1457, 1
      %v2531 = vsel %vm2516, %v2524, %v2530
      %2532 = vrot.lane.b32.xlu0 %v2519, 112
      %v2533 = vpop.permute.xlu0 %2532
      %2534 = vrot.lane.b32.xlu0 %v2522, 112
      %v2535 = vpop.permute.xlu0 %2534
      %2536 = vrot.lane.b32.xlu0 %v2525, 112
      %v2537 = vpop.permute.xlu0 %2536
      %2538 = vrot.lane.b32.xlu0 %v2527, 112
      %v2539 = vpop.permute.xlu0 %2538
      %2540 = vrot.lane.b32.xlu0 %v2529, 112
      %v2541 = vpop.permute.xlu0 %2540
      %2542 = vrot.lane.b32.xlu0 %v2531, 112
      %v2543 = vpop.permute.xlu0 %2542
      %vm2544 = vcmask 916480
      %v2545 = vsel %vm2544, %v2533, %v2535
      %v2546 = vsel %vm2544, %v2535, %v2537
      %v2547 = vsel %vm2544, %v2539, %v2541
      %v2548 = vsel %vm2544, %v2541, %v2543
      %v2553 = vadd.f32 %v2503, %v2545
      %v2554 = vadd.f32 %v2504, %v2546
      %v2555 = vadd.f32 %v2505, %v2547
      %v2556 = vadd.f32 %v2506, %v2548
      %v2557 = vmax.f32 %v2553, 0.0
      %v2558 = vmax.f32 %v2554, 0.0
      %v2559 = vmax.f32 %v2555, 0.0
      %v2560 = vmax.f32 %v2556, 0.0
      %v2561 = vpack.c.bf16 %v2559, %v2557
      %v2562 = vpack.c.bf16 %v2560, %v2558
      %2565 = vrot.lane.b32.xlu0 %v2561, 16
      %v2566 = vpop.permute.xlu0 %2565
      %2567 = vrot.lane.b32.xlu0 %v2562, 16
      %v2568 = vpop.permute.xlu0 %2567
      %v2569 = vsel %vm1470, %v2566, %v2568
      %v2571 = vsel %vm1472, 0, %v2566
      %v2573 = vsel %vm1472, %v2568, 0
      %v2574 = vshrl.u32 %v2571, 16
      %v2576 = vrot.slane %v2574, 7
      %v2577 = vshll.u32 %v2571, 16
      %v2579 = vor.u32 %v2576, %v2577
      %v2581 = vshrl.u32 %v2569, 16
      %v2583 = vrot.slane %v2581, 7
      %v2584 = vshll.u32 %v2569, 16
      %v2586 = vor.u32 %v2583, %v2584
      %v2587 = vshrl.u32 %v2573, 16
      %v2589 = vrot.slane %v2587, 7
      %v2590 = vshll.u32 %v2573, 16
      %v2592 = vor.u32 %v2589, %v2590
      %v2599 = vsel %vm1505, 0, %v2579
      %v2600 = vsel %vm1505, 0, %v2586
      %v2601 = vsel %vm1505, 0, %v2592
      %v2602 = vsel %vm1505, %v2576, 0
      %v2603 = vsel %vm1505, %v2583, 0
      %v2604 = vsel %vm1505, %v2589, 0
      %v2605 = vld [vmem:[%s6] sm:$0x3]
      %v2606 = vld [vmem:[%s5] sm:$0xff]
      %v2607 = vld [vmem:[%s5 + $0x8] sm:$0xff]
      %v2608 = vld [vmem:[%s5 + $0x10] sm:$0xff]
      %v2609 = vld [vmem:[%s5 + $0x18] sm:$0xff]
      %v2610 = vld [vmem:[%s5 + $0x20] sm:$0xff]
      %v2611 = vld [vmem:[%s5 + $0x28] sm:$0xff]
      %v2612 = vld [vmem:[%s5 + $0x30] sm:$0xff]
      %v2613 = vld [vmem:[%s5 + $0x38] sm:$0xff]
      %v2614 = vld [vmem:[%s5 + $0x40] sm:$0xff]
      %v2615 = vld [vmem:[%s5 + $0x48] sm:$0xff]
      %v2616 = vld [vmem:[%s5 + $0x50] sm:$0xff]
      %v2617 = vld [vmem:[%s5 + $0x58] sm:$0xff]
      %v2618 = vld [vmem:[%s5 + $0x60] sm:$0xff]
      %v2619 = vld [vmem:[%s5 + $0x68] sm:$0xff]
      %v2620 = vld [vmem:[%s5 + $0x70] sm:$0xff]
      %v2621 = vld [vmem:[%s5 + $0x78] sm:$0xff]
      %v2622 = vld [vmem:[%s5 + $0x80] sm:$0xff]
      %v2623 = vld [vmem:[%s5 + $0x88] sm:$0xff]
      %v2624 = vld [vmem:[%s5 + $0x90] sm:$0xff]
      %v2625 = vld [vmem:[%s5 + $0x98] sm:$0xff]
      %v2626 = vld [vmem:[%s5 + $0xa0] sm:$0xff]
      %v2627 = vld [vmem:[%s5 + $0xa8] sm:$0xff]
      %v2628 = vld [vmem:[%s5 + $0xb0] sm:$0xff]
      %v2629 = vld [vmem:[%s5 + $0xb8] sm:$0xff]
      %v2630 = vld [vmem:[%s5 + $0xc0] sm:$0xff]
      %v2631 = vld [vmem:[%s5 + $0xc8] sm:$0xff]
      %v2632 = vld [vmem:[%s5 + $0xd0] sm:$0xff]
      %v2633 = vld [vmem:[%s5 + $0xd8] sm:$0xff]
      %v2634 = vld [vmem:[%s5 + $0xe0] sm:$0xff]
      %v2635 = vld [vmem:[%s5 + $0xe8] sm:$0xff]
      %v2636 = vld [vmem:[%s5 + $0xf0] sm:$0xff]
      %v2637 = vld [vmem:[%s5 + $0xf8] sm:$0xff]
      %v2638 = vld [vmem:[%s5 + $0x100] sm:$0xff]
      %v2639 = vld [vmem:[%s5 + $0x108] sm:$0xff]
      %v2640 = vld [vmem:[%s5 + $0x110] sm:$0xff]
      %v2641 = vld [vmem:[%s5 + $0x118] sm:$0xff]
      %v2678 = vunpack.c.l.b16 %v2606
      %v2679 = vunpack.c.h.b16 %v2606
      %v2680 = vunpack.c.l.b16 %v2607
      %v2681 = vunpack.c.h.b16 %v2607
      %v2682 = vunpack.c.l.b16 %v2608
      %v2683 = vunpack.c.h.b16 %v2608
      %v2684 = vunpack.c.l.b16 %v2609
      %v2685 = vunpack.c.h.b16 %v2609
      %v2686 = vunpack.c.l.b16 %v2610
      %v2687 = vunpack.c.h.b16 %v2610
      %v2688 = vunpack.c.l.b16 %v2611
      %v2689 = vunpack.c.h.b16 %v2611
      %v2690 = vunpack.c.l.b16 %v2612
      %v2691 = vunpack.c.h.b16 %v2612
      %v2692 = vunpack.c.l.b16 %v2613
      %v2693 = vunpack.c.h.b16 %v2613
      %v2694 = vunpack.c.l.b16 %v2614
      %v2695 = vunpack.c.h.b16 %v2614
      %v2696 = vunpack.c.l.b16 %v2615
      %v2697 = vunpack.c.h.b16 %v2615
      %v2698 = vunpack.c.l.b16 %v2616
      %v2699 = vunpack.c.h.b16 %v2616
      %v2700 = vunpack.c.l.b16 %v2617
      %v2701 = vunpack.c.h.b16 %v2617
      %v2702 = vunpack.c.l.b16 %v2618
      %v2703 = vunpack.c.h.b16 %v2618
      %v2704 = vunpack.c.l.b16 %v2619
      %v2705 = vunpack.c.h.b16 %v2619
      %v2706 = vunpack.c.l.b16 %v2620
      %v2707 = vunpack.c.h.b16 %v2620
      %v2708 = vunpack.c.l.b16 %v2621
      %v2709 = vunpack.c.h.b16 %v2621
      %v2710 = vunpack.c.l.b16 %v2622
      %v2711 = vunpack.c.h.b16 %v2622
      %v2712 = vunpack.c.l.b16 %v2623
      %v2713 = vunpack.c.h.b16 %v2623
      %v2714 = vunpack.c.l.b16 %v2624
      %v2715 = vunpack.c.h.b16 %v2624
      %v2716 = vunpack.c.l.b16 %v2625
      %v2717 = vunpack.c.h.b16 %v2625
      %v2718 = vunpack.c.l.b16 %v2626
      %v2719 = vunpack.c.h.b16 %v2626
      %v2720 = vunpack.c.l.b16 %v2627
      %v2721 = vunpack.c.h.b16 %v2627
      %v2722 = vunpack.c.l.b16 %v2628
      %v2723 = vunpack.c.h.b16 %v2628
      %v2724 = vunpack.c.l.b16 %v2629
      %v2725 = vunpack.c.h.b16 %v2629
      %v2726 = vunpack.c.l.b16 %v2630
      %v2727 = vunpack.c.h.b16 %v2630
      %v2728 = vunpack.c.l.b16 %v2631
      %v2729 = vunpack.c.h.b16 %v2631
      %v2730 = vunpack.c.l.b16 %v2632
      %v2731 = vunpack.c.h.b16 %v2632
      %v2732 = vunpack.c.l.b16 %v2633
      %v2733 = vunpack.c.h.b16 %v2633
      %v2734 = vunpack.c.l.b16 %v2634
      %v2735 = vunpack.c.h.b16 %v2634
      %v2736 = vunpack.c.l.b16 %v2635
      %v2737 = vunpack.c.h.b16 %v2635
      %v2738 = vunpack.c.l.b16 %v2636
      %v2739 = vunpack.c.h.b16 %v2636
      %v2740 = vunpack.c.l.b16 %v2637
      %v2741 = vunpack.c.h.b16 %v2637
      %v2742 = vunpack.c.l.b16 %v2638
      %v2743 = vunpack.c.h.b16 %v2638
      %v2744 = vunpack.c.l.b16 %v2639
      %v2745 = vunpack.c.h.b16 %v2639
      %v2746 = vunpack.c.l.b16 %v2640
      %v2747 = vunpack.c.h.b16 %v2640
      %v2748 = vunpack.c.l.b16 %v2641
      %v2749 = vunpack.c.h.b16 %v2641
      %v2750 = vpack.c.b16 %v2680, %v2678
      %v2751 = vpack.c.b16 %v2681, %v2679
      %v2752 = vpack.c.b16 %v2684, %v2682
      %v2753 = vpack.c.b16 %v2685, %v2683
      %v2754 = vpack.c.b16 %v2688, %v2686
      %v2755 = vpack.c.b16 %v2689, %v2687
      %v2756 = vpack.c.b16 %v2692, %v2690
      %v2757 = vpack.c.b16 %v2693, %v2691
      %v2758 = vpack.c.b16 %v2696, %v2694
      %v2759 = vpack.c.b16 %v2697, %v2695
      %v2760 = vpack.c.b16 %v2700, %v2698
      %v2761 = vpack.c.b16 %v2701, %v2699
      %v2762 = vpack.c.b16 %v2704, %v2702
      %v2763 = vpack.c.b16 %v2705, %v2703
      %v2764 = vpack.c.b16 %v2708, %v2706
      %v2765 = vpack.c.b16 %v2709, %v2707
      %v2766 = vpack.c.b16 %v2712, %v2710
      %v2767 = vpack.c.b16 %v2713, %v2711
      %v2768 = vpack.c.b16 %v2716, %v2714
      %v2769 = vpack.c.b16 %v2717, %v2715
      %v2770 = vpack.c.b16 %v2720, %v2718
      %v2771 = vpack.c.b16 %v2721, %v2719
      %v2772 = vpack.c.b16 %v2724, %v2722
      %v2773 = vpack.c.b16 %v2725, %v2723
      %v2774 = vpack.c.b16 %v2728, %v2726
      %v2775 = vpack.c.b16 %v2729, %v2727
      %v2776 = vpack.c.b16 %v2732, %v2730
      %v2777 = vpack.c.b16 %v2733, %v2731
      %v2778 = vpack.c.b16 %v2736, %v2734
      %v2779 = vpack.c.b16 %v2737, %v2735
      %v2780 = vpack.c.b16 %v2740, %v2738
      %v2781 = vpack.c.b16 %v2741, %v2739
      %v2782 = vpack.c.b16 %v2744, %v2742
      %v2783 = vpack.c.b16 %v2745, %v2743
      %v2784 = vpack.c.b16 %v2748, %v2746
      %v2785 = vpack.c.b16 %v2749, %v2747
      %v2823 = vsel %vm666, %v2601, 0
      %2825 = vmatprep.subr.bf16.mxu0 %v2765
      %2826 = vmatpush1.bf16.msra.mxu0 %v2764
      %2827 = vmatprep.subr.bf16.mxu0 %v2763
      %2828 = vmatpush1.bf16.msra.mxu0 %v2762
      %2829 = vmatprep.subr.bf16.mxu0 %v2761
      %2830 = vmatpush1.bf16.msra.mxu0 %v2760
      %2831 = vmatprep.subr.bf16.mxu0 %v2759
      %2832 = vmatpush1.bf16.msra.mxu0 %v2758
      %2833 = vmatprep.subr.bf16.mxu0 %v2757
      %2834 = vmatpush1.bf16.msra.mxu0 %v2756
      %2835 = vmatprep.subr.bf16.mxu0 %v2755
      %2836 = vmatpush1.bf16.msra.mxu0 %v2754
      %2837 = vmatprep.subr.bf16.mxu0 %v2753
      %2838 = vmatpush1.bf16.msra.mxu0 %v2752
      %2839 = vmatprep.subr.bf16.mxu0 %v2751
      %2840 = vmatpush1.bf16.msra.mxu0 %v2750
      %2841 = vmatprep.subr.bf16.mxu0 %v2781
      %2842 = vmatpush2.bf16.msra.mxu0 %v2780
      %2843 = vmatprep.subr.bf16.mxu0 %v2779
      %2844 = vmatpush2.bf16.msra.mxu0 %v2778
      %2845 = vmatprep.subr.bf16.mxu0 %v2777
      %2846 = vmatpush2.bf16.msra.mxu0 %v2776
      %2847 = vmatprep.subr.bf16.mxu0 %v2775
      %2848 = vmatpush2.bf16.msra.mxu0 %v2774
      %2849 = vmatprep.subr.bf16.mxu0 %v2773
      %2850 = vmatpush2.bf16.msra.mxu0 %v2772
      %2851 = vmatprep.subr.bf16.mxu0 %v2771
      %2852 = vmatpush2.bf16.msra.mxu0 %v2770
      %2853 = vmatprep.subr.bf16.mxu0 %v2769
      %2854 = vmatpush2.bf16.msra.mxu0 %v2768
      %2855 = vmatprep.subr.bf16.mxu0 %v2767
      %2856 = vmatpush2.bf16.msra.mxu0 %v2766
      %2857 = vmatprep.mubr.bf16.mxu0 %v2600
      %2858 = vmatmul.mubr.bf16.gmra.mxu0 %v2599
      %v2859 = vpop.f32.mrf.mxu0
      %v2860 = vadd.f32 0.0, %v2859
      %v2861 = vpop.f32.mrf.mxu0
      %v2862 = vadd.f32 0.0, %v2861
      %v2863 = vpop.f32.mrf.mxu0
      %v2864 = vadd.f32 0.0, %v2863
      %v2865 = vpop.f32.mrf.mxu0
      %v2866 = vadd.f32 0.0, %v2865
      %2867 = vdwg.mxu0
      %2868 = vmatprep.subr.bf16.mxu0 0
      %2869 = vmatpush1.bf16.msra.mxu0 0
      %2870 = vmatprep.subr.bf16.mxu0 0
      %2871 = vmatpush1.bf16.msra.mxu0 0
      %2872 = vmatprep.subr.bf16.mxu0 0
      %2873 = vmatpush1.bf16.msra.mxu0 0
      %2874 = vmatprep.subr.bf16.mxu0 0
      %2875 = vmatpush1.bf16.msra.mxu0 0
      %2876 = vmatprep.subr.bf16.mxu0 0
      %2877 = vmatpush1.bf16.msra.mxu0 0
      %2878 = vmatprep.subr.bf16.mxu0 0
      %2879 = vmatpush1.bf16.msra.mxu0 0
      %2880 = vmatprep.subr.bf16.mxu0 %v2785
      %2881 = vmatpush1.bf16.msra.mxu0 %v2784
      %2882 = vmatprep.subr.bf16.mxu0 %v2783
      %2883 = vmatpush1.bf16.msra.mxu0 %v2782
      %2884 = vmatprep.subr.bf16.mxu0 0
      %2885 = vmatpush2.bf16.msra.mxu0 0
      %2886 = vmatprep.subr.bf16.mxu0 0
      %2887 = vmatpush2.bf16.msra.mxu0 0
      %2888 = vmatprep.subr.bf16.mxu0 0
      %2889 = vmatpush2.bf16.msra.mxu0 0
      %2890 = vmatprep.subr.bf16.mxu0 0
      %2891 = vmatpush2.bf16.msra.mxu0 0
      %2892 = vmatprep.subr.bf16.mxu0 0
      %2893 = vmatpush2.bf16.msra.mxu0 0
      %2894 = vmatprep.subr.bf16.mxu0 0
      %2895 = vmatpush2.bf16.msra.mxu0 0
      %2896 = vmatprep.subr.bf16.mxu0 0
      %2897 = vmatpush2.bf16.msra.mxu0 0
      %2898 = vmatprep.subr.bf16.mxu0 0
      %2899 = vmatpush2.bf16.msra.mxu0 0
      %2900 = vmatprep.mubr.bf16.mxu0 0
      %2901 = vmatmul.mubr.bf16.gmra.mxu0 %v2823
      %v2902 = vpop.f32.mrf.mxu0
      %v2903 = vadd.f32 %v2860, %v2902
      %v2904 = vpop.f32.mrf.mxu0
      %v2905 = vadd.f32 %v2862, %v2904
      %v2906 = vpop.f32.mrf.mxu0
      %v2907 = vadd.f32 %v2864, %v2906
      %v2908 = vpop.f32.mrf.mxu0
      %v2909 = vadd.f32 %v2866, %v2908
      %2910 = vdwg.mxu0
      %v2912 = vlaneseq
      %v2913 = vshrl.u32 %v2912, 7
      %v2914 = vsub.s32 0, %v2913
      %v2915 = vrot.slane %v2605, %v2914
      %v2916 = vlaneseq
      %v2917 = vshrl.u32 %v2916, 7
      %v2918 = vsub.s32 1, %v2917
      %v2919 = vrot.slane %v2605, %v2918
      %v2922 = vadd.f32 %v2915, %v2903
      %v2923 = vadd.f32 %v2919, %v2905
      %v2924 = vadd.f32 %v2915, %v2907
      %v2925 = vadd.f32 %v2919, %v2909
      %s2926 = scalar_lea.vmem %s5, 288
      %v2927 = vld [vmem:[%s2926] sm:$0xff]
      %v2928 = vld [vmem:[%s2926 + $0x8] sm:$0xff]
      %v2929 = vld [vmem:[%s2926 + $0x10] sm:$0xff]
      %v2930 = vld [vmem:[%s2926 + $0x18] sm:$0xff]
      %v2931 = vld [vmem:[%s2926 + $0x20] sm:$0xff]
      %v2932 = vld [vmem:[%s2926 + $0x28] sm:$0xff]
      %v2933 = vld [vmem:[%s2926 + $0x30] sm:$0xff]
      %v2934 = vld [vmem:[%s2926 + $0x38] sm:$0xff]
      %v2935 = vld [vmem:[%s2926 + $0x40] sm:$0xff]
      %v2936 = vld [vmem:[%s2926 + $0x48] sm:$0xff]
      %v2937 = vld [vmem:[%s2926 + $0x50] sm:$0xff]
      %v2938 = vld [vmem:[%s2926 + $0x58] sm:$0xff]
      %v2939 = vld [vmem:[%s2926 + $0x60] sm:$0xff]
      %v2940 = vld [vmem:[%s2926 + $0x68] sm:$0xff]
      %v2941 = vld [vmem:[%s2926 + $0x70] sm:$0xff]
      %v2942 = vld [vmem:[%s2926 + $0x78] sm:$0xff]
      %v2943 = vld [vmem:[%s2926 + $0x80] sm:$0xff]
      %v2944 = vld [vmem:[%s2926 + $0x88] sm:$0xff]
      %v2945 = vld [vmem:[%s2926 + $0x90] sm:$0xff]
      %v2946 = vld [vmem:[%s2926 + $0x98] sm:$0xff]
      %v2947 = vld [vmem:[%s2926 + $0xa0] sm:$0xff]
      %v2948 = vld [vmem:[%s2926 + $0xa8] sm:$0xff]
      %v2949 = vld [vmem:[%s2926 + $0xb0] sm:$0xff]
      %v2950 = vld [vmem:[%s2926 + $0xb8] sm:$0xff]
      %v2951 = vld [vmem:[%s2926 + $0xc0] sm:$0xff]
      %v2952 = vld [vmem:[%s2926 + $0xc8] sm:$0xff]
      %v2953 = vld [vmem:[%s2926 + $0xd0] sm:$0xff]
      %v2954 = vld [vmem:[%s2926 + $0xd8] sm:$0xff]
      %v2955 = vld [vmem:[%s2926 + $0xe0] sm:$0xff]
      %v2956 = vld [vmem:[%s2926 + $0xe8] sm:$0xff]
      %v2957 = vld [vmem:[%s2926 + $0xf0] sm:$0xff]
      %v2958 = vld [vmem:[%s2926 + $0xf8] sm:$0xff]
      %v2959 = vld [vmem:[%s2926 + $0x100] sm:$0xff]
      %v2960 = vld [vmem:[%s2926 + $0x108] sm:$0xff]
      %v2961 = vld [vmem:[%s2926 + $0x110] sm:$0xff]
      %v2962 = vld [vmem:[%s2926 + $0x118] sm:$0xff]
      %v2964 = vshrl.u32 %v2599, 16
      %v2966 = vshll.u32 %v2599, 16
      %v2968 = vrot.slane %v2966, 1
      %v2969 = vor.u32 %v2964, %v2968
      %v2971 = vshll.u32 %v2602, 16
      %v2973 = vrot.slane %v2971, 1
      %v2974 = vsel %vm816, %v2969, %v2973
      %v2976 = vshrl.u32 %v2600, 16
      %v2978 = vshll.u32 %v2600, 16
      %v2980 = vrot.slane %v2978, 1
      %v2981 = vor.u32 %v2976, %v2980
      %v2983 = vshll.u32 %v2603, 16
      %v2985 = vrot.slane %v2983, 1
      %v2986 = vsel %vm816, %v2981, %v2985
      %v2987 = vshrl.u32 %v2601, 16
      %v2989 = vshll.u32 %v2601, 16
      %v2991 = vrot.slane %v2989, 1
      %v2992 = vor.u32 %v2987, %v2991
      %v2994 = vshll.u32 %v2604, 16
      %v2996 = vrot.slane %v2994, 1
      %v2997 = vsel %vm816, %v2992, %v2996
      %v3036 = vunpack.c.l.b16 %v2927
      %v3037 = vunpack.c.h.b16 %v2927
      %v3038 = vunpack.c.l.b16 %v2928
      %v3039 = vunpack.c.h.b16 %v2928
      %v3040 = vunpack.c.l.b16 %v2929
      %v3041 = vunpack.c.h.b16 %v2929
      %v3042 = vunpack.c.l.b16 %v2930
      %v3043 = vunpack.c.h.b16 %v2930
      %v3044 = vunpack.c.l.b16 %v2931
      %v3045 = vunpack.c.h.b16 %v2931
      %v3046 = vunpack.c.l.b16 %v2932
      %v3047 = vunpack.c.h.b16 %v2932
      %v3048 = vunpack.c.l.b16 %v2933
      %v3049 = vunpack.c.h.b16 %v2933
      %v3050 = vunpack.c.l.b16 %v2934
      %v3051 = vunpack.c.h.b16 %v2934
      %v3052 = vunpack.c.l.b16 %v2935
      %v3053 = vunpack.c.h.b16 %v2935
      %v3054 = vunpack.c.l.b16 %v2936
      %v3055 = vunpack.c.h.b16 %v2936
      %v3056 = vunpack.c.l.b16 %v2937
      %v3057 = vunpack.c.h.b16 %v2937
      %v3058 = vunpack.c.l.b16 %v2938
      %v3059 = vunpack.c.h.b16 %v2938
      %v3060 = vunpack.c.l.b16 %v2939
      %v3061 = vunpack.c.h.b16 %v2939
      %v3062 = vunpack.c.l.b16 %v2940
      %v3063 = vunpack.c.h.b16 %v2940
      %v3064 = vunpack.c.l.b16 %v2941
      %v3065 = vunpack.c.h.b16 %v2941
      %v3066 = vunpack.c.l.b16 %v2942
      %v3067 = vunpack.c.h.b16 %v2942
      %v3068 = vunpack.c.l.b16 %v2943
      %v3069 = vunpack.c.h.b16 %v2943
      %v3070 = vunpack.c.l.b16 %v2944
      %v3071 = vunpack.c.h.b16 %v2944
      %v3072 = vunpack.c.l.b16 %v2945
      %v3073 = vunpack.c.h.b16 %v2945
      %v3074 = vunpack.c.l.b16 %v2946
      %v3075 = vunpack.c.h.b16 %v2946
      %v3076 = vunpack.c.l.b16 %v2947
      %v3077 = vunpack.c.h.b16 %v2947
      %v3078 = vunpack.c.l.b16 %v2948
      %v3079 = vunpack.c.h.b16 %v2948
      %v3080 = vunpack.c.l.b16 %v2949
      %v3081 = vunpack.c.h.b16 %v2949
      %v3082 = vunpack.c.l.b16 %v2950
      %v3083 = vunpack.c.h.b16 %v2950
      %v3084 = vunpack.c.l.b16 %v2951
      %v3085 = vunpack.c.h.b16 %v2951
      %v3086 = vunpack.c.l.b16 %v2952
      %v3087 = vunpack.c.h.b16 %v2952
      %v3088 = vunpack.c.l.b16 %v2953
      %v3089 = vunpack.c.h.b16 %v2953
      %v3090 = vunpack.c.l.b16 %v2954
      %v3091 = vunpack.c.h.b16 %v2954
      %v3092 = vunpack.c.l.b16 %v2955
      %v3093 = vunpack.c.h.b16 %v2955
      %v3094 = vunpack.c.l.b16 %v2956
      %v3095 = vunpack.c.h.b16 %v2956
      %v3096 = vunpack.c.l.b16 %v2957
      %v3097 = vunpack.c.h.b16 %v2957
      %v3098 = vunpack.c.l.b16 %v2958
      %v3099 = vunpack.c.h.b16 %v2958
      %v3100 = vunpack.c.l.b16 %v2959
      %v3101 = vunpack.c.h.b16 %v2959
      %v3102 = vunpack.c.l.b16 %v2960
      %v3103 = vunpack.c.h.b16 %v2960
      %v3104 = vunpack.c.l.b16 %v2961
      %v3105 = vunpack.c.h.b16 %v2961
      %v3106 = vunpack.c.l.b16 %v2962
      %v3107 = vunpack.c.h.b16 %v2962
      %v3108 = vpack.c.b16 %v3038, %v3036
      %v3109 = vpack.c.b16 %v3039, %v3037
      %v3110 = vpack.c.b16 %v3042, %v3040
      %v3111 = vpack.c.b16 %v3043, %v3041
      %v3112 = vpack.c.b16 %v3046, %v3044
      %v3113 = vpack.c.b16 %v3047, %v3045
      %v3114 = vpack.c.b16 %v3050, %v3048
      %v3115 = vpack.c.b16 %v3051, %v3049
      %v3116 = vpack.c.b16 %v3054, %v3052
      %v3117 = vpack.c.b16 %v3055, %v3053
      %v3118 = vpack.c.b16 %v3058, %v3056
      %v3119 = vpack.c.b16 %v3059, %v3057
      %v3120 = vpack.c.b16 %v3062, %v3060
      %v3121 = vpack.c.b16 %v3063, %v3061
      %v3122 = vpack.c.b16 %v3066, %v3064
      %v3123 = vpack.c.b16 %v3067, %v3065
      %v3124 = vpack.c.b16 %v3070, %v3068
      %v3125 = vpack.c.b16 %v3071, %v3069
      %v3126 = vpack.c.b16 %v3074, %v3072
      %v3127 = vpack.c.b16 %v3075, %v3073
      %v3128 = vpack.c.b16 %v3078, %v3076
      %v3129 = vpack.c.b16 %v3079, %v3077
      %v3130 = vpack.c.b16 %v3082, %v3080
      %v3131 = vpack.c.b16 %v3083, %v3081
      %v3132 = vpack.c.b16 %v3086, %v3084
      %v3133 = vpack.c.b16 %v3087, %v3085
      %v3134 = vpack.c.b16 %v3090, %v3088
      %v3135 = vpack.c.b16 %v3091, %v3089
      %v3136 = vpack.c.b16 %v3094, %v3092
      %v3137 = vpack.c.b16 %v3095, %v3093
      %v3138 = vpack.c.b16 %v3098, %v3096
      %v3139 = vpack.c.b16 %v3099, %v3097
      %v3140 = vpack.c.b16 %v3102, %v3100
      %v3141 = vpack.c.b16 %v3103, %v3101
      %v3142 = vpack.c.b16 %v3106, %v3104
      %v3143 = vpack.c.b16 %v3107, %v3105
      %v3181 = vsel %vm666, %v2997, 0
      %3183 = vmatprep.subr.bf16.mxu0 %v3123
      %3184 = vmatpush1.bf16.msra.mxu0 %v3122
      %3185 = vmatprep.subr.bf16.mxu0 %v3121
      %3186 = vmatpush1.bf16.msra.mxu0 %v3120
      %3187 = vmatprep.subr.bf16.mxu0 %v3119
      %3188 = vmatpush1.bf16.msra.mxu0 %v3118
      %3189 = vmatprep.subr.bf16.mxu0 %v3117
      %3190 = vmatpush1.bf16.msra.mxu0 %v3116
      %3191 = vmatprep.subr.bf16.mxu0 %v3115
      %3192 = vmatpush1.bf16.msra.mxu0 %v3114
      %3193 = vmatprep.subr.bf16.mxu0 %v3113
      %3194 = vmatpush1.bf16.msra.mxu0 %v3112
      %3195 = vmatprep.subr.bf16.mxu0 %v3111
      %3196 = vmatpush1.bf16.msra.mxu0 %v3110
      %3197 = vmatprep.subr.bf16.mxu0 %v3109
      %3198 = vmatpush1.bf16.msra.mxu0 %v3108
      %3199 = vmatprep.subr.bf16.mxu0 %v3139
      %3200 = vmatpush2.bf16.msra.mxu0 %v3138
      %3201 = vmatprep.subr.bf16.mxu0 %v3137
      %3202 = vmatpush2.bf16.msra.mxu0 %v3136
      %3203 = vmatprep.subr.bf16.mxu0 %v3135
      %3204 = vmatpush2.bf16.msra.mxu0 %v3134
      %3205 = vmatprep.subr.bf16.mxu0 %v3133
      %3206 = vmatpush2.bf16.msra.mxu0 %v3132
      %3207 = vmatprep.subr.bf16.mxu0 %v3131
      %3208 = vmatpush2.bf16.msra.mxu0 %v3130
      %3209 = vmatprep.subr.bf16.mxu0 %v3129
      %3210 = vmatpush2.bf16.msra.mxu0 %v3128
      %3211 = vmatprep.subr.bf16.mxu0 %v3127
      %3212 = vmatpush2.bf16.msra.mxu0 %v3126
      %3213 = vmatprep.subr.bf16.mxu0 %v3125
      %3214 = vmatpush2.bf16.msra.mxu0 %v3124
      %3215 = vmatprep.mubr.bf16.mxu0 %v2986
      %3216 = vmatmul.mubr.bf16.gmra.mxu0 %v2974
      %v3217 = vpop.f32.mrf.mxu0
      %v3218 = vadd.f32 0.0, %v3217
      %v3219 = vpop.f32.mrf.mxu0
      %v3220 = vadd.f32 0.0, %v3219
      %v3221 = vpop.f32.mrf.mxu0
      %v3222 = vadd.f32 0.0, %v3221
      %v3223 = vpop.f32.mrf.mxu0
      %v3224 = vadd.f32 0.0, %v3223
      %3225 = vdwg.mxu0
      %3226 = vmatprep.subr.bf16.mxu0 0
      %3227 = vmatpush1.bf16.msra.mxu0 0
      %3228 = vmatprep.subr.bf16.mxu0 0
      %3229 = vmatpush1.bf16.msra.mxu0 0
      %3230 = vmatprep.subr.bf16.mxu0 0
      %3231 = vmatpush1.bf16.msra.mxu0 0
      %3232 = vmatprep.subr.bf16.mxu0 0
      %3233 = vmatpush1.bf16.msra.mxu0 0
      %3234 = vmatprep.subr.bf16.mxu0 0
      %3235 = vmatpush1.bf16.msra.mxu0 0
      %3236 = vmatprep.subr.bf16.mxu0 0
      %3237 = vmatpush1.bf16.msra.mxu0 0
      %3238 = vmatprep.subr.bf16.mxu0 %v3143
      %3239 = vmatpush1.bf16.msra.mxu0 %v3142
      %3240 = vmatprep.subr.bf16.mxu0 %v3141
      %3241 = vmatpush1.bf16.msra.mxu0 %v3140
      %3242 = vmatprep.subr.bf16.mxu0 0
      %3243 = vmatpush2.bf16.msra.mxu0 0
      %3244 = vmatprep.subr.bf16.mxu0 0
      %3245 = vmatpush2.bf16.msra.mxu0 0
      %3246 = vmatprep.subr.bf16.mxu0 0
      %3247 = vmatpush2.bf16.msra.mxu0 0
      %3248 = vmatprep.subr.bf16.mxu0 0
      %3249 = vmatpush2.bf16.msra.mxu0 0
      %3250 = vmatprep.subr.bf16.mxu0 0
      %3251 = vmatpush2.bf16.msra.mxu0 0
      %3252 = vmatprep.subr.bf16.mxu0 0
      %3253 = vmatpush2.bf16.msra.mxu0 0
      %3254 = vmatprep.subr.bf16.mxu0 0
      %3255 = vmatpush2.bf16.msra.mxu0 0
      %3256 = vmatprep.subr.bf16.mxu0 0
      %3257 = vmatpush2.bf16.msra.mxu0 0
      %3258 = vmatprep.mubr.bf16.mxu0 0
      %3259 = vmatmul.mubr.bf16.gmra.mxu0 %v3181
      %v3260 = vpop.f32.mrf.mxu0
      %v3261 = vadd.f32 %v3218, %v3260
      %v3262 = vpop.f32.mrf.mxu0
      %v3263 = vadd.f32 %v3220, %v3262
      %v3264 = vpop.f32.mrf.mxu0
      %v3265 = vadd.f32 %v3222, %v3264
      %v3266 = vpop.f32.mrf.mxu0
      %v3267 = vadd.f32 %v3224, %v3266
      %3268 = vdwg.mxu0
      %v3269 = vadd.f32 %v2922, %v3261
      %v3270 = vadd.f32 %v2923, %v3263
      %v3271 = vadd.f32 %v2924, %v3265
      %v3272 = vadd.f32 %v2925, %v3267
      %s3273 = scalar_lea.vmem %s5, 576
      %v3274 = vld [vmem:[%s3273] sm:$0xff]
      %v3275 = vld [vmem:[%s3273 + $0x8] sm:$0xff]
      %v3276 = vld [vmem:[%s3273 + $0x10] sm:$0xff]
      %v3277 = vld [vmem:[%s3273 + $0x18] sm:$0xff]
      %v3278 = vld [vmem:[%s3273 + $0x20] sm:$0xff]
      %v3279 = vld [vmem:[%s3273 + $0x28] sm:$0xff]
      %v3280 = vld [vmem:[%s3273 + $0x30] sm:$0xff]
      %v3281 = vld [vmem:[%s3273 + $0x38] sm:$0xff]
      %v3282 = vld [vmem:[%s3273 + $0x40] sm:$0xff]
      %v3283 = vld [vmem:[%s3273 + $0x48] sm:$0xff]
      %v3284 = vld [vmem:[%s3273 + $0x50] sm:$0xff]
      %v3285 = vld [vmem:[%s3273 + $0x58] sm:$0xff]
      %v3286 = vld [vmem:[%s3273 + $0x60] sm:$0xff]
      %v3287 = vld [vmem:[%s3273 + $0x68] sm:$0xff]
      %v3288 = vld [vmem:[%s3273 + $0x70] sm:$0xff]
      %v3289 = vld [vmem:[%s3273 + $0x78] sm:$0xff]
      %v3290 = vld [vmem:[%s3273 + $0x80] sm:$0xff]
      %v3291 = vld [vmem:[%s3273 + $0x88] sm:$0xff]
      %v3292 = vld [vmem:[%s3273 + $0x90] sm:$0xff]
      %v3293 = vld [vmem:[%s3273 + $0x98] sm:$0xff]
      %v3294 = vld [vmem:[%s3273 + $0xa0] sm:$0xff]
      %v3295 = vld [vmem:[%s3273 + $0xa8] sm:$0xff]
      %v3296 = vld [vmem:[%s3273 + $0xb0] sm:$0xff]
      %v3297 = vld [vmem:[%s3273 + $0xb8] sm:$0xff]
      %v3298 = vld [vmem:[%s3273 + $0xc0] sm:$0xff]
      %v3299 = vld [vmem:[%s3273 + $0xc8] sm:$0xff]
      %v3300 = vld [vmem:[%s3273 + $0xd0] sm:$0xff]
      %v3301 = vld [vmem:[%s3273 + $0xd8] sm:$0xff]
      %v3302 = vld [vmem:[%s3273 + $0xe0] sm:$0xff]
      %v3303 = vld [vmem:[%s3273 + $0xe8] sm:$0xff]
      %v3304 = vld [vmem:[%s3273 + $0xf0] sm:$0xff]
      %v3305 = vld [vmem:[%s3273 + $0xf8] sm:$0xff]
      %v3306 = vld [vmem:[%s3273 + $0x100] sm:$0xff]
      %v3307 = vld [vmem:[%s3273 + $0x108] sm:$0xff]
      %v3308 = vld [vmem:[%s3273 + $0x110] sm:$0xff]
      %v3309 = vld [vmem:[%s3273 + $0x118] sm:$0xff]
      %v3316 = vrot.slane %v2599, 1
      %v3317 = vrot.slane %v2602, 1
      %v3318 = vsel %vm1164, %v3316, %v3317
      %v3319 = vrot.slane %v2600, 1
      %v3320 = vrot.slane %v2603, 1
      %v3321 = vsel %vm1164, %v3319, %v3320
      %v3322 = vrot.slane %v2601, 1
      %v3323 = vrot.slane %v2604, 1
      %v3324 = vsel %vm1164, %v3322, %v3323
      %v3363 = vunpack.c.l.b16 %v3274
      %v3364 = vunpack.c.h.b16 %v3274
      %v3365 = vunpack.c.l.b16 %v3275
      %v3366 = vunpack.c.h.b16 %v3275
      %v3367 = vunpack.c.l.b16 %v3276
      %v3368 = vunpack.c.h.b16 %v3276
      %v3369 = vunpack.c.l.b16 %v3277
      %v3370 = vunpack.c.h.b16 %v3277
      %v3371 = vunpack.c.l.b16 %v3278
      %v3372 = vunpack.c.h.b16 %v3278
      %v3373 = vunpack.c.l.b16 %v3279
      %v3374 = vunpack.c.h.b16 %v3279
      %v3375 = vunpack.c.l.b16 %v3280
      %v3376 = vunpack.c.h.b16 %v3280
      %v3377 = vunpack.c.l.b16 %v3281
      %v3378 = vunpack.c.h.b16 %v3281
      %v3379 = vunpack.c.l.b16 %v3282
      %v3380 = vunpack.c.h.b16 %v3282
      %v3381 = vunpack.c.l.b16 %v3283
      %v3382 = vunpack.c.h.b16 %v3283
      %v3383 = vunpack.c.l.b16 %v3284
      %v3384 = vunpack.c.h.b16 %v3284
      %v3385 = vunpack.c.l.b16 %v3285
      %v3386 = vunpack.c.h.b16 %v3285
      %v3387 = vunpack.c.l.b16 %v3286
      %v3388 = vunpack.c.h.b16 %v3286
      %v3389 = vunpack.c.l.b16 %v3287
      %v3390 = vunpack.c.h.b16 %v3287
      %v3391 = vunpack.c.l.b16 %v3288
      %v3392 = vunpack.c.h.b16 %v3288
      %v3393 = vunpack.c.l.b16 %v3289
      %v3394 = vunpack.c.h.b16 %v3289
      %v3395 = vunpack.c.l.b16 %v3290
      %v3396 = vunpack.c.h.b16 %v3290
      %v3397 = vunpack.c.l.b16 %v3291
      %v3398 = vunpack.c.h.b16 %v3291
      %v3399 = vunpack.c.l.b16 %v3292
      %v3400 = vunpack.c.h.b16 %v3292
      %v3401 = vunpack.c.l.b16 %v3293
      %v3402 = vunpack.c.h.b16 %v3293
      %v3403 = vunpack.c.l.b16 %v3294
      %v3404 = vunpack.c.h.b16 %v3294
      %v3405 = vunpack.c.l.b16 %v3295
      %v3406 = vunpack.c.h.b16 %v3295
      %v3407 = vunpack.c.l.b16 %v3296
      %v3408 = vunpack.c.h.b16 %v3296
      %v3409 = vunpack.c.l.b16 %v3297
      %v3410 = vunpack.c.h.b16 %v3297
      %v3411 = vunpack.c.l.b16 %v3298
      %v3412 = vunpack.c.h.b16 %v3298
      %v3413 = vunpack.c.l.b16 %v3299
      %v3414 = vunpack.c.h.b16 %v3299
      %v3415 = vunpack.c.l.b16 %v3300
      %v3416 = vunpack.c.h.b16 %v3300
      %v3417 = vunpack.c.l.b16 %v3301
      %v3418 = vunpack.c.h.b16 %v3301
      %v3419 = vunpack.c.l.b16 %v3302
      %v3420 = vunpack.c.h.b16 %v3302
      %v3421 = vunpack.c.l.b16 %v3303
      %v3422 = vunpack.c.h.b16 %v3303
      %v3423 = vunpack.c.l.b16 %v3304
      %v3424 = vunpack.c.h.b16 %v3304
      %v3425 = vunpack.c.l.b16 %v3305
      %v3426 = vunpack.c.h.b16 %v3305
      %v3427 = vunpack.c.l.b16 %v3306
      %v3428 = vunpack.c.h.b16 %v3306
      %v3429 = vunpack.c.l.b16 %v3307
      %v3430 = vunpack.c.h.b16 %v3307
      %v3431 = vunpack.c.l.b16 %v3308
      %v3432 = vunpack.c.h.b16 %v3308
      %v3433 = vunpack.c.l.b16 %v3309
      %v3434 = vunpack.c.h.b16 %v3309
      %v3435 = vpack.c.b16 %v3365, %v3363
      %v3436 = vpack.c.b16 %v3366, %v3364
      %v3437 = vpack.c.b16 %v3369, %v3367
      %v3438 = vpack.c.b16 %v3370, %v3368
      %v3439 = vpack.c.b16 %v3373, %v3371
      %v3440 = vpack.c.b16 %v3374, %v3372
      %v3441 = vpack.c.b16 %v3377, %v3375
      %v3442 = vpack.c.b16 %v3378, %v3376
      %v3443 = vpack.c.b16 %v3381, %v3379
      %v3444 = vpack.c.b16 %v3382, %v3380
      %v3445 = vpack.c.b16 %v3385, %v3383
      %v3446 = vpack.c.b16 %v3386, %v3384
      %v3447 = vpack.c.b16 %v3389, %v3387
      %v3448 = vpack.c.b16 %v3390, %v3388
      %v3449 = vpack.c.b16 %v3393, %v3391
      %v3450 = vpack.c.b16 %v3394, %v3392
      %v3451 = vpack.c.b16 %v3397, %v3395
      %v3452 = vpack.c.b16 %v3398, %v3396
      %v3453 = vpack.c.b16 %v3401, %v3399
      %v3454 = vpack.c.b16 %v3402, %v3400
      %v3455 = vpack.c.b16 %v3405, %v3403
      %v3456 = vpack.c.b16 %v3406, %v3404
      %v3457 = vpack.c.b16 %v3409, %v3407
      %v3458 = vpack.c.b16 %v3410, %v3408
      %v3459 = vpack.c.b16 %v3413, %v3411
      %v3460 = vpack.c.b16 %v3414, %v3412
      %v3461 = vpack.c.b16 %v3417, %v3415
      %v3462 = vpack.c.b16 %v3418, %v3416
      %v3463 = vpack.c.b16 %v3421, %v3419
      %v3464 = vpack.c.b16 %v3422, %v3420
      %v3465 = vpack.c.b16 %v3425, %v3423
      %v3466 = vpack.c.b16 %v3426, %v3424
      %v3467 = vpack.c.b16 %v3429, %v3427
      %v3468 = vpack.c.b16 %v3430, %v3428
      %v3469 = vpack.c.b16 %v3433, %v3431
      %v3470 = vpack.c.b16 %v3434, %v3432
      %v3508 = vsel %vm666, %v3324, 0
      %3510 = vmatprep.subr.bf16.mxu0 %v3450
      %3511 = vmatpush1.bf16.msra.mxu0 %v3449
      %3512 = vmatprep.subr.bf16.mxu0 %v3448
      %3513 = vmatpush1.bf16.msra.mxu0 %v3447
      %3514 = vmatprep.subr.bf16.mxu0 %v3446
      %3515 = vmatpush1.bf16.msra.mxu0 %v3445
      %3516 = vmatprep.subr.bf16.mxu0 %v3444
      %3517 = vmatpush1.bf16.msra.mxu0 %v3443
      %3518 = vmatprep.subr.bf16.mxu0 %v3442
      %3519 = vmatpush1.bf16.msra.mxu0 %v3441
      %3520 = vmatprep.subr.bf16.mxu0 %v3440
      %3521 = vmatpush1.bf16.msra.mxu0 %v3439
      %3522 = vmatprep.subr.bf16.mxu0 %v3438
      %3523 = vmatpush1.bf16.msra.mxu0 %v3437
      %3524 = vmatprep.subr.bf16.mxu0 %v3436
      %3525 = vmatpush1.bf16.msra.mxu0 %v3435
      %3526 = vmatprep.subr.bf16.mxu0 %v3466
      %3527 = vmatpush2.bf16.msra.mxu0 %v3465
      %3528 = vmatprep.subr.bf16.mxu0 %v3464
      %3529 = vmatpush2.bf16.msra.mxu0 %v3463
      %3530 = vmatprep.subr.bf16.mxu0 %v3462
      %3531 = vmatpush2.bf16.msra.mxu0 %v3461
      %3532 = vmatprep.subr.bf16.mxu0 %v3460
      %3533 = vmatpush2.bf16.msra.mxu0 %v3459
      %3534 = vmatprep.subr.bf16.mxu0 %v3458
      %3535 = vmatpush2.bf16.msra.mxu0 %v3457
      %3536 = vmatprep.subr.bf16.mxu0 %v3456
      %3537 = vmatpush2.bf16.msra.mxu0 %v3455
      %3538 = vmatprep.subr.bf16.mxu0 %v3454
      %3539 = vmatpush2.bf16.msra.mxu0 %v3453
      %3540 = vmatprep.subr.bf16.mxu0 %v3452
      %3541 = vmatpush2.bf16.msra.mxu0 %v3451
      %3542 = vmatprep.mubr.bf16.mxu0 %v3321
      %3543 = vmatmul.mubr.bf16.gmra.mxu0 %v3318
      %v3544 = vpop.f32.mrf.mxu0
      %v3545 = vadd.f32 0.0, %v3544
      %v3546 = vpop.f32.mrf.mxu0
      %v3547 = vadd.f32 0.0, %v3546
      %v3548 = vpop.f32.mrf.mxu0
      %v3549 = vadd.f32 0.0, %v3548
      %v3550 = vpop.f32.mrf.mxu0
      %v3551 = vadd.f32 0.0, %v3550
      %3552 = vdwg.mxu0
      %3553 = vmatprep.subr.bf16.mxu0 0
      %3554 = vmatpush1.bf16.msra.mxu0 0
      %3555 = vmatprep.subr.bf16.mxu0 0
      %3556 = vmatpush1.bf16.msra.mxu0 0
      %3557 = vmatprep.subr.bf16.mxu0 0
      %3558 = vmatpush1.bf16.msra.mxu0 0
      %3559 = vmatprep.subr.bf16.mxu0 0
      %3560 = vmatpush1.bf16.msra.mxu0 0
      %3561 = vmatprep.subr.bf16.mxu0 0
      %3562 = vmatpush1.bf16.msra.mxu0 0
      %3563 = vmatprep.subr.bf16.mxu0 0
      %3564 = vmatpush1.bf16.msra.mxu0 0
      %3565 = vmatprep.subr.bf16.mxu0 %v3470
      %3566 = vmatpush1.bf16.msra.mxu0 %v3469
      %3567 = vmatprep.subr.bf16.mxu0 %v3468
      %3568 = vmatpush1.bf16.msra.mxu0 %v3467
      %3569 = vmatprep.subr.bf16.mxu0 0
      %3570 = vmatpush2.bf16.msra.mxu0 0
      %3571 = vmatprep.subr.bf16.mxu0 0
      %3572 = vmatpush2.bf16.msra.mxu0 0
      %3573 = vmatprep.subr.bf16.mxu0 0
      %3574 = vmatpush2.bf16.msra.mxu0 0
      %3575 = vmatprep.subr.bf16.mxu0 0
      %3576 = vmatpush2.bf16.msra.mxu0 0
      %3577 = vmatprep.subr.bf16.mxu0 0
      %3578 = vmatpush2.bf16.msra.mxu0 0
      %3579 = vmatprep.subr.bf16.mxu0 0
      %3580 = vmatpush2.bf16.msra.mxu0 0
      %3581 = vmatprep.subr.bf16.mxu0 0
      %3582 = vmatpush2.bf16.msra.mxu0 0
      %3583 = vmatprep.subr.bf16.mxu0 0
      %3584 = vmatpush2.bf16.msra.mxu0 0
      %3585 = vmatprep.mubr.bf16.mxu0 0
      %3586 = vmatmul.mubr.bf16.gmra.mxu0 %v3508
      %v3587 = vpop.f32.mrf.mxu0
      %v3588 = vadd.f32 %v3545, %v3587
      %v3589 = vpop.f32.mrf.mxu0
      %v3590 = vadd.f32 %v3547, %v3589
      %v3591 = vpop.f32.mrf.mxu0
      %v3592 = vadd.f32 %v3549, %v3591
      %v3593 = vpop.f32.mrf.mxu0
      %v3594 = vadd.f32 %v3551, %v3593
      %3595 = vdwg.mxu0
      %v3596 = vadd.f32 %v3269, %v3588
      %v3597 = vadd.f32 %v3270, %v3590
      %v3598 = vadd.f32 %v3271, %v3592
      %v3599 = vadd.f32 %v3272, %v3594
      %v3600 = vunpack.c.l.bf16 %v2561
      %v3601 = vunpack.c.l.bf16 %v2562
      %v3602 = vunpack.c.h.bf16 %v2561
      %v3603 = vunpack.c.h.bf16 %v2562
      %v3604 = vmax.f32 %v3596, 0.0
      %v3605 = vmax.f32 %v3597, 0.0
      %v3606 = vmax.f32 %v3598, 0.0
      %v3607 = vmax.f32 %v3599, 0.0
      %v3608 = vpack.c.bf16 %v3606, %v3604
      %v3609 = vpack.c.bf16 %v3607, %v3605
      %3612 = vrot.lane.b32.xlu0 %v3608, 16
      %v3613 = vpop.permute.xlu0 %3612
      %3614 = vrot.lane.b32.xlu0 %v3609, 16
      %v3615 = vpop.permute.xlu0 %3614
      %v3616 = vsel %vm1470, %v3613, %v3615
      %v3618 = vsel %vm1472, 0, %v3613
      %v3620 = vsel %vm1472, %v3615, 0
      %v3621 = vshrl.u32 %v3618, 16
      %v3623 = vrot.slane %v3621, 7
      %v3624 = vshll.u32 %v3618, 16
      %v3626 = vor.u32 %v3623, %v3624
      %v3628 = vshrl.u32 %v3616, 16
      %v3630 = vrot.slane %v3628, 7
      %v3631 = vshll.u32 %v3616, 16
      %v3633 = vor.u32 %v3630, %v3631
      %v3634 = vshrl.u32 %v3620, 16
      %v3636 = vrot.slane %v3634, 7
      %v3637 = vshll.u32 %v3620, 16
      %v3639 = vor.u32 %v3636, %v3637
      %v3646 = vsel %vm1505, 0, %v3626
      %v3647 = vsel %vm1505, 0, %v3633
      %v3648 = vsel %vm1505, 0, %v3639
      %v3649 = vsel %vm1505, %v3623, 0
      %v3650 = vsel %vm1505, %v3630, 0
      %v3651 = vsel %vm1505, %v3636, 0
      %v3652 = vld [vmem:[%s8] sm:$0x3]
      %v3653 = vld [vmem:[%s7] sm:$0xff]
      %v3654 = vld [vmem:[%s7 + $0x8] sm:$0xff]
      %v3655 = vld [vmem:[%s7 + $0x10] sm:$0xff]
      %v3656 = vld [vmem:[%s7 + $0x18] sm:$0xff]
      %v3657 = vld [vmem:[%s7 + $0x20] sm:$0xff]
      %v3658 = vld [vmem:[%s7 + $0x28] sm:$0xff]
      %v3659 = vld [vmem:[%s7 + $0x30] sm:$0xff]
      %v3660 = vld [vmem:[%s7 + $0x38] sm:$0xff]
      %v3661 = vld [vmem:[%s7 + $0x40] sm:$0xff]
      %v3662 = vld [vmem:[%s7 + $0x48] sm:$0xff]
      %v3663 = vld [vmem:[%s7 + $0x50] sm:$0xff]
      %v3664 = vld [vmem:[%s7 + $0x58] sm:$0xff]
      %v3665 = vld [vmem:[%s7 + $0x60] sm:$0xff]
      %v3666 = vld [vmem:[%s7 + $0x68] sm:$0xff]
      %v3667 = vld [vmem:[%s7 + $0x70] sm:$0xff]
      %v3668 = vld [vmem:[%s7 + $0x78] sm:$0xff]
      %v3669 = vld [vmem:[%s7 + $0x80] sm:$0xff]
      %v3670 = vld [vmem:[%s7 + $0x88] sm:$0xff]
      %v3671 = vld [vmem:[%s7 + $0x90] sm:$0xff]
      %v3672 = vld [vmem:[%s7 + $0x98] sm:$0xff]
      %v3673 = vld [vmem:[%s7 + $0xa0] sm:$0xff]
      %v3674 = vld [vmem:[%s7 + $0xa8] sm:$0xff]
      %v3675 = vld [vmem:[%s7 + $0xb0] sm:$0xff]
      %v3676 = vld [vmem:[%s7 + $0xb8] sm:$0xff]
      %v3677 = vld [vmem:[%s7 + $0xc0] sm:$0xff]
      %v3678 = vld [vmem:[%s7 + $0xc8] sm:$0xff]
      %v3679 = vld [vmem:[%s7 + $0xd0] sm:$0xff]
      %v3680 = vld [vmem:[%s7 + $0xd8] sm:$0xff]
      %v3681 = vld [vmem:[%s7 + $0xe0] sm:$0xff]
      %v3682 = vld [vmem:[%s7 + $0xe8] sm:$0xff]
      %v3683 = vld [vmem:[%s7 + $0xf0] sm:$0xff]
      %v3684 = vld [vmem:[%s7 + $0xf8] sm:$0xff]
      %v3685 = vld [vmem:[%s7 + $0x100] sm:$0xff]
      %v3686 = vld [vmem:[%s7 + $0x108] sm:$0xff]
      %v3687 = vld [vmem:[%s7 + $0x110] sm:$0xff]
      %v3688 = vld [vmem:[%s7 + $0x118] sm:$0xff]
      %v3725 = vunpack.c.l.b16 %v3653
      %v3726 = vunpack.c.h.b16 %v3653
      %v3727 = vunpack.c.l.b16 %v3654
      %v3728 = vunpack.c.h.b16 %v3654
      %v3729 = vunpack.c.l.b16 %v3655
      %v3730 = vunpack.c.h.b16 %v3655
      %v3731 = vunpack.c.l.b16 %v3656
      %v3732 = vunpack.c.h.b16 %v3656
      %v3733 = vunpack.c.l.b16 %v3657
      %v3734 = vunpack.c.h.b16 %v3657
      %v3735 = vunpack.c.l.b16 %v3658
      %v3736 = vunpack.c.h.b16 %v3658
      %v3737 = vunpack.c.l.b16 %v3659
      %v3738 = vunpack.c.h.b16 %v3659
      %v3739 = vunpack.c.l.b16 %v3660
      %v3740 = vunpack.c.h.b16 %v3660
      %v3741 = vunpack.c.l.b16 %v3661
      %v3742 = vunpack.c.h.b16 %v3661
      %v3743 = vunpack.c.l.b16 %v3662
      %v3744 = vunpack.c.h.b16 %v3662
      %v3745 = vunpack.c.l.b16 %v3663
      %v3746 = vunpack.c.h.b16 %v3663
      %v3747 = vunpack.c.l.b16 %v3664
      %v3748 = vunpack.c.h.b16 %v3664
      %v3749 = vunpack.c.l.b16 %v3665
      %v3750 = vunpack.c.h.b16 %v3665
      %v3751 = vunpack.c.l.b16 %v3666
      %v3752 = vunpack.c.h.b16 %v3666
      %v3753 = vunpack.c.l.b16 %v3667
      %v3754 = vunpack.c.h.b16 %v3667
      %v3755 = vunpack.c.l.b16 %v3668
      %v3756 = vunpack.c.h.b16 %v3668
      %v3757 = vunpack.c.l.b16 %v3669
      %v3758 = vunpack.c.h.b16 %v3669
      %v3759 = vunpack.c.l.b16 %v3670
      %v3760 = vunpack.c.h.b16 %v3670
      %v3761 = vunpack.c.l.b16 %v3671
      %v3762 = vunpack.c.h.b16 %v3671
      %v3763 = vunpack.c.l.b16 %v3672
      %v3764 = vunpack.c.h.b16 %v3672
      %v3765 = vunpack.c.l.b16 %v3673
      %v3766 = vunpack.c.h.b16 %v3673
      %v3767 = vunpack.c.l.b16 %v3674
      %v3768 = vunpack.c.h.b16 %v3674
      %v3769 = vunpack.c.l.b16 %v3675
      %v3770 = vunpack.c.h.b16 %v3675
      %v3771 = vunpack.c.l.b16 %v3676
      %v3772 = vunpack.c.h.b16 %v3676
      %v3773 = vunpack.c.l.b16 %v3677
      %v3774 = vunpack.c.h.b16 %v3677
      %v3775 = vunpack.c.l.b16 %v3678
      %v3776 = vunpack.c.h.b16 %v3678
      %v3777 = vunpack.c.l.b16 %v3679
      %v3778 = vunpack.c.h.b16 %v3679
      %v3779 = vunpack.c.l.b16 %v3680
      %v3780 = vunpack.c.h.b16 %v3680
      %v3781 = vunpack.c.l.b16 %v3681
      %v3782 = vunpack.c.h.b16 %v3681
      %v3783 = vunpack.c.l.b16 %v3682
      %v3784 = vunpack.c.h.b16 %v3682
      %v3785 = vunpack.c.l.b16 %v3683
      %v3786 = vunpack.c.h.b16 %v3683
      %v3787 = vunpack.c.l.b16 %v3684
      %v3788 = vunpack.c.h.b16 %v3684
      %v3789 = vunpack.c.l.b16 %v3685
      %v3790 = vunpack.c.h.b16 %v3685
      %v3791 = vunpack.c.l.b16 %v3686
      %v3792 = vunpack.c.h.b16 %v3686
      %v3793 = vunpack.c.l.b16 %v3687
      %v3794 = vunpack.c.h.b16 %v3687
      %v3795 = vunpack.c.l.b16 %v3688
      %v3796 = vunpack.c.h.b16 %v3688
      %v3797 = vpack.c.b16 %v3727, %v3725
      %v3798 = vpack.c.b16 %v3728, %v3726
      %v3799 = vpack.c.b16 %v3731, %v3729
      %v3800 = vpack.c.b16 %v3732, %v3730
      %v3801 = vpack.c.b16 %v3735, %v3733
      %v3802 = vpack.c.b16 %v3736, %v3734
      %v3803 = vpack.c.b16 %v3739, %v3737
      %v3804 = vpack.c.b16 %v3740, %v3738
      %v3805 = vpack.c.b16 %v3743, %v3741
      %v3806 = vpack.c.b16 %v3744, %v3742
      %v3807 = vpack.c.b16 %v3747, %v3745
      %v3808 = vpack.c.b16 %v3748, %v3746
      %v3809 = vpack.c.b16 %v3751, %v3749
      %v3810 = vpack.c.b16 %v3752, %v3750
      %v3811 = vpack.c.b16 %v3755, %v3753
      %v3812 = vpack.c.b16 %v3756, %v3754
      %v3813 = vpack.c.b16 %v3759, %v3757
      %v3814 = vpack.c.b16 %v3760, %v3758
      %v3815 = vpack.c.b16 %v3763, %v3761
      %v3816 = vpack.c.b16 %v3764, %v3762
      %v3817 = vpack.c.b16 %v3767, %v3765
      %v3818 = vpack.c.b16 %v3768, %v3766
      %v3819 = vpack.c.b16 %v3771, %v3769
      %v3820 = vpack.c.b16 %v3772, %v3770
      %v3821 = vpack.c.b16 %v3775, %v3773
      %v3822 = vpack.c.b16 %v3776, %v3774
      %v3823 = vpack.c.b16 %v3779, %v3777
      %v3824 = vpack.c.b16 %v3780, %v3778
      %v3825 = vpack.c.b16 %v3783, %v3781
      %v3826 = vpack.c.b16 %v3784, %v3782
      %v3827 = vpack.c.b16 %v3787, %v3785
      %v3828 = vpack.c.b16 %v3788, %v3786
      %v3829 = vpack.c.b16 %v3791, %v3789
      %v3830 = vpack.c.b16 %v3792, %v3790
      %v3831 = vpack.c.b16 %v3795, %v3793
      %v3832 = vpack.c.b16 %v3796, %v3794
      %v3870 = vsel %vm666, %v3648, 0
      %3872 = vmatprep.subr.bf16.mxu0 %v3812
      %3873 = vmatpush1.bf16.msra.mxu0 %v3811
      %3874 = vmatprep.subr.bf16.mxu0 %v3810
      %3875 = vmatpush1.bf16.msra.mxu0 %v3809
      %3876 = vmatprep.subr.bf16.mxu0 %v3808
      %3877 = vmatpush1.bf16.msra.mxu0 %v3807
      %3878 = vmatprep.subr.bf16.mxu0 %v3806
      %3879 = vmatpush1.bf16.msra.mxu0 %v3805
      %3880 = vmatprep.subr.bf16.mxu0 %v3804
      %3881 = vmatpush1.bf16.msra.mxu0 %v3803
      %3882 = vmatprep.subr.bf16.mxu0 %v3802
      %3883 = vmatpush1.bf16.msra.mxu0 %v3801
      %3884 = vmatprep.subr.bf16.mxu0 %v3800
      %3885 = vmatpush1.bf16.msra.mxu0 %v3799
      %3886 = vmatprep.subr.bf16.mxu0 %v3798
      %3887 = vmatpush1.bf16.msra.mxu0 %v3797
      %3888 = vmatprep.subr.bf16.mxu0 %v3828
      %3889 = vmatpush2.bf16.msra.mxu0 %v3827
      %3890 = vmatprep.subr.bf16.mxu0 %v3826
      %3891 = vmatpush2.bf16.msra.mxu0 %v3825
      %3892 = vmatprep.subr.bf16.mxu0 %v3824
      %3893 = vmatpush2.bf16.msra.mxu0 %v3823
      %3894 = vmatprep.subr.bf16.mxu0 %v3822
      %3895 = vmatpush2.bf16.msra.mxu0 %v3821
      %3896 = vmatprep.subr.bf16.mxu0 %v3820
      %3897 = vmatpush2.bf16.msra.mxu0 %v3819
      %3898 = vmatprep.subr.bf16.mxu0 %v3818
      %3899 = vmatpush2.bf16.msra.mxu0 %v3817
      %3900 = vmatprep.subr.bf16.mxu0 %v3816
      %3901 = vmatpush2.bf16.msra.mxu0 %v3815
      %3902 = vmatprep.subr.bf16.mxu0 %v3814
      %3903 = vmatpush2.bf16.msra.mxu0 %v3813
      %3904 = vmatprep.mubr.bf16.mxu0 %v3647
      %3905 = vmatmul.mubr.bf16.gmra.mxu0 %v3646
      %v3906 = vpop.f32.mrf.mxu0
      %v3907 = vadd.f32 0.0, %v3906
      %v3908 = vpop.f32.mrf.mxu0
      %v3909 = vadd.f32 0.0, %v3908
      %v3910 = vpop.f32.mrf.mxu0
      %v3911 = vadd.f32 0.0, %v3910
      %v3912 = vpop.f32.mrf.mxu0
      %v3913 = vadd.f32 0.0, %v3912
      %3914 = vdwg.mxu0
      %3915 = vmatprep.subr.bf16.mxu0 0
      %3916 = vmatpush1.bf16.msra.mxu0 0
      %3917 = vmatprep.subr.bf16.mxu0 0
      %3918 = vmatpush1.bf16.msra.mxu0 0
      %3919 = vmatprep.subr.bf16.mxu0 0
      %3920 = vmatpush1.bf16.msra.mxu0 0
      %3921 = vmatprep.subr.bf16.mxu0 0
      %3922 = vmatpush1.bf16.msra.mxu0 0
      %3923 = vmatprep.subr.bf16.mxu0 0
      %3924 = vmatpush1.bf16.msra.mxu0 0
      %3925 = vmatprep.subr.bf16.mxu0 0
      %3926 = vmatpush1.bf16.msra.mxu0 0
      %3927 = vmatprep.subr.bf16.mxu0 %v3832
      %3928 = vmatpush1.bf16.msra.mxu0 %v3831
      %3929 = vmatprep.subr.bf16.mxu0 %v3830
      %3930 = vmatpush1.bf16.msra.mxu0 %v3829
      %3931 = vmatprep.subr.bf16.mxu0 0
      %3932 = vmatpush2.bf16.msra.mxu0 0
      %3933 = vmatprep.subr.bf16.mxu0 0
      %3934 = vmatpush2.bf16.msra.mxu0 0
      %3935 = vmatprep.subr.bf16.mxu0 0
      %3936 = vmatpush2.bf16.msra.mxu0 0
      %3937 = vmatprep.subr.bf16.mxu0 0
      %3938 = vmatpush2.bf16.msra.mxu0 0
      %3939 = vmatprep.subr.bf16.mxu0 0
      %3940 = vmatpush2.bf16.msra.mxu0 0
      %3941 = vmatprep.subr.bf16.mxu0 0
      %3942 = vmatpush2.bf16.msra.mxu0 0
      %3943 = vmatprep.subr.bf16.mxu0 0
      %3944 = vmatpush2.bf16.msra.mxu0 0
      %3945 = vmatprep.subr.bf16.mxu0 0
      %3946 = vmatpush2.bf16.msra.mxu0 0
      %3947 = vmatprep.mubr.bf16.mxu0 0
      %3948 = vmatmul.mubr.bf16.gmra.mxu0 %v3870
      %v3949 = vpop.f32.mrf.mxu0
      %v3950 = vadd.f32 %v3907, %v3949
      %v3951 = vpop.f32.mrf.mxu0
      %v3952 = vadd.f32 %v3909, %v3951
      %v3953 = vpop.f32.mrf.mxu0
      %v3954 = vadd.f32 %v3911, %v3953
      %v3955 = vpop.f32.mrf.mxu0
      %v3956 = vadd.f32 %v3913, %v3955
      %3957 = vdwg.mxu0
      %v3959 = vlaneseq
      %v3960 = vshrl.u32 %v3959, 7
      %v3961 = vsub.s32 0, %v3960
      %v3962 = vrot.slane %v3652, %v3961
      %v3963 = vlaneseq
      %v3964 = vshrl.u32 %v3963, 7
      %v3965 = vsub.s32 1, %v3964
      %v3966 = vrot.slane %v3652, %v3965
      %v3969 = vadd.f32 %v3962, %v3950
      %v3970 = vadd.f32 %v3966, %v3952
      %v3971 = vadd.f32 %v3962, %v3954
      %v3972 = vadd.f32 %v3966, %v3956
      %s3973 = scalar_lea.vmem %s7, 288
      %v3974 = vld [vmem:[%s3973] sm:$0xff]
      %v3975 = vld [vmem:[%s3973 + $0x8] sm:$0xff]
      %v3976 = vld [vmem:[%s3973 + $0x10] sm:$0xff]
      %v3977 = vld [vmem:[%s3973 + $0x18] sm:$0xff]
      %v3978 = vld [vmem:[%s3973 + $0x20] sm:$0xff]
      %v3979 = vld [vmem:[%s3973 + $0x28] sm:$0xff]
      %v3980 = vld [vmem:[%s3973 + $0x30] sm:$0xff]
      %v3981 = vld [vmem:[%s3973 + $0x38] sm:$0xff]
      %v3982 = vld [vmem:[%s3973 + $0x40] sm:$0xff]
      %v3983 = vld [vmem:[%s3973 + $0x48] sm:$0xff]
      %v3984 = vld [vmem:[%s3973 + $0x50] sm:$0xff]
      %v3985 = vld [vmem:[%s3973 + $0x58] sm:$0xff]
      %v3986 = vld [vmem:[%s3973 + $0x60] sm:$0xff]
      %v3987 = vld [vmem:[%s3973 + $0x68] sm:$0xff]
      %v3988 = vld [vmem:[%s3973 + $0x70] sm:$0xff]
      %v3989 = vld [vmem:[%s3973 + $0x78] sm:$0xff]
      %v3990 = vld [vmem:[%s3973 + $0x80] sm:$0xff]
      %v3991 = vld [vmem:[%s3973 + $0x88] sm:$0xff]
      %v3992 = vld [vmem:[%s3973 + $0x90] sm:$0xff]
      %v3993 = vld [vmem:[%s3973 + $0x98] sm:$0xff]
      %v3994 = vld [vmem:[%s3973 + $0xa0] sm:$0xff]
      %v3995 = vld [vmem:[%s3973 + $0xa8] sm:$0xff]
      %v3996 = vld [vmem:[%s3973 + $0xb0] sm:$0xff]
      %v3997 = vld [vmem:[%s3973 + $0xb8] sm:$0xff]
      %v3998 = vld [vmem:[%s3973 + $0xc0] sm:$0xff]
      %v3999 = vld [vmem:[%s3973 + $0xc8] sm:$0xff]
      %v4000 = vld [vmem:[%s3973 + $0xd0] sm:$0xff]
      %v4001 = vld [vmem:[%s3973 + $0xd8] sm:$0xff]
      %v4002 = vld [vmem:[%s3973 + $0xe0] sm:$0xff]
      %v4003 = vld [vmem:[%s3973 + $0xe8] sm:$0xff]
      %v4004 = vld [vmem:[%s3973 + $0xf0] sm:$0xff]
      %v4005 = vld [vmem:[%s3973 + $0xf8] sm:$0xff]
      %v4006 = vld [vmem:[%s3973 + $0x100] sm:$0xff]
      %v4007 = vld [vmem:[%s3973 + $0x108] sm:$0xff]
      %v4008 = vld [vmem:[%s3973 + $0x110] sm:$0xff]
      %v4009 = vld [vmem:[%s3973 + $0x118] sm:$0xff]
      %v4011 = vshrl.u32 %v3646, 16
      %v4013 = vshll.u32 %v3646, 16
      %v4015 = vrot.slane %v4013, 1
      %v4016 = vor.u32 %v4011, %v4015
      %v4018 = vshll.u32 %v3649, 16
      %v4020 = vrot.slane %v4018, 1
      %v4021 = vsel %vm816, %v4016, %v4020
      %v4023 = vshrl.u32 %v3647, 16
      %v4025 = vshll.u32 %v3647, 16
      %v4027 = vrot.slane %v4025, 1
      %v4028 = vor.u32 %v4023, %v4027
      %v4030 = vshll.u32 %v3650, 16
      %v4032 = vrot.slane %v4030, 1
      %v4033 = vsel %vm816, %v4028, %v4032
      %v4034 = vshrl.u32 %v3648, 16
      %v4036 = vshll.u32 %v3648, 16
      %v4038 = vrot.slane %v4036, 1
      %v4039 = vor.u32 %v4034, %v4038
      %v4041 = vshll.u32 %v3651, 16
      %v4043 = vrot.slane %v4041, 1
      %v4044 = vsel %vm816, %v4039, %v4043
      %v4083 = vunpack.c.l.b16 %v3974
      %v4084 = vunpack.c.h.b16 %v3974
      %v4085 = vunpack.c.l.b16 %v3975
      %v4086 = vunpack.c.h.b16 %v3975
      %v4087 = vunpack.c.l.b16 %v3976
      %v4088 = vunpack.c.h.b16 %v3976
      %v4089 = vunpack.c.l.b16 %v3977
      %v4090 = vunpack.c.h.b16 %v3977
      %v4091 = vunpack.c.l.b16 %v3978
      %v4092 = vunpack.c.h.b16 %v3978
      %v4093 = vunpack.c.l.b16 %v3979
      %v4094 = vunpack.c.h.b16 %v3979
      %v4095 = vunpack.c.l.b16 %v3980
      %v4096 = vunpack.c.h.b16 %v3980
      %v4097 = vunpack.c.l.b16 %v3981
      %v4098 = vunpack.c.h.b16 %v3981
      %v4099 = vunpack.c.l.b16 %v3982
      %v4100 = vunpack.c.h.b16 %v3982
      %v4101 = vunpack.c.l.b16 %v3983
      %v4102 = vunpack.c.h.b16 %v3983
      %v4103 = vunpack.c.l.b16 %v3984
      %v4104 = vunpack.c.h.b16 %v3984
      %v4105 = vunpack.c.l.b16 %v3985
      %v4106 = vunpack.c.h.b16 %v3985
      %v4107 = vunpack.c.l.b16 %v3986
      %v4108 = vunpack.c.h.b16 %v3986
      %v4109 = vunpack.c.l.b16 %v3987
      %v4110 = vunpack.c.h.b16 %v3987
      %v4111 = vunpack.c.l.b16 %v3988
      %v4112 = vunpack.c.h.b16 %v3988
      %v4113 = vunpack.c.l.b16 %v3989
      %v4114 = vunpack.c.h.b16 %v3989
      %v4115 = vunpack.c.l.b16 %v3990
      %v4116 = vunpack.c.h.b16 %v3990
      %v4117 = vunpack.c.l.b16 %v3991
      %v4118 = vunpack.c.h.b16 %v3991
      %v4119 = vunpack.c.l.b16 %v3992
      %v4120 = vunpack.c.h.b16 %v3992
      %v4121 = vunpack.c.l.b16 %v3993
      %v4122 = vunpack.c.h.b16 %v3993
      %v4123 = vunpack.c.l.b16 %v3994
      %v4124 = vunpack.c.h.b16 %v3994
      %v4125 = vunpack.c.l.b16 %v3995
      %v4126 = vunpack.c.h.b16 %v3995
      %v4127 = vunpack.c.l.b16 %v3996
      %v4128 = vunpack.c.h.b16 %v3996
      %v4129 = vunpack.c.l.b16 %v3997
      %v4130 = vunpack.c.h.b16 %v3997
      %v4131 = vunpack.c.l.b16 %v3998
      %v4132 = vunpack.c.h.b16 %v3998
      %v4133 = vunpack.c.l.b16 %v3999
      %v4134 = vunpack.c.h.b16 %v3999
      %v4135 = vunpack.c.l.b16 %v4000
      %v4136 = vunpack.c.h.b16 %v4000
      %v4137 = vunpack.c.l.b16 %v4001
      %v4138 = vunpack.c.h.b16 %v4001
      %v4139 = vunpack.c.l.b16 %v4002
      %v4140 = vunpack.c.h.b16 %v4002
      %v4141 = vunpack.c.l.b16 %v4003
      %v4142 = vunpack.c.h.b16 %v4003
      %v4143 = vunpack.c.l.b16 %v4004
      %v4144 = vunpack.c.h.b16 %v4004
      %v4145 = vunpack.c.l.b16 %v4005
      %v4146 = vunpack.c.h.b16 %v4005
      %v4147 = vunpack.c.l.b16 %v4006
      %v4148 = vunpack.c.h.b16 %v4006
      %v4149 = vunpack.c.l.b16 %v4007
      %v4150 = vunpack.c.h.b16 %v4007
      %v4151 = vunpack.c.l.b16 %v4008
      %v4152 = vunpack.c.h.b16 %v4008
      %v4153 = vunpack.c.l.b16 %v4009
      %v4154 = vunpack.c.h.b16 %v4009
      %v4155 = vpack.c.b16 %v4085, %v4083
      %v4156 = vpack.c.b16 %v4086, %v4084
      %v4157 = vpack.c.b16 %v4089, %v4087
      %v4158 = vpack.c.b16 %v4090, %v4088
      %v4159 = vpack.c.b16 %v4093, %v4091
      %v4160 = vpack.c.b16 %v4094, %v4092
      %v4161 = vpack.c.b16 %v4097, %v4095
      %v4162 = vpack.c.b16 %v4098, %v4096
      %v4163 = vpack.c.b16 %v4101, %v4099
      %v4164 = vpack.c.b16 %v4102, %v4100
      %v4165 = vpack.c.b16 %v4105, %v4103
      %v4166 = vpack.c.b16 %v4106, %v4104
      %v4167 = vpack.c.b16 %v4109, %v4107
      %v4168 = vpack.c.b16 %v4110, %v4108
      %v4169 = vpack.c.b16 %v4113, %v4111
      %v4170 = vpack.c.b16 %v4114, %v4112
      %v4171 = vpack.c.b16 %v4117, %v4115
      %v4172 = vpack.c.b16 %v4118, %v4116
      %v4173 = vpack.c.b16 %v4121, %v4119
      %v4174 = vpack.c.b16 %v4122, %v4120
      %v4175 = vpack.c.b16 %v4125, %v4123
      %v4176 = vpack.c.b16 %v4126, %v4124
      %v4177 = vpack.c.b16 %v4129, %v4127
      %v4178 = vpack.c.b16 %v4130, %v4128
      %v4179 = vpack.c.b16 %v4133, %v4131
      %v4180 = vpack.c.b16 %v4134, %v4132
      %v4181 = vpack.c.b16 %v4137, %v4135
      %v4182 = vpack.c.b16 %v4138, %v4136
      %v4183 = vpack.c.b16 %v4141, %v4139
      %v4184 = vpack.c.b16 %v4142, %v4140
      %v4185 = vpack.c.b16 %v4145, %v4143
      %v4186 = vpack.c.b16 %v4146, %v4144
      %v4187 = vpack.c.b16 %v4149, %v4147
      %v4188 = vpack.c.b16 %v4150, %v4148
      %v4189 = vpack.c.b16 %v4153, %v4151
      %v4190 = vpack.c.b16 %v4154, %v4152
      %v4228 = vsel %vm666, %v4044, 0
      %4230 = vmatprep.subr.bf16.mxu0 %v4170
      %4231 = vmatpush1.bf16.msra.mxu0 %v4169
      %4232 = vmatprep.subr.bf16.mxu0 %v4168
      %4233 = vmatpush1.bf16.msra.mxu0 %v4167
      %4234 = vmatprep.subr.bf16.mxu0 %v4166
      %4235 = vmatpush1.bf16.msra.mxu0 %v4165
      %4236 = vmatprep.subr.bf16.mxu0 %v4164
      %4237 = vmatpush1.bf16.msra.mxu0 %v4163
      %4238 = vmatprep.subr.bf16.mxu0 %v4162
      %4239 = vmatpush1.bf16.msra.mxu0 %v4161
      %4240 = vmatprep.subr.bf16.mxu0 %v4160
      %4241 = vmatpush1.bf16.msra.mxu0 %v4159
      %4242 = vmatprep.subr.bf16.mxu0 %v4158
      %4243 = vmatpush1.bf16.msra.mxu0 %v4157
      %4244 = vmatprep.subr.bf16.mxu0 %v4156
      %4245 = vmatpush1.bf16.msra.mxu0 %v4155
      %4246 = vmatprep.subr.bf16.mxu0 %v4186
      %4247 = vmatpush2.bf16.msra.mxu0 %v4185
      %4248 = vmatprep.subr.bf16.mxu0 %v4184
      %4249 = vmatpush2.bf16.msra.mxu0 %v4183
      %4250 = vmatprep.subr.bf16.mxu0 %v4182
      %4251 = vmatpush2.bf16.msra.mxu0 %v4181
      %4252 = vmatprep.subr.bf16.mxu0 %v4180
      %4253 = vmatpush2.bf16.msra.mxu0 %v4179
      %4254 = vmatprep.subr.bf16.mxu0 %v4178
      %4255 = vmatpush2.bf16.msra.mxu0 %v4177
      %4256 = vmatprep.subr.bf16.mxu0 %v4176
      %4257 = vmatpush2.bf16.msra.mxu0 %v4175
      %4258 = vmatprep.subr.bf16.mxu0 %v4174
      %4259 = vmatpush2.bf16.msra.mxu0 %v4173
      %4260 = vmatprep.subr.bf16.mxu0 %v4172
      %4261 = vmatpush2.bf16.msra.mxu0 %v4171
      %4262 = vmatprep.mubr.bf16.mxu0 %v4033
      %4263 = vmatmul.mubr.bf16.gmra.mxu0 %v4021
      %v4264 = vpop.f32.mrf.mxu0
      %v4265 = vadd.f32 0.0, %v4264
      %v4266 = vpop.f32.mrf.mxu0
      %v4267 = vadd.f32 0.0, %v4266
      %v4268 = vpop.f32.mrf.mxu0
      %v4269 = vadd.f32 0.0, %v4268
      %v4270 = vpop.f32.mrf.mxu0
      %v4271 = vadd.f32 0.0, %v4270
      %4272 = vdwg.mxu0
      %4273 = vmatprep.subr.bf16.mxu0 0
      %4274 = vmatpush1.bf16.msra.mxu0 0
      %4275 = vmatprep.subr.bf16.mxu0 0
      %4276 = vmatpush1.bf16.msra.mxu0 0
      %4277 = vmatprep.subr.bf16.mxu0 0
      %4278 = vmatpush1.bf16.msra.mxu0 0
      %4279 = vmatprep.subr.bf16.mxu0 0
      %4280 = vmatpush1.bf16.msra.mxu0 0
      %4281 = vmatprep.subr.bf16.mxu0 0
      %4282 = vmatpush1.bf16.msra.mxu0 0
      %4283 = vmatprep.subr.bf16.mxu0 0
      %4284 = vmatpush1.bf16.msra.mxu0 0
      %4285 = vmatprep.subr.bf16.mxu0 %v4190
      %4286 = vmatpush1.bf16.msra.mxu0 %v4189
      %4287 = vmatprep.subr.bf16.mxu0 %v4188
      %4288 = vmatpush1.bf16.msra.mxu0 %v4187
      %4289 = vmatprep.subr.bf16.mxu0 0
      %4290 = vmatpush2.bf16.msra.mxu0 0
      %4291 = vmatprep.subr.bf16.mxu0 0
      %4292 = vmatpush2.bf16.msra.mxu0 0
      %4293 = vmatprep.subr.bf16.mxu0 0
      %4294 = vmatpush2.bf16.msra.mxu0 0
      %4295 = vmatprep.subr.bf16.mxu0 0
      %4296 = vmatpush2.bf16.msra.mxu0 0
      %4297 = vmatprep.subr.bf16.mxu0 0
      %4298 = vmatpush2.bf16.msra.mxu0 0
      %4299 = vmatprep.subr.bf16.mxu0 0
      %4300 = vmatpush2.bf16.msra.mxu0 0
      %4301 = vmatprep.subr.bf16.mxu0 0
      %4302 = vmatpush2.bf16.msra.mxu0 0
      %4303 = vmatprep.subr.bf16.mxu0 0
      %4304 = vmatpush2.bf16.msra.mxu0 0
      %4305 = vmatprep.mubr.bf16.mxu0 0
      %4306 = vmatmul.mubr.bf16.gmra.mxu0 %v4228
      %v4307 = vpop.f32.mrf.mxu0
      %v4308 = vadd.f32 %v4265, %v4307
      %v4309 = vpop.f32.mrf.mxu0
      %v4310 = vadd.f32 %v4267, %v4309
      %v4311 = vpop.f32.mrf.mxu0
      %v4312 = vadd.f32 %v4269, %v4311
      %v4313 = vpop.f32.mrf.mxu0
      %v4314 = vadd.f32 %v4271, %v4313
      %4315 = vdwg.mxu0
      %v4316 = vadd.f32 %v3969, %v4308
      %v4317 = vadd.f32 %v3970, %v4310
      %v4318 = vadd.f32 %v3971, %v4312
      %v4319 = vadd.f32 %v3972, %v4314
      %s4320 = scalar_lea.vmem %s7, 576
      %v4321 = vld [vmem:[%s4320] sm:$0xff]
      %v4322 = vld [vmem:[%s4320 + $0x8] sm:$0xff]
      %v4323 = vld [vmem:[%s4320 + $0x10] sm:$0xff]
      %v4324 = vld [vmem:[%s4320 + $0x18] sm:$0xff]
      %v4325 = vld [vmem:[%s4320 + $0x20] sm:$0xff]
      %v4326 = vld [vmem:[%s4320 + $0x28] sm:$0xff]
      %v4327 = vld [vmem:[%s4320 + $0x30] sm:$0xff]
      %v4328 = vld [vmem:[%s4320 + $0x38] sm:$0xff]
      %v4329 = vld [vmem:[%s4320 + $0x40] sm:$0xff]
      %v4330 = vld [vmem:[%s4320 + $0x48] sm:$0xff]
      %v4331 = vld [vmem:[%s4320 + $0x50] sm:$0xff]
      %v4332 = vld [vmem:[%s4320 + $0x58] sm:$0xff]
      %v4333 = vld [vmem:[%s4320 + $0x60] sm:$0xff]
      %v4334 = vld [vmem:[%s4320 + $0x68] sm:$0xff]
      %v4335 = vld [vmem:[%s4320 + $0x70] sm:$0xff]
      %v4336 = vld [vmem:[%s4320 + $0x78] sm:$0xff]
      %v4337 = vld [vmem:[%s4320 + $0x80] sm:$0xff]
      %v4338 = vld [vmem:[%s4320 + $0x88] sm:$0xff]
      %v4339 = vld [vmem:[%s4320 + $0x90] sm:$0xff]
      %v4340 = vld [vmem:[%s4320 + $0x98] sm:$0xff]
      %v4341 = vld [vmem:[%s4320 + $0xa0] sm:$0xff]
      %v4342 = vld [vmem:[%s4320 + $0xa8] sm:$0xff]
      %v4343 = vld [vmem:[%s4320 + $0xb0] sm:$0xff]
      %v4344 = vld [vmem:[%s4320 + $0xb8] sm:$0xff]
      %v4345 = vld [vmem:[%s4320 + $0xc0] sm:$0xff]
      %v4346 = vld [vmem:[%s4320 + $0xc8] sm:$0xff]
      %v4347 = vld [vmem:[%s4320 + $0xd0] sm:$0xff]
      %v4348 = vld [vmem:[%s4320 + $0xd8] sm:$0xff]
      %v4349 = vld [vmem:[%s4320 + $0xe0] sm:$0xff]
      %v4350 = vld [vmem:[%s4320 + $0xe8] sm:$0xff]
      %v4351 = vld [vmem:[%s4320 + $0xf0] sm:$0xff]
      %v4352 = vld [vmem:[%s4320 + $0xf8] sm:$0xff]
      %v4353 = vld [vmem:[%s4320 + $0x100] sm:$0xff]
      %v4354 = vld [vmem:[%s4320 + $0x108] sm:$0xff]
      %v4355 = vld [vmem:[%s4320 + $0x110] sm:$0xff]
      %v4356 = vld [vmem:[%s4320 + $0x118] sm:$0xff]
      %v4363 = vrot.slane %v3646, 1
      %v4364 = vrot.slane %v3649, 1
      %v4365 = vsel %vm1164, %v4363, %v4364
      %v4366 = vrot.slane %v3647, 1
      %v4367 = vrot.slane %v3650, 1
      %v4368 = vsel %vm1164, %v4366, %v4367
      %v4369 = vrot.slane %v3648, 1
      %v4370 = vrot.slane %v3651, 1
      %v4371 = vsel %vm1164, %v4369, %v4370
      %v4410 = vunpack.c.l.b16 %v4321
      %v4411 = vunpack.c.h.b16 %v4321
      %v4412 = vunpack.c.l.b16 %v4322
      %v4413 = vunpack.c.h.b16 %v4322
      %v4414 = vunpack.c.l.b16 %v4323
      %v4415 = vunpack.c.h.b16 %v4323
      %v4416 = vunpack.c.l.b16 %v4324
      %v4417 = vunpack.c.h.b16 %v4324
      %v4418 = vunpack.c.l.b16 %v4325
      %v4419 = vunpack.c.h.b16 %v4325
      %v4420 = vunpack.c.l.b16 %v4326
      %v4421 = vunpack.c.h.b16 %v4326
      %v4422 = vunpack.c.l.b16 %v4327
      %v4423 = vunpack.c.h.b16 %v4327
      %v4424 = vunpack.c.l.b16 %v4328
      %v4425 = vunpack.c.h.b16 %v4328
      %v4426 = vunpack.c.l.b16 %v4329
      %v4427 = vunpack.c.h.b16 %v4329
      %v4428 = vunpack.c.l.b16 %v4330
      %v4429 = vunpack.c.h.b16 %v4330
      %v4430 = vunpack.c.l.b16 %v4331
      %v4431 = vunpack.c.h.b16 %v4331
      %v4432 = vunpack.c.l.b16 %v4332
      %v4433 = vunpack.c.h.b16 %v4332
      %v4434 = vunpack.c.l.b16 %v4333
      %v4435 = vunpack.c.h.b16 %v4333
      %v4436 = vunpack.c.l.b16 %v4334
      %v4437 = vunpack.c.h.b16 %v4334
      %v4438 = vunpack.c.l.b16 %v4335
      %v4439 = vunpack.c.h.b16 %v4335
      %v4440 = vunpack.c.l.b16 %v4336
      %v4441 = vunpack.c.h.b16 %v4336
      %v4442 = vunpack.c.l.b16 %v4337
      %v4443 = vunpack.c.h.b16 %v4337
      %v4444 = vunpack.c.l.b16 %v4338
      %v4445 = vunpack.c.h.b16 %v4338
      %v4446 = vunpack.c.l.b16 %v4339
      %v4447 = vunpack.c.h.b16 %v4339
      %v4448 = vunpack.c.l.b16 %v4340
      %v4449 = vunpack.c.h.b16 %v4340
      %v4450 = vunpack.c.l.b16 %v4341
      %v4451 = vunpack.c.h.b16 %v4341
      %v4452 = vunpack.c.l.b16 %v4342
      %v4453 = vunpack.c.h.b16 %v4342
      %v4454 = vunpack.c.l.b16 %v4343
      %v4455 = vunpack.c.h.b16 %v4343
      %v4456 = vunpack.c.l.b16 %v4344
      %v4457 = vunpack.c.h.b16 %v4344
      %v4458 = vunpack.c.l.b16 %v4345
      %v4459 = vunpack.c.h.b16 %v4345
      %v4460 = vunpack.c.l.b16 %v4346
      %v4461 = vunpack.c.h.b16 %v4346
      %v4462 = vunpack.c.l.b16 %v4347
      %v4463 = vunpack.c.h.b16 %v4347
      %v4464 = vunpack.c.l.b16 %v4348
      %v4465 = vunpack.c.h.b16 %v4348
      %v4466 = vunpack.c.l.b16 %v4349
      %v4467 = vunpack.c.h.b16 %v4349
      %v4468 = vunpack.c.l.b16 %v4350
      %v4469 = vunpack.c.h.b16 %v4350
      %v4470 = vunpack.c.l.b16 %v4351
      %v4471 = vunpack.c.h.b16 %v4351
      %v4472 = vunpack.c.l.b16 %v4352
      %v4473 = vunpack.c.h.b16 %v4352
      %v4474 = vunpack.c.l.b16 %v4353
      %v4475 = vunpack.c.h.b16 %v4353
      %v4476 = vunpack.c.l.b16 %v4354
      %v4477 = vunpack.c.h.b16 %v4354
      %v4478 = vunpack.c.l.b16 %v4355
      %v4479 = vunpack.c.h.b16 %v4355
      %v4480 = vunpack.c.l.b16 %v4356
      %v4481 = vunpack.c.h.b16 %v4356
      %v4482 = vpack.c.b16 %v4412, %v4410
      %v4483 = vpack.c.b16 %v4413, %v4411
      %v4484 = vpack.c.b16 %v4416, %v4414
      %v4485 = vpack.c.b16 %v4417, %v4415
      %v4486 = vpack.c.b16 %v4420, %v4418
      %v4487 = vpack.c.b16 %v4421, %v4419
      %v4488 = vpack.c.b16 %v4424, %v4422
      %v4489 = vpack.c.b16 %v4425, %v4423
      %v4490 = vpack.c.b16 %v4428, %v4426
      %v4491 = vpack.c.b16 %v4429, %v4427
      %v4492 = vpack.c.b16 %v4432, %v4430
      %v4493 = vpack.c.b16 %v4433, %v4431
      %v4494 = vpack.c.b16 %v4436, %v4434
      %v4495 = vpack.c.b16 %v4437, %v4435
      %v4496 = vpack.c.b16 %v4440, %v4438
      %v4497 = vpack.c.b16 %v4441, %v4439
      %v4498 = vpack.c.b16 %v4444, %v4442
      %v4499 = vpack.c.b16 %v4445, %v4443
      %v4500 = vpack.c.b16 %v4448, %v4446
      %v4501 = vpack.c.b16 %v4449, %v4447
      %v4502 = vpack.c.b16 %v4452, %v4450
      %v4503 = vpack.c.b16 %v4453, %v4451
      %v4504 = vpack.c.b16 %v4456, %v4454
      %v4505 = vpack.c.b16 %v4457, %v4455
      %v4506 = vpack.c.b16 %v4460, %v4458
      %v4507 = vpack.c.b16 %v4461, %v4459
      %v4508 = vpack.c.b16 %v4464, %v4462
      %v4509 = vpack.c.b16 %v4465, %v4463
      %v4510 = vpack.c.b16 %v4468, %v4466
      %v4511 = vpack.c.b16 %v4469, %v4467
      %v4512 = vpack.c.b16 %v4472, %v4470
      %v4513 = vpack.c.b16 %v4473, %v4471
      %v4514 = vpack.c.b16 %v4476, %v4474
      %v4515 = vpack.c.b16 %v4477, %v4475
      %v4516 = vpack.c.b16 %v4480, %v4478
      %v4517 = vpack.c.b16 %v4481, %v4479
      %v4555 = vsel %vm666, %v4371, 0
      %4557 = vmatprep.subr.bf16.mxu0 %v4497
      %4558 = vmatpush1.bf16.msra.mxu0 %v4496
      %4559 = vmatprep.subr.bf16.mxu0 %v4495
      %4560 = vmatpush1.bf16.msra.mxu0 %v4494
      %4561 = vmatprep.subr.bf16.mxu0 %v4493
      %4562 = vmatpush1.bf16.msra.mxu0 %v4492
      %4563 = vmatprep.subr.bf16.mxu0 %v4491
      %4564 = vmatpush1.bf16.msra.mxu0 %v4490
      %4565 = vmatprep.subr.bf16.mxu0 %v4489
      %4566 = vmatpush1.bf16.msra.mxu0 %v4488
      %4567 = vmatprep.subr.bf16.mxu0 %v4487
      %4568 = vmatpush1.bf16.msra.mxu0 %v4486
      %4569 = vmatprep.subr.bf16.mxu0 %v4485
      %4570 = vmatpush1.bf16.msra.mxu0 %v4484
      %4571 = vmatprep.subr.bf16.mxu0 %v4483
      %4572 = vmatpush1.bf16.msra.mxu0 %v4482
      %4573 = vmatprep.subr.bf16.mxu0 %v4513
      %4574 = vmatpush2.bf16.msra.mxu0 %v4512
      %4575 = vmatprep.subr.bf16.mxu0 %v4511
      %4576 = vmatpush2.bf16.msra.mxu0 %v4510
      %4577 = vmatprep.subr.bf16.mxu0 %v4509
      %4578 = vmatpush2.bf16.msra.mxu0 %v4508
      %4579 = vmatprep.subr.bf16.mxu0 %v4507
      %4580 = vmatpush2.bf16.msra.mxu0 %v4506
      %4581 = vmatprep.subr.bf16.mxu0 %v4505
      %4582 = vmatpush2.bf16.msra.mxu0 %v4504
      %4583 = vmatprep.subr.bf16.mxu0 %v4503
      %4584 = vmatpush2.bf16.msra.mxu0 %v4502
      %4585 = vmatprep.subr.bf16.mxu0 %v4501
      %4586 = vmatpush2.bf16.msra.mxu0 %v4500
      %4587 = vmatprep.subr.bf16.mxu0 %v4499
      %4588 = vmatpush2.bf16.msra.mxu0 %v4498
      %4589 = vmatprep.mubr.bf16.mxu0 %v4368
      %4590 = vmatmul.mubr.bf16.gmra.mxu0 %v4365
      %v4591 = vpop.f32.mrf.mxu0
      %v4592 = vadd.f32 0.0, %v4591
      %v4593 = vpop.f32.mrf.mxu0
      %v4594 = vadd.f32 0.0, %v4593
      %v4595 = vpop.f32.mrf.mxu0
      %v4596 = vadd.f32 0.0, %v4595
      %v4597 = vpop.f32.mrf.mxu0
      %v4598 = vadd.f32 0.0, %v4597
      %4599 = vdwg.mxu0
      %4600 = vmatprep.subr.bf16.mxu0 0
      %4601 = vmatpush1.bf16.msra.mxu0 0
      %4602 = vmatprep.subr.bf16.mxu0 0
      %4603 = vmatpush1.bf16.msra.mxu0 0
      %4604 = vmatprep.subr.bf16.mxu0 0
      %4605 = vmatpush1.bf16.msra.mxu0 0
      %4606 = vmatprep.subr.bf16.mxu0 0
      %4607 = vmatpush1.bf16.msra.mxu0 0
      %4608 = vmatprep.subr.bf16.mxu0 0
      %4609 = vmatpush1.bf16.msra.mxu0 0
      %4610 = vmatprep.subr.bf16.mxu0 0
      %4611 = vmatpush1.bf16.msra.mxu0 0
      %4612 = vmatprep.subr.bf16.mxu0 %v4517
      %4613 = vmatpush1.bf16.msra.mxu0 %v4516
      %4614 = vmatprep.subr.bf16.mxu0 %v4515
      %4615 = vmatpush1.bf16.msra.mxu0 %v4514
      %4616 = vmatprep.subr.bf16.mxu0 0
      %4617 = vmatpush2.bf16.msra.mxu0 0
      %4618 = vmatprep.subr.bf16.mxu0 0
      %4619 = vmatpush2.bf16.msra.mxu0 0
      %4620 = vmatprep.subr.bf16.mxu0 0
      %4621 = vmatpush2.bf16.msra.mxu0 0
      %4622 = vmatprep.subr.bf16.mxu0 0
      %4623 = vmatpush2.bf16.msra.mxu0 0
      %4624 = vmatprep.subr.bf16.mxu0 0
      %4625 = vmatpush2.bf16.msra.mxu0 0
      %4626 = vmatprep.subr.bf16.mxu0 0
      %4627 = vmatpush2.bf16.msra.mxu0 0
      %4628 = vmatprep.subr.bf16.mxu0 0
      %4629 = vmatpush2.bf16.msra.mxu0 0
      %4630 = vmatprep.subr.bf16.mxu0 0
      %4631 = vmatpush2.bf16.msra.mxu0 0
      %4632 = vmatprep.mubr.bf16.mxu0 0
      %4633 = vmatmul.mubr.bf16.gmra.mxu0 %v4555
      %v4634 = vpop.f32.mrf.mxu0
      %v4635 = vadd.f32 %v4592, %v4634
      %v4636 = vpop.f32.mrf.mxu0
      %v4637 = vadd.f32 %v4594, %v4636
      %v4638 = vpop.f32.mrf.mxu0
      %v4639 = vadd.f32 %v4596, %v4638
      %v4640 = vpop.f32.mrf.mxu0
      %v4641 = vadd.f32 %v4598, %v4640
      %4642 = vdwg.mxu0
      %v4643 = vadd.f32 %v4316, %v4635
      %v4644 = vadd.f32 %v4317, %v4637
      %v4645 = vadd.f32 %v4318, %v4639
      %v4646 = vadd.f32 %v4319, %v4641
      %v4647 = vadd.f32 %v4643, %v3600
      %v4648 = vadd.f32 %v4644, %v3601
      %v4649 = vadd.f32 %v4645, %v3602
      %v4650 = vadd.f32 %v4646, %v3603
      %v4651 = vmax.f32 %v4647, 0.0
      %v4652 = vmax.f32 %v4648, 0.0
      %v4653 = vmax.f32 %v4649, 0.0
      %v4654 = vmax.f32 %v4650, 0.0
      %v4655 = vpack.c.bf16 %v4653, %v4651
      %v4656 = vpack.c.bf16 %v4654, %v4652
      %v4659 = vunpack.c.l.b16 %v4655
      %v4660 = vunpack.c.l.b16 %v4656
      %v4661 = vunpack.c.h.b16 %v4655
      %v4662 = vunpack.c.h.b16 %v4656
      %v4663 = vpack.c.b16 %v4660, %v4659
      %v4664 = vpack.c.b16 %v4662, %v4661
      %4667 = vst [vmem:[%s421] sm:$0xff] %v4663
      %4668 = vst [vmem:[%s421 + $0x8] sm:$0xff] %v4664
      %v4669 = vld [vmem:[%s9] sm:$0xff]
      %v4670 = vld [vmem:[%s9 + $0x8] sm:$0xff]
      %v4671 = vld [vmem:[%s9 + $0x10] sm:$0xff]
      %v4672 = vld [vmem:[%s9 + $0x18] sm:$0xff]
      %v4673 = vld [vmem:[%s9 + $0x20] sm:$0xff]
      %v4674 = vld [vmem:[%s9 + $0x28] sm:$0xff]
      %v4675 = vld [vmem:[%s9 + $0x30] sm:$0xff]
      %v4676 = vld [vmem:[%s9 + $0x38] sm:$0xff]
      %v4677 = vld [vmem:[%s9 + $0x40] sm:$0xff]
      %v4678 = vld [vmem:[%s9 + $0x48] sm:$0xff]
      %v4679 = vld [vmem:[%s9 + $0x50] sm:$0xff]
      %v4680 = vld [vmem:[%s9 + $0x58] sm:$0xff]
      %v4681 = vld [vmem:[%s9 + $0x60] sm:$0xff]
      %v4682 = vld [vmem:[%s9 + $0x68] sm:$0xff]
      %v4683 = vld [vmem:[%s9 + $0x70] sm:$0xff]
      %v4684 = vld [vmem:[%s9 + $0x78] sm:$0xff]
      %v4685 = vld [vmem:[%s9 + $0x80] sm:$0xff]
      %v4686 = vld [vmem:[%s9 + $0x88] sm:$0xff]
      %v4687 = vld [vmem:[%s9 + $0x90] sm:$0xff]
      %v4688 = vld [vmem:[%s9 + $0x98] sm:$0xff]
      %v4689 = vld [vmem:[%s9 + $0xa0] sm:$0xff]
      %v4690 = vld [vmem:[%s9 + $0xa8] sm:$0xff]
      %v4691 = vld [vmem:[%s9 + $0xb0] sm:$0xff]
      %v4692 = vld [vmem:[%s9 + $0xb8] sm:$0xff]
      %v4693 = vld [vmem:[%s9 + $0xc0] sm:$0xff]
      %v4694 = vld [vmem:[%s9 + $0xc8] sm:$0xff]
      %v4695 = vld [vmem:[%s9 + $0xd0] sm:$0xff]
      %v4696 = vld [vmem:[%s9 + $0xd8] sm:$0xff]
      %v4697 = vld [vmem:[%s9 + $0xe0] sm:$0xff]
      %v4698 = vld [vmem:[%s9 + $0xe8] sm:$0xff]
      %v4699 = vld [vmem:[%s9 + $0xf0] sm:$0xff]
      %v4700 = vld [vmem:[%s9 + $0xf8] sm:$0xff]
      %v4701 = vld [vmem:[%s10] sm:$0x3]
      %v4703 = vlaneseq
      %v4704 = vshrl.u32 %v4703, 7
      %v4705 = vsub.s32 0, %v4704
      %v4706 = vrot.slane %v4701, %v4705
      %v4707 = vlaneseq
      %v4708 = vshrl.u32 %v4707, 7
      %v4709 = vsub.s32 1, %v4708
      %v4710 = vrot.slane %v4701, %v4709
      %v4745 = vunpack.c.l.b16 %v4669
      %v4746 = vunpack.c.h.b16 %v4669
      %v4747 = vunpack.c.l.b16 %v4670
      %v4748 = vunpack.c.h.b16 %v4670
      %v4749 = vunpack.c.l.b16 %v4671
      %v4750 = vunpack.c.h.b16 %v4671
      %v4751 = vunpack.c.l.b16 %v4672
      %v4752 = vunpack.c.h.b16 %v4672
      %v4753 = vunpack.c.l.b16 %v4673
      %v4754 = vunpack.c.h.b16 %v4673
      %v4755 = vunpack.c.l.b16 %v4674
      %v4756 = vunpack.c.h.b16 %v4674
      %v4757 = vunpack.c.l.b16 %v4675
      %v4758 = vunpack.c.h.b16 %v4675
      %v4759 = vunpack.c.l.b16 %v4676
      %v4760 = vunpack.c.h.b16 %v4676
      %v4761 = vunpack.c.l.b16 %v4677
      %v4762 = vunpack.c.h.b16 %v4677
      %v4763 = vunpack.c.l.b16 %v4678
      %v4764 = vunpack.c.h.b16 %v4678
      %v4765 = vunpack.c.l.b16 %v4679
      %v4766 = vunpack.c.h.b16 %v4679
      %v4767 = vunpack.c.l.b16 %v4680
      %v4768 = vunpack.c.h.b16 %v4680
      %v4769 = vunpack.c.l.b16 %v4681
      %v4770 = vunpack.c.h.b16 %v4681
      %v4771 = vunpack.c.l.b16 %v4682
      %v4772 = vunpack.c.h.b16 %v4682
      %v4773 = vunpack.c.l.b16 %v4683
      %v4774 = vunpack.c.h.b16 %v4683
      %v4775 = vunpack.c.l.b16 %v4684
      %v4776 = vunpack.c.h.b16 %v4684
      %v4777 = vunpack.c.l.b16 %v4685
      %v4778 = vunpack.c.h.b16 %v4685
      %v4779 = vunpack.c.l.b16 %v4686
      %v4780 = vunpack.c.h.b16 %v4686
      %v4781 = vunpack.c.l.b16 %v4687
      %v4782 = vunpack.c.h.b16 %v4687
      %v4783 = vunpack.c.l.b16 %v4688
      %v4784 = vunpack.c.h.b16 %v4688
      %v4785 = vunpack.c.l.b16 %v4689
      %v4786 = vunpack.c.h.b16 %v4689
      %v4787 = vunpack.c.l.b16 %v4690
      %v4788 = vunpack.c.h.b16 %v4690
      %v4789 = vunpack.c.l.b16 %v4691
      %v4790 = vunpack.c.h.b16 %v4691
      %v4791 = vunpack.c.l.b16 %v4692
      %v4792 = vunpack.c.h.b16 %v4692
      %v4793 = vunpack.c.l.b16 %v4693
      %v4794 = vunpack.c.h.b16 %v4693
      %v4795 = vunpack.c.l.b16 %v4694
      %v4796 = vunpack.c.h.b16 %v4694
      %v4797 = vunpack.c.l.b16 %v4695
      %v4798 = vunpack.c.h.b16 %v4695
      %v4799 = vunpack.c.l.b16 %v4696
      %v4800 = vunpack.c.h.b16 %v4696
      %v4801 = vunpack.c.l.b16 %v4697
      %v4802 = vunpack.c.h.b16 %v4697
      %v4803 = vunpack.c.l.b16 %v4698
      %v4804 = vunpack.c.h.b16 %v4698
      %v4805 = vunpack.c.l.b16 %v4699
      %v4806 = vunpack.c.h.b16 %v4699
      %v4807 = vunpack.c.l.b16 %v4700
      %v4808 = vunpack.c.h.b16 %v4700
      %v4809 = vpack.c.b16 %v4747, %v4745
      %v4810 = vpack.c.b16 %v4748, %v4746
      %v4811 = vpack.c.b16 %v4751, %v4749
      %v4812 = vpack.c.b16 %v4752, %v4750
      %v4813 = vpack.c.b16 %v4755, %v4753
      %v4814 = vpack.c.b16 %v4756, %v4754
      %v4815 = vpack.c.b16 %v4759, %v4757
      %v4816 = vpack.c.b16 %v4760, %v4758
      %v4817 = vpack.c.b16 %v4763, %v4761
      %v4818 = vpack.c.b16 %v4764, %v4762
      %v4819 = vpack.c.b16 %v4767, %v4765
      %v4820 = vpack.c.b16 %v4768, %v4766
      %v4821 = vpack.c.b16 %v4771, %v4769
      %v4822 = vpack.c.b16 %v4772, %v4770
      %v4823 = vpack.c.b16 %v4775, %v4773
      %v4824 = vpack.c.b16 %v4776, %v4774
      %v4825 = vpack.c.b16 %v4779, %v4777
      %v4826 = vpack.c.b16 %v4780, %v4778
      %v4827 = vpack.c.b16 %v4783, %v4781
      %v4828 = vpack.c.b16 %v4784, %v4782
      %v4829 = vpack.c.b16 %v4787, %v4785
      %v4830 = vpack.c.b16 %v4788, %v4786
      %v4831 = vpack.c.b16 %v4791, %v4789
      %v4832 = vpack.c.b16 %v4792, %v4790
      %v4833 = vpack.c.b16 %v4795, %v4793
      %v4834 = vpack.c.b16 %v4796, %v4794
      %v4835 = vpack.c.b16 %v4799, %v4797
      %v4836 = vpack.c.b16 %v4800, %v4798
      %v4837 = vpack.c.b16 %v4803, %v4801
      %v4838 = vpack.c.b16 %v4804, %v4802
      %v4839 = vpack.c.b16 %v4807, %v4805
      %v4840 = vpack.c.b16 %v4808, %v4806
      %4873 = vmatprep.subr.bf16.mxu0 %v4824
      %4874 = vmatpush1.bf16.msra.mxu0 %v4823
      %4875 = vmatprep.subr.bf16.mxu0 %v4822
      %4876 = vmatpush1.bf16.msra.mxu0 %v4821
      %4877 = vmatprep.subr.bf16.mxu0 %v4820
      %4878 = vmatpush1.bf16.msra.mxu0 %v4819
      %4879 = vmatprep.subr.bf16.mxu0 %v4818
      %4880 = vmatpush1.bf16.msra.mxu0 %v4817
      %4881 = vmatprep.subr.bf16.mxu0 %v4816
      %4882 = vmatpush1.bf16.msra.mxu0 %v4815
      %4883 = vmatprep.subr.bf16.mxu0 %v4814
      %4884 = vmatpush1.bf16.msra.mxu0 %v4813
      %4885 = vmatprep.subr.bf16.mxu0 %v4812
      %4886 = vmatpush1.bf16.msra.mxu0 %v4811
      %4887 = vmatprep.subr.bf16.mxu0 %v4810
      %4888 = vmatpush1.bf16.msra.mxu0 %v4809
      %4889 = vmatprep.subr.bf16.mxu0 %v4840
      %4890 = vmatpush2.bf16.msra.mxu0 %v4839
      %4891 = vmatprep.subr.bf16.mxu0 %v4838
      %4892 = vmatpush2.bf16.msra.mxu0 %v4837
      %4893 = vmatprep.subr.bf16.mxu0 %v4836
      %4894 = vmatpush2.bf16.msra.mxu0 %v4835
      %4895 = vmatprep.subr.bf16.mxu0 %v4834
      %4896 = vmatpush2.bf16.msra.mxu0 %v4833
      %4897 = vmatprep.subr.bf16.mxu0 %v4832
      %4898 = vmatpush2.bf16.msra.mxu0 %v4831
      %4899 = vmatprep.subr.bf16.mxu0 %v4830
      %4900 = vmatpush2.bf16.msra.mxu0 %v4829
      %4901 = vmatprep.subr.bf16.mxu0 %v4828
      %4902 = vmatpush2.bf16.msra.mxu0 %v4827
      %4903 = vmatprep.subr.bf16.mxu0 %v4826
      %4904 = vmatpush2.bf16.msra.mxu0 %v4825
      %4905 = vmatprep.mubr.bf16.mxu0 %v4656
      %4906 = vmatmul.mubr.bf16.gmra.mxu0 %v4655
      %v4907 = vpop.f32.mrf.mxu0
      %v4908 = vadd.f32 %v4706, %v4907
      %v4909 = vpop.f32.mrf.mxu0
      %v4910 = vadd.f32 %v4710, %v4909
      %v4911 = vpop.f32.mrf.mxu0
      %v4912 = vadd.f32 %v4706, %v4911
      %v4913 = vpop.f32.mrf.mxu0
      %v4914 = vadd.f32 %v4710, %v4913
      %4915 = vdwg.mxu0
      %v4916 = vmax.f32 %v4908, 0.0
      %v4917 = vmax.f32 %v4910, 0.0
      %v4918 = vmax.f32 %v4912, 0.0
      %v4919 = vmax.f32 %v4914, 0.0
      %v4920 = vpack.c.bf16 %v4918, %v4916
      %v4921 = vpack.c.bf16 %v4919, %v4917
      %v4924 = vunpack.c.l.b16 %v4920
      %v4925 = vunpack.c.l.b16 %v4921
      %v4926 = vunpack.c.h.b16 %v4920
      %v4927 = vunpack.c.h.b16 %v4921
      %v4928 = vpack.c.b16 %v4925, %v4924
      %v4929 = vpack.c.b16 %v4927, %v4926
      %4932 = vst [vmem:[%s426] sm:$0xff] %v4928
      %4933 = vst [vmem:[%s426 + $0x8] sm:$0xff] %v4929
      %p4934 = scmp.lt.s32.totalorder %s24, 1
      %s4935 = scalar_select %p4934, %s24, 1
      %s4936 = smul.addr %s4935, 4
      %s4937 = smul.addr %s4936, 4
      %s4938 = scalar_lea.vmem %s11, %s4937
      %p4939 = scmp.lt.s32.totalorder %s24, 1
      %s4940 = scalar_select %p4939, %s24, 1
      %s4941 = smul.addr %s4940, 4
      %s4942 = smul.addr %s4941, 4
      %s4943 = scalar_lea.vmem %s12, %s4942
      // Predicated region
      $region65: #{run.2} parent=63 // pred_check
        %p4944 = pneg %p278
      $region66: #{run.2} parent=63 // pred_check_branch
        %4946 = sbr.rel (%p4944) target = $region68
      $region67: #{run.2} parent=63 // pred_region
        _
      $region68: #{run.2} parent=63 // pred_fallthru
        _
      // Predicated region
      $region69: #{run.2} parent=63 // pred_check
        %p4947 = pneg %p304
      $region70: #{run.2} parent=63 // pred_check_branch
        %4949 = sbr.rel (%p4947) target = $region72
      $region71: #{run.2} parent=63 // pred_region
        _
      $region72: #{run.2} parent=63 // pred_fallthru
        _
    $region64: #{run.2} parent=5 // pred_fallthru
      _
    %p4950 = scmp.le.s32.totalorder 2, %s19
    // Predicated region
    $region73: #{run.2} parent=5 // pred_check
      %p4951 = pneg %p4950
    $region74: #{run.2} parent=5 // pred_check_branch
      %4953 = sbr.rel (%p4951) target = $region76
    $region75: #{run.2} parent=5 // pred_region
      %s4954 = ssub.s32 %s19, 2
      // Predicated region
      $region77: #{run.2} parent=75 // pred_check
        %p4955 = pneg %p284
      $region78: #{run.2} parent=75 // pred_check_branch
        %4957 = sbr.rel (%p4955) target = $region80
      $region79: #{run.2} parent=75 // pred_region
        %p4958 = scmp.lt.s32.totalorder %s25, 1
        %s4959 = scalar_select %p4958, %s25, 1
        %s4960 = smul.addr %s4959, 4
        %s4961 = smul.addr %s4960, 4
        %s4962 = scalar_lea.vmem %s11, %s4961
      $region80: #{run.2} parent=75 // pred_fallthru
        _
      // Predicated region
      $region81: #{run.2} parent=75 // pred_check
        %p4963 = pneg %p310
      $region82: #{run.2} parent=75 // pred_check_branch
        %4965 = sbr.rel (%p4963) target = $region84
      $region83: #{run.2} parent=75 // pred_region
        %p4966 = scmp.lt.s32.totalorder %s25, 1
        %s4967 = scalar_select %p4966, %s25, 1
        %s4968 = smul.addr %s4967, 4
        %s4969 = smul.addr %s4968, 4
        %s4970 = scalar_lea.vmem %s12, %s4969
      $region84: #{run.2} parent=75 // pred_fallthru
        _
    $region76: #{run.2} parent=5 // pred_fallthru
      _
  $region6: #{run.2} parent=0 // loop_footer
    %s23 = sadd.s32 1, %s19
  $region7: #{run.2} parent=0 // loop_footer_branch
    %18 = sbr.rel target = $region3
  $region8: #{run.2} parent=0 // loop_exit
    _

// kernel: tile.66
$region0: #{tile.66}
  #allocation0 [shape = 's32[1]{0}', space=sflag, size = 0x4, scoped, tag = 'scoped memory for tile.66']
  %s0 = inlined_call_operand.vmem [shape: f32[32], index: 0, kind: input, shape index: {}]
  %s1 = inlined_call_operand.vmem [shape: f32[8,32], index: 1, kind: output, shape index: {}]
  // Predicated region
  $region2: #{tile.66} parent=0 // pred_check
    _
  $region3: #{tile.66} parent=0 // pred_check_branch
    %3 = sbr.rel (0) target = $region5
  $region4: #{tile.66} parent=0 // pred_region
    _
  $region5: #{tile.66} parent=0 // pred_fallthru
    _
  %v4 = vld [vmem:[%s0] ss:$0 sm:$0xff]
  %5 = vst [vmem:[%s1] sm:$0xff] %v4

// kernel: tile.67
$region0: #{tile.67}
  %s0 = inlined_call_operand.vmem [shape: f32[8,32], index: 0, kind: input, shape index: {}]
  %s1 = inlined_call_operand.vmem [shape: f32[1,256], index: 1, kind: output, shape index: {}]
  $region1: #{tile.67} parent=0
    #allocation0 [shape = 'u8[8192]{0}', space=vmem, size = 0x2000, scoped, tag = 'scoped mem for output reshape']
    %s2 = smov 3
    %v3 = vld [vmem:[%s0] ss:$4 sm:%s2]
    %vm4 = vcmask 261120
    %5 = vst.msk [vmem:[#allocation0] ss:$8 sm:$0x3] %vm4, %v3
    %s6 = scalar_lea.vmem %s0, 3
    %s7 = smov 3
    %v8 = vld [vmem:[%s6] ss:$4 sm:%s7]
    %9 = vrot.lane.b32.xlu0 %v8, 96
    %v10 = vpop.permute.xlu0 %9
    %vm11 = vcmask 1048320
    %12 = vst.msk [vmem:[#allocation0] ss:$8 sm:$0x3] %vm11, %v10
    %s13 = scalar_lea.vmem %s0, 2
    %s14 = smov 3
    %v15 = vld [vmem:[%s13] ss:$4 sm:%s14]
    %16 = vrot.lane.b32.xlu0 %v15, 64
    %v17 = vpop.permute.xlu0 %16
    %vm18 = vcmask 785920
    %19 = vst.msk [vmem:[#allocation0] ss:$8 sm:$0x3] %vm18, %v17
    %s20 = scalar_lea.vmem %s0, 1
    %s21 = smov 3
    %v22 = vld [vmem:[%s20] ss:$4 sm:%s21]
    %23 = vrot.lane.b32.xlu0 %v22, 32
    %v24 = vpop.permute.xlu0 %23
    %vm25 = vcmask 523520
    %26 = vst.msk [vmem:[#allocation0] ss:$8 sm:$0x3] %vm25, %v24
    %s28 = sshll.u32 1, 1
    %s29 = ssub.s32 %s28, 1
    %v31 = vld [vmem:[#allocation0] sm:%s29]
    %s32 = sshll.u32 1, 1
    %s33 = ssub.s32 %s32, 1
    %34 = vst [vmem:[%s1] sm:%s33] %v31
    %s35 = scalar_lea.vmem [#allocation0], 8
    %v36 = vld [vmem:[%s35] sm:%s29]
    %s37 = sshll.u32 1, 1
    %s38 = ssub.s32 %s37, 1
    %s39 = scalar_lea.vmem %s1, 1
    %40 = vst [vmem:[%s39] sm:%s38] %v36

// kernel: run.3
$region0: #{run.3}
  #allocation0 [shape = 'u32[]', space=smem, size = 0x4, offset = 0x4, fixed_abs, tag = 'smem constant byte address 0x4 - core index']
  #allocation1 [shape = 'u32[144,128]{1,0:T(1,128)}', space=vmem, size = 0x12000, scoped, tag = 'internal scratch']
  %s0 = inlined_call_operand.vmem [shape: bf16[2,9,144], index: 0, kind: input, shape index: {}]
  %s1 = inlined_call_operand.vmem [shape: bf16[2,9,144], index: 1, kind: input, shape index: {}]
  %s2 = inlined_call_operand.vmem [shape: bf16[2,9,144], index: 2, kind: input, shape index: {}]
  %s3 = inlined_call_operand.vmem [shape: bf16[2,9,144], index: 3, kind: input, shape index: {}]
  %s4 = inlined_call_operand.vmem [shape: bf16[6,144,256], index: 4, kind: input, shape index: {}]
  %s5 = inlined_call_operand.vmem [shape: f32[1,256], index: 5, kind: input, shape index: {}]
  %s6 = inlined_call_operand.vmem [shape: bf16[144,256], index: 6, kind: input, shape index: {}]
  %s7 = inlined_call_operand.vmem [shape: f32[1,256], index: 7, kind: input, shape index: {}]
  %s8 = inlined_call_operand.vmem [shape: bf16[3,320,256], index: 8, kind: input, shape index: {}]
  %s9 = inlined_call_operand.vmem [shape: f32[1,256], index: 9, kind: input, shape index: {}]
  %s10 = inlined_call_operand.vmem [shape: bf16[3,320,256], index: 10, kind: input, shape index: {}]
  %s11 = inlined_call_operand.vmem [shape: f32[1,256], index: 11, kind: input, shape index: {}]
  %s12 = inlined_call_operand.vmem [shape: bf16[3,320,256], index: 12, kind: input, shape index: {}]
  %s13 = inlined_call_operand.vmem [shape: f32[1,256], index: 13, kind: input, shape index: {}]
  %s14 = inlined_call_operand.vmem [shape: bf16[2,256,256], index: 14, kind: input, shape index: {}]
  %s15 = inlined_call_operand.vmem [shape: f32[1,256], index: 15, kind: input, shape index: {}]
  %s16 = inlined_call_operand.vmem [shape: bf16[2,2,8,256], index: 16, kind: output, shape index: {}]
  %s17 = sld [smem:[#allocation0]]
  $region97: #{run.3} parent=0
    _
  %s19 = ssub.s32 1, %s17
  %s20 = scalar_select 0, %s19, %s17
  loop: start=0, step=1, limit=4
  $region2: #{run.3} parent=0 // loop_pre_header
    _
  $region3: #{run.3} parent=0 // loop_header
    %s22 = sphi 0, %s26
    %p23 = scmp.ge.s32.totalorder %s22, 4
    %s32 = sphi 0, %s34
    %s35 = sphi 0, %s32
    %s36 = sphi 0, %s35
    %s52 = sphi 0, %s36
    %s58 = sphi 0, %s60
    %s61 = sphi 0, %s58
    %s62 = sphi 0, %s61
    %s78 = sphi 0, %s62
    %s84 = sphi 0, %s86
    %s87 = sphi 0, %s84
    %s88 = sphi 0, %s87
    %s104 = sphi 0, %s88
    %s110 = sphi 0, %s112
    %s113 = sphi 0, %s110
    %s114 = sphi 0, %s113
    %s130 = sphi 0, %s114
    %s134 = sphi 0, %s134
    %s136 = sphi 0, %s134
    %s137 = sphi 0, %s136
    %s151 = sphi 0, %s137
    %s155 = sphi 0, %s155
    %s157 = sphi 0, %s155
    %s158 = sphi 0, %s157
    %s172 = sphi 0, %s158
    %s176 = sphi 0, %s176
    %s178 = sphi 0, %s176
    %s179 = sphi 0, %s178
    %s193 = sphi 0, %s179
    %s197 = sphi 0, %s197
    %s199 = sphi 0, %s197
    %s200 = sphi 0, %s199
    %s214 = sphi 0, %s200
    %s218 = sphi 0, %s218
    %s220 = sphi 0, %s218
    %s221 = sphi 0, %s220
    %s235 = sphi 0, %s221
    %s239 = sphi 0, %s239
    %s241 = sphi 0, %s239
    %s242 = sphi 0, %s241
    %s256 = sphi 0, %s242
    %s260 = sphi 0, %s260
    %s262 = sphi 0, %s260
    %s263 = sphi 0, %s262
    %s277 = sphi 0, %s263
    %s281 = sphi 0, %s281
    %s283 = sphi 0, %s281
    %s284 = sphi 0, %s283
    %s298 = sphi 0, %s284
    %s302 = sphi 0, %s302
    %s304 = sphi 0, %s302
    %s305 = sphi 0, %s304
    %s319 = sphi 0, %s305
    %s323 = sphi 0, %s323
    %s325 = sphi 0, %s323
    %s326 = sphi 0, %s325
    %s340 = sphi 0, %s326
    %s344 = sphi 0, %s344
    %s346 = sphi 0, %s344
    %s347 = sphi 0, %s346
    %s361 = sphi 0, %s347
    %s365 = sphi 0, %s365
    %s367 = sphi 0, %s365
    %s368 = sphi 0, %s367
    %s382 = sphi 0, %s368
    %s388 = sphi 0, %s390
    %s391 = sphi 0, %s388
    %s392 = sphi 0, %s391
    %s408 = sphi 0, %s392
  $region4: #{run.3} parent=0 // loop_header_branch
    %25 = sbr.rel (%p23) target = $region8
  $region5: #{run.3} parent=0 // loop_body
    %s27 = ssub.s32 %s22, 1
    %s28 = ssub.s32 %s22, 2
    %s29 = sadd.s32 %s22, 1
    %s30 = ssub.s32 %s22, %s29
    %p31 = scmp.eq.s32.totalorder %s30, 0
    %s33 = sadd.s32 %s32, 1
    %s34 = scalar_select %p31, %s32, %s33
    %p37 = pneg %p31
    %p38 = scmp.eq.s32.totalorder %s22, 1
    %p39 = por %p37, %p38
    %p40 = scmp.ne.s32.totalorder %s32, %s35
    %p41 = scmp.eq.s32.totalorder %s22, 0
    %p42 = por %p40, %p41
    %p43 = scmp.ne.s32.totalorder %s32, %s35
    %p44 = scmp.eq.s32.totalorder %s27, 1
    %p45 = por %p43, %p44
    %p46 = scmp.ne.s32.totalorder %s35, %s36
    %p47 = scmp.eq.s32.totalorder %s27, 0
    %p48 = por %p46, %p47
    %p49 = scmp.ne.s32.totalorder %s35, %s36
    %p50 = scmp.eq.s32.totalorder %s28, 1
    %p51 = por %p49, %p50
    %p53 = scmp.ne.s32.totalorder %s36, %s52
    %p54 = scmp.eq.s32.totalorder %s28, 0
    %p55 = por %p53, %p54
    %s56 = ssub.s32 %s22, %s29
    %p57 = scmp.eq.s32.totalorder %s56, 0
    %s59 = sadd.s32 %s58, 1
    %s60 = scalar_select %p57, %s58, %s59
    %p63 = pneg %p57
    %p64 = scmp.eq.s32.totalorder %s22, 1
    %p65 = por %p63, %p64
    %p66 = scmp.ne.s32.totalorder %s58, %s61
    %p67 = scmp.eq.s32.totalorder %s22, 0
    %p68 = por %p66, %p67
    %p69 = scmp.ne.s32.totalorder %s58, %s61
    %p70 = scmp.eq.s32.totalorder %s27, 1
    %p71 = por %p69, %p70
    %p72 = scmp.ne.s32.totalorder %s61, %s62
    %p73 = scmp.eq.s32.totalorder %s27, 0
    %p74 = por %p72, %p73
    %p75 = scmp.ne.s32.totalorder %s61, %s62
    %p76 = scmp.eq.s32.totalorder %s28, 1
    %p77 = por %p75, %p76
    %p79 = scmp.ne.s32.totalorder %s62, %s78
    %p80 = scmp.eq.s32.totalorder %s28, 0
    %p81 = por %p79, %p80
    %s82 = ssub.s32 %s22, %s29
    %p83 = scmp.eq.s32.totalorder %s82, 0
    %s85 = sadd.s32 %s84, 1
    %s86 = scalar_select %p83, %s84, %s85
    %p89 = pneg %p83
    %p90 = scmp.eq.s32.totalorder %s22, 1
    %p91 = por %p89, %p90
    %p92 = scmp.ne.s32.totalorder %s84, %s87
    %p93 = scmp.eq.s32.totalorder %s22, 0
    %p94 = por %p92, %p93
    %p95 = scmp.ne.s32.totalorder %s84, %s87
    %p96 = scmp.eq.s32.totalorder %s27, 1
    %p97 = por %p95, %p96
    %p98 = scmp.ne.s32.totalorder %s87, %s88
    %p99 = scmp.eq.s32.totalorder %s27, 0
    %p100 = por %p98, %p99
    %p101 = scmp.ne.s32.totalorder %s87, %s88
    %p102 = scmp.eq.s32.totalorder %s28, 1
    %p103 = por %p101, %p102
    %p105 = scmp.ne.s32.totalorder %s88, %s104
    %p106 = scmp.eq.s32.totalorder %s28, 0
    %p107 = por %p105, %p106
    %s108 = ssub.s32 %s22, %s29
    %p109 = scmp.eq.s32.totalorder %s108, 0
    %s111 = sadd.s32 %s110, 1
    %s112 = scalar_select %p109, %s110, %s111
    %p115 = pneg %p109
    %p116 = scmp.eq.s32.totalorder %s22, 1
    %p117 = por %p115, %p116
    %p118 = scmp.ne.s32.totalorder %s110, %s113
    %p119 = scmp.eq.s32.totalorder %s22, 0
    %p120 = por %p118, %p119
    %p121 = scmp.ne.s32.totalorder %s110, %s113
    %p122 = scmp.eq.s32.totalorder %s27, 1
    %p123 = por %p121, %p122
    %p124 = scmp.ne.s32.totalorder %s113, %s114
    %p125 = scmp.eq.s32.totalorder %s27, 0
    %p126 = por %p124, %p125
    %p127 = scmp.ne.s32.totalorder %s113, %s114
    %p128 = scmp.eq.s32.totalorder %s28, 1
    %p129 = por %p127, %p128
    %p131 = scmp.ne.s32.totalorder %s114, %s130
    %p132 = scmp.eq.s32.totalorder %s28, 0
    %p133 = por %p131, %p132
    %s135 = sadd.s32 %s134, 1
    %p138 = scmp.eq.s32.totalorder %s22, 1
    %p139 = scmp.ne.s32.totalorder %s134, %s136
    %p140 = scmp.eq.s32.totalorder %s22, 0
    %p141 = por %p139, %p140
    %p142 = scmp.ne.s32.totalorder %s134, %s136
    %p143 = scmp.eq.s32.totalorder %s27, 1
    %p144 = por %p142, %p143
    %p145 = scmp.ne.s32.totalorder %s136, %s137
    %p146 = scmp.eq.s32.totalorder %s27, 0
    %p147 = por %p145, %p146
    %p148 = scmp.ne.s32.totalorder %s136, %s137
    %p149 = scmp.eq.s32.totalorder %s28, 1
    %p150 = por %p148, %p149
    %p152 = scmp.ne.s32.totalorder %s137, %s151
    %p153 = scmp.eq.s32.totalorder %s28, 0
    %p154 = por %p152, %p153
    %s156 = sadd.s32 %s155, 1
    %p159 = scmp.eq.s32.totalorder %s22, 1
    %p160 = scmp.ne.s32.totalorder %s155, %s157
    %p161 = scmp.eq.s32.totalorder %s22, 0
    %p162 = por %p160, %p161
    %p163 = scmp.ne.s32.totalorder %s155, %s157
    %p164 = scmp.eq.s32.totalorder %s27, 1
    %p165 = por %p163, %p164
    %p166 = scmp.ne.s32.totalorder %s157, %s158
    %p167 = scmp.eq.s32.totalorder %s27, 0
    %p168 = por %p166, %p167
    %p169 = scmp.ne.s32.totalorder %s157, %s158
    %p170 = scmp.eq.s32.totalorder %s28, 1
    %p171 = por %p169, %p170
    %p173 = scmp.ne.s32.totalorder %s158, %s172
    %p174 = scmp.eq.s32.totalorder %s28, 0
    %p175 = por %p173, %p174
    %s177 = sadd.s32 %s176, 1
    %p180 = scmp.eq.s32.totalorder %s22, 1
    %p181 = scmp.ne.s32.totalorder %s176, %s178
    %p182 = scmp.eq.s32.totalorder %s22, 0
    %p183 = por %p181, %p182
    %p184 = scmp.ne.s32.totalorder %s176, %s178
    %p185 = scmp.eq.s32.totalorder %s27, 1
    %p186 = por %p184, %p185
    %p187 = scmp.ne.s32.totalorder %s178, %s179
    %p188 = scmp.eq.s32.totalorder %s27, 0
    %p189 = por %p187, %p188
    %p190 = scmp.ne.s32.totalorder %s178, %s179
    %p191 = scmp.eq.s32.totalorder %s28, 1
    %p192 = por %p190, %p191
    %p194 = scmp.ne.s32.totalorder %s179, %s193
    %p195 = scmp.eq.s32.totalorder %s28, 0
    %p196 = por %p194, %p195
    %s198 = sadd.s32 %s197, 1
    %p201 = scmp.eq.s32.totalorder %s22, 1
    %p202 = scmp.ne.s32.totalorder %s197, %s199
    %p203 = scmp.eq.s32.totalorder %s22, 0
    %p204 = por %p202, %p203
    %p205 = scmp.ne.s32.totalorder %s197, %s199
    %p206 = scmp.eq.s32.totalorder %s27, 1
    %p207 = por %p205, %p206
    %p208 = scmp.ne.s32.totalorder %s199, %s200
    %p209 = scmp.eq.s32.totalorder %s27, 0
    %p210 = por %p208, %p209
    %p211 = scmp.ne.s32.totalorder %s199, %s200
    %p212 = scmp.eq.s32.totalorder %s28, 1
    %p213 = por %p211, %p212
    %p215 = scmp.ne.s32.totalorder %s200, %s214
    %p216 = scmp.eq.s32.totalorder %s28, 0
    %p217 = por %p215, %p216
    %s219 = sadd.s32 %s218, 1
    %p222 = scmp.eq.s32.totalorder %s22, 1
    %p223 = scmp.ne.s32.totalorder %s218, %s220
    %p224 = scmp.eq.s32.totalorder %s22, 0
    %p225 = por %p223, %p224
    %p226 = scmp.ne.s32.totalorder %s218, %s220
    %p227 = scmp.eq.s32.totalorder %s27, 1
    %p228 = por %p226, %p227
    %p229 = scmp.ne.s32.totalorder %s220, %s221
    %p230 = scmp.eq.s32.totalorder %s27, 0
    %p231 = por %p229, %p230
    %p232 = scmp.ne.s32.totalorder %s220, %s221
    %p233 = scmp.eq.s32.totalorder %s28, 1
    %p234 = por %p232, %p233
    %p236 = scmp.ne.s32.totalorder %s221, %s235
    %p237 = scmp.eq.s32.totalorder %s28, 0
    %p238 = por %p236, %p237
    %s240 = sadd.s32 %s239, 1
    %p243 = scmp.eq.s32.totalorder %s22, 1
    %p244 = scmp.ne.s32.totalorder %s239, %s241
    %p245 = scmp.eq.s32.totalorder %s22, 0
    %p246 = por %p244, %p245
    %p247 = scmp.ne.s32.totalorder %s239, %s241
    %p248 = scmp.eq.s32.totalorder %s27, 1
    %p249 = por %p247, %p248
    %p250 = scmp.ne.s32.totalorder %s241, %s242
    %p251 = scmp.eq.s32.totalorder %s27, 0
    %p252 = por %p250, %p251
    %p253 = scmp.ne.s32.totalorder %s241, %s242
    %p254 = scmp.eq.s32.totalorder %s28, 1
    %p255 = por %p253, %p254
    %p257 = scmp.ne.s32.totalorder %s242, %s256
    %p258 = scmp.eq.s32.totalorder %s28, 0
    %p259 = por %p257, %p258
    %s261 = sadd.s32 %s260, 1
    %p264 = scmp.eq.s32.totalorder %s22, 1
    %p265 = scmp.ne.s32.totalorder %s260, %s262
    %p266 = scmp.eq.s32.totalorder %s22, 0
    %p267 = por %p265, %p266
    %p268 = scmp.ne.s32.totalorder %s260, %s262
    %p269 = scmp.eq.s32.totalorder %s27, 1
    %p270 = por %p268, %p269
    %p271 = scmp.ne.s32.totalorder %s262, %s263
    %p272 = scmp.eq.s32.totalorder %s27, 0
    %p273 = por %p271, %p272
    %p274 = scmp.ne.s32.totalorder %s262, %s263
    %p275 = scmp.eq.s32.totalorder %s28, 1
    %p276 = por %p274, %p275
    %p278 = scmp.ne.s32.totalorder %s263, %s277
    %p279 = scmp.eq.s32.totalorder %s28, 0
    %p280 = por %p278, %p279
    %s282 = sadd.s32 %s281, 1
    %p285 = scmp.eq.s32.totalorder %s22, 1
    %p286 = scmp.ne.s32.totalorder %s281, %s283
    %p287 = scmp.eq.s32.totalorder %s22, 0
    %p288 = por %p286, %p287
    %p289 = scmp.ne.s32.totalorder %s281, %s283
    %p290 = scmp.eq.s32.totalorder %s27, 1
    %p291 = por %p289, %p290
    %p292 = scmp.ne.s32.totalorder %s283, %s284
    %p293 = scmp.eq.s32.totalorder %s27, 0
    %p294 = por %p292, %p293
    %p295 = scmp.ne.s32.totalorder %s283, %s284
    %p296 = scmp.eq.s32.totalorder %s28, 1
    %p297 = por %p295, %p296
    %p299 = scmp.ne.s32.totalorder %s284, %s298
    %p300 = scmp.eq.s32.totalorder %s28, 0
    %p301 = por %p299, %p300
    %s303 = sadd.s32 %s302, 1
    %p306 = scmp.eq.s32.totalorder %s22, 1
    %p307 = scmp.ne.s32.totalorder %s302, %s304
    %p308 = scmp.eq.s32.totalorder %s22, 0
    %p309 = por %p307, %p308
    %p310 = scmp.ne.s32.totalorder %s302, %s304
    %p311 = scmp.eq.s32.totalorder %s27, 1
    %p312 = por %p310, %p311
    %p313 = scmp.ne.s32.totalorder %s304, %s305
    %p314 = scmp.eq.s32.totalorder %s27, 0
    %p315 = por %p313, %p314
    %p316 = scmp.ne.s32.totalorder %s304, %s305
    %p317 = scmp.eq.s32.totalorder %s28, 1
    %p318 = por %p316, %p317
    %p320 = scmp.ne.s32.totalorder %s305, %s319
    %p321 = scmp.eq.s32.totalorder %s28, 0
    %p322 = por %p320, %p321
    %s324 = sadd.s32 %s323, 1
    %p327 = scmp.eq.s32.totalorder %s22, 1
    %p328 = scmp.ne.s32.totalorder %s323, %s325
    %p329 = scmp.eq.s32.totalorder %s22, 0
    %p330 = por %p328, %p329
    %p331 = scmp.ne.s32.totalorder %s323, %s325
    %p332 = scmp.eq.s32.totalorder %s27, 1
    %p333 = por %p331, %p332
    %p334 = scmp.ne.s32.totalorder %s325, %s326
    %p335 = scmp.eq.s32.totalorder %s27, 0
    %p336 = por %p334, %p335
    %p337 = scmp.ne.s32.totalorder %s325, %s326
    %p338 = scmp.eq.s32.totalorder %s28, 1
    %p339 = por %p337, %p338
    %p341 = scmp.ne.s32.totalorder %s326, %s340
    %p342 = scmp.eq.s32.totalorder %s28, 0
    %p343 = por %p341, %p342
    %s345 = sadd.s32 %s344, 1
    %p348 = scmp.eq.s32.totalorder %s22, 1
    %p349 = scmp.ne.s32.totalorder %s344, %s346
    %p350 = scmp.eq.s32.totalorder %s22, 0
    %p351 = por %p349, %p350
    %p352 = scmp.ne.s32.totalorder %s344, %s346
    %p353 = scmp.eq.s32.totalorder %s27, 1
    %p354 = por %p352, %p353
    %p355 = scmp.ne.s32.totalorder %s346, %s347
    %p356 = scmp.eq.s32.totalorder %s27, 0
    %p357 = por %p355, %p356
    %p358 = scmp.ne.s32.totalorder %s346, %s347
    %p359 = scmp.eq.s32.totalorder %s28, 1
    %p360 = por %p358, %p359
    %p362 = scmp.ne.s32.totalorder %s347, %s361
    %p363 = scmp.eq.s32.totalorder %s28, 0
    %p364 = por %p362, %p363
    %s366 = sadd.s32 %s365, 1
    %p369 = scmp.eq.s32.totalorder %s22, 1
    %p370 = scmp.ne.s32.totalorder %s365, %s367
    %p371 = scmp.eq.s32.totalorder %s22, 0
    %p372 = por %p370, %p371
    %p373 = scmp.ne.s32.totalorder %s365, %s367
    %p374 = scmp.eq.s32.totalorder %s27, 1
    %p375 = por %p373, %p374
    %p376 = scmp.ne.s32.totalorder %s367, %s368
    %p377 = scmp.eq.s32.totalorder %s27, 0
    %p378 = por %p376, %p377
    %p379 = scmp.ne.s32.totalorder %s367, %s368
    %p380 = scmp.eq.s32.totalorder %s28, 1
    %p381 = por %p379, %p380
    %p383 = scmp.ne.s32.totalorder %s368, %s382
    %p384 = scmp.eq.s32.totalorder %s28, 0
    %p385 = por %p383, %p384
    %s386 = ssub.s32 %s22, %s29
    %p387 = scmp.eq.s32.totalorder %s386, 0
    %s389 = sadd.s32 %s388, 1
    %s390 = scalar_select %p387, %s388, %s389
    %p393 = pneg %p387
    %p394 = scmp.eq.s32.totalorder %s22, 1
    %p395 = por %p393, %p394
    %p396 = scmp.ne.s32.totalorder %s388, %s391
    %p397 = scmp.eq.s32.totalorder %s22, 0
    %p398 = por %p396, %p397
    %p399 = scmp.ne.s32.totalorder %s388, %s391
    %p400 = scmp.eq.s32.totalorder %s27, 1
    %p401 = por %p399, %p400
    %p402 = scmp.ne.s32.totalorder %s391, %s392
    %p403 = scmp.eq.s32.totalorder %s27, 0
    %p404 = por %p402, %p403
    %p405 = scmp.ne.s32.totalorder %s391, %s392
    %p406 = scmp.eq.s32.totalorder %s28, 1
    %p407 = por %p405, %p406
    %p409 = scmp.ne.s32.totalorder %s392, %s408
    %p410 = scmp.eq.s32.totalorder %s28, 0
    %p411 = por %p409, %p410
    %p412 = scmp.le.s32.totalorder 1, %s22
    %p413 = scmp.lt.s32.totalorder %s22, 3
    %p414 = pnand %p412, %p413
    %p415 = pneg %p414
    // Predicated region
    $region9: #{run.3} parent=5 // pred_check
      _
    $region10: #{run.3} parent=5 // pred_check_branch
      %417 = sbr.rel (%p414) target = $region12
    $region11: #{run.3} parent=5 // pred_region
      %s418 = ssub.s32 %s22, 1
      // Predicated region
      $region13: #{run.3} parent=11 // pred_check
        %p419 = pneg %p147
      $region14: #{run.3} parent=11 // pred_check_branch
        %421 = sbr.rel (%p419) target = $region16
      $region15: #{run.3} parent=11 // pred_region
        _
      $region16: #{run.3} parent=11 // pred_fallthru
        _
      // Predicated region
      $region17: #{run.3} parent=11 // pred_check
        %p422 = pneg %p168
      $region18: #{run.3} parent=11 // pred_check_branch
        %424 = sbr.rel (%p422) target = $region20
      $region19: #{run.3} parent=11 // pred_region
        _
      $region20: #{run.3} parent=11 // pred_fallthru
        _
      // Predicated region
      $region21: #{run.3} parent=11 // pred_check
        %p425 = pneg %p189
      $region22: #{run.3} parent=11 // pred_check_branch
        %427 = sbr.rel (%p425) target = $region24
      $region23: #{run.3} parent=11 // pred_region
        _
      $region24: #{run.3} parent=11 // pred_fallthru
        _
      // Predicated region
      $region25: #{run.3} parent=11 // pred_check
        %p428 = pneg %p210
      $region26: #{run.3} parent=11 // pred_check_branch
        %430 = sbr.rel (%p428) target = $region28
      $region27: #{run.3} parent=11 // pred_region
        _
      $region28: #{run.3} parent=11 // pred_fallthru
        _
      // Predicated region
      $region29: #{run.3} parent=11 // pred_check
        %p431 = pneg %p231
      $region30: #{run.3} parent=11 // pred_check_branch
        %433 = sbr.rel (%p431) target = $region32
      $region31: #{run.3} parent=11 // pred_region
        _
      $region32: #{run.3} parent=11 // pred_fallthru
        _
      // Predicated region
      $region33: #{run.3} parent=11 // pred_check
        %p434 = pneg %p252
      $region34: #{run.3} parent=11 // pred_check_branch
        %436 = sbr.rel (%p434) target = $region36
      $region35: #{run.3} parent=11 // pred_region
        _
      $region36: #{run.3} parent=11 // pred_fallthru
        _
      // Predicated region
      $region37: #{run.3} parent=11 // pred_check
        %p437 = pneg %p273
      $region38: #{run.3} parent=11 // pred_check_branch
        %439 = sbr.rel (%p437) target = $region40
      $region39: #{run.3} parent=11 // pred_region
        _
      $region40: #{run.3} parent=11 // pred_fallthru
        _
      // Predicated region
      $region41: #{run.3} parent=11 // pred_check
        %p440 = pneg %p294
      $region42: #{run.3} parent=11 // pred_check_branch
        %442 = sbr.rel (%p440) target = $region44
      $region43: #{run.3} parent=11 // pred_region
        _
      $region44: #{run.3} parent=11 // pred_fallthru
        _
      // Predicated region
      $region45: #{run.3} parent=11 // pred_check
        %p443 = pneg %p315
      $region46: #{run.3} parent=11 // pred_check_branch
        %445 = sbr.rel (%p443) target = $region48
      $region47: #{run.3} parent=11 // pred_region
        _
      $region48: #{run.3} parent=11 // pred_fallthru
        _
      // Predicated region
      $region49: #{run.3} parent=11 // pred_check
        %p446 = pneg %p336
      $region50: #{run.3} parent=11 // pred_check_branch
        %448 = sbr.rel (%p446) target = $region52
      $region51: #{run.3} parent=11 // pred_region
        _
      $region52: #{run.3} parent=11 // pred_fallthru
        _
      // Predicated region
      $region53: #{run.3} parent=11 // pred_check
        %p449 = pneg %p357
      $region54: #{run.3} parent=11 // pred_check_branch
        %451 = sbr.rel (%p449) target = $region56
      $region55: #{run.3} parent=11 // pred_region
        _
      $region56: #{run.3} parent=11 // pred_fallthru
        _
      // Predicated region
      $region57: #{run.3} parent=11 // pred_check
        %p452 = pneg %p378
      $region58: #{run.3} parent=11 // pred_check_branch
        %454 = sbr.rel (%p452) target = $region60
      $region59: #{run.3} parent=11 // pred_region
        _
      $region60: #{run.3} parent=11 // pred_fallthru
        _
    $region12: #{run.3} parent=5 // pred_fallthru
      _
    %p455 = scmp.lt.s32.totalorder %s22, 2
    // Predicated region
    $region61: #{run.3} parent=5 // pred_check
      %p456 = pneg %p455
    $region62: #{run.3} parent=5 // pred_check_branch
      %458 = sbr.rel (%p456) target = $region64
    $region63: #{run.3} parent=5 // pred_region
      // Predicated region
      $region65: #{run.3} parent=63 // pred_check
        %p459 = pneg %p42
      $region66: #{run.3} parent=63 // pred_check_branch
        %461 = sbr.rel (%p459) target = $region68
      $region67: #{run.3} parent=63 // pred_region
        %p462 = scmp.lt.s32.totalorder %s22, 1
        %s463 = scalar_select %p462, %s22, 1
        %s464 = smul.addr %s463, 4
        %s465 = smul.addr %s464, 4
        %s466 = scalar_lea.vmem %s0, %s465
      $region68: #{run.3} parent=63 // pred_fallthru
        _
      // Predicated region
      $region69: #{run.3} parent=63 // pred_check
        %p467 = pneg %p68
      $region70: #{run.3} parent=63 // pred_check_branch
        %469 = sbr.rel (%p467) target = $region72
      $region71: #{run.3} parent=63 // pred_region
        %p470 = scmp.lt.s32.totalorder %s22, 1
        %s471 = scalar_select %p470, %s22, 1
        %s472 = smul.addr %s471, 4
        %s473 = smul.addr %s472, 4
        %s474 = scalar_lea.vmem %s1, %s473
      $region72: #{run.3} parent=63 // pred_fallthru
        _
      // Predicated region
      $region73: #{run.3} parent=63 // pred_check
        %p475 = pneg %p94
      $region74: #{run.3} parent=63 // pred_check_branch
        %477 = sbr.rel (%p475) target = $region76
      $region75: #{run.3} parent=63 // pred_region
        %p478 = scmp.lt.s32.totalorder %s22, 1
        %s479 = scalar_select %p478, %s22, 1
        %s480 = smul.addr %s479, 4
        %s481 = smul.addr %s480, 4
        %s482 = scalar_lea.vmem %s2, %s481
      $region76: #{run.3} parent=63 // pred_fallthru
        _
      // Predicated region
      $region77: #{run.3} parent=63 // pred_check
        %p483 = pneg %p120
      $region78: #{run.3} parent=63 // pred_check_branch
        %485 = sbr.rel (%p483) target = $region80
      $region79: #{run.3} parent=63 // pred_region
        %p486 = scmp.lt.s32.totalorder %s22, 1
        %s487 = scalar_select %p486, %s22, 1
        %s488 = smul.addr %s487, 4
        %s489 = smul.addr %s488, 4
        %s490 = scalar_lea.vmem %s3, %s489
      $region80: #{run.3} parent=63 // pred_fallthru
        _
    $region64: #{run.3} parent=5 // pred_fallthru
      _
    %p491 = scmp.le.s32.totalorder 1, %s22
    %p492 = scmp.lt.s32.totalorder %s22, 3
    %p493 = pnand %p491, %p492
    %p494 = pneg %p493
    // Predicated region
    $region81: #{run.3} parent=5 // pred_check
      _
    $region82: #{run.3} parent=5 // pred_check_branch
      %496 = sbr.rel (%p493) target = $region84
    $region83: #{run.3} parent=5 // pred_region
      %s497 = ssub.s32 %s22, 1
      %p498 = scmp.lt.s32.totalorder %s27, 1
      %s499 = scalar_select %p498, %s27, 1
      %s500 = smul.addr %s499, 4
      %s501 = smul.addr %s500, 4
      %s502 = scalar_lea.vmem %s0, %s501
      %p503 = pneg %p48
      %p504 = pneg %p45
      %p505 = scmp.lt.s32.totalorder %s27, 1
      %s506 = scalar_select %p505, %s27, 1
      %s507 = smul.addr %s506, 4
      %s508 = smul.addr %s507, 4
      %s509 = scalar_lea.vmem %s1, %s508
      %p510 = pneg %p74
      %p511 = pneg %p71
      %p512 = scmp.lt.s32.totalorder %s27, 1
      %s513 = scalar_select %p512, %s27, 1
      %s514 = smul.addr %s513, 4
      %s515 = smul.addr %s514, 4
      %s516 = scalar_lea.vmem %s2, %s515
      %p517 = pneg %p100
      %p518 = pneg %p97
      %p519 = scmp.lt.s32.totalorder %s27, 1
      %s520 = scalar_select %p519, %s27, 1
      %s521 = smul.addr %s520, 4
      %s522 = smul.addr %s521, 4
      %s523 = scalar_lea.vmem %s3, %s522
      %p524 = pneg %p126
      %p525 = pneg %p123
      %p526 = pneg %p147
      %p527 = pneg %p144
      %p528 = pneg %p168
      %p529 = pneg %p165
      %p530 = pneg %p189
      %p531 = pneg %p186
      %p532 = pneg %p210
      %p533 = pneg %p207
      %p534 = pneg %p231
      %p535 = pneg %p228
      %p536 = pneg %p252
      %p537 = pneg %p249
      %p538 = pneg %p273
      %p539 = pneg %p270
      %p540 = pneg %p294
      %p541 = pneg %p291
      %p542 = pneg %p315
      %p543 = pneg %p312
      %p544 = pneg %p336
      %p545 = pneg %p333
      %p546 = pneg %p357
      %p547 = pneg %p354
      %p548 = pneg %p378
      %p549 = pneg %p375
      %p550 = pneg %p404
      %p551 = pneg %p401
      %p552 = scmp.lt.s32.totalorder %s27, 1
      %s553 = scalar_select %p552, %s27, 1
      %s554 = smul.addr %s553, 4
      %s555 = smul.addr %s554, 4
      %s556 = scalar_lea.vmem %s16, %s555
      %p557 = scmp.lt.s32.totalorder %s27, 1
      %s558 = scalar_select %p557, %s27, 1
      %s559 = smul.addr %s558, 4
      %s560 = smul.addr %s559, 4
      %s561 = scalar_lea.vmem %s0, %s560
      %p562 = scmp.lt.s32.totalorder %s27, 1
      %s563 = scalar_select %p562, %s27, 1
      %s564 = smul.addr %s563, 4
      %s565 = smul.addr %s564, 4
      %s566 = scalar_lea.vmem %s1, %s565
      %p567 = scmp.lt.s32.totalorder %s27, 1
      %s568 = scalar_select %p567, %s27, 1
      %s569 = smul.addr %s568, 4
      %s570 = smul.addr %s569, 4
      %s571 = scalar_lea.vmem %s2, %s570
      %p572 = scmp.lt.s32.totalorder %s27, 1
      %s573 = scalar_select %p572, %s27, 1
      %s574 = smul.addr %s573, 4
      %s575 = smul.addr %s574, 4
      %s576 = scalar_lea.vmem %s3, %s575
      %p577 = scmp.lt.s32.totalorder %s27, 1
      %s578 = scalar_select %p577, %s27, 1
      %s579 = smul.addr %s578, 4
      %s580 = smul.addr %s579, 4
      %s581 = scalar_lea.vmem %s16, %s580
      %v583 = vld [vmem:[%s561] sm:$0xff]
      %v584 = vld [vmem:[%s561 + $0x8] sm:$0x11]
      %v585 = vld [vmem:[%s566] sm:$0xff]
      %v586 = vld [vmem:[%s566 + $0x8] sm:$0x11]
      %v587 = vld [vmem:[%s571] sm:$0xff]
      %v588 = vld [vmem:[%s576] sm:$0xff]
      %v589 = vld [vmem:[%s5] sm:$0x3]
      %v590 = vld [vmem:[%s4] sm:$0xff]
      %v591 = vld [vmem:[%s4 + $0x8] sm:$0xff]
      %v592 = vld [vmem:[%s4 + $0x10] sm:$0xff]
      %v593 = vld [vmem:[%s4 + $0x18] sm:$0xff]
      %v594 = vld [vmem:[%s4 + $0x20] sm:$0xff]
      %v595 = vld [vmem:[%s4 + $0x28] sm:$0xff]
      %v596 = vld [vmem:[%s4 + $0x30] sm:$0xff]
      %v597 = vld [vmem:[%s4 + $0x38] sm:$0xff]
      %v598 = vld [vmem:[%s4 + $0x40] sm:$0xff]
      %v599 = vld [vmem:[%s4 + $0x48] sm:$0xff]
      %v600 = vld [vmem:[%s4 + $0x50] sm:$0xff]
      %v601 = vld [vmem:[%s4 + $0x58] sm:$0xff]
      %v602 = vld [vmem:[%s4 + $0x60] sm:$0xff]
      %v603 = vld [vmem:[%s4 + $0x68] sm:$0xff]
      %v604 = vld [vmem:[%s4 + $0x70] sm:$0xff]
      %v605 = vld [vmem:[%s4 + $0x78] sm:$0xff]
      %v606 = vld [vmem:[%s4 + $0x80] sm:$0xff]
      %v607 = vld [vmem:[%s4 + $0x88] sm:$0xff]
      %v609 = vunpack.c.l.b16 %v583
      %v610 = vunpack.c.h.b16 %v583
      %v611 = vpack.c.b16 %v609, %v609
      %v612 = vpack.c.b16 %v610, %v610
      %v632 = vunpack.c.l.b16 %v590
      %v633 = vunpack.c.h.b16 %v590
      %v634 = vunpack.c.l.b16 %v591
      %v635 = vunpack.c.h.b16 %v591
      %v636 = vunpack.c.l.b16 %v592
      %v637 = vunpack.c.h.b16 %v592
      %v638 = vunpack.c.l.b16 %v593
      %v639 = vunpack.c.h.b16 %v593
      %v640 = vunpack.c.l.b16 %v594
      %v641 = vunpack.c.h.b16 %v594
      %v642 = vunpack.c.l.b16 %v595
      %v643 = vunpack.c.h.b16 %v595
      %v644 = vunpack.c.l.b16 %v596
      %v645 = vunpack.c.h.b16 %v596
      %v646 = vunpack.c.l.b16 %v597
      %v647 = vunpack.c.h.b16 %v597
      %v648 = vunpack.c.l.b16 %v598
      %v649 = vunpack.c.h.b16 %v598
      %v650 = vunpack.c.l.b16 %v599
      %v651 = vunpack.c.h.b16 %v599
      %v652 = vunpack.c.l.b16 %v600
      %v653 = vunpack.c.h.b16 %v600
      %v654 = vunpack.c.l.b16 %v601
      %v655 = vunpack.c.h.b16 %v601
      %v656 = vunpack.c.l.b16 %v602
      %v657 = vunpack.c.h.b16 %v602
      %v658 = vunpack.c.l.b16 %v603
      %v659 = vunpack.c.h.b16 %v603
      %v660 = vunpack.c.l.b16 %v604
      %v661 = vunpack.c.h.b16 %v604
      %v662 = vunpack.c.l.b16 %v605
      %v663 = vunpack.c.h.b16 %v605
      %v664 = vunpack.c.l.b16 %v606
      %v665 = vunpack.c.h.b16 %v606
      %v666 = vunpack.c.l.b16 %v607
      %v667 = vunpack.c.h.b16 %v607
      %v668 = vpack.c.b16 %v634, %v632
      %v669 = vpack.c.b16 %v635, %v633
      %v670 = vpack.c.b16 %v638, %v636
      %v671 = vpack.c.b16 %v639, %v637
      %v672 = vpack.c.b16 %v642, %v640
      %v673 = vpack.c.b16 %v643, %v641
      %v674 = vpack.c.b16 %v646, %v644
      %v675 = vpack.c.b16 %v647, %v645
      %v676 = vpack.c.b16 %v650, %v648
      %v677 = vpack.c.b16 %v651, %v649
      %v678 = vpack.c.b16 %v654, %v652
      %v679 = vpack.c.b16 %v655, %v653
      %v680 = vpack.c.b16 %v658, %v656
      %v681 = vpack.c.b16 %v659, %v657
      %v682 = vpack.c.b16 %v662, %v660
      %v683 = vpack.c.b16 %v663, %v661
      %v684 = vpack.c.b16 %v666, %v664
      %v685 = vpack.c.b16 %v667, %v665
      %vm704 = vcmask 130048
      %v706 = vsel %vm704, %v612, 0
      %708 = vmatprep.subr.bf16.mxu0 %v683
      %709 = vmatpush1.bf16.msra.mxu0 %v682
      %710 = vmatprep.subr.bf16.mxu0 %v681
      %711 = vmatpush1.bf16.msra.mxu0 %v680
      %712 = vmatprep.subr.bf16.mxu0 %v679
      %713 = vmatpush1.bf16.msra.mxu0 %v678
      %714 = vmatprep.subr.bf16.mxu0 %v677
      %715 = vmatpush1.bf16.msra.mxu0 %v676
      %716 = vmatprep.subr.bf16.mxu0 %v675
      %717 = vmatpush1.bf16.msra.mxu0 %v674
      %718 = vmatprep.subr.bf16.mxu0 %v673
      %719 = vmatpush1.bf16.msra.mxu0 %v672
      %720 = vmatprep.subr.bf16.mxu0 %v671
      %721 = vmatpush1.bf16.msra.mxu0 %v670
      %722 = vmatprep.subr.bf16.mxu0 %v669
      %723 = vmatpush1.bf16.msra.mxu0 %v668
      %724 = vmatprep.subr.bf16.mxu0 0
      %725 = vmatpush2.bf16.msra.mxu0 0
      %726 = vmatprep.subr.bf16.mxu0 0
      %727 = vmatpush2.bf16.msra.mxu0 0
      %728 = vmatprep.subr.bf16.mxu0 0
      %729 = vmatpush2.bf16.msra.mxu0 0
      %730 = vmatprep.subr.bf16.mxu0 0
      %731 = vmatpush2.bf16.msra.mxu0 0
      %732 = vmatprep.subr.bf16.mxu0 0
      %733 = vmatpush2.bf16.msra.mxu0 0
      %734 = vmatprep.subr.bf16.mxu0 0
      %735 = vmatpush2.bf16.msra.mxu0 0
      %736 = vmatprep.subr.bf16.mxu0 0
      %737 = vmatpush2.bf16.msra.mxu0 0
      %738 = vmatprep.subr.bf16.mxu0 %v685
      %739 = vmatpush2.bf16.msra.mxu0 %v684
      %740 = vmatprep.mubr.bf16.mxu0 %v706
      %741 = vmatmul.mubr.bf16.gmra.mxu0 %v611
      %v742 = vpop.f32.mrf.mxu0
      %v743 = vadd.f32 0.0, %v742
      %v744 = vpop.f32.mrf.mxu0
      %v745 = vadd.f32 0.0, %v744
      %v746 = vpop.f32.mrf.mxu0
      %v747 = vpop.f32.mrf.mxu0
      %748 = vdwg.mxu0
      %v750 = vlaneseq
      %v751 = vshrl.u32 %v750, 7
      %v752 = vsub.s32 0, %v751
      %v753 = vrot.slane %v589, %v752
      %v754 = vlaneseq
      %v755 = vshrl.u32 %v754, 7
      %v756 = vsub.s32 1, %v755
      %v757 = vrot.slane %v589, %v756
      %v760 = vadd.f32 %v753, %v743
      %v761 = vadd.f32 %v757, %v745
      %s762 = scalar_lea.vmem %s4, 144
      %v763 = vld [vmem:[%s762] sm:$0xff]
      %v764 = vld [vmem:[%s762 + $0x8] sm:$0xff]
      %v765 = vld [vmem:[%s762 + $0x10] sm:$0xff]
      %v766 = vld [vmem:[%s762 + $0x18] sm:$0xff]
      %v767 = vld [vmem:[%s762 + $0x20] sm:$0xff]
      %v768 = vld [vmem:[%s762 + $0x28] sm:$0xff]
      %v769 = vld [vmem:[%s762 + $0x30] sm:$0xff]
      %v770 = vld [vmem:[%s762 + $0x38] sm:$0xff]
      %v771 = vld [vmem:[%s762 + $0x40] sm:$0xff]
      %v772 = vld [vmem:[%s762 + $0x48] sm:$0xff]
      %v773 = vld [vmem:[%s762 + $0x50] sm:$0xff]
      %v774 = vld [vmem:[%s762 + $0x58] sm:$0xff]
      %v775 = vld [vmem:[%s762 + $0x60] sm:$0xff]
      %v776 = vld [vmem:[%s762 + $0x68] sm:$0xff]
      %v777 = vld [vmem:[%s762 + $0x70] sm:$0xff]
      %v778 = vld [vmem:[%s762 + $0x78] sm:$0xff]
      %v779 = vld [vmem:[%s762 + $0x80] sm:$0xff]
      %v780 = vld [vmem:[%s762 + $0x88] sm:$0xff]
      %v782 = vunpack.c.l.b16 %v585
      %v783 = vunpack.c.h.b16 %v585
      %v784 = vpack.c.b16 %v782, %v782
      %v785 = vpack.c.b16 %v783, %v783
      %v805 = vunpack.c.l.b16 %v763
      %v806 = vunpack.c.h.b16 %v763
      %v807 = vunpack.c.l.b16 %v764
      %v808 = vunpack.c.h.b16 %v764
      %v809 = vunpack.c.l.b16 %v765
      %v810 = vunpack.c.h.b16 %v765
      %v811 = vunpack.c.l.b16 %v766
      %v812 = vunpack.c.h.b16 %v766
      %v813 = vunpack.c.l.b16 %v767
      %v814 = vunpack.c.h.b16 %v767
      %v815 = vunpack.c.l.b16 %v768
      %v816 = vunpack.c.h.b16 %v768
      %v817 = vunpack.c.l.b16 %v769
      %v818 = vunpack.c.h.b16 %v769
      %v819 = vunpack.c.l.b16 %v770
      %v820 = vunpack.c.h.b16 %v770
      %v821 = vunpack.c.l.b16 %v771
      %v822 = vunpack.c.h.b16 %v771
      %v823 = vunpack.c.l.b16 %v772
      %v824 = vunpack.c.h.b16 %v772
      %v825 = vunpack.c.l.b16 %v773
      %v826 = vunpack.c.h.b16 %v773
      %v827 = vunpack.c.l.b16 %v774
      %v828 = vunpack.c.h.b16 %v774
      %v829 = vunpack.c.l.b16 %v775
      %v830 = vunpack.c.h.b16 %v775
      %v831 = vunpack.c.l.b16 %v776
      %v832 = vunpack.c.h.b16 %v776
      %v833 = vunpack.c.l.b16 %v777
      %v834 = vunpack.c.h.b16 %v777
      %v835 = vunpack.c.l.b16 %v778
      %v836 = vunpack.c.h.b16 %v778
      %v837 = vunpack.c.l.b16 %v779
      %v838 = vunpack.c.h.b16 %v779
      %v839 = vunpack.c.l.b16 %v780
      %v840 = vunpack.c.h.b16 %v780
      %v841 = vpack.c.b16 %v807, %v805
      %v842 = vpack.c.b16 %v808, %v806
      %v843 = vpack.c.b16 %v811, %v809
      %v844 = vpack.c.b16 %v812, %v810
      %v845 = vpack.c.b16 %v815, %v813
      %v846 = vpack.c.b16 %v816, %v814
      %v847 = vpack.c.b16 %v819, %v817
      %v848 = vpack.c.b16 %v820, %v818
      %v849 = vpack.c.b16 %v823, %v821
      %v850 = vpack.c.b16 %v824, %v822
      %v851 = vpack.c.b16 %v827, %v825
      %v852 = vpack.c.b16 %v828, %v826
      %v853 = vpack.c.b16 %v831, %v829
      %v854 = vpack.c.b16 %v832, %v830
      %v855 = vpack.c.b16 %v835, %v833
      %v856 = vpack.c.b16 %v836, %v834
      %v857 = vpack.c.b16 %v839, %v837
      %v858 = vpack.c.b16 %v840, %v838
      %v878 = vsel %vm704, %v785, 0
      %880 = vmatprep.subr.bf16.mxu0 %v856
      %881 = vmatpush1.bf16.msra.mxu0 %v855
      %882 = vmatprep.subr.bf16.mxu0 %v854
      %883 = vmatpush1.bf16.msra.mxu0 %v853
      %884 = vmatprep.subr.bf16.mxu0 %v852
      %885 = vmatpush1.bf16.msra.mxu0 %v851
      %886 = vmatprep.subr.bf16.mxu0 %v850
      %887 = vmatpush1.bf16.msra.mxu0 %v849
      %888 = vmatprep.subr.bf16.mxu0 %v848
      %889 = vmatpush1.bf16.msra.mxu0 %v847
      %890 = vmatprep.subr.bf16.mxu0 %v846
      %891 = vmatpush1.bf16.msra.mxu0 %v845
      %892 = vmatprep.subr.bf16.mxu0 %v844
      %893 = vmatpush1.bf16.msra.mxu0 %v843
      %894 = vmatprep.subr.bf16.mxu0 %v842
      %895 = vmatpush1.bf16.msra.mxu0 %v841
      %896 = vmatprep.subr.bf16.mxu0 0
      %897 = vmatpush2.bf16.msra.mxu0 0
      %898 = vmatprep.subr.bf16.mxu0 0
      %899 = vmatpush2.bf16.msra.mxu0 0
      %900 = vmatprep.subr.bf16.mxu0 0
      %901 = vmatpush2.bf16.msra.mxu0 0
      %902 = vmatprep.subr.bf16.mxu0 0
      %903 = vmatpush2.bf16.msra.mxu0 0
      %904 = vmatprep.subr.bf16.mxu0 0
      %905 = vmatpush2.bf16.msra.mxu0 0
      %906 = vmatprep.subr.bf16.mxu0 0
      %907 = vmatpush2.bf16.msra.mxu0 0
      %908 = vmatprep.subr.bf16.mxu0 0
      %909 = vmatpush2.bf16.msra.mxu0 0
      %910 = vmatprep.subr.bf16.mxu0 %v858
      %911 = vmatpush2.bf16.msra.mxu0 %v857
      %912 = vmatprep.mubr.bf16.mxu0 %v878
      %913 = vmatmul.mubr.bf16.gmra.mxu0 %v784
      %v914 = vpop.f32.mrf.mxu0
      %v915 = vadd.f32 0.0, %v914
      %v916 = vpop.f32.mrf.mxu0
      %v917 = vadd.f32 0.0, %v916
      %v918 = vpop.f32.mrf.mxu0
      %v919 = vpop.f32.mrf.mxu0
      %920 = vdwg.mxu0
      %v921 = vadd.f32 %v760, %v915
      %v922 = vadd.f32 %v761, %v917
      %s923 = scalar_lea.vmem %s4, 288
      %v924 = vld [vmem:[%s923] sm:$0xff]
      %v925 = vld [vmem:[%s923 + $0x8] sm:$0xff]
      %v926 = vld [vmem:[%s923 + $0x10] sm:$0xff]
      %v927 = vld [vmem:[%s923 + $0x18] sm:$0xff]
      %v928 = vld [vmem:[%s923 + $0x20] sm:$0xff]
      %v929 = vld [vmem:[%s923 + $0x28] sm:$0xff]
      %v930 = vld [vmem:[%s923 + $0x30] sm:$0xff]
      %v931 = vld [vmem:[%s923 + $0x38] sm:$0xff]
      %v932 = vld [vmem:[%s923 + $0x40] sm:$0xff]
      %v933 = vld [vmem:[%s923 + $0x48] sm:$0xff]
      %v934 = vld [vmem:[%s923 + $0x50] sm:$0xff]
      %v935 = vld [vmem:[%s923 + $0x58] sm:$0xff]
      %v936 = vld [vmem:[%s923 + $0x60] sm:$0xff]
      %v937 = vld [vmem:[%s923 + $0x68] sm:$0xff]
      %v938 = vld [vmem:[%s923 + $0x70] sm:$0xff]
      %v939 = vld [vmem:[%s923 + $0x78] sm:$0xff]
      %v940 = vld [vmem:[%s923 + $0x80] sm:$0xff]
      %v941 = vld [vmem:[%s923 + $0x88] sm:$0xff]
      %v943 = vunpack.c.l.b16 %v587
      %v944 = vunpack.c.h.b16 %v587
      %v945 = vpack.c.b16 %v943, %v943
      %v946 = vpack.c.b16 %v944, %v944
      %v966 = vunpack.c.l.b16 %v924
      %v967 = vunpack.c.h.b16 %v924
      %v968 = vunpack.c.l.b16 %v925
      %v969 = vunpack.c.h.b16 %v925
      %v970 = vunpack.c.l.b16 %v926
      %v971 = vunpack.c.h.b16 %v926
      %v972 = vunpack.c.l.b16 %v927
      %v973 = vunpack.c.h.b16 %v927
      %v974 = vunpack.c.l.b16 %v928
      %v975 = vunpack.c.h.b16 %v928
      %v976 = vunpack.c.l.b16 %v929
      %v977 = vunpack.c.h.b16 %v929
      %v978 = vunpack.c.l.b16 %v930
      %v979 = vunpack.c.h.b16 %v930
      %v980 = vunpack.c.l.b16 %v931
      %v981 = vunpack.c.h.b16 %v931
      %v982 = vunpack.c.l.b16 %v932
      %v983 = vunpack.c.h.b16 %v932
      %v984 = vunpack.c.l.b16 %v933
      %v985 = vunpack.c.h.b16 %v933
      %v986 = vunpack.c.l.b16 %v934
      %v987 = vunpack.c.h.b16 %v934
      %v988 = vunpack.c.l.b16 %v935
      %v989 = vunpack.c.h.b16 %v935
      %v990 = vunpack.c.l.b16 %v936
      %v991 = vunpack.c.h.b16 %v936
      %v992 = vunpack.c.l.b16 %v937
      %v993 = vunpack.c.h.b16 %v937
      %v994 = vunpack.c.l.b16 %v938
      %v995 = vunpack.c.h.b16 %v938
      %v996 = vunpack.c.l.b16 %v939
      %v997 = vunpack.c.h.b16 %v939
      %v998 = vunpack.c.l.b16 %v940
      %v999 = vunpack.c.h.b16 %v940
      %v1000 = vunpack.c.l.b16 %v941
      %v1001 = vunpack.c.h.b16 %v941
      %v1002 = vpack.c.b16 %v968, %v966
      %v1003 = vpack.c.b16 %v969, %v967
      %v1004 = vpack.c.b16 %v972, %v970
      %v1005 = vpack.c.b16 %v973, %v971
      %v1006 = vpack.c.b16 %v976, %v974
      %v1007 = vpack.c.b16 %v977, %v975
      %v1008 = vpack.c.b16 %v980, %v978
      %v1009 = vpack.c.b16 %v981, %v979
      %v1010 = vpack.c.b16 %v984, %v982
      %v1011 = vpack.c.b16 %v985, %v983
      %v1012 = vpack.c.b16 %v988, %v986
      %v1013 = vpack.c.b16 %v989, %v987
      %v1014 = vpack.c.b16 %v992, %v990
      %v1015 = vpack.c.b16 %v993, %v991
      %v1016 = vpack.c.b16 %v996, %v994
      %v1017 = vpack.c.b16 %v997, %v995
      %v1018 = vpack.c.b16 %v1000, %v998
      %v1019 = vpack.c.b16 %v1001, %v999
      %v1039 = vsel %vm704, %v946, 0
      %1041 = vmatprep.subr.bf16.mxu0 %v1017
      %1042 = vmatpush1.bf16.msra.mxu0 %v1016
      %1043 = vmatprep.subr.bf16.mxu0 %v1015
      %1044 = vmatpush1.bf16.msra.mxu0 %v1014
      %1045 = vmatprep.subr.bf16.mxu0 %v1013
      %1046 = vmatpush1.bf16.msra.mxu0 %v1012
      %1047 = vmatprep.subr.bf16.mxu0 %v1011
      %1048 = vmatpush1.bf16.msra.mxu0 %v1010
      %1049 = vmatprep.subr.bf16.mxu0 %v1009
      %1050 = vmatpush1.bf16.msra.mxu0 %v1008
      %1051 = vmatprep.subr.bf16.mxu0 %v1007
      %1052 = vmatpush1.bf16.msra.mxu0 %v1006
      %1053 = vmatprep.subr.bf16.mxu0 %v1005
      %1054 = vmatpush1.bf16.msra.mxu0 %v1004
      %1055 = vmatprep.subr.bf16.mxu0 %v1003
      %1056 = vmatpush1.bf16.msra.mxu0 %v1002
      %1057 = vmatprep.subr.bf16.mxu0 0
      %1058 = vmatpush2.bf16.msra.mxu0 0
      %1059 = vmatprep.subr.bf16.mxu0 0
      %1060 = vmatpush2.bf16.msra.mxu0 0
      %1061 = vmatprep.subr.bf16.mxu0 0
      %1062 = vmatpush2.bf16.msra.mxu0 0
      %1063 = vmatprep.subr.bf16.mxu0 0
      %1064 = vmatpush2.bf16.msra.mxu0 0
      %1065 = vmatprep.subr.bf16.mxu0 0
      %1066 = vmatpush2.bf16.msra.mxu0 0
      %1067 = vmatprep.subr.bf16.mxu0 0
      %1068 = vmatpush2.bf16.msra.mxu0 0
      %1069 = vmatprep.subr.bf16.mxu0 0
      %1070 = vmatpush2.bf16.msra.mxu0 0
      %1071 = vmatprep.subr.bf16.mxu0 %v1019
      %1072 = vmatpush2.bf16.msra.mxu0 %v1018
      %1073 = vmatprep.mubr.bf16.mxu0 %v1039
      %1074 = vmatmul.mubr.bf16.gmra.mxu0 %v945
      %v1075 = vpop.f32.mrf.mxu0
      %v1076 = vadd.f32 0.0, %v1075
      %v1077 = vpop.f32.mrf.mxu0
      %v1078 = vadd.f32 0.0, %v1077
      %v1079 = vpop.f32.mrf.mxu0
      %v1080 = vpop.f32.mrf.mxu0
      %1081 = vdwg.mxu0
      %v1082 = vadd.f32 %v921, %v1076
      %v1083 = vadd.f32 %v922, %v1078
      %s1084 = scalar_lea.vmem %s4, 432
      %v1085 = vld [vmem:[%s1084] sm:$0xff]
      %v1086 = vld [vmem:[%s1084 + $0x8] sm:$0xff]
      %v1087 = vld [vmem:[%s1084 + $0x10] sm:$0xff]
      %v1088 = vld [vmem:[%s1084 + $0x18] sm:$0xff]
      %v1089 = vld [vmem:[%s1084 + $0x20] sm:$0xff]
      %v1090 = vld [vmem:[%s1084 + $0x28] sm:$0xff]
      %v1091 = vld [vmem:[%s1084 + $0x30] sm:$0xff]
      %v1092 = vld [vmem:[%s1084 + $0x38] sm:$0xff]
      %v1093 = vld [vmem:[%s1084 + $0x40] sm:$0xff]
      %v1094 = vld [vmem:[%s1084 + $0x48] sm:$0xff]
      %v1095 = vld [vmem:[%s1084 + $0x50] sm:$0xff]
      %v1096 = vld [vmem:[%s1084 + $0x58] sm:$0xff]
      %v1097 = vld [vmem:[%s1084 + $0x60] sm:$0xff]
      %v1098 = vld [vmem:[%s1084 + $0x68] sm:$0xff]
      %v1099 = vld [vmem:[%s1084 + $0x70] sm:$0xff]
      %v1100 = vld [vmem:[%s1084 + $0x78] sm:$0xff]
      %v1101 = vld [vmem:[%s1084 + $0x80] sm:$0xff]
      %v1102 = vld [vmem:[%s1084 + $0x88] sm:$0xff]
      %v1104 = vunpack.c.l.b16 %v588
      %v1105 = vunpack.c.h.b16 %v588
      %v1106 = vpack.c.b16 %v1104, %v1104
      %v1107 = vpack.c.b16 %v1105, %v1105
      %v1127 = vunpack.c.l.b16 %v1085
      %v1128 = vunpack.c.h.b16 %v1085
      %v1129 = vunpack.c.l.b16 %v1086
      %v1130 = vunpack.c.h.b16 %v1086
      %v1131 = vunpack.c.l.b16 %v1087
      %v1132 = vunpack.c.h.b16 %v1087
      %v1133 = vunpack.c.l.b16 %v1088
      %v1134 = vunpack.c.h.b16 %v1088
      %v1135 = vunpack.c.l.b16 %v1089
      %v1136 = vunpack.c.h.b16 %v1089
      %v1137 = vunpack.c.l.b16 %v1090
      %v1138 = vunpack.c.h.b16 %v1090
      %v1139 = vunpack.c.l.b16 %v1091
      %v1140 = vunpack.c.h.b16 %v1091
      %v1141 = vunpack.c.l.b16 %v1092
      %v1142 = vunpack.c.h.b16 %v1092
      %v1143 = vunpack.c.l.b16 %v1093
      %v1144 = vunpack.c.h.b16 %v1093
      %v1145 = vunpack.c.l.b16 %v1094
      %v1146 = vunpack.c.h.b16 %v1094
      %v1147 = vunpack.c.l.b16 %v1095
      %v1148 = vunpack.c.h.b16 %v1095
      %v1149 = vunpack.c.l.b16 %v1096
      %v1150 = vunpack.c.h.b16 %v1096
      %v1151 = vunpack.c.l.b16 %v1097
      %v1152 = vunpack.c.h.b16 %v1097
      %v1153 = vunpack.c.l.b16 %v1098
      %v1154 = vunpack.c.h.b16 %v1098
      %v1155 = vunpack.c.l.b16 %v1099
      %v1156 = vunpack.c.h.b16 %v1099
      %v1157 = vunpack.c.l.b16 %v1100
      %v1158 = vunpack.c.h.b16 %v1100
      %v1159 = vunpack.c.l.b16 %v1101
      %v1160 = vunpack.c.h.b16 %v1101
      %v1161 = vunpack.c.l.b16 %v1102
      %v1162 = vunpack.c.h.b16 %v1102
      %v1163 = vpack.c.b16 %v1129, %v1127
      %v1164 = vpack.c.b16 %v1130, %v1128
      %v1165 = vpack.c.b16 %v1133, %v1131
      %v1166 = vpack.c.b16 %v1134, %v1132
      %v1167 = vpack.c.b16 %v1137, %v1135
      %v1168 = vpack.c.b16 %v1138, %v1136
      %v1169 = vpack.c.b16 %v1141, %v1139
      %v1170 = vpack.c.b16 %v1142, %v1140
      %v1171 = vpack.c.b16 %v1145, %v1143
      %v1172 = vpack.c.b16 %v1146, %v1144
      %v1173 = vpack.c.b16 %v1149, %v1147
      %v1174 = vpack.c.b16 %v1150, %v1148
      %v1175 = vpack.c.b16 %v1153, %v1151
      %v1176 = vpack.c.b16 %v1154, %v1152
      %v1177 = vpack.c.b16 %v1157, %v1155
      %v1178 = vpack.c.b16 %v1158, %v1156
      %v1179 = vpack.c.b16 %v1161, %v1159
      %v1180 = vpack.c.b16 %v1162, %v1160
      %v1200 = vsel %vm704, %v1107, 0
      %1202 = vmatprep.subr.bf16.mxu0 %v1178
      %1203 = vmatpush1.bf16.msra.mxu0 %v1177
      %1204 = vmatprep.subr.bf16.mxu0 %v1176
      %1205 = vmatpush1.bf16.msra.mxu0 %v1175
      %1206 = vmatprep.subr.bf16.mxu0 %v1174
      %1207 = vmatpush1.bf16.msra.mxu0 %v1173
      %1208 = vmatprep.subr.bf16.mxu0 %v1172
      %1209 = vmatpush1.bf16.msra.mxu0 %v1171
      %1210 = vmatprep.subr.bf16.mxu0 %v1170
      %1211 = vmatpush1.bf16.msra.mxu0 %v1169
      %1212 = vmatprep.subr.bf16.mxu0 %v1168
      %1213 = vmatpush1.bf16.msra.mxu0 %v1167
      %1214 = vmatprep.subr.bf16.mxu0 %v1166
      %1215 = vmatpush1.bf16.msra.mxu0 %v1165
      %1216 = vmatprep.subr.bf16.mxu0 %v1164
      %1217 = vmatpush1.bf16.msra.mxu0 %v1163
      %1218 = vmatprep.subr.bf16.mxu0 0
      %1219 = vmatpush2.bf16.msra.mxu0 0
      %1220 = vmatprep.subr.bf16.mxu0 0
      %1221 = vmatpush2.bf16.msra.mxu0 0
      %1222 = vmatprep.subr.bf16.mxu0 0
      %1223 = vmatpush2.bf16.msra.mxu0 0
      %1224 = vmatprep.subr.bf16.mxu0 0
      %1225 = vmatpush2.bf16.msra.mxu0 0
      %1226 = vmatprep.subr.bf16.mxu0 0
      %1227 = vmatpush2.bf16.msra.mxu0 0
      %1228 = vmatprep.subr.bf16.mxu0 0
      %1229 = vmatpush2.bf16.msra.mxu0 0
      %1230 = vmatprep.subr.bf16.mxu0 0
      %1231 = vmatpush2.bf16.msra.mxu0 0
      %1232 = vmatprep.subr.bf16.mxu0 %v1180
      %1233 = vmatpush2.bf16.msra.mxu0 %v1179
      %1234 = vmatprep.mubr.bf16.mxu0 %v1200
      %1235 = vmatmul.mubr.bf16.gmra.mxu0 %v1106
      %v1236 = vpop.f32.mrf.mxu0
      %v1237 = vadd.f32 0.0, %v1236
      %v1238 = vpop.f32.mrf.mxu0
      %v1239 = vadd.f32 0.0, %v1238
      %v1240 = vpop.f32.mrf.mxu0
      %v1241 = vpop.f32.mrf.mxu0
      %1242 = vdwg.mxu0
      %v1243 = vadd.f32 %v1082, %v1237
      %v1244 = vadd.f32 %v1083, %v1239
      %s1245 = scalar_lea.vmem %s4, 576
      %v1246 = vld [vmem:[%s1245] sm:$0xff]
      %v1247 = vld [vmem:[%s1245 + $0x8] sm:$0xff]
      %v1248 = vld [vmem:[%s1245 + $0x10] sm:$0xff]
      %v1249 = vld [vmem:[%s1245 + $0x18] sm:$0xff]
      %v1250 = vld [vmem:[%s1245 + $0x20] sm:$0xff]
      %v1251 = vld [vmem:[%s1245 + $0x28] sm:$0xff]
      %v1252 = vld [vmem:[%s1245 + $0x30] sm:$0xff]
      %v1253 = vld [vmem:[%s1245 + $0x38] sm:$0xff]
      %v1254 = vld [vmem:[%s1245 + $0x40] sm:$0xff]
      %v1255 = vld [vmem:[%s1245 + $0x48] sm:$0xff]
      %v1256 = vld [vmem:[%s1245 + $0x50] sm:$0xff]
      %v1257 = vld [vmem:[%s1245 + $0x58] sm:$0xff]
      %v1258 = vld [vmem:[%s1245 + $0x60] sm:$0xff]
      %v1259 = vld [vmem:[%s1245 + $0x68] sm:$0xff]
      %v1260 = vld [vmem:[%s1245 + $0x70] sm:$0xff]
      %v1261 = vld [vmem:[%s1245 + $0x78] sm:$0xff]
      %v1262 = vld [vmem:[%s1245 + $0x80] sm:$0xff]
      %v1263 = vld [vmem:[%s1245 + $0x88] sm:$0xff]
      %v1265 = vunpack.c.l.b16 %v584
      %v1266 = vunpack.c.h.b16 %v584
      %v1267 = vpack.c.b16 %v1265, %v609
      %v1268 = vpack.c.b16 %v1266, %v610
      %v1270 = vshrl.u32 %v1267, 16
      %v1272 = vshll.u32 %v1267, 16
      %v1274 = vrot.slane %v1272, 1
      %v1275 = vor.u32 %v1270, %v1274
      %v1277 = vshrl.u32 %v1268, 16
      %v1279 = vshll.u32 %v1268, 16
      %v1281 = vrot.slane %v1279, 1
      %v1282 = vor.u32 %v1277, %v1281
      %v1302 = vunpack.c.l.b16 %v1246
      %v1303 = vunpack.c.h.b16 %v1246
      %v1304 = vunpack.c.l.b16 %v1247
      %v1305 = vunpack.c.h.b16 %v1247
      %v1306 = vunpack.c.l.b16 %v1248
      %v1307 = vunpack.c.h.b16 %v1248
      %v1308 = vunpack.c.l.b16 %v1249
      %v1309 = vunpack.c.h.b16 %v1249
      %v1310 = vunpack.c.l.b16 %v1250
      %v1311 = vunpack.c.h.b16 %v1250
      %v1312 = vunpack.c.l.b16 %v1251
      %v1313 = vunpack.c.h.b16 %v1251
      %v1314 = vunpack.c.l.b16 %v1252
      %v1315 = vunpack.c.h.b16 %v1252
      %v1316 = vunpack.c.l.b16 %v1253
      %v1317 = vunpack.c.h.b16 %v1253
      %v1318 = vunpack.c.l.b16 %v1254
      %v1319 = vunpack.c.h.b16 %v1254
      %v1320 = vunpack.c.l.b16 %v1255
      %v1321 = vunpack.c.h.b16 %v1255
      %v1322 = vunpack.c.l.b16 %v1256
      %v1323 = vunpack.c.h.b16 %v1256
      %v1324 = vunpack.c.l.b16 %v1257
      %v1325 = vunpack.c.h.b16 %v1257
      %v1326 = vunpack.c.l.b16 %v1258
      %v1327 = vunpack.c.h.b16 %v1258
      %v1328 = vunpack.c.l.b16 %v1259
      %v1329 = vunpack.c.h.b16 %v1259
      %v1330 = vunpack.c.l.b16 %v1260
      %v1331 = vunpack.c.h.b16 %v1260
      %v1332 = vunpack.c.l.b16 %v1261
      %v1333 = vunpack.c.h.b16 %v1261
      %v1334 = vunpack.c.l.b16 %v1262
      %v1335 = vunpack.c.h.b16 %v1262
      %v1336 = vunpack.c.l.b16 %v1263
      %v1337 = vunpack.c.h.b16 %v1263
      %v1338 = vpack.c.b16 %v1304, %v1302
      %v1339 = vpack.c.b16 %v1305, %v1303
      %v1340 = vpack.c.b16 %v1308, %v1306
      %v1341 = vpack.c.b16 %v1309, %v1307
      %v1342 = vpack.c.b16 %v1312, %v1310
      %v1343 = vpack.c.b16 %v1313, %v1311
      %v1344 = vpack.c.b16 %v1316, %v1314
      %v1345 = vpack.c.b16 %v1317, %v1315
      %v1346 = vpack.c.b16 %v1320, %v1318
      %v1347 = vpack.c.b16 %v1321, %v1319
      %v1348 = vpack.c.b16 %v1324, %v1322
      %v1349 = vpack.c.b16 %v1325, %v1323
      %v1350 = vpack.c.b16 %v1328, %v1326
      %v1351 = vpack.c.b16 %v1329, %v1327
      %v1352 = vpack.c.b16 %v1332, %v1330
      %v1353 = vpack.c.b16 %v1333, %v1331
      %v1354 = vpack.c.b16 %v1336, %v1334
      %v1355 = vpack.c.b16 %v1337, %v1335
      %v1375 = vsel %vm704, %v1282, 0
      %1377 = vmatprep.subr.bf16.mxu0 %v1353
      %1378 = vmatpush1.bf16.msra.mxu0 %v1352
      %1379 = vmatprep.subr.bf16.mxu0 %v1351
      %1380 = vmatpush1.bf16.msra.mxu0 %v1350
      %1381 = vmatprep.subr.bf16.mxu0 %v1349
      %1382 = vmatpush1.bf16.msra.mxu0 %v1348
      %1383 = vmatprep.subr.bf16.mxu0 %v1347
      %1384 = vmatpush1.bf16.msra.mxu0 %v1346
      %1385 = vmatprep.subr.bf16.mxu0 %v1345
      %1386 = vmatpush1.bf16.msra.mxu0 %v1344
      %1387 = vmatprep.subr.bf16.mxu0 %v1343
      %1388 = vmatpush1.bf16.msra.mxu0 %v1342
      %1389 = vmatprep.subr.bf16.mxu0 %v1341
      %1390 = vmatpush1.bf16.msra.mxu0 %v1340
      %1391 = vmatprep.subr.bf16.mxu0 %v1339
      %1392 = vmatpush1.bf16.msra.mxu0 %v1338
      %1393 = vmatprep.subr.bf16.mxu0 0
      %1394 = vmatpush2.bf16.msra.mxu0 0
      %1395 = vmatprep.subr.bf16.mxu0 0
      %1396 = vmatpush2.bf16.msra.mxu0 0
      %1397 = vmatprep.subr.bf16.mxu0 0
      %1398 = vmatpush2.bf16.msra.mxu0 0
      %1399 = vmatprep.subr.bf16.mxu0 0
      %1400 = vmatpush2.bf16.msra.mxu0 0
      %1401 = vmatprep.subr.bf16.mxu0 0
      %1402 = vmatpush2.bf16.msra.mxu0 0
      %1403 = vmatprep.subr.bf16.mxu0 0
      %1404 = vmatpush2.bf16.msra.mxu0 0
      %1405 = vmatprep.subr.bf16.mxu0 0
      %1406 = vmatpush2.bf16.msra.mxu0 0
      %1407 = vmatprep.subr.bf16.mxu0 %v1355
      %1408 = vmatpush2.bf16.msra.mxu0 %v1354
      %1409 = vmatprep.mubr.bf16.mxu0 %v1375
      %1410 = vmatmul.mubr.bf16.gmra.mxu0 %v1275
      %v1411 = vpop.f32.mrf.mxu0
      %v1412 = vadd.f32 0.0, %v1411
      %v1413 = vpop.f32.mrf.mxu0
      %v1414 = vadd.f32 0.0, %v1413
      %v1415 = vpop.f32.mrf.mxu0
      %v1416 = vpop.f32.mrf.mxu0
      %1417 = vdwg.mxu0
      %v1418 = vadd.f32 %v1243, %v1412
      %v1419 = vadd.f32 %v1244, %v1414
      %s1420 = scalar_lea.vmem %s4, 720
      %v1421 = vld [vmem:[%s1420] sm:$0xff]
      %v1422 = vld [vmem:[%s1420 + $0x8] sm:$0xff]
      %v1423 = vld [vmem:[%s1420 + $0x10] sm:$0xff]
      %v1424 = vld [vmem:[%s1420 + $0x18] sm:$0xff]
      %v1425 = vld [vmem:[%s1420 + $0x20] sm:$0xff]
      %v1426 = vld [vmem:[%s1420 + $0x28] sm:$0xff]
      %v1427 = vld [vmem:[%s1420 + $0x30] sm:$0xff]
      %v1428 = vld [vmem:[%s1420 + $0x38] sm:$0xff]
      %v1429 = vld [vmem:[%s1420 + $0x40] sm:$0xff]
      %v1430 = vld [vmem:[%s1420 + $0x48] sm:$0xff]
      %v1431 = vld [vmem:[%s1420 + $0x50] sm:$0xff]
      %v1432 = vld [vmem:[%s1420 + $0x58] sm:$0xff]
      %v1433 = vld [vmem:[%s1420 + $0x60] sm:$0xff]
      %v1434 = vld [vmem:[%s1420 + $0x68] sm:$0xff]
      %v1435 = vld [vmem:[%s1420 + $0x70] sm:$0xff]
      %v1436 = vld [vmem:[%s1420 + $0x78] sm:$0xff]
      %v1437 = vld [vmem:[%s1420 + $0x80] sm:$0xff]
      %v1438 = vld [vmem:[%s1420 + $0x88] sm:$0xff]
      %v1440 = vunpack.c.l.b16 %v586
      %v1441 = vunpack.c.h.b16 %v586
      %v1442 = vpack.c.b16 %v1440, %v782
      %v1443 = vpack.c.b16 %v1441, %v783
      %v1445 = vshrl.u32 %v1442, 16
      %v1447 = vshll.u32 %v1442, 16
      %v1449 = vrot.slane %v1447, 1
      %v1450 = vor.u32 %v1445, %v1449
      %v1452 = vshrl.u32 %v1443, 16
      %v1454 = vshll.u32 %v1443, 16
      %v1456 = vrot.slane %v1454, 1
      %v1457 = vor.u32 %v1452, %v1456
      %v1477 = vunpack.c.l.b16 %v1421
      %v1478 = vunpack.c.h.b16 %v1421
      %v1479 = vunpack.c.l.b16 %v1422
      %v1480 = vunpack.c.h.b16 %v1422
      %v1481 = vunpack.c.l.b16 %v1423
      %v1482 = vunpack.c.h.b16 %v1423
      %v1483 = vunpack.c.l.b16 %v1424
      %v1484 = vunpack.c.h.b16 %v1424
      %v1485 = vunpack.c.l.b16 %v1425
      %v1486 = vunpack.c.h.b16 %v1425
      %v1487 = vunpack.c.l.b16 %v1426
      %v1488 = vunpack.c.h.b16 %v1426
      %v1489 = vunpack.c.l.b16 %v1427
      %v1490 = vunpack.c.h.b16 %v1427
      %v1491 = vunpack.c.l.b16 %v1428
      %v1492 = vunpack.c.h.b16 %v1428
      %v1493 = vunpack.c.l.b16 %v1429
      %v1494 = vunpack.c.h.b16 %v1429
      %v1495 = vunpack.c.l.b16 %v1430
      %v1496 = vunpack.c.h.b16 %v1430
      %v1497 = vunpack.c.l.b16 %v1431
      %v1498 = vunpack.c.h.b16 %v1431
      %v1499 = vunpack.c.l.b16 %v1432
      %v1500 = vunpack.c.h.b16 %v1432
      %v1501 = vunpack.c.l.b16 %v1433
      %v1502 = vunpack.c.h.b16 %v1433
      %v1503 = vunpack.c.l.b16 %v1434
      %v1504 = vunpack.c.h.b16 %v1434
      %v1505 = vunpack.c.l.b16 %v1435
      %v1506 = vunpack.c.h.b16 %v1435
      %v1507 = vunpack.c.l.b16 %v1436
      %v1508 = vunpack.c.h.b16 %v1436
      %v1509 = vunpack.c.l.b16 %v1437
      %v1510 = vunpack.c.h.b16 %v1437
      %v1511 = vunpack.c.l.b16 %v1438
      %v1512 = vunpack.c.h.b16 %v1438
      %v1513 = vpack.c.b16 %v1479, %v1477
      %v1514 = vpack.c.b16 %v1480, %v1478
      %v1515 = vpack.c.b16 %v1483, %v1481
      %v1516 = vpack.c.b16 %v1484, %v1482
      %v1517 = vpack.c.b16 %v1487, %v1485
      %v1518 = vpack.c.b16 %v1488, %v1486
      %v1519 = vpack.c.b16 %v1491, %v1489
      %v1520 = vpack.c.b16 %v1492, %v1490
      %v1521 = vpack.c.b16 %v1495, %v1493
      %v1522 = vpack.c.b16 %v1496, %v1494
      %v1523 = vpack.c.b16 %v1499, %v1497
      %v1524 = vpack.c.b16 %v1500, %v1498
      %v1525 = vpack.c.b16 %v1503, %v1501
      %v1526 = vpack.c.b16 %v1504, %v1502
      %v1527 = vpack.c.b16 %v1507, %v1505
      %v1528 = vpack.c.b16 %v1508, %v1506
      %v1529 = vpack.c.b16 %v1511, %v1509
      %v1530 = vpack.c.b16 %v1512, %v1510
      %v1550 = vsel %vm704, %v1457, 0
      %1552 = vmatprep.subr.bf16.mxu0 %v1528
      %1553 = vmatpush1.bf16.msra.mxu0 %v1527
      %1554 = vmatprep.subr.bf16.mxu0 %v1526
      %1555 = vmatpush1.bf16.msra.mxu0 %v1525
      %1556 = vmatprep.subr.bf16.mxu0 %v1524
      %1557 = vmatpush1.bf16.msra.mxu0 %v1523
      %1558 = vmatprep.subr.bf16.mxu0 %v1522
      %1559 = vmatpush1.bf16.msra.mxu0 %v1521
      %1560 = vmatprep.subr.bf16.mxu0 %v1520
      %1561 = vmatpush1.bf16.msra.mxu0 %v1519
      %1562 = vmatprep.subr.bf16.mxu0 %v1518
      %1563 = vmatpush1.bf16.msra.mxu0 %v1517
      %1564 = vmatprep.subr.bf16.mxu0 %v1516
      %1565 = vmatpush1.bf16.msra.mxu0 %v1515
      %1566 = vmatprep.subr.bf16.mxu0 %v1514
      %1567 = vmatpush1.bf16.msra.mxu0 %v1513
      %1568 = vmatprep.subr.bf16.mxu0 0
      %1569 = vmatpush2.bf16.msra.mxu0 0
      %1570 = vmatprep.subr.bf16.mxu0 0
      %1571 = vmatpush2.bf16.msra.mxu0 0
      %1572 = vmatprep.subr.bf16.mxu0 0
      %1573 = vmatpush2.bf16.msra.mxu0 0
      %1574 = vmatprep.subr.bf16.mxu0 0
      %1575 = vmatpush2.bf16.msra.mxu0 0
      %1576 = vmatprep.subr.bf16.mxu0 0
      %1577 = vmatpush2.bf16.msra.mxu0 0
      %1578 = vmatprep.subr.bf16.mxu0 0
      %1579 = vmatpush2.bf16.msra.mxu0 0
      %1580 = vmatprep.subr.bf16.mxu0 0
      %1581 = vmatpush2.bf16.msra.mxu0 0
      %1582 = vmatprep.subr.bf16.mxu0 %v1530
      %1583 = vmatpush2.bf16.msra.mxu0 %v1529
      %1584 = vmatprep.mubr.bf16.mxu0 %v1550
      %1585 = vmatmul.mubr.bf16.gmra.mxu0 %v1450
      %v1586 = vpop.f32.mrf.mxu0
      %v1587 = vadd.f32 0.0, %v1586
      %v1588 = vpop.f32.mrf.mxu0
      %v1589 = vadd.f32 0.0, %v1588
      %v1590 = vpop.f32.mrf.mxu0
      %v1591 = vpop.f32.mrf.mxu0
      %1592 = vdwg.mxu0
      %v1593 = vadd.f32 %v1418, %v1587
      %v1594 = vadd.f32 %v1419, %v1589
      %v1595 = vld [vmem:[%s6] sm:$0xff]
      %v1596 = vld [vmem:[%s6 + $0x8] sm:$0xff]
      %v1597 = vld [vmem:[%s6 + $0x10] sm:$0xff]
      %v1598 = vld [vmem:[%s6 + $0x18] sm:$0xff]
      %v1599 = vld [vmem:[%s6 + $0x20] sm:$0xff]
      %v1600 = vld [vmem:[%s6 + $0x28] sm:$0xff]
      %v1601 = vld [vmem:[%s6 + $0x30] sm:$0xff]
      %v1602 = vld [vmem:[%s6 + $0x38] sm:$0xff]
      %v1603 = vld [vmem:[%s6 + $0x40] sm:$0xff]
      %v1604 = vld [vmem:[%s6 + $0x48] sm:$0xff]
      %v1605 = vld [vmem:[%s6 + $0x50] sm:$0xff]
      %v1606 = vld [vmem:[%s6 + $0x58] sm:$0xff]
      %v1607 = vld [vmem:[%s6 + $0x60] sm:$0xff]
      %v1608 = vld [vmem:[%s6 + $0x68] sm:$0xff]
      %v1609 = vld [vmem:[%s6 + $0x70] sm:$0xff]
      %v1610 = vld [vmem:[%s6 + $0x78] sm:$0xff]
      %v1611 = vld [vmem:[%s6 + $0x80] sm:$0xff]
      %v1612 = vld [vmem:[%s6 + $0x88] sm:$0xff]
      %v1613 = vld [vmem:[%s7] sm:$0x3]
      %v1615 = vlaneseq
      %v1616 = vshrl.u32 %v1615, 7
      %v1617 = vsub.s32 0, %v1616
      %v1618 = vrot.slane %v1613, %v1617
      %v1619 = vlaneseq
      %v1620 = vshrl.u32 %v1619, 7
      %v1621 = vsub.s32 1, %v1620
      %v1622 = vrot.slane %v1613, %v1621
      %v1643 = vunpack.c.l.b16 %v1595
      %v1644 = vunpack.c.h.b16 %v1595
      %v1645 = vunpack.c.l.b16 %v1596
      %v1646 = vunpack.c.h.b16 %v1596
      %v1647 = vunpack.c.l.b16 %v1597
      %v1648 = vunpack.c.h.b16 %v1597
      %v1649 = vunpack.c.l.b16 %v1598
      %v1650 = vunpack.c.h.b16 %v1598
      %v1651 = vunpack.c.l.b16 %v1599
      %v1652 = vunpack.c.h.b16 %v1599
      %v1653 = vunpack.c.l.b16 %v1600
      %v1654 = vunpack.c.h.b16 %v1600
      %v1655 = vunpack.c.l.b16 %v1601
      %v1656 = vunpack.c.h.b16 %v1601
      %v1657 = vunpack.c.l.b16 %v1602
      %v1658 = vunpack.c.h.b16 %v1602
      %v1659 = vunpack.c.l.b16 %v1603
      %v1660 = vunpack.c.h.b16 %v1603
      %v1661 = vunpack.c.l.b16 %v1604
      %v1662 = vunpack.c.h.b16 %v1604
      %v1663 = vunpack.c.l.b16 %v1605
      %v1664 = vunpack.c.h.b16 %v1605
      %v1665 = vunpack.c.l.b16 %v1606
      %v1666 = vunpack.c.h.b16 %v1606
      %v1667 = vunpack.c.l.b16 %v1607
      %v1668 = vunpack.c.h.b16 %v1607
      %v1669 = vunpack.c.l.b16 %v1608
      %v1670 = vunpack.c.h.b16 %v1608
      %v1671 = vunpack.c.l.b16 %v1609
      %v1672 = vunpack.c.h.b16 %v1609
      %v1673 = vunpack.c.l.b16 %v1610
      %v1674 = vunpack.c.h.b16 %v1610
      %v1675 = vunpack.c.l.b16 %v1611
      %v1676 = vunpack.c.h.b16 %v1611
      %v1677 = vunpack.c.l.b16 %v1612
      %v1678 = vunpack.c.h.b16 %v1612
      %v1679 = vpack.c.b16 %v1645, %v1643
      %v1680 = vpack.c.b16 %v1646, %v1644
      %v1681 = vpack.c.b16 %v1649, %v1647
      %v1682 = vpack.c.b16 %v1650, %v1648
      %v1683 = vpack.c.b16 %v1653, %v1651
      %v1684 = vpack.c.b16 %v1654, %v1652
      %v1685 = vpack.c.b16 %v1657, %v1655
      %v1686 = vpack.c.b16 %v1658, %v1656
      %v1687 = vpack.c.b16 %v1661, %v1659
      %v1688 = vpack.c.b16 %v1662, %v1660
      %v1689 = vpack.c.b16 %v1665, %v1663
      %v1690 = vpack.c.b16 %v1666, %v1664
      %v1691 = vpack.c.b16 %v1669, %v1667
      %v1692 = vpack.c.b16 %v1670, %v1668
      %v1693 = vpack.c.b16 %v1673, %v1671
      %v1694 = vpack.c.b16 %v1674, %v1672
      %v1695 = vpack.c.b16 %v1677, %v1675
      %v1696 = vpack.c.b16 %v1678, %v1676
      %1715 = vmatprep.subr.bf16.mxu0 %v1694
      %1716 = vmatpush1.bf16.msra.mxu0 %v1693
      %1717 = vmatprep.subr.bf16.mxu0 %v1692
      %1718 = vmatpush1.bf16.msra.mxu0 %v1691
      %1719 = vmatprep.subr.bf16.mxu0 %v1690
      %1720 = vmatpush1.bf16.msra.mxu0 %v1689
      %1721 = vmatprep.subr.bf16.mxu0 %v1688
      %1722 = vmatpush1.bf16.msra.mxu0 %v1687
      %1723 = vmatprep.subr.bf16.mxu0 %v1686
      %1724 = vmatpush1.bf16.msra.mxu0 %v1685
      %1725 = vmatprep.subr.bf16.mxu0 %v1684
      %1726 = vmatpush1.bf16.msra.mxu0 %v1683
      %1727 = vmatprep.subr.bf16.mxu0 %v1682
      %1728 = vmatpush1.bf16.msra.mxu0 %v1681
      %1729 = vmatprep.subr.bf16.mxu0 %v1680
      %1730 = vmatpush1.bf16.msra.mxu0 %v1679
      %1731 = vmatprep.subr.bf16.mxu0 0
      %1732 = vmatpush2.bf16.msra.mxu0 0
      %1733 = vmatprep.subr.bf16.mxu0 0
      %1734 = vmatpush2.bf16.msra.mxu0 0
      %1735 = vmatprep.subr.bf16.mxu0 0
      %1736 = vmatpush2.bf16.msra.mxu0 0
      %1737 = vmatprep.subr.bf16.mxu0 0
      %1738 = vmatpush2.bf16.msra.mxu0 0
      %1739 = vmatprep.subr.bf16.mxu0 0
      %1740 = vmatpush2.bf16.msra.mxu0 0
      %1741 = vmatprep.subr.bf16.mxu0 0
      %1742 = vmatpush2.bf16.msra.mxu0 0
      %1743 = vmatprep.subr.bf16.mxu0 0
      %1744 = vmatpush2.bf16.msra.mxu0 0
      %1745 = vmatprep.subr.bf16.mxu0 %v1696
      %1746 = vmatpush2.bf16.msra.mxu0 %v1695
      %1747 = vmatprep.mubr.bf16.mxu0 %v1200
      %1748 = vmatmul.mubr.bf16.gmra.mxu0 %v1106
      %v1749 = vpop.f32.mrf.mxu0
      %v1750 = vadd.f32 %v1618, %v1749
      %v1751 = vpop.f32.mrf.mxu0
      %v1752 = vadd.f32 %v1622, %v1751
      %v1753 = vpop.f32.mrf.mxu0
      %v1754 = vpop.f32.mrf.mxu0
      %1755 = vdwg.mxu0
      %v1756 = vmax.f32 %v1593, 0.0
      %v1757 = vmax.f32 %v1594, 0.0
      %v1758 = vpack.c.bf16 %v1756, %v1756
      %v1759 = vpack.c.bf16 %v1757, %v1757
      %1762 = vrot.lane.b32.xlu0 %v1758, 32
      %v1763 = vpop.permute.xlu0 %1762
      %1764 = vrot.lane.b32.xlu0 %v1759, 32
      %v1765 = vpop.permute.xlu0 %1764
      %vm1766 = vcmask 261120
      %v1767 = vsel %vm1766, %v1763, %v1765
      %vm1768 = vcmask 261120
      %v1771 = vsel %vm1768, 0, %v1763
      %v1773 = vsel %vm1768, %v1765, 0
      %v1774 = vshrl.u32 %v1771, 16
      %v1776 = vrot.slane %v1774, 7
      %v1777 = vshll.u32 %v1771, 16
      %v1779 = vor.u32 %v1776, %v1777
      %v1781 = vshrl.u32 %v1767, 16
      %v1783 = vrot.slane %v1781, 7
      %v1784 = vshll.u32 %v1767, 16
      %v1786 = vor.u32 %v1783, %v1784
      %v1787 = vshrl.u32 %v1773, 16
      %v1789 = vrot.slane %v1787, 7
      %v1790 = vshll.u32 %v1773, 16
      %v1792 = vor.u32 %v1789, %v1790
      %vm1796 = vcmask 1040384
      %vm1797 = vsmask.f32 256
      %vm1798 = vmand %vm1796, %vm1797
      %v1799 = vsel %vm1798, 0, %v1779
      %v1800 = vsel %vm1798, 0, %v1786
      %v1801 = vsel %vm1798, 0, %v1792
      %vm1802 = vcmask 1044480
      %vm1803 = vsmask.f32 4352
      %vm1804 = vmand %vm1802, %vm1803
      %v1805 = vsel %vm1804, %v1799, 0
      %v1806 = vsel %vm1804, %v1800, 0
      %v1807 = vsel %vm1804, %v1801, 0
      %v1808 = vld [vmem:[%s9] sm:$0x3]
      %v1809 = vld [vmem:[%s8] sm:$0xff]
      %v1810 = vld [vmem:[%s8 + $0x8] sm:$0xff]
      %v1811 = vld [vmem:[%s8 + $0x10] sm:$0xff]
      %v1812 = vld [vmem:[%s8 + $0x18] sm:$0xff]
      %v1813 = vld [vmem:[%s8 + $0x20] sm:$0xff]
      %v1814 = vld [vmem:[%s8 + $0x28] sm:$0xff]
      %v1815 = vld [vmem:[%s8 + $0x30] sm:$0xff]
      %v1816 = vld [vmem:[%s8 + $0x38] sm:$0xff]
      %v1817 = vld [vmem:[%s8 + $0x40] sm:$0xff]
      %v1818 = vld [vmem:[%s8 + $0x48] sm:$0xff]
      %v1819 = vld [vmem:[%s8 + $0x50] sm:$0xff]
      %v1820 = vld [vmem:[%s8 + $0x58] sm:$0xff]
      %v1821 = vld [vmem:[%s8 + $0x60] sm:$0xff]
      %v1822 = vld [vmem:[%s8 + $0x68] sm:$0xff]
      %v1823 = vld [vmem:[%s8 + $0x70] sm:$0xff]
      %v1824 = vld [vmem:[%s8 + $0x78] sm:$0xff]
      %v1825 = vld [vmem:[%s8 + $0x80] sm:$0xff]
      %v1826 = vld [vmem:[%s8 + $0x88] sm:$0xff]
      %v1827 = vld [vmem:[%s8 + $0x90] sm:$0xff]
      %v1828 = vld [vmem:[%s8 + $0x98] sm:$0xff]
      %v1829 = vld [vmem:[%s8 + $0xa0] sm:$0xff]
      %v1830 = vld [vmem:[%s8 + $0xa8] sm:$0xff]
      %v1831 = vld [vmem:[%s8 + $0xb0] sm:$0xff]
      %v1832 = vld [vmem:[%s8 + $0xb8] sm:$0xff]
      %v1833 = vld [vmem:[%s8 + $0xc0] sm:$0xff]
      %v1834 = vld [vmem:[%s8 + $0xc8] sm:$0xff]
      %v1835 = vld [vmem:[%s8 + $0xd0] sm:$0xff]
      %v1836 = vld [vmem:[%s8 + $0xd8] sm:$0xff]
      %v1837 = vld [vmem:[%s8 + $0xe0] sm:$0xff]
      %v1838 = vld [vmem:[%s8 + $0xe8] sm:$0xff]
      %v1839 = vld [vmem:[%s8 + $0xf0] sm:$0xff]
      %v1840 = vld [vmem:[%s8 + $0xf8] sm:$0xff]
      %v1841 = vld [vmem:[%s8 + $0x100] sm:$0xff]
      %v1842 = vld [vmem:[%s8 + $0x108] sm:$0xff]
      %v1843 = vld [vmem:[%s8 + $0x110] sm:$0xff]
      %v1844 = vld [vmem:[%s8 + $0x118] sm:$0xff]
      %v1845 = vld [vmem:[%s8 + $0x120] sm:$0xff]
      %v1846 = vld [vmem:[%s8 + $0x128] sm:$0xff]
      %v1847 = vld [vmem:[%s8 + $0x130] sm:$0xff]
      %v1848 = vld [vmem:[%s8 + $0x138] sm:$0xff]
      %v1889 = vunpack.c.l.b16 %v1809
      %v1890 = vunpack.c.h.b16 %v1809
      %v1891 = vunpack.c.l.b16 %v1810
      %v1892 = vunpack.c.h.b16 %v1810
      %v1893 = vunpack.c.l.b16 %v1811
      %v1894 = vunpack.c.h.b16 %v1811
      %v1895 = vunpack.c.l.b16 %v1812
      %v1896 = vunpack.c.h.b16 %v1812
      %v1897 = vunpack.c.l.b16 %v1813
      %v1898 = vunpack.c.h.b16 %v1813
      %v1899 = vunpack.c.l.b16 %v1814
      %v1900 = vunpack.c.h.b16 %v1814
      %v1901 = vunpack.c.l.b16 %v1815
      %v1902 = vunpack.c.h.b16 %v1815
      %v1903 = vunpack.c.l.b16 %v1816
      %v1904 = vunpack.c.h.b16 %v1816
      %v1905 = vunpack.c.l.b16 %v1817
      %v1906 = vunpack.c.h.b16 %v1817
      %v1907 = vunpack.c.l.b16 %v1818
      %v1908 = vunpack.c.h.b16 %v1818
      %v1909 = vunpack.c.l.b16 %v1819
      %v1910 = vunpack.c.h.b16 %v1819
      %v1911 = vunpack.c.l.b16 %v1820
      %v1912 = vunpack.c.h.b16 %v1820
      %v1913 = vunpack.c.l.b16 %v1821
      %v1914 = vunpack.c.h.b16 %v1821
      %v1915 = vunpack.c.l.b16 %v1822
      %v1916 = vunpack.c.h.b16 %v1822
      %v1917 = vunpack.c.l.b16 %v1823
      %v1918 = vunpack.c.h.b16 %v1823
      %v1919 = vunpack.c.l.b16 %v1824
      %v1920 = vunpack.c.h.b16 %v1824
      %v1921 = vunpack.c.l.b16 %v1825
      %v1922 = vunpack.c.h.b16 %v1825
      %v1923 = vunpack.c.l.b16 %v1826
      %v1924 = vunpack.c.h.b16 %v1826
      %v1925 = vunpack.c.l.b16 %v1827
      %v1926 = vunpack.c.h.b16 %v1827
      %v1927 = vunpack.c.l.b16 %v1828
      %v1928 = vunpack.c.h.b16 %v1828
      %v1929 = vunpack.c.l.b16 %v1829
      %v1930 = vunpack.c.h.b16 %v1829
      %v1931 = vunpack.c.l.b16 %v1830
      %v1932 = vunpack.c.h.b16 %v1830
      %v1933 = vunpack.c.l.b16 %v1831
      %v1934 = vunpack.c.h.b16 %v1831
      %v1935 = vunpack.c.l.b16 %v1832
      %v1936 = vunpack.c.h.b16 %v1832
      %v1937 = vunpack.c.l.b16 %v1833
      %v1938 = vunpack.c.h.b16 %v1833
      %v1939 = vunpack.c.l.b16 %v1834
      %v1940 = vunpack.c.h.b16 %v1834
      %v1941 = vunpack.c.l.b16 %v1835
      %v1942 = vunpack.c.h.b16 %v1835
      %v1943 = vunpack.c.l.b16 %v1836
      %v1944 = vunpack.c.h.b16 %v1836
      %v1945 = vunpack.c.l.b16 %v1837
      %v1946 = vunpack.c.h.b16 %v1837
      %v1947 = vunpack.c.l.b16 %v1838
      %v1948 = vunpack.c.h.b16 %v1838
      %v1949 = vunpack.c.l.b16 %v1839
      %v1950 = vunpack.c.h.b16 %v1839
      %v1951 = vunpack.c.l.b16 %v1840
      %v1952 = vunpack.c.h.b16 %v1840
      %v1953 = vunpack.c.l.b16 %v1841
      %v1954 = vunpack.c.h.b16 %v1841
      %v1955 = vunpack.c.l.b16 %v1842
      %v1956 = vunpack.c.h.b16 %v1842
      %v1957 = vunpack.c.l.b16 %v1843
      %v1958 = vunpack.c.h.b16 %v1843
      %v1959 = vunpack.c.l.b16 %v1844
      %v1960 = vunpack.c.h.b16 %v1844
      %v1961 = vunpack.c.l.b16 %v1845
      %v1962 = vunpack.c.h.b16 %v1845
      %v1963 = vunpack.c.l.b16 %v1846
      %v1964 = vunpack.c.h.b16 %v1846
      %v1965 = vunpack.c.l.b16 %v1847
      %v1966 = vunpack.c.h.b16 %v1847
      %v1967 = vunpack.c.l.b16 %v1848
      %v1968 = vunpack.c.h.b16 %v1848
      %v1969 = vpack.c.b16 %v1891, %v1889
      %v1970 = vpack.c.b16 %v1892, %v1890
      %v1971 = vpack.c.b16 %v1895, %v1893
      %v1972 = vpack.c.b16 %v1896, %v1894
      %v1973 = vpack.c.b16 %v1899, %v1897
      %v1974 = vpack.c.b16 %v1900, %v1898
      %v1975 = vpack.c.b16 %v1903, %v1901
      %v1976 = vpack.c.b16 %v1904, %v1902
      %v1977 = vpack.c.b16 %v1907, %v1905
      %v1978 = vpack.c.b16 %v1908, %v1906
      %v1979 = vpack.c.b16 %v1911, %v1909
      %v1980 = vpack.c.b16 %v1912, %v1910
      %v1981 = vpack.c.b16 %v1915, %v1913
      %v1982 = vpack.c.b16 %v1916, %v1914
      %v1983 = vpack.c.b16 %v1919, %v1917
      %v1984 = vpack.c.b16 %v1920, %v1918
      %v1985 = vpack.c.b16 %v1923, %v1921
      %v1986 = vpack.c.b16 %v1924, %v1922
      %v1987 = vpack.c.b16 %v1927, %v1925
      %v1988 = vpack.c.b16 %v1928, %v1926
      %v1989 = vpack.c.b16 %v1931, %v1929
      %v1990 = vpack.c.b16 %v1932, %v1930
      %v1991 = vpack.c.b16 %v1935, %v1933
      %v1992 = vpack.c.b16 %v1936, %v1934
      %v1993 = vpack.c.b16 %v1939, %v1937
      %v1994 = vpack.c.b16 %v1940, %v1938
      %v1995 = vpack.c.b16 %v1943, %v1941
      %v1996 = vpack.c.b16 %v1944, %v1942
      %v1997 = vpack.c.b16 %v1947, %v1945
      %v1998 = vpack.c.b16 %v1948, %v1946
      %v1999 = vpack.c.b16 %v1951, %v1949
      %v2000 = vpack.c.b16 %v1952, %v1950
      %v2001 = vpack.c.b16 %v1955, %v1953
      %v2002 = vpack.c.b16 %v1956, %v1954
      %v2003 = vpack.c.b16 %v1959, %v1957
      %v2004 = vpack.c.b16 %v1960, %v1958
      %v2005 = vpack.c.b16 %v1963, %v1961
      %v2006 = vpack.c.b16 %v1964, %v1962
      %v2007 = vpack.c.b16 %v1967, %v1965
      %v2008 = vpack.c.b16 %v1968, %v1966
      %vm2049 = vcmask 523264
      %v2051 = vsel %vm2049, %v1807, 0
      %2053 = vmatprep.subr.bf16.mxu0 %v1984
      %2054 = vmatpush1.bf16.msra.mxu0 %v1983
      %2055 = vmatprep.subr.bf16.mxu0 %v1982
      %2056 = vmatpush1.bf16.msra.mxu0 %v1981
      %2057 = vmatprep.subr.bf16.mxu0 %v1980
      %2058 = vmatpush1.bf16.msra.mxu0 %v1979
      %2059 = vmatprep.subr.bf16.mxu0 %v1978
      %2060 = vmatpush1.bf16.msra.mxu0 %v1977
      %2061 = vmatprep.subr.bf16.mxu0 %v1976
      %2062 = vmatpush1.bf16.msra.mxu0 %v1975
      %2063 = vmatprep.subr.bf16.mxu0 %v1974
      %2064 = vmatpush1.bf16.msra.mxu0 %v1973
      %2065 = vmatprep.subr.bf16.mxu0 %v1972
      %2066 = vmatpush1.bf16.msra.mxu0 %v1971
      %2067 = vmatprep.subr.bf16.mxu0 %v1970
      %2068 = vmatpush1.bf16.msra.mxu0 %v1969
      %2069 = vmatprep.subr.bf16.mxu0 %v2000
      %2070 = vmatpush2.bf16.msra.mxu0 %v1999
      %2071 = vmatprep.subr.bf16.mxu0 %v1998
      %2072 = vmatpush2.bf16.msra.mxu0 %v1997
      %2073 = vmatprep.subr.bf16.mxu0 %v1996
      %2074 = vmatpush2.bf16.msra.mxu0 %v1995
      %2075 = vmatprep.subr.bf16.mxu0 %v1994
      %2076 = vmatpush2.bf16.msra.mxu0 %v1993
      %2077 = vmatprep.subr.bf16.mxu0 %v1992
      %2078 = vmatpush2.bf16.msra.mxu0 %v1991
      %2079 = vmatprep.subr.bf16.mxu0 %v1990
      %2080 = vmatpush2.bf16.msra.mxu0 %v1989
      %2081 = vmatprep.subr.bf16.mxu0 %v1988
      %2082 = vmatpush2.bf16.msra.mxu0 %v1987
      %2083 = vmatprep.subr.bf16.mxu0 %v1986
      %2084 = vmatpush2.bf16.msra.mxu0 %v1985
      %2085 = vmatprep.mubr.bf16.mxu0 %v1806
      %2086 = vmatmul.mubr.bf16.gmra.mxu0 %v1805
      %v2087 = vpop.f32.mrf.mxu0
      %v2088 = vadd.f32 0.0, %v2087
      %v2089 = vpop.f32.mrf.mxu0
      %v2090 = vadd.f32 0.0, %v2089
      %v2091 = vpop.f32.mrf.mxu0
      %v2092 = vpop.f32.mrf.mxu0
      %2093 = vdwg.mxu0
      %2094 = vmatprep.subr.bf16.mxu0 0
      %2095 = vmatpush1.bf16.msra.mxu0 0
      %2096 = vmatprep.subr.bf16.mxu0 0
      %2097 = vmatpush1.bf16.msra.mxu0 0
      %2098 = vmatprep.subr.bf16.mxu0 0
      %2099 = vmatpush1.bf16.msra.mxu0 0
      %2100 = vmatprep.subr.bf16.mxu0 0
      %2101 = vmatpush1.bf16.msra.mxu0 0
      %2102 = vmatprep.subr.bf16.mxu0 %v2008
      %2103 = vmatpush1.bf16.msra.mxu0 %v2007
      %2104 = vmatprep.subr.bf16.mxu0 %v2006
      %2105 = vmatpush1.bf16.msra.mxu0 %v2005
      %2106 = vmatprep.subr.bf16.mxu0 %v2004
      %2107 = vmatpush1.bf16.msra.mxu0 %v2003
      %2108 = vmatprep.subr.bf16.mxu0 %v2002
      %2109 = vmatpush1.bf16.msra.mxu0 %v2001
      %2110 = vmatprep.subr.bf16.mxu0 0
      %2111 = vmatpush2.bf16.msra.mxu0 0
      %2112 = vmatprep.subr.bf16.mxu0 0
      %2113 = vmatpush2.bf16.msra.mxu0 0
      %2114 = vmatprep.subr.bf16.mxu0 0
      %2115 = vmatpush2.bf16.msra.mxu0 0
      %2116 = vmatprep.subr.bf16.mxu0 0
      %2117 = vmatpush2.bf16.msra.mxu0 0
      %2118 = vmatprep.subr.bf16.mxu0 0
      %2119 = vmatpush2.bf16.msra.mxu0 0
      %2120 = vmatprep.subr.bf16.mxu0 0
      %2121 = vmatpush2.bf16.msra.mxu0 0
      %2122 = vmatprep.subr.bf16.mxu0 0
      %2123 = vmatpush2.bf16.msra.mxu0 0
      %2124 = vmatprep.subr.bf16.mxu0 0
      %2125 = vmatpush2.bf16.msra.mxu0 0
      %2126 = vmatprep.mubr.bf16.mxu0 0
      %2127 = vmatmul.mubr.bf16.gmra.mxu0 %v2051
      %v2128 = vpop.f32.mrf.mxu0
      %v2129 = vadd.f32 %v2088, %v2128
      %v2130 = vpop.f32.mrf.mxu0
      %v2131 = vadd.f32 %v2090, %v2130
      %v2132 = vpop.f32.mrf.mxu0
      %v2133 = vpop.f32.mrf.mxu0
      %2134 = vdwg.mxu0
      %v2136 = vlaneseq
      %v2137 = vshrl.u32 %v2136, 7
      %v2138 = vsub.s32 0, %v2137
      %v2139 = vrot.slane %v1808, %v2138
      %v2140 = vlaneseq
      %v2141 = vshrl.u32 %v2140, 7
      %v2142 = vsub.s32 1, %v2141
      %v2143 = vrot.slane %v1808, %v2142
      %v2146 = vadd.f32 %v2139, %v2129
      %v2147 = vadd.f32 %v2143, %v2131
      %s2148 = scalar_lea.vmem %s8, 320
      %v2149 = vld [vmem:[%s2148] sm:$0xff]
      %v2150 = vld [vmem:[%s2148 + $0x8] sm:$0xff]
      %v2151 = vld [vmem:[%s2148 + $0x10] sm:$0xff]
      %v2152 = vld [vmem:[%s2148 + $0x18] sm:$0xff]
      %v2153 = vld [vmem:[%s2148 + $0x20] sm:$0xff]
      %v2154 = vld [vmem:[%s2148 + $0x28] sm:$0xff]
      %v2155 = vld [vmem:[%s2148 + $0x30] sm:$0xff]
      %v2156 = vld [vmem:[%s2148 + $0x38] sm:$0xff]
      %v2157 = vld [vmem:[%s2148 + $0x40] sm:$0xff]
      %v2158 = vld [vmem:[%s2148 + $0x48] sm:$0xff]
      %v2159 = vld [vmem:[%s2148 + $0x50] sm:$0xff]
      %v2160 = vld [vmem:[%s2148 + $0x58] sm:$0xff]
      %v2161 = vld [vmem:[%s2148 + $0x60] sm:$0xff]
      %v2162 = vld [vmem:[%s2148 + $0x68] sm:$0xff]
      %v2163 = vld [vmem:[%s2148 + $0x70] sm:$0xff]
      %v2164 = vld [vmem:[%s2148 + $0x78] sm:$0xff]
      %v2165 = vld [vmem:[%s2148 + $0x80] sm:$0xff]
      %v2166 = vld [vmem:[%s2148 + $0x88] sm:$0xff]
      %v2167 = vld [vmem:[%s2148 + $0x90] sm:$0xff]
      %v2168 = vld [vmem:[%s2148 + $0x98] sm:$0xff]
      %v2169 = vld [vmem:[%s2148 + $0xa0] sm:$0xff]
      %v2170 = vld [vmem:[%s2148 + $0xa8] sm:$0xff]
      %v2171 = vld [vmem:[%s2148 + $0xb0] sm:$0xff]
      %v2172 = vld [vmem:[%s2148 + $0xb8] sm:$0xff]
      %v2173 = vld [vmem:[%s2148 + $0xc0] sm:$0xff]
      %v2174 = vld [vmem:[%s2148 + $0xc8] sm:$0xff]
      %v2175 = vld [vmem:[%s2148 + $0xd0] sm:$0xff]
      %v2176 = vld [vmem:[%s2148 + $0xd8] sm:$0xff]
      %v2177 = vld [vmem:[%s2148 + $0xe0] sm:$0xff]
      %v2178 = vld [vmem:[%s2148 + $0xe8] sm:$0xff]
      %v2179 = vld [vmem:[%s2148 + $0xf0] sm:$0xff]
      %v2180 = vld [vmem:[%s2148 + $0xf8] sm:$0xff]
      %v2181 = vld [vmem:[%s2148 + $0x100] sm:$0xff]
      %v2182 = vld [vmem:[%s2148 + $0x108] sm:$0xff]
      %v2183 = vld [vmem:[%s2148 + $0x110] sm:$0xff]
      %v2184 = vld [vmem:[%s2148 + $0x118] sm:$0xff]
      %v2185 = vld [vmem:[%s2148 + $0x120] sm:$0xff]
      %v2186 = vld [vmem:[%s2148 + $0x128] sm:$0xff]
      %v2187 = vld [vmem:[%s2148 + $0x130] sm:$0xff]
      %v2188 = vld [vmem:[%s2148 + $0x138] sm:$0xff]
      %v2190 = vshrl.u32 %v1805, 16
      %v2192 = vshll.u32 %v1805, 16
      %v2194 = vrot.slane %v2192, 1
      %v2195 = vor.u32 %v2190, %v2194
      %v2197 = vshrl.u32 %v1806, 16
      %v2199 = vshll.u32 %v1806, 16
      %v2201 = vrot.slane %v2199, 1
      %v2202 = vor.u32 %v2197, %v2201
      %v2203 = vshrl.u32 %v1807, 16
      %v2205 = vshll.u32 %v1807, 16
      %v2207 = vrot.slane %v2205, 1
      %v2208 = vor.u32 %v2203, %v2207
      %v2251 = vunpack.c.l.b16 %v2149
      %v2252 = vunpack.c.h.b16 %v2149
      %v2253 = vunpack.c.l.b16 %v2150
      %v2254 = vunpack.c.h.b16 %v2150
      %v2255 = vunpack.c.l.b16 %v2151
      %v2256 = vunpack.c.h.b16 %v2151
      %v2257 = vunpack.c.l.b16 %v2152
      %v2258 = vunpack.c.h.b16 %v2152
      %v2259 = vunpack.c.l.b16 %v2153
      %v2260 = vunpack.c.h.b16 %v2153
      %v2261 = vunpack.c.l.b16 %v2154
      %v2262 = vunpack.c.h.b16 %v2154
      %v2263 = vunpack.c.l.b16 %v2155
      %v2264 = vunpack.c.h.b16 %v2155
      %v2265 = vunpack.c.l.b16 %v2156
      %v2266 = vunpack.c.h.b16 %v2156
      %v2267 = vunpack.c.l.b16 %v2157
      %v2268 = vunpack.c.h.b16 %v2157
      %v2269 = vunpack.c.l.b16 %v2158
      %v2270 = vunpack.c.h.b16 %v2158
      %v2271 = vunpack.c.l.b16 %v2159
      %v2272 = vunpack.c.h.b16 %v2159
      %v2273 = vunpack.c.l.b16 %v2160
      %v2274 = vunpack.c.h.b16 %v2160
      %v2275 = vunpack.c.l.b16 %v2161
      %v2276 = vunpack.c.h.b16 %v2161
      %v2277 = vunpack.c.l.b16 %v2162
      %v2278 = vunpack.c.h.b16 %v2162
      %v2279 = vunpack.c.l.b16 %v2163
      %v2280 = vunpack.c.h.b16 %v2163
      %v2281 = vunpack.c.l.b16 %v2164
      %v2282 = vunpack.c.h.b16 %v2164
      %v2283 = vunpack.c.l.b16 %v2165
      %v2284 = vunpack.c.h.b16 %v2165
      %v2285 = vunpack.c.l.b16 %v2166
      %v2286 = vunpack.c.h.b16 %v2166
      %v2287 = vunpack.c.l.b16 %v2167
      %v2288 = vunpack.c.h.b16 %v2167
      %v2289 = vunpack.c.l.b16 %v2168
      %v2290 = vunpack.c.h.b16 %v2168
      %v2291 = vunpack.c.l.b16 %v2169
      %v2292 = vunpack.c.h.b16 %v2169
      %v2293 = vunpack.c.l.b16 %v2170
      %v2294 = vunpack.c.h.b16 %v2170
      %v2295 = vunpack.c.l.b16 %v2171
      %v2296 = vunpack.c.h.b16 %v2171
      %v2297 = vunpack.c.l.b16 %v2172
      %v2298 = vunpack.c.h.b16 %v2172
      %v2299 = vunpack.c.l.b16 %v2173
      %v2300 = vunpack.c.h.b16 %v2173
      %v2301 = vunpack.c.l.b16 %v2174
      %v2302 = vunpack.c.h.b16 %v2174
      %v2303 = vunpack.c.l.b16 %v2175
      %v2304 = vunpack.c.h.b16 %v2175
      %v2305 = vunpack.c.l.b16 %v2176
      %v2306 = vunpack.c.h.b16 %v2176
      %v2307 = vunpack.c.l.b16 %v2177
      %v2308 = vunpack.c.h.b16 %v2177
      %v2309 = vunpack.c.l.b16 %v2178
      %v2310 = vunpack.c.h.b16 %v2178
      %v2311 = vunpack.c.l.b16 %v2179
      %v2312 = vunpack.c.h.b16 %v2179
      %v2313 = vunpack.c.l.b16 %v2180
      %v2314 = vunpack.c.h.b16 %v2180
      %v2315 = vunpack.c.l.b16 %v2181
      %v2316 = vunpack.c.h.b16 %v2181
      %v2317 = vunpack.c.l.b16 %v2182
      %v2318 = vunpack.c.h.b16 %v2182
      %v2319 = vunpack.c.l.b16 %v2183
      %v2320 = vunpack.c.h.b16 %v2183
      %v2321 = vunpack.c.l.b16 %v2184
      %v2322 = vunpack.c.h.b16 %v2184
      %v2323 = vunpack.c.l.b16 %v2185
      %v2324 = vunpack.c.h.b16 %v2185
      %v2325 = vunpack.c.l.b16 %v2186
      %v2326 = vunpack.c.h.b16 %v2186
      %v2327 = vunpack.c.l.b16 %v2187
      %v2328 = vunpack.c.h.b16 %v2187
      %v2329 = vunpack.c.l.b16 %v2188
      %v2330 = vunpack.c.h.b16 %v2188
      %v2331 = vpack.c.b16 %v2253, %v2251
      %v2332 = vpack.c.b16 %v2254, %v2252
      %v2333 = vpack.c.b16 %v2257, %v2255
      %v2334 = vpack.c.b16 %v2258, %v2256
      %v2335 = vpack.c.b16 %v2261, %v2259
      %v2336 = vpack.c.b16 %v2262, %v2260
      %v2337 = vpack.c.b16 %v2265, %v2263
      %v2338 = vpack.c.b16 %v2266, %v2264
      %v2339 = vpack.c.b16 %v2269, %v2267
      %v2340 = vpack.c.b16 %v2270, %v2268
      %v2341 = vpack.c.b16 %v2273, %v2271
      %v2342 = vpack.c.b16 %v2274, %v2272
      %v2343 = vpack.c.b16 %v2277, %v2275
      %v2344 = vpack.c.b16 %v2278, %v2276
      %v2345 = vpack.c.b16 %v2281, %v2279
      %v2346 = vpack.c.b16 %v2282, %v2280
      %v2347 = vpack.c.b16 %v2285, %v2283
      %v2348 = vpack.c.b16 %v2286, %v2284
      %v2349 = vpack.c.b16 %v2289, %v2287
      %v2350 = vpack.c.b16 %v2290, %v2288
      %v2351 = vpack.c.b16 %v2293, %v2291
      %v2352 = vpack.c.b16 %v2294, %v2292
      %v2353 = vpack.c.b16 %v2297, %v2295
      %v2354 = vpack.c.b16 %v2298, %v2296
      %v2355 = vpack.c.b16 %v2301, %v2299
      %v2356 = vpack.c.b16 %v2302, %v2300
      %v2357 = vpack.c.b16 %v2305, %v2303
      %v2358 = vpack.c.b16 %v2306, %v2304
      %v2359 = vpack.c.b16 %v2309, %v2307
      %v2360 = vpack.c.b16 %v2310, %v2308
      %v2361 = vpack.c.b16 %v2313, %v2311
      %v2362 = vpack.c.b16 %v2314, %v2312
      %v2363 = vpack.c.b16 %v2317, %v2315
      %v2364 = vpack.c.b16 %v2318, %v2316
      %v2365 = vpack.c.b16 %v2321, %v2319
      %v2366 = vpack.c.b16 %v2322, %v2320
      %v2367 = vpack.c.b16 %v2325, %v2323
      %v2368 = vpack.c.b16 %v2326, %v2324
      %v2369 = vpack.c.b16 %v2329, %v2327
      %v2370 = vpack.c.b16 %v2330, %v2328
      %v2412 = vsel %vm2049, %v2208, 0
      %2414 = vmatprep.subr.bf16.mxu0 %v2346
      %2415 = vmatpush1.bf16.msra.mxu0 %v2345
      %2416 = vmatprep.subr.bf16.mxu0 %v2344
      %2417 = vmatpush1.bf16.msra.mxu0 %v2343
      %2418 = vmatprep.subr.bf16.mxu0 %v2342
      %2419 = vmatpush1.bf16.msra.mxu0 %v2341
      %2420 = vmatprep.subr.bf16.mxu0 %v2340
      %2421 = vmatpush1.bf16.msra.mxu0 %v2339
      %2422 = vmatprep.subr.bf16.mxu0 %v2338
      %2423 = vmatpush1.bf16.msra.mxu0 %v2337
      %2424 = vmatprep.subr.bf16.mxu0 %v2336
      %2425 = vmatpush1.bf16.msra.mxu0 %v2335
      %2426 = vmatprep.subr.bf16.mxu0 %v2334
      %2427 = vmatpush1.bf16.msra.mxu0 %v2333
      %2428 = vmatprep.subr.bf16.mxu0 %v2332
      %2429 = vmatpush1.bf16.msra.mxu0 %v2331
      %2430 = vmatprep.subr.bf16.mxu0 %v2362
      %2431 = vmatpush2.bf16.msra.mxu0 %v2361
      %2432 = vmatprep.subr.bf16.mxu0 %v2360
      %2433 = vmatpush2.bf16.msra.mxu0 %v2359
      %2434 = vmatprep.subr.bf16.mxu0 %v2358
      %2435 = vmatpush2.bf16.msra.mxu0 %v2357
      %2436 = vmatprep.subr.bf16.mxu0 %v2356
      %2437 = vmatpush2.bf16.msra.mxu0 %v2355
      %2438 = vmatprep.subr.bf16.mxu0 %v2354
      %2439 = vmatpush2.bf16.msra.mxu0 %v2353
      %2440 = vmatprep.subr.bf16.mxu0 %v2352
      %2441 = vmatpush2.bf16.msra.mxu0 %v2351
      %2442 = vmatprep.subr.bf16.mxu0 %v2350
      %2443 = vmatpush2.bf16.msra.mxu0 %v2349
      %2444 = vmatprep.subr.bf16.mxu0 %v2348
      %2445 = vmatpush2.bf16.msra.mxu0 %v2347
      %2446 = vmatprep.mubr.bf16.mxu0 %v2202
      %2447 = vmatmul.mubr.bf16.gmra.mxu0 %v2195
      %v2448 = vpop.f32.mrf.mxu0
      %v2449 = vadd.f32 0.0, %v2448
      %v2450 = vpop.f32.mrf.mxu0
      %v2451 = vadd.f32 0.0, %v2450
      %v2452 = vpop.f32.mrf.mxu0
      %v2453 = vpop.f32.mrf.mxu0
      %2454 = vdwg.mxu0
      %2455 = vmatprep.subr.bf16.mxu0 0
      %2456 = vmatpush1.bf16.msra.mxu0 0
      %2457 = vmatprep.subr.bf16.mxu0 0
      %2458 = vmatpush1.bf16.msra.mxu0 0
      %2459 = vmatprep.subr.bf16.mxu0 0
      %2460 = vmatpush1.bf16.msra.mxu0 0
      %2461 = vmatprep.subr.bf16.mxu0 0
      %2462 = vmatpush1.bf16.msra.mxu0 0
      %2463 = vmatprep.subr.bf16.mxu0 %v2370
      %2464 = vmatpush1.bf16.msra.mxu0 %v2369
      %2465 = vmatprep.subr.bf16.mxu0 %v2368
      %2466 = vmatpush1.bf16.msra.mxu0 %v2367
      %2467 = vmatprep.subr.bf16.mxu0 %v2366
      %2468 = vmatpush1.bf16.msra.mxu0 %v2365
      %2469 = vmatprep.subr.bf16.mxu0 %v2364
      %2470 = vmatpush1.bf16.msra.mxu0 %v2363
      %2471 = vmatprep.subr.bf16.mxu0 0
      %2472 = vmatpush2.bf16.msra.mxu0 0
      %2473 = vmatprep.subr.bf16.mxu0 0
      %2474 = vmatpush2.bf16.msra.mxu0 0
      %2475 = vmatprep.subr.bf16.mxu0 0
      %2476 = vmatpush2.bf16.msra.mxu0 0
      %2477 = vmatprep.subr.bf16.mxu0 0
      %2478 = vmatpush2.bf16.msra.mxu0 0
      %2479 = vmatprep.subr.bf16.mxu0 0
      %2480 = vmatpush2.bf16.msra.mxu0 0
      %2481 = vmatprep.subr.bf16.mxu0 0
      %2482 = vmatpush2.bf16.msra.mxu0 0
      %2483 = vmatprep.subr.bf16.mxu0 0
      %2484 = vmatpush2.bf16.msra.mxu0 0
      %2485 = vmatprep.subr.bf16.mxu0 0
      %2486 = vmatpush2.bf16.msra.mxu0 0
      %2487 = vmatprep.mubr.bf16.mxu0 0
      %2488 = vmatmul.mubr.bf16.gmra.mxu0 %v2412
      %v2489 = vpop.f32.mrf.mxu0
      %v2490 = vadd.f32 %v2449, %v2489
      %v2491 = vpop.f32.mrf.mxu0
      %v2492 = vadd.f32 %v2451, %v2491
      %v2493 = vpop.f32.mrf.mxu0
      %v2494 = vpop.f32.mrf.mxu0
      %2495 = vdwg.mxu0
      %v2496 = vadd.f32 %v2146, %v2490
      %v2497 = vadd.f32 %v2147, %v2492
      %s2498 = scalar_lea.vmem %s8, 640
      %v2499 = vld [vmem:[%s2498] sm:$0xff]
      %v2500 = vld [vmem:[%s2498 + $0x8] sm:$0xff]
      %v2501 = vld [vmem:[%s2498 + $0x10] sm:$0xff]
      %v2502 = vld [vmem:[%s2498 + $0x18] sm:$0xff]
      %v2503 = vld [vmem:[%s2498 + $0x20] sm:$0xff]
      %v2504 = vld [vmem:[%s2498 + $0x28] sm:$0xff]
      %v2505 = vld [vmem:[%s2498 + $0x30] sm:$0xff]
      %v2506 = vld [vmem:[%s2498 + $0x38] sm:$0xff]
      %v2507 = vld [vmem:[%s2498 + $0x40] sm:$0xff]
      %v2508 = vld [vmem:[%s2498 + $0x48] sm:$0xff]
      %v2509 = vld [vmem:[%s2498 + $0x50] sm:$0xff]
      %v2510 = vld [vmem:[%s2498 + $0x58] sm:$0xff]
      %v2511 = vld [vmem:[%s2498 + $0x60] sm:$0xff]
      %v2512 = vld [vmem:[%s2498 + $0x68] sm:$0xff]
      %v2513 = vld [vmem:[%s2498 + $0x70] sm:$0xff]
      %v2514 = vld [vmem:[%s2498 + $0x78] sm:$0xff]
      %v2515 = vld [vmem:[%s2498 + $0x80] sm:$0xff]
      %v2516 = vld [vmem:[%s2498 + $0x88] sm:$0xff]
      %v2517 = vld [vmem:[%s2498 + $0x90] sm:$0xff]
      %v2518 = vld [vmem:[%s2498 + $0x98] sm:$0xff]
      %v2519 = vld [vmem:[%s2498 + $0xa0] sm:$0xff]
      %v2520 = vld [vmem:[%s2498 + $0xa8] sm:$0xff]
      %v2521 = vld [vmem:[%s2498 + $0xb0] sm:$0xff]
      %v2522 = vld [vmem:[%s2498 + $0xb8] sm:$0xff]
      %v2523 = vld [vmem:[%s2498 + $0xc0] sm:$0xff]
      %v2524 = vld [vmem:[%s2498 + $0xc8] sm:$0xff]
      %v2525 = vld [vmem:[%s2498 + $0xd0] sm:$0xff]
      %v2526 = vld [vmem:[%s2498 + $0xd8] sm:$0xff]
      %v2527 = vld [vmem:[%s2498 + $0xe0] sm:$0xff]
      %v2528 = vld [vmem:[%s2498 + $0xe8] sm:$0xff]
      %v2529 = vld [vmem:[%s2498 + $0xf0] sm:$0xff]
      %v2530 = vld [vmem:[%s2498 + $0xf8] sm:$0xff]
      %v2531 = vld [vmem:[%s2498 + $0x100] sm:$0xff]
      %v2532 = vld [vmem:[%s2498 + $0x108] sm:$0xff]
      %v2533 = vld [vmem:[%s2498 + $0x110] sm:$0xff]
      %v2534 = vld [vmem:[%s2498 + $0x118] sm:$0xff]
      %v2535 = vld [vmem:[%s2498 + $0x120] sm:$0xff]
      %v2536 = vld [vmem:[%s2498 + $0x128] sm:$0xff]
      %v2537 = vld [vmem:[%s2498 + $0x130] sm:$0xff]
      %v2538 = vld [vmem:[%s2498 + $0x138] sm:$0xff]
      %v2542 = vrot.slane %v1805, 1
      %v2543 = vrot.slane %v1806, 1
      %v2544 = vrot.slane %v1807, 1
      %v2587 = vunpack.c.l.b16 %v2499
      %v2588 = vunpack.c.h.b16 %v2499
      %v2589 = vunpack.c.l.b16 %v2500
      %v2590 = vunpack.c.h.b16 %v2500
      %v2591 = vunpack.c.l.b16 %v2501
      %v2592 = vunpack.c.h.b16 %v2501
      %v2593 = vunpack.c.l.b16 %v2502
      %v2594 = vunpack.c.h.b16 %v2502
      %v2595 = vunpack.c.l.b16 %v2503
      %v2596 = vunpack.c.h.b16 %v2503
      %v2597 = vunpack.c.l.b16 %v2504
      %v2598 = vunpack.c.h.b16 %v2504
      %v2599 = vunpack.c.l.b16 %v2505
      %v2600 = vunpack.c.h.b16 %v2505
      %v2601 = vunpack.c.l.b16 %v2506
      %v2602 = vunpack.c.h.b16 %v2506
      %v2603 = vunpack.c.l.b16 %v2507
      %v2604 = vunpack.c.h.b16 %v2507
      %v2605 = vunpack.c.l.b16 %v2508
      %v2606 = vunpack.c.h.b16 %v2508
      %v2607 = vunpack.c.l.b16 %v2509
      %v2608 = vunpack.c.h.b16 %v2509
      %v2609 = vunpack.c.l.b16 %v2510
      %v2610 = vunpack.c.h.b16 %v2510
      %v2611 = vunpack.c.l.b16 %v2511
      %v2612 = vunpack.c.h.b16 %v2511
      %v2613 = vunpack.c.l.b16 %v2512
      %v2614 = vunpack.c.h.b16 %v2512
      %v2615 = vunpack.c.l.b16 %v2513
      %v2616 = vunpack.c.h.b16 %v2513
      %v2617 = vunpack.c.l.b16 %v2514
      %v2618 = vunpack.c.h.b16 %v2514
      %v2619 = vunpack.c.l.b16 %v2515
      %v2620 = vunpack.c.h.b16 %v2515
      %v2621 = vunpack.c.l.b16 %v2516
      %v2622 = vunpack.c.h.b16 %v2516
      %v2623 = vunpack.c.l.b16 %v2517
      %v2624 = vunpack.c.h.b16 %v2517
      %v2625 = vunpack.c.l.b16 %v2518
      %v2626 = vunpack.c.h.b16 %v2518
      %v2627 = vunpack.c.l.b16 %v2519
      %v2628 = vunpack.c.h.b16 %v2519
      %v2629 = vunpack.c.l.b16 %v2520
      %v2630 = vunpack.c.h.b16 %v2520
      %v2631 = vunpack.c.l.b16 %v2521
      %v2632 = vunpack.c.h.b16 %v2521
      %v2633 = vunpack.c.l.b16 %v2522
      %v2634 = vunpack.c.h.b16 %v2522
      %v2635 = vunpack.c.l.b16 %v2523
      %v2636 = vunpack.c.h.b16 %v2523
      %v2637 = vunpack.c.l.b16 %v2524
      %v2638 = vunpack.c.h.b16 %v2524
      %v2639 = vunpack.c.l.b16 %v2525
      %v2640 = vunpack.c.h.b16 %v2525
      %v2641 = vunpack.c.l.b16 %v2526
      %v2642 = vunpack.c.h.b16 %v2526
      %v2643 = vunpack.c.l.b16 %v2527
      %v2644 = vunpack.c.h.b16 %v2527
      %v2645 = vunpack.c.l.b16 %v2528
      %v2646 = vunpack.c.h.b16 %v2528
      %v2647 = vunpack.c.l.b16 %v2529
      %v2648 = vunpack.c.h.b16 %v2529
      %v2649 = vunpack.c.l.b16 %v2530
      %v2650 = vunpack.c.h.b16 %v2530
      %v2651 = vunpack.c.l.b16 %v2531
      %v2652 = vunpack.c.h.b16 %v2531
      %v2653 = vunpack.c.l.b16 %v2532
      %v2654 = vunpack.c.h.b16 %v2532
      %v2655 = vunpack.c.l.b16 %v2533
      %v2656 = vunpack.c.h.b16 %v2533
      %v2657 = vunpack.c.l.b16 %v2534
      %v2658 = vunpack.c.h.b16 %v2534
      %v2659 = vunpack.c.l.b16 %v2535
      %v2660 = vunpack.c.h.b16 %v2535
      %v2661 = vunpack.c.l.b16 %v2536
      %v2662 = vunpack.c.h.b16 %v2536
      %v2663 = vunpack.c.l.b16 %v2537
      %v2664 = vunpack.c.h.b16 %v2537
      %v2665 = vunpack.c.l.b16 %v2538
      %v2666 = vunpack.c.h.b16 %v2538
      %v2667 = vpack.c.b16 %v2589, %v2587
      %v2668 = vpack.c.b16 %v2590, %v2588
      %v2669 = vpack.c.b16 %v2593, %v2591
      %v2670 = vpack.c.b16 %v2594, %v2592
      %v2671 = vpack.c.b16 %v2597, %v2595
      %v2672 = vpack.c.b16 %v2598, %v2596
      %v2673 = vpack.c.b16 %v2601, %v2599
      %v2674 = vpack.c.b16 %v2602, %v2600
      %v2675 = vpack.c.b16 %v2605, %v2603
      %v2676 = vpack.c.b16 %v2606, %v2604
      %v2677 = vpack.c.b16 %v2609, %v2607
      %v2678 = vpack.c.b16 %v2610, %v2608
      %v2679 = vpack.c.b16 %v2613, %v2611
      %v2680 = vpack.c.b16 %v2614, %v2612
      %v2681 = vpack.c.b16 %v2617, %v2615
      %v2682 = vpack.c.b16 %v2618, %v2616
      %v2683 = vpack.c.b16 %v2621, %v2619
      %v2684 = vpack.c.b16 %v2622, %v2620
      %v2685 = vpack.c.b16 %v2625, %v2623
      %v2686 = vpack.c.b16 %v2626, %v2624
      %v2687 = vpack.c.b16 %v2629, %v2627
      %v2688 = vpack.c.b16 %v2630, %v2628
      %v2689 = vpack.c.b16 %v2633, %v2631
      %v2690 = vpack.c.b16 %v2634, %v2632
      %v2691 = vpack.c.b16 %v2637, %v2635
      %v2692 = vpack.c.b16 %v2638, %v2636
      %v2693 = vpack.c.b16 %v2641, %v2639
      %v2694 = vpack.c.b16 %v2642, %v2640
      %v2695 = vpack.c.b16 %v2645, %v2643
      %v2696 = vpack.c.b16 %v2646, %v2644
      %v2697 = vpack.c.b16 %v2649, %v2647
      %v2698 = vpack.c.b16 %v2650, %v2648
      %v2699 = vpack.c.b16 %v2653, %v2651
      %v2700 = vpack.c.b16 %v2654, %v2652
      %v2701 = vpack.c.b16 %v2657, %v2655
      %v2702 = vpack.c.b16 %v2658, %v2656
      %v2703 = vpack.c.b16 %v2661, %v2659
      %v2704 = vpack.c.b16 %v2662, %v2660
      %v2705 = vpack.c.b16 %v2665, %v2663
      %v2706 = vpack.c.b16 %v2666, %v2664
      %v2748 = vsel %vm2049, %v2544, 0
      %2750 = vmatprep.subr.bf16.mxu0 %v2682
      %2751 = vmatpush1.bf16.msra.mxu0 %v2681
      %2752 = vmatprep.subr.bf16.mxu0 %v2680
      %2753 = vmatpush1.bf16.msra.mxu0 %v2679
      %2754 = vmatprep.subr.bf16.mxu0 %v2678
      %2755 = vmatpush1.bf16.msra.mxu0 %v2677
      %2756 = vmatprep.subr.bf16.mxu0 %v2676
      %2757 = vmatpush1.bf16.msra.mxu0 %v2675
      %2758 = vmatprep.subr.bf16.mxu0 %v2674
      %2759 = vmatpush1.bf16.msra.mxu0 %v2673
      %2760 = vmatprep.subr.bf16.mxu0 %v2672
      %2761 = vmatpush1.bf16.msra.mxu0 %v2671
      %2762 = vmatprep.subr.bf16.mxu0 %v2670
      %2763 = vmatpush1.bf16.msra.mxu0 %v2669
      %2764 = vmatprep.subr.bf16.mxu0 %v2668
      %2765 = vmatpush1.bf16.msra.mxu0 %v2667
      %2766 = vmatprep.subr.bf16.mxu0 %v2698
      %2767 = vmatpush2.bf16.msra.mxu0 %v2697
      %2768 = vmatprep.subr.bf16.mxu0 %v2696
      %2769 = vmatpush2.bf16.msra.mxu0 %v2695
      %2770 = vmatprep.subr.bf16.mxu0 %v2694
      %2771 = vmatpush2.bf16.msra.mxu0 %v2693
      %2772 = vmatprep.subr.bf16.mxu0 %v2692
      %2773 = vmatpush2.bf16.msra.mxu0 %v2691
      %2774 = vmatprep.subr.bf16.mxu0 %v2690
      %2775 = vmatpush2.bf16.msra.mxu0 %v2689
      %2776 = vmatprep.subr.bf16.mxu0 %v2688
      %2777 = vmatpush2.bf16.msra.mxu0 %v2687
      %2778 = vmatprep.subr.bf16.mxu0 %v2686
      %2779 = vmatpush2.bf16.msra.mxu0 %v2685
      %2780 = vmatprep.subr.bf16.mxu0 %v2684
      %2781 = vmatpush2.bf16.msra.mxu0 %v2683
      %2782 = vmatprep.mubr.bf16.mxu0 %v2543
      %2783 = vmatmul.mubr.bf16.gmra.mxu0 %v2542
      %v2784 = vpop.f32.mrf.mxu0
      %v2785 = vadd.f32 0.0, %v2784
      %v2786 = vpop.f32.mrf.mxu0
      %v2787 = vadd.f32 0.0, %v2786
      %v2788 = vpop.f32.mrf.mxu0
      %v2789 = vpop.f32.mrf.mxu0
      %2790 = vdwg.mxu0
      %2791 = vmatprep.subr.bf16.mxu0 0
      %2792 = vmatpush1.bf16.msra.mxu0 0
      %2793 = vmatprep.subr.bf16.mxu0 0
      %2794 = vmatpush1.bf16.msra.mxu0 0
      %2795 = vmatprep.subr.bf16.mxu0 0
      %2796 = vmatpush1.bf16.msra.mxu0 0
      %2797 = vmatprep.subr.bf16.mxu0 0
      %2798 = vmatpush1.bf16.msra.mxu0 0
      %2799 = vmatprep.subr.bf16.mxu0 %v2706
      %2800 = vmatpush1.bf16.msra.mxu0 %v2705
      %2801 = vmatprep.subr.bf16.mxu0 %v2704
      %2802 = vmatpush1.bf16.msra.mxu0 %v2703
      %2803 = vmatprep.subr.bf16.mxu0 %v2702
      %2804 = vmatpush1.bf16.msra.mxu0 %v2701
      %2805 = vmatprep.subr.bf16.mxu0 %v2700
      %2806 = vmatpush1.bf16.msra.mxu0 %v2699
      %2807 = vmatprep.subr.bf16.mxu0 0
      %2808 = vmatpush2.bf16.msra.mxu0 0
      %2809 = vmatprep.subr.bf16.mxu0 0
      %2810 = vmatpush2.bf16.msra.mxu0 0
      %2811 = vmatprep.subr.bf16.mxu0 0
      %2812 = vmatpush2.bf16.msra.mxu0 0
      %2813 = vmatprep.subr.bf16.mxu0 0
      %2814 = vmatpush2.bf16.msra.mxu0 0
      %2815 = vmatprep.subr.bf16.mxu0 0
      %2816 = vmatpush2.bf16.msra.mxu0 0
      %2817 = vmatprep.subr.bf16.mxu0 0
      %2818 = vmatpush2.bf16.msra.mxu0 0
      %2819 = vmatprep.subr.bf16.mxu0 0
      %2820 = vmatpush2.bf16.msra.mxu0 0
      %2821 = vmatprep.subr.bf16.mxu0 0
      %2822 = vmatpush2.bf16.msra.mxu0 0
      %2823 = vmatprep.mubr.bf16.mxu0 0
      %2824 = vmatmul.mubr.bf16.gmra.mxu0 %v2748
      %v2825 = vpop.f32.mrf.mxu0
      %v2826 = vadd.f32 %v2785, %v2825
      %v2827 = vpop.f32.mrf.mxu0
      %v2828 = vadd.f32 %v2787, %v2827
      %v2829 = vpop.f32.mrf.mxu0
      %v2830 = vpop.f32.mrf.mxu0
      %2831 = vdwg.mxu0
      %v2832 = vadd.f32 %v2496, %v2826
      %v2833 = vadd.f32 %v2497, %v2828
      %v2834 = vadd.f32 %v2832, %v1750
      %v2835 = vadd.f32 %v2833, %v1752
      %v2836 = vmax.f32 %v2834, 0.0
      %v2837 = vmax.f32 %v2835, 0.0
      %v2838 = vpack.c.bf16 %v2836, %v2836
      %v2839 = vpack.c.bf16 %v2837, %v2837
      %2842 = vrot.lane.b32.xlu0 %v2838, 32
      %v2843 = vpop.permute.xlu0 %2842
      %2844 = vrot.lane.b32.xlu0 %v2839, 32
      %v2845 = vpop.permute.xlu0 %2844
      %v2846 = vsel %vm1766, %v2843, %v2845
      %v2848 = vsel %vm1768, 0, %v2843
      %v2850 = vsel %vm1768, %v2845, 0
      %v2851 = vshrl.u32 %v2848, 16
      %v2853 = vrot.slane %v2851, 7
      %v2854 = vshll.u32 %v2848, 16
      %v2856 = vor.u32 %v2853, %v2854
      %v2858 = vshrl.u32 %v2846, 16
      %v2860 = vrot.slane %v2858, 7
      %v2861 = vshll.u32 %v2846, 16
      %v2863 = vor.u32 %v2860, %v2861
      %v2864 = vshrl.u32 %v2850, 16
      %v2866 = vrot.slane %v2864, 7
      %v2867 = vshll.u32 %v2850, 16
      %v2869 = vor.u32 %v2866, %v2867
      %v2873 = vsel %vm1798, 0, %v2856
      %v2874 = vsel %vm1798, 0, %v2863
      %v2875 = vsel %vm1798, 0, %v2869
      %v2876 = vsel %vm1804, %v2873, 0
      %v2877 = vsel %vm1804, %v2874, 0
      %v2878 = vsel %vm1804, %v2875, 0
      %v2879 = vld [vmem:[%s11] sm:$0x3]
      %v2880 = vld [vmem:[%s10] sm:$0xff]
      %v2881 = vld [vmem:[%s10 + $0x8] sm:$0xff]
      %v2882 = vld [vmem:[%s10 + $0x10] sm:$0xff]
      %v2883 = vld [vmem:[%s10 + $0x18] sm:$0xff]
      %v2884 = vld [vmem:[%s10 + $0x20] sm:$0xff]
      %v2885 = vld [vmem:[%s10 + $0x28] sm:$0xff]
      %v2886 = vld [vmem:[%s10 + $0x30] sm:$0xff]
      %v2887 = vld [vmem:[%s10 + $0x38] sm:$0xff]
      %v2888 = vld [vmem:[%s10 + $0x40] sm:$0xff]
      %v2889 = vld [vmem:[%s10 + $0x48] sm:$0xff]
      %v2890 = vld [vmem:[%s10 + $0x50] sm:$0xff]
      %v2891 = vld [vmem:[%s10 + $0x58] sm:$0xff]
      %v2892 = vld [vmem:[%s10 + $0x60] sm:$0xff]
      %v2893 = vld [vmem:[%s10 + $0x68] sm:$0xff]
      %v2894 = vld [vmem:[%s10 + $0x70] sm:$0xff]
      %v2895 = vld [vmem:[%s10 + $0x78] sm:$0xff]
      %v2896 = vld [vmem:[%s10 + $0x80] sm:$0xff]
      %v2897 = vld [vmem:[%s10 + $0x88] sm:$0xff]
      %v2898 = vld [vmem:[%s10 + $0x90] sm:$0xff]
      %v2899 = vld [vmem:[%s10 + $0x98] sm:$0xff]
      %v2900 = vld [vmem:[%s10 + $0xa0] sm:$0xff]
      %v2901 = vld [vmem:[%s10 + $0xa8] sm:$0xff]
      %v2902 = vld [vmem:[%s10 + $0xb0] sm:$0xff]
      %v2903 = vld [vmem:[%s10 + $0xb8] sm:$0xff]
      %v2904 = vld [vmem:[%s10 + $0xc0] sm:$0xff]
      %v2905 = vld [vmem:[%s10 + $0xc8] sm:$0xff]
      %v2906 = vld [vmem:[%s10 + $0xd0] sm:$0xff]
      %v2907 = vld [vmem:[%s10 + $0xd8] sm:$0xff]
      %v2908 = vld [vmem:[%s10 + $0xe0] sm:$0xff]
      %v2909 = vld [vmem:[%s10 + $0xe8] sm:$0xff]
      %v2910 = vld [vmem:[%s10 + $0xf0] sm:$0xff]
      %v2911 = vld [vmem:[%s10 + $0xf8] sm:$0xff]
      %v2912 = vld [vmem:[%s10 + $0x100] sm:$0xff]
      %v2913 = vld [vmem:[%s10 + $0x108] sm:$0xff]
      %v2914 = vld [vmem:[%s10 + $0x110] sm:$0xff]
      %v2915 = vld [vmem:[%s10 + $0x118] sm:$0xff]
      %v2916 = vld [vmem:[%s10 + $0x120] sm:$0xff]
      %v2917 = vld [vmem:[%s10 + $0x128] sm:$0xff]
      %v2918 = vld [vmem:[%s10 + $0x130] sm:$0xff]
      %v2919 = vld [vmem:[%s10 + $0x138] sm:$0xff]
      %v2960 = vunpack.c.l.b16 %v2880
      %v2961 = vunpack.c.h.b16 %v2880
      %v2962 = vunpack.c.l.b16 %v2881
      %v2963 = vunpack.c.h.b16 %v2881
      %v2964 = vunpack.c.l.b16 %v2882
      %v2965 = vunpack.c.h.b16 %v2882
      %v2966 = vunpack.c.l.b16 %v2883
      %v2967 = vunpack.c.h.b16 %v2883
      %v2968 = vunpack.c.l.b16 %v2884
      %v2969 = vunpack.c.h.b16 %v2884
      %v2970 = vunpack.c.l.b16 %v2885
      %v2971 = vunpack.c.h.b16 %v2885
      %v2972 = vunpack.c.l.b16 %v2886
      %v2973 = vunpack.c.h.b16 %v2886
      %v2974 = vunpack.c.l.b16 %v2887
      %v2975 = vunpack.c.h.b16 %v2887
      %v2976 = vunpack.c.l.b16 %v2888
      %v2977 = vunpack.c.h.b16 %v2888
      %v2978 = vunpack.c.l.b16 %v2889
      %v2979 = vunpack.c.h.b16 %v2889
      %v2980 = vunpack.c.l.b16 %v2890
      %v2981 = vunpack.c.h.b16 %v2890
      %v2982 = vunpack.c.l.b16 %v2891
      %v2983 = vunpack.c.h.b16 %v2891
      %v2984 = vunpack.c.l.b16 %v2892
      %v2985 = vunpack.c.h.b16 %v2892
      %v2986 = vunpack.c.l.b16 %v2893
      %v2987 = vunpack.c.h.b16 %v2893
      %v2988 = vunpack.c.l.b16 %v2894
      %v2989 = vunpack.c.h.b16 %v2894
      %v2990 = vunpack.c.l.b16 %v2895
      %v2991 = vunpack.c.h.b16 %v2895
      %v2992 = vunpack.c.l.b16 %v2896
      %v2993 = vunpack.c.h.b16 %v2896
      %v2994 = vunpack.c.l.b16 %v2897
      %v2995 = vunpack.c.h.b16 %v2897
      %v2996 = vunpack.c.l.b16 %v2898
      %v2997 = vunpack.c.h.b16 %v2898
      %v2998 = vunpack.c.l.b16 %v2899
      %v2999 = vunpack.c.h.b16 %v2899
      %v3000 = vunpack.c.l.b16 %v2900
      %v3001 = vunpack.c.h.b16 %v2900
      %v3002 = vunpack.c.l.b16 %v2901
      %v3003 = vunpack.c.h.b16 %v2901
      %v3004 = vunpack.c.l.b16 %v2902
      %v3005 = vunpack.c.h.b16 %v2902
      %v3006 = vunpack.c.l.b16 %v2903
      %v3007 = vunpack.c.h.b16 %v2903
      %v3008 = vunpack.c.l.b16 %v2904
      %v3009 = vunpack.c.h.b16 %v2904
      %v3010 = vunpack.c.l.b16 %v2905
      %v3011 = vunpack.c.h.b16 %v2905
      %v3012 = vunpack.c.l.b16 %v2906
      %v3013 = vunpack.c.h.b16 %v2906
      %v3014 = vunpack.c.l.b16 %v2907
      %v3015 = vunpack.c.h.b16 %v2907
      %v3016 = vunpack.c.l.b16 %v2908
      %v3017 = vunpack.c.h.b16 %v2908
      %v3018 = vunpack.c.l.b16 %v2909
      %v3019 = vunpack.c.h.b16 %v2909
      %v3020 = vunpack.c.l.b16 %v2910
      %v3021 = vunpack.c.h.b16 %v2910
      %v3022 = vunpack.c.l.b16 %v2911
      %v3023 = vunpack.c.h.b16 %v2911
      %v3024 = vunpack.c.l.b16 %v2912
      %v3025 = vunpack.c.h.b16 %v2912
      %v3026 = vunpack.c.l.b16 %v2913
      %v3027 = vunpack.c.h.b16 %v2913
      %v3028 = vunpack.c.l.b16 %v2914
      %v3029 = vunpack.c.h.b16 %v2914
      %v3030 = vunpack.c.l.b16 %v2915
      %v3031 = vunpack.c.h.b16 %v2915
      %v3032 = vunpack.c.l.b16 %v2916
      %v3033 = vunpack.c.h.b16 %v2916
      %v3034 = vunpack.c.l.b16 %v2917
      %v3035 = vunpack.c.h.b16 %v2917
      %v3036 = vunpack.c.l.b16 %v2918
      %v3037 = vunpack.c.h.b16 %v2918
      %v3038 = vunpack.c.l.b16 %v2919
      %v3039 = vunpack.c.h.b16 %v2919
      %v3040 = vpack.c.b16 %v2962, %v2960
      %v3041 = vpack.c.b16 %v2963, %v2961
      %v3042 = vpack.c.b16 %v2966, %v2964
      %v3043 = vpack.c.b16 %v2967, %v2965
      %v3044 = vpack.c.b16 %v2970, %v2968
      %v3045 = vpack.c.b16 %v2971, %v2969
      %v3046 = vpack.c.b16 %v2974, %v2972
      %v3047 = vpack.c.b16 %v2975, %v2973
      %v3048 = vpack.c.b16 %v2978, %v2976
      %v3049 = vpack.c.b16 %v2979, %v2977
      %v3050 = vpack.c.b16 %v2982, %v2980
      %v3051 = vpack.c.b16 %v2983, %v2981
      %v3052 = vpack.c.b16 %v2986, %v2984
      %v3053 = vpack.c.b16 %v2987, %v2985
      %v3054 = vpack.c.b16 %v2990, %v2988
      %v3055 = vpack.c.b16 %v2991, %v2989
      %v3056 = vpack.c.b16 %v2994, %v2992
      %v3057 = vpack.c.b16 %v2995, %v2993
      %v3058 = vpack.c.b16 %v2998, %v2996
      %v3059 = vpack.c.b16 %v2999, %v2997
      %v3060 = vpack.c.b16 %v3002, %v3000
      %v3061 = vpack.c.b16 %v3003, %v3001
      %v3062 = vpack.c.b16 %v3006, %v3004
      %v3063 = vpack.c.b16 %v3007, %v3005
      %v3064 = vpack.c.b16 %v3010, %v3008
      %v3065 = vpack.c.b16 %v3011, %v3009
      %v3066 = vpack.c.b16 %v3014, %v3012
      %v3067 = vpack.c.b16 %v3015, %v3013
      %v3068 = vpack.c.b16 %v3018, %v3016
      %v3069 = vpack.c.b16 %v3019, %v3017
      %v3070 = vpack.c.b16 %v3022, %v3020
      %v3071 = vpack.c.b16 %v3023, %v3021
      %v3072 = vpack.c.b16 %v3026, %v3024
      %v3073 = vpack.c.b16 %v3027, %v3025
      %v3074 = vpack.c.b16 %v3030, %v3028
      %v3075 = vpack.c.b16 %v3031, %v3029
      %v3076 = vpack.c.b16 %v3034, %v3032
      %v3077 = vpack.c.b16 %v3035, %v3033
      %v3078 = vpack.c.b16 %v3038, %v3036
      %v3079 = vpack.c.b16 %v3039, %v3037
      %v3121 = vsel %vm2049, %v2878, 0
      %3123 = vmatprep.subr.bf16.mxu0 %v3055
      %3124 = vmatpush1.bf16.msra.mxu0 %v3054
      %3125 = vmatprep.subr.bf16.mxu0 %v3053
      %3126 = vmatpush1.bf16.msra.mxu0 %v3052
      %3127 = vmatprep.subr.bf16.mxu0 %v3051
      %3128 = vmatpush1.bf16.msra.mxu0 %v3050
      %3129 = vmatprep.subr.bf16.mxu0 %v3049
      %3130 = vmatpush1.bf16.msra.mxu0 %v3048
      %3131 = vmatprep.subr.bf16.mxu0 %v3047
      %3132 = vmatpush1.bf16.msra.mxu0 %v3046
      %3133 = vmatprep.subr.bf16.mxu0 %v3045
      %3134 = vmatpush1.bf16.msra.mxu0 %v3044
      %3135 = vmatprep.subr.bf16.mxu0 %v3043
      %3136 = vmatpush1.bf16.msra.mxu0 %v3042
      %3137 = vmatprep.subr.bf16.mxu0 %v3041
      %3138 = vmatpush1.bf16.msra.mxu0 %v3040
      %3139 = vmatprep.subr.bf16.mxu0 %v3071
      %3140 = vmatpush2.bf16.msra.mxu0 %v3070
      %3141 = vmatprep.subr.bf16.mxu0 %v3069
      %3142 = vmatpush2.bf16.msra.mxu0 %v3068
      %3143 = vmatprep.subr.bf16.mxu0 %v3067
      %3144 = vmatpush2.bf16.msra.mxu0 %v3066
      %3145 = vmatprep.subr.bf16.mxu0 %v3065
      %3146 = vmatpush2.bf16.msra.mxu0 %v3064
      %3147 = vmatprep.subr.bf16.mxu0 %v3063
      %3148 = vmatpush2.bf16.msra.mxu0 %v3062
      %3149 = vmatprep.subr.bf16.mxu0 %v3061
      %3150 = vmatpush2.bf16.msra.mxu0 %v3060
      %3151 = vmatprep.subr.bf16.mxu0 %v3059
      %3152 = vmatpush2.bf16.msra.mxu0 %v3058
      %3153 = vmatprep.subr.bf16.mxu0 %v3057
      %3154 = vmatpush2.bf16.msra.mxu0 %v3056
      %3155 = vmatprep.mubr.bf16.mxu0 %v2877
      %3156 = vmatmul.mubr.bf16.gmra.mxu0 %v2876
      %v3157 = vpop.f32.mrf.mxu0
      %v3158 = vadd.f32 0.0, %v3157
      %v3159 = vpop.f32.mrf.mxu0
      %v3160 = vadd.f32 0.0, %v3159
      %v3161 = vpop.f32.mrf.mxu0
      %v3162 = vpop.f32.mrf.mxu0
      %3163 = vdwg.mxu0
      %3164 = vmatprep.subr.bf16.mxu0 0
      %3165 = vmatpush1.bf16.msra.mxu0 0
      %3166 = vmatprep.subr.bf16.mxu0 0
      %3167 = vmatpush1.bf16.msra.mxu0 0
      %3168 = vmatprep.subr.bf16.mxu0 0
      %3169 = vmatpush1.bf16.msra.mxu0 0
      %3170 = vmatprep.subr.bf16.mxu0 0
      %3171 = vmatpush1.bf16.msra.mxu0 0
      %3172 = vmatprep.subr.bf16.mxu0 %v3079
      %3173 = vmatpush1.bf16.msra.mxu0 %v3078
      %3174 = vmatprep.subr.bf16.mxu0 %v3077
      %3175 = vmatpush1.bf16.msra.mxu0 %v3076
      %3176 = vmatprep.subr.bf16.mxu0 %v3075
      %3177 = vmatpush1.bf16.msra.mxu0 %v3074
      %3178 = vmatprep.subr.bf16.mxu0 %v3073
      %3179 = vmatpush1.bf16.msra.mxu0 %v3072
      %3180 = vmatprep.subr.bf16.mxu0 0
      %3181 = vmatpush2.bf16.msra.mxu0 0
      %3182 = vmatprep.subr.bf16.mxu0 0
      %3183 = vmatpush2.bf16.msra.mxu0 0
      %3184 = vmatprep.subr.bf16.mxu0 0
      %3185 = vmatpush2.bf16.msra.mxu0 0
      %3186 = vmatprep.subr.bf16.mxu0 0
      %3187 = vmatpush2.bf16.msra.mxu0 0
      %3188 = vmatprep.subr.bf16.mxu0 0
      %3189 = vmatpush2.bf16.msra.mxu0 0
      %3190 = vmatprep.subr.bf16.mxu0 0
      %3191 = vmatpush2.bf16.msra.mxu0 0
      %3192 = vmatprep.subr.bf16.mxu0 0
      %3193 = vmatpush2.bf16.msra.mxu0 0
      %3194 = vmatprep.subr.bf16.mxu0 0
      %3195 = vmatpush2.bf16.msra.mxu0 0
      %3196 = vmatprep.mubr.bf16.mxu0 0
      %3197 = vmatmul.mubr.bf16.gmra.mxu0 %v3121
      %v3198 = vpop.f32.mrf.mxu0
      %v3199 = vadd.f32 %v3158, %v3198
      %v3200 = vpop.f32.mrf.mxu0
      %v3201 = vadd.f32 %v3160, %v3200
      %v3202 = vpop.f32.mrf.mxu0
      %v3203 = vpop.f32.mrf.mxu0
      %3204 = vdwg.mxu0
      %v3206 = vlaneseq
      %v3207 = vshrl.u32 %v3206, 7
      %v3208 = vsub.s32 0, %v3207
      %v3209 = vrot.slane %v2879, %v3208
      %v3210 = vlaneseq
      %v3211 = vshrl.u32 %v3210, 7
      %v3212 = vsub.s32 1, %v3211
      %v3213 = vrot.slane %v2879, %v3212
      %v3216 = vadd.f32 %v3209, %v3199
      %v3217 = vadd.f32 %v3213, %v3201
      %s3218 = scalar_lea.vmem %s10, 320
      %v3219 = vld [vmem:[%s3218] sm:$0xff]
      %v3220 = vld [vmem:[%s3218 + $0x8] sm:$0xff]
      %v3221 = vld [vmem:[%s3218 + $0x10] sm:$0xff]
      %v3222 = vld [vmem:[%s3218 + $0x18] sm:$0xff]
      %v3223 = vld [vmem:[%s3218 + $0x20] sm:$0xff]
      %v3224 = vld [vmem:[%s3218 + $0x28] sm:$0xff]
      %v3225 = vld [vmem:[%s3218 + $0x30] sm:$0xff]
      %v3226 = vld [vmem:[%s3218 + $0x38] sm:$0xff]
      %v3227 = vld [vmem:[%s3218 + $0x40] sm:$0xff]
      %v3228 = vld [vmem:[%s3218 + $0x48] sm:$0xff]
      %v3229 = vld [vmem:[%s3218 + $0x50] sm:$0xff]
      %v3230 = vld [vmem:[%s3218 + $0x58] sm:$0xff]
      %v3231 = vld [vmem:[%s3218 + $0x60] sm:$0xff]
      %v3232 = vld [vmem:[%s3218 + $0x68] sm:$0xff]
      %v3233 = vld [vmem:[%s3218 + $0x70] sm:$0xff]
      %v3234 = vld [vmem:[%s3218 + $0x78] sm:$0xff]
      %v3235 = vld [vmem:[%s3218 + $0x80] sm:$0xff]
      %v3236 = vld [vmem:[%s3218 + $0x88] sm:$0xff]
      %v3237 = vld [vmem:[%s3218 + $0x90] sm:$0xff]
      %v3238 = vld [vmem:[%s3218 + $0x98] sm:$0xff]
      %v3239 = vld [vmem:[%s3218 + $0xa0] sm:$0xff]
      %v3240 = vld [vmem:[%s3218 + $0xa8] sm:$0xff]
      %v3241 = vld [vmem:[%s3218 + $0xb0] sm:$0xff]
      %v3242 = vld [vmem:[%s3218 + $0xb8] sm:$0xff]
      %v3243 = vld [vmem:[%s3218 + $0xc0] sm:$0xff]
      %v3244 = vld [vmem:[%s3218 + $0xc8] sm:$0xff]
      %v3245 = vld [vmem:[%s3218 + $0xd0] sm:$0xff]
      %v3246 = vld [vmem:[%s3218 + $0xd8] sm:$0xff]
      %v3247 = vld [vmem:[%s3218 + $0xe0] sm:$0xff]
      %v3248 = vld [vmem:[%s3218 + $0xe8] sm:$0xff]
      %v3249 = vld [vmem:[%s3218 + $0xf0] sm:$0xff]
      %v3250 = vld [vmem:[%s3218 + $0xf8] sm:$0xff]
      %v3251 = vld [vmem:[%s3218 + $0x100] sm:$0xff]
      %v3252 = vld [vmem:[%s3218 + $0x108] sm:$0xff]
      %v3253 = vld [vmem:[%s3218 + $0x110] sm:$0xff]
      %v3254 = vld [vmem:[%s3218 + $0x118] sm:$0xff]
      %v3255 = vld [vmem:[%s3218 + $0x120] sm:$0xff]
      %v3256 = vld [vmem:[%s3218 + $0x128] sm:$0xff]
      %v3257 = vld [vmem:[%s3218 + $0x130] sm:$0xff]
      %v3258 = vld [vmem:[%s3218 + $0x138] sm:$0xff]
      %v3260 = vshrl.u32 %v2876, 16
      %v3262 = vshll.u32 %v2876, 16
      %v3264 = vrot.slane %v3262, 1
      %v3265 = vor.u32 %v3260, %v3264
      %v3267 = vshrl.u32 %v2877, 16
      %v3269 = vshll.u32 %v2877, 16
      %v3271 = vrot.slane %v3269, 1
      %v3272 = vor.u32 %v3267, %v3271
      %v3273 = vshrl.u32 %v2878, 16
      %v3275 = vshll.u32 %v2878, 16
      %v3277 = vrot.slane %v3275, 1
      %v3278 = vor.u32 %v3273, %v3277
      %v3321 = vunpack.c.l.b16 %v3219
      %v3322 = vunpack.c.h.b16 %v3219
      %v3323 = vunpack.c.l.b16 %v3220
      %v3324 = vunpack.c.h.b16 %v3220
      %v3325 = vunpack.c.l.b16 %v3221
      %v3326 = vunpack.c.h.b16 %v3221
      %v3327 = vunpack.c.l.b16 %v3222
      %v3328 = vunpack.c.h.b16 %v3222
      %v3329 = vunpack.c.l.b16 %v3223
      %v3330 = vunpack.c.h.b16 %v3223
      %v3331 = vunpack.c.l.b16 %v3224
      %v3332 = vunpack.c.h.b16 %v3224
      %v3333 = vunpack.c.l.b16 %v3225
      %v3334 = vunpack.c.h.b16 %v3225
      %v3335 = vunpack.c.l.b16 %v3226
      %v3336 = vunpack.c.h.b16 %v3226
      %v3337 = vunpack.c.l.b16 %v3227
      %v3338 = vunpack.c.h.b16 %v3227
      %v3339 = vunpack.c.l.b16 %v3228
      %v3340 = vunpack.c.h.b16 %v3228
      %v3341 = vunpack.c.l.b16 %v3229
      %v3342 = vunpack.c.h.b16 %v3229
      %v3343 = vunpack.c.l.b16 %v3230
      %v3344 = vunpack.c.h.b16 %v3230
      %v3345 = vunpack.c.l.b16 %v3231
      %v3346 = vunpack.c.h.b16 %v3231
      %v3347 = vunpack.c.l.b16 %v3232
      %v3348 = vunpack.c.h.b16 %v3232
      %v3349 = vunpack.c.l.b16 %v3233
      %v3350 = vunpack.c.h.b16 %v3233
      %v3351 = vunpack.c.l.b16 %v3234
      %v3352 = vunpack.c.h.b16 %v3234
      %v3353 = vunpack.c.l.b16 %v3235
      %v3354 = vunpack.c.h.b16 %v3235
      %v3355 = vunpack.c.l.b16 %v3236
      %v3356 = vunpack.c.h.b16 %v3236
      %v3357 = vunpack.c.l.b16 %v3237
      %v3358 = vunpack.c.h.b16 %v3237
      %v3359 = vunpack.c.l.b16 %v3238
      %v3360 = vunpack.c.h.b16 %v3238
      %v3361 = vunpack.c.l.b16 %v3239
      %v3362 = vunpack.c.h.b16 %v3239
      %v3363 = vunpack.c.l.b16 %v3240
      %v3364 = vunpack.c.h.b16 %v3240
      %v3365 = vunpack.c.l.b16 %v3241
      %v3366 = vunpack.c.h.b16 %v3241
      %v3367 = vunpack.c.l.b16 %v3242
      %v3368 = vunpack.c.h.b16 %v3242
      %v3369 = vunpack.c.l.b16 %v3243
      %v3370 = vunpack.c.h.b16 %v3243
      %v3371 = vunpack.c.l.b16 %v3244
      %v3372 = vunpack.c.h.b16 %v3244
      %v3373 = vunpack.c.l.b16 %v3245
      %v3374 = vunpack.c.h.b16 %v3245
      %v3375 = vunpack.c.l.b16 %v3246
      %v3376 = vunpack.c.h.b16 %v3246
      %v3377 = vunpack.c.l.b16 %v3247
      %v3378 = vunpack.c.h.b16 %v3247
      %v3379 = vunpack.c.l.b16 %v3248
      %v3380 = vunpack.c.h.b16 %v3248
      %v3381 = vunpack.c.l.b16 %v3249
      %v3382 = vunpack.c.h.b16 %v3249
      %v3383 = vunpack.c.l.b16 %v3250
      %v3384 = vunpack.c.h.b16 %v3250
      %v3385 = vunpack.c.l.b16 %v3251
      %v3386 = vunpack.c.h.b16 %v3251
      %v3387 = vunpack.c.l.b16 %v3252
      %v3388 = vunpack.c.h.b16 %v3252
      %v3389 = vunpack.c.l.b16 %v3253
      %v3390 = vunpack.c.h.b16 %v3253
      %v3391 = vunpack.c.l.b16 %v3254
      %v3392 = vunpack.c.h.b16 %v3254
      %v3393 = vunpack.c.l.b16 %v3255
      %v3394 = vunpack.c.h.b16 %v3255
      %v3395 = vunpack.c.l.b16 %v3256
      %v3396 = vunpack.c.h.b16 %v3256
      %v3397 = vunpack.c.l.b16 %v3257
      %v3398 = vunpack.c.h.b16 %v3257
      %v3399 = vunpack.c.l.b16 %v3258
      %v3400 = vunpack.c.h.b16 %v3258
      %v3401 = vpack.c.b16 %v3323, %v3321
      %v3402 = vpack.c.b16 %v3324, %v3322
      %v3403 = vpack.c.b16 %v3327, %v3325
      %v3404 = vpack.c.b16 %v3328, %v3326
      %v3405 = vpack.c.b16 %v3331, %v3329
      %v3406 = vpack.c.b16 %v3332, %v3330
      %v3407 = vpack.c.b16 %v3335, %v3333
      %v3408 = vpack.c.b16 %v3336, %v3334
      %v3409 = vpack.c.b16 %v3339, %v3337
      %v3410 = vpack.c.b16 %v3340, %v3338
      %v3411 = vpack.c.b16 %v3343, %v3341
      %v3412 = vpack.c.b16 %v3344, %v3342
      %v3413 = vpack.c.b16 %v3347, %v3345
      %v3414 = vpack.c.b16 %v3348, %v3346
      %v3415 = vpack.c.b16 %v3351, %v3349
      %v3416 = vpack.c.b16 %v3352, %v3350
      %v3417 = vpack.c.b16 %v3355, %v3353
      %v3418 = vpack.c.b16 %v3356, %v3354
      %v3419 = vpack.c.b16 %v3359, %v3357
      %v3420 = vpack.c.b16 %v3360, %v3358
      %v3421 = vpack.c.b16 %v3363, %v3361
      %v3422 = vpack.c.b16 %v3364, %v3362
      %v3423 = vpack.c.b16 %v3367, %v3365
      %v3424 = vpack.c.b16 %v3368, %v3366
      %v3425 = vpack.c.b16 %v3371, %v3369
      %v3426 = vpack.c.b16 %v3372, %v3370
      %v3427 = vpack.c.b16 %v3375, %v3373
      %v3428 = vpack.c.b16 %v3376, %v3374
      %v3429 = vpack.c.b16 %v3379, %v3377
      %v3430 = vpack.c.b16 %v3380, %v3378
      %v3431 = vpack.c.b16 %v3383, %v3381
      %v3432 = vpack.c.b16 %v3384, %v3382
      %v3433 = vpack.c.b16 %v3387, %v3385
      %v3434 = vpack.c.b16 %v3388, %v3386
      %v3435 = vpack.c.b16 %v3391, %v3389
      %v3436 = vpack.c.b16 %v3392, %v3390
      %v3437 = vpack.c.b16 %v3395, %v3393
      %v3438 = vpack.c.b16 %v3396, %v3394
      %v3439 = vpack.c.b16 %v3399, %v3397
      %v3440 = vpack.c.b16 %v3400, %v3398
      %v3482 = vsel %vm2049, %v3278, 0
      %3484 = vmatprep.subr.bf16.mxu0 %v3416
      %3485 = vmatpush1.bf16.msra.mxu0 %v3415
      %3486 = vmatprep.subr.bf16.mxu0 %v3414
      %3487 = vmatpush1.bf16.msra.mxu0 %v3413
      %3488 = vmatprep.subr.bf16.mxu0 %v3412
      %3489 = vmatpush1.bf16.msra.mxu0 %v3411
      %3490 = vmatprep.subr.bf16.mxu0 %v3410
      %3491 = vmatpush1.bf16.msra.mxu0 %v3409
      %3492 = vmatprep.subr.bf16.mxu0 %v3408
      %3493 = vmatpush1.bf16.msra.mxu0 %v3407
      %3494 = vmatprep.subr.bf16.mxu0 %v3406
      %3495 = vmatpush1.bf16.msra.mxu0 %v3405
      %3496 = vmatprep.subr.bf16.mxu0 %v3404
      %3497 = vmatpush1.bf16.msra.mxu0 %v3403
      %3498 = vmatprep.subr.bf16.mxu0 %v3402
      %3499 = vmatpush1.bf16.msra.mxu0 %v3401
      %3500 = vmatprep.subr.bf16.mxu0 %v3432
      %3501 = vmatpush2.bf16.msra.mxu0 %v3431
      %3502 = vmatprep.subr.bf16.mxu0 %v3430
      %3503 = vmatpush2.bf16.msra.mxu0 %v3429
      %3504 = vmatprep.subr.bf16.mxu0 %v3428
      %3505 = vmatpush2.bf16.msra.mxu0 %v3427
      %3506 = vmatprep.subr.bf16.mxu0 %v3426
      %3507 = vmatpush2.bf16.msra.mxu0 %v3425
      %3508 = vmatprep.subr.bf16.mxu0 %v3424
      %3509 = vmatpush2.bf16.msra.mxu0 %v3423
      %3510 = vmatprep.subr.bf16.mxu0 %v3422
      %3511 = vmatpush2.bf16.msra.mxu0 %v3421
      %3512 = vmatprep.subr.bf16.mxu0 %v3420
      %3513 = vmatpush2.bf16.msra.mxu0 %v3419
      %3514 = vmatprep.subr.bf16.mxu0 %v3418
      %3515 = vmatpush2.bf16.msra.mxu0 %v3417
      %3516 = vmatprep.mubr.bf16.mxu0 %v3272
      %3517 = vmatmul.mubr.bf16.gmra.mxu0 %v3265
      %v3518 = vpop.f32.mrf.mxu0
      %v3519 = vadd.f32 0.0, %v3518
      %v3520 = vpop.f32.mrf.mxu0
      %v3521 = vadd.f32 0.0, %v3520
      %v3522 = vpop.f32.mrf.mxu0
      %v3523 = vpop.f32.mrf.mxu0
      %3524 = vdwg.mxu0
      %3525 = vmatprep.subr.bf16.mxu0 0
      %3526 = vmatpush1.bf16.msra.mxu0 0
      %3527 = vmatprep.subr.bf16.mxu0 0
      %3528 = vmatpush1.bf16.msra.mxu0 0
      %3529 = vmatprep.subr.bf16.mxu0 0
      %3530 = vmatpush1.bf16.msra.mxu0 0
      %3531 = vmatprep.subr.bf16.mxu0 0
      %3532 = vmatpush1.bf16.msra.mxu0 0
      %3533 = vmatprep.subr.bf16.mxu0 %v3440
      %3534 = vmatpush1.bf16.msra.mxu0 %v3439
      %3535 = vmatprep.subr.bf16.mxu0 %v3438
      %3536 = vmatpush1.bf16.msra.mxu0 %v3437
      %3537 = vmatprep.subr.bf16.mxu0 %v3436
      %3538 = vmatpush1.bf16.msra.mxu0 %v3435
      %3539 = vmatprep.subr.bf16.mxu0 %v3434
      %3540 = vmatpush1.bf16.msra.mxu0 %v3433
      %3541 = vmatprep.subr.bf16.mxu0 0
      %3542 = vmatpush2.bf16.msra.mxu0 0
      %3543 = vmatprep.subr.bf16.mxu0 0
      %3544 = vmatpush2.bf16.msra.mxu0 0
      %3545 = vmatprep.subr.bf16.mxu0 0
      %3546 = vmatpush2.bf16.msra.mxu0 0
      %3547 = vmatprep.subr.bf16.mxu0 0
      %3548 = vmatpush2.bf16.msra.mxu0 0
      %3549 = vmatprep.subr.bf16.mxu0 0
      %3550 = vmatpush2.bf16.msra.mxu0 0
      %3551 = vmatprep.subr.bf16.mxu0 0
      %3552 = vmatpush2.bf16.msra.mxu0 0
      %3553 = vmatprep.subr.bf16.mxu0 0
      %3554 = vmatpush2.bf16.msra.mxu0 0
      %3555 = vmatprep.subr.bf16.mxu0 0
      %3556 = vmatpush2.bf16.msra.mxu0 0
      %3557 = vmatprep.mubr.bf16.mxu0 0
      %3558 = vmatmul.mubr.bf16.gmra.mxu0 %v3482
      %v3559 = vpop.f32.mrf.mxu0
      %v3560 = vadd.f32 %v3519, %v3559
      %v3561 = vpop.f32.mrf.mxu0
      %v3562 = vadd.f32 %v3521, %v3561
      %v3563 = vpop.f32.mrf.mxu0
      %v3564 = vpop.f32.mrf.mxu0
      %3565 = vdwg.mxu0
      %v3566 = vadd.f32 %v3216, %v3560
      %v3567 = vadd.f32 %v3217, %v3562
      %s3568 = scalar_lea.vmem %s10, 640
      %v3569 = vld [vmem:[%s3568] sm:$0xff]
      %v3570 = vld [vmem:[%s3568 + $0x8] sm:$0xff]
      %v3571 = vld [vmem:[%s3568 + $0x10] sm:$0xff]
      %v3572 = vld [vmem:[%s3568 + $0x18] sm:$0xff]
      %v3573 = vld [vmem:[%s3568 + $0x20] sm:$0xff]
      %v3574 = vld [vmem:[%s3568 + $0x28] sm:$0xff]
      %v3575 = vld [vmem:[%s3568 + $0x30] sm:$0xff]
      %v3576 = vld [vmem:[%s3568 + $0x38] sm:$0xff]
      %v3577 = vld [vmem:[%s3568 + $0x40] sm:$0xff]
      %v3578 = vld [vmem:[%s3568 + $0x48] sm:$0xff]
      %v3579 = vld [vmem:[%s3568 + $0x50] sm:$0xff]
      %v3580 = vld [vmem:[%s3568 + $0x58] sm:$0xff]
      %v3581 = vld [vmem:[%s3568 + $0x60] sm:$0xff]
      %v3582 = vld [vmem:[%s3568 + $0x68] sm:$0xff]
      %v3583 = vld [vmem:[%s3568 + $0x70] sm:$0xff]
      %v3584 = vld [vmem:[%s3568 + $0x78] sm:$0xff]
      %v3585 = vld [vmem:[%s3568 + $0x80] sm:$0xff]
      %v3586 = vld [vmem:[%s3568 + $0x88] sm:$0xff]
      %v3587 = vld [vmem:[%s3568 + $0x90] sm:$0xff]
      %v3588 = vld [vmem:[%s3568 + $0x98] sm:$0xff]
      %v3589 = vld [vmem:[%s3568 + $0xa0] sm:$0xff]
      %v3590 = vld [vmem:[%s3568 + $0xa8] sm:$0xff]
      %v3591 = vld [vmem:[%s3568 + $0xb0] sm:$0xff]
      %v3592 = vld [vmem:[%s3568 + $0xb8] sm:$0xff]
      %v3593 = vld [vmem:[%s3568 + $0xc0] sm:$0xff]
      %v3594 = vld [vmem:[%s3568 + $0xc8] sm:$0xff]
      %v3595 = vld [vmem:[%s3568 + $0xd0] sm:$0xff]
      %v3596 = vld [vmem:[%s3568 + $0xd8] sm:$0xff]
      %v3597 = vld [vmem:[%s3568 + $0xe0] sm:$0xff]
      %v3598 = vld [vmem:[%s3568 + $0xe8] sm:$0xff]
      %v3599 = vld [vmem:[%s3568 + $0xf0] sm:$0xff]
      %v3600 = vld [vmem:[%s3568 + $0xf8] sm:$0xff]
      %v3601 = vld [vmem:[%s3568 + $0x100] sm:$0xff]
      %v3602 = vld [vmem:[%s3568 + $0x108] sm:$0xff]
      %v3603 = vld [vmem:[%s3568 + $0x110] sm:$0xff]
      %v3604 = vld [vmem:[%s3568 + $0x118] sm:$0xff]
      %v3605 = vld [vmem:[%s3568 + $0x120] sm:$0xff]
      %v3606 = vld [vmem:[%s3568 + $0x128] sm:$0xff]
      %v3607 = vld [vmem:[%s3568 + $0x130] sm:$0xff]
      %v3608 = vld [vmem:[%s3568 + $0x138] sm:$0xff]
      %v3612 = vrot.slane %v2876, 1
      %v3613 = vrot.slane %v2877, 1
      %v3614 = vrot.slane %v2878, 1
      %v3657 = vunpack.c.l.b16 %v3569
      %v3658 = vunpack.c.h.b16 %v3569
      %v3659 = vunpack.c.l.b16 %v3570
      %v3660 = vunpack.c.h.b16 %v3570
      %v3661 = vunpack.c.l.b16 %v3571
      %v3662 = vunpack.c.h.b16 %v3571
      %v3663 = vunpack.c.l.b16 %v3572
      %v3664 = vunpack.c.h.b16 %v3572
      %v3665 = vunpack.c.l.b16 %v3573
      %v3666 = vunpack.c.h.b16 %v3573
      %v3667 = vunpack.c.l.b16 %v3574
      %v3668 = vunpack.c.h.b16 %v3574
      %v3669 = vunpack.c.l.b16 %v3575
      %v3670 = vunpack.c.h.b16 %v3575
      %v3671 = vunpack.c.l.b16 %v3576
      %v3672 = vunpack.c.h.b16 %v3576
      %v3673 = vunpack.c.l.b16 %v3577
      %v3674 = vunpack.c.h.b16 %v3577
      %v3675 = vunpack.c.l.b16 %v3578
      %v3676 = vunpack.c.h.b16 %v3578
      %v3677 = vunpack.c.l.b16 %v3579
      %v3678 = vunpack.c.h.b16 %v3579
      %v3679 = vunpack.c.l.b16 %v3580
      %v3680 = vunpack.c.h.b16 %v3580
      %v3681 = vunpack.c.l.b16 %v3581
      %v3682 = vunpack.c.h.b16 %v3581
      %v3683 = vunpack.c.l.b16 %v3582
      %v3684 = vunpack.c.h.b16 %v3582
      %v3685 = vunpack.c.l.b16 %v3583
      %v3686 = vunpack.c.h.b16 %v3583
      %v3687 = vunpack.c.l.b16 %v3584
      %v3688 = vunpack.c.h.b16 %v3584
      %v3689 = vunpack.c.l.b16 %v3585
      %v3690 = vunpack.c.h.b16 %v3585
      %v3691 = vunpack.c.l.b16 %v3586
      %v3692 = vunpack.c.h.b16 %v3586
      %v3693 = vunpack.c.l.b16 %v3587
      %v3694 = vunpack.c.h.b16 %v3587
      %v3695 = vunpack.c.l.b16 %v3588
      %v3696 = vunpack.c.h.b16 %v3588
      %v3697 = vunpack.c.l.b16 %v3589
      %v3698 = vunpack.c.h.b16 %v3589
      %v3699 = vunpack.c.l.b16 %v3590
      %v3700 = vunpack.c.h.b16 %v3590
      %v3701 = vunpack.c.l.b16 %v3591
      %v3702 = vunpack.c.h.b16 %v3591
      %v3703 = vunpack.c.l.b16 %v3592
      %v3704 = vunpack.c.h.b16 %v3592
      %v3705 = vunpack.c.l.b16 %v3593
      %v3706 = vunpack.c.h.b16 %v3593
      %v3707 = vunpack.c.l.b16 %v3594
      %v3708 = vunpack.c.h.b16 %v3594
      %v3709 = vunpack.c.l.b16 %v3595
      %v3710 = vunpack.c.h.b16 %v3595
      %v3711 = vunpack.c.l.b16 %v3596
      %v3712 = vunpack.c.h.b16 %v3596
      %v3713 = vunpack.c.l.b16 %v3597
      %v3714 = vunpack.c.h.b16 %v3597
      %v3715 = vunpack.c.l.b16 %v3598
      %v3716 = vunpack.c.h.b16 %v3598
      %v3717 = vunpack.c.l.b16 %v3599
      %v3718 = vunpack.c.h.b16 %v3599
      %v3719 = vunpack.c.l.b16 %v3600
      %v3720 = vunpack.c.h.b16 %v3600
      %v3721 = vunpack.c.l.b16 %v3601
      %v3722 = vunpack.c.h.b16 %v3601
      %v3723 = vunpack.c.l.b16 %v3602
      %v3724 = vunpack.c.h.b16 %v3602
      %v3725 = vunpack.c.l.b16 %v3603
      %v3726 = vunpack.c.h.b16 %v3603
      %v3727 = vunpack.c.l.b16 %v3604
      %v3728 = vunpack.c.h.b16 %v3604
      %v3729 = vunpack.c.l.b16 %v3605
      %v3730 = vunpack.c.h.b16 %v3605
      %v3731 = vunpack.c.l.b16 %v3606
      %v3732 = vunpack.c.h.b16 %v3606
      %v3733 = vunpack.c.l.b16 %v3607
      %v3734 = vunpack.c.h.b16 %v3607
      %v3735 = vunpack.c.l.b16 %v3608
      %v3736 = vunpack.c.h.b16 %v3608
      %v3737 = vpack.c.b16 %v3659, %v3657
      %v3738 = vpack.c.b16 %v3660, %v3658
      %v3739 = vpack.c.b16 %v3663, %v3661
      %v3740 = vpack.c.b16 %v3664, %v3662
      %v3741 = vpack.c.b16 %v3667, %v3665
      %v3742 = vpack.c.b16 %v3668, %v3666
      %v3743 = vpack.c.b16 %v3671, %v3669
      %v3744 = vpack.c.b16 %v3672, %v3670
      %v3745 = vpack.c.b16 %v3675, %v3673
      %v3746 = vpack.c.b16 %v3676, %v3674
      %v3747 = vpack.c.b16 %v3679, %v3677
      %v3748 = vpack.c.b16 %v3680, %v3678
      %v3749 = vpack.c.b16 %v3683, %v3681
      %v3750 = vpack.c.b16 %v3684, %v3682
      %v3751 = vpack.c.b16 %v3687, %v3685
      %v3752 = vpack.c.b16 %v3688, %v3686
      %v3753 = vpack.c.b16 %v3691, %v3689
      %v3754 = vpack.c.b16 %v3692, %v3690
      %v3755 = vpack.c.b16 %v3695, %v3693
      %v3756 = vpack.c.b16 %v3696, %v3694
      %v3757 = vpack.c.b16 %v3699, %v3697
      %v3758 = vpack.c.b16 %v3700, %v3698
      %v3759 = vpack.c.b16 %v3703, %v3701
      %v3760 = vpack.c.b16 %v3704, %v3702
      %v3761 = vpack.c.b16 %v3707, %v3705
      %v3762 = vpack.c.b16 %v3708, %v3706
      %v3763 = vpack.c.b16 %v3711, %v3709
      %v3764 = vpack.c.b16 %v3712, %v3710
      %v3765 = vpack.c.b16 %v3715, %v3713
      %v3766 = vpack.c.b16 %v3716, %v3714
      %v3767 = vpack.c.b16 %v3719, %v3717
      %v3768 = vpack.c.b16 %v3720, %v3718
      %v3769 = vpack.c.b16 %v3723, %v3721
      %v3770 = vpack.c.b16 %v3724, %v3722
      %v3771 = vpack.c.b16 %v3727, %v3725
      %v3772 = vpack.c.b16 %v3728, %v3726
      %v3773 = vpack.c.b16 %v3731, %v3729
      %v3774 = vpack.c.b16 %v3732, %v3730
      %v3775 = vpack.c.b16 %v3735, %v3733
      %v3776 = vpack.c.b16 %v3736, %v3734
      %v3818 = vsel %vm2049, %v3614, 0
      %3820 = vmatprep.subr.bf16.mxu0 %v3752
      %3821 = vmatpush1.bf16.msra.mxu0 %v3751
      %3822 = vmatprep.subr.bf16.mxu0 %v3750
      %3823 = vmatpush1.bf16.msra.mxu0 %v3749
      %3824 = vmatprep.subr.bf16.mxu0 %v3748
      %3825 = vmatpush1.bf16.msra.mxu0 %v3747
      %3826 = vmatprep.subr.bf16.mxu0 %v3746
      %3827 = vmatpush1.bf16.msra.mxu0 %v3745
      %3828 = vmatprep.subr.bf16.mxu0 %v3744
      %3829 = vmatpush1.bf16.msra.mxu0 %v3743
      %3830 = vmatprep.subr.bf16.mxu0 %v3742
      %3831 = vmatpush1.bf16.msra.mxu0 %v3741
      %3832 = vmatprep.subr.bf16.mxu0 %v3740
      %3833 = vmatpush1.bf16.msra.mxu0 %v3739
      %3834 = vmatprep.subr.bf16.mxu0 %v3738
      %3835 = vmatpush1.bf16.msra.mxu0 %v3737
      %3836 = vmatprep.subr.bf16.mxu0 %v3768
      %3837 = vmatpush2.bf16.msra.mxu0 %v3767
      %3838 = vmatprep.subr.bf16.mxu0 %v3766
      %3839 = vmatpush2.bf16.msra.mxu0 %v3765
      %3840 = vmatprep.subr.bf16.mxu0 %v3764
      %3841 = vmatpush2.bf16.msra.mxu0 %v3763
      %3842 = vmatprep.subr.bf16.mxu0 %v3762
      %3843 = vmatpush2.bf16.msra.mxu0 %v3761
      %3844 = vmatprep.subr.bf16.mxu0 %v3760
      %3845 = vmatpush2.bf16.msra.mxu0 %v3759
      %3846 = vmatprep.subr.bf16.mxu0 %v3758
      %3847 = vmatpush2.bf16.msra.mxu0 %v3757
      %3848 = vmatprep.subr.bf16.mxu0 %v3756
      %3849 = vmatpush2.bf16.msra.mxu0 %v3755
      %3850 = vmatprep.subr.bf16.mxu0 %v3754
      %3851 = vmatpush2.bf16.msra.mxu0 %v3753
      %3852 = vmatprep.mubr.bf16.mxu0 %v3613
      %3853 = vmatmul.mubr.bf16.gmra.mxu0 %v3612
      %v3854 = vpop.f32.mrf.mxu0
      %v3855 = vadd.f32 0.0, %v3854
      %v3856 = vpop.f32.mrf.mxu0
      %v3857 = vadd.f32 0.0, %v3856
      %v3858 = vpop.f32.mrf.mxu0
      %v3859 = vpop.f32.mrf.mxu0
      %3860 = vdwg.mxu0
      %3861 = vmatprep.subr.bf16.mxu0 0
      %3862 = vmatpush1.bf16.msra.mxu0 0
      %3863 = vmatprep.subr.bf16.mxu0 0
      %3864 = vmatpush1.bf16.msra.mxu0 0
      %3865 = vmatprep.subr.bf16.mxu0 0
      %3866 = vmatpush1.bf16.msra.mxu0 0
      %3867 = vmatprep.subr.bf16.mxu0 0
      %3868 = vmatpush1.bf16.msra.mxu0 0
      %3869 = vmatprep.subr.bf16.mxu0 %v3776
      %3870 = vmatpush1.bf16.msra.mxu0 %v3775
      %3871 = vmatprep.subr.bf16.mxu0 %v3774
      %3872 = vmatpush1.bf16.msra.mxu0 %v3773
      %3873 = vmatprep.subr.bf16.mxu0 %v3772
      %3874 = vmatpush1.bf16.msra.mxu0 %v3771
      %3875 = vmatprep.subr.bf16.mxu0 %v3770
      %3876 = vmatpush1.bf16.msra.mxu0 %v3769
      %3877 = vmatprep.subr.bf16.mxu0 0
      %3878 = vmatpush2.bf16.msra.mxu0 0
      %3879 = vmatprep.subr.bf16.mxu0 0
      %3880 = vmatpush2.bf16.msra.mxu0 0
      %3881 = vmatprep.subr.bf16.mxu0 0
      %3882 = vmatpush2.bf16.msra.mxu0 0
      %3883 = vmatprep.subr.bf16.mxu0 0
      %3884 = vmatpush2.bf16.msra.mxu0 0
      %3885 = vmatprep.subr.bf16.mxu0 0
      %3886 = vmatpush2.bf16.msra.mxu0 0
      %3887 = vmatprep.subr.bf16.mxu0 0
      %3888 = vmatpush2.bf16.msra.mxu0 0
      %3889 = vmatprep.subr.bf16.mxu0 0
      %3890 = vmatpush2.bf16.msra.mxu0 0
      %3891 = vmatprep.subr.bf16.mxu0 0
      %3892 = vmatpush2.bf16.msra.mxu0 0
      %3893 = vmatprep.mubr.bf16.mxu0 0
      %3894 = vmatmul.mubr.bf16.gmra.mxu0 %v3818
      %v3895 = vpop.f32.mrf.mxu0
      %v3896 = vadd.f32 %v3855, %v3895
      %v3897 = vpop.f32.mrf.mxu0
      %v3898 = vadd.f32 %v3857, %v3897
      %v3899 = vpop.f32.mrf.mxu0
      %v3900 = vpop.f32.mrf.mxu0
      %3901 = vdwg.mxu0
      %v3902 = vadd.f32 %v3566, %v3896
      %v3903 = vadd.f32 %v3567, %v3898
      %v3904 = vunpack.c.l.bf16 %v2838
      %v3905 = vunpack.c.l.bf16 %v2839
      %v3906 = vmax.f32 %v3902, 0.0
      %v3907 = vmax.f32 %v3903, 0.0
      %v3908 = vpack.c.bf16 %v3906, %v3906
      %v3909 = vpack.c.bf16 %v3907, %v3907
      %3912 = vrot.lane.b32.xlu0 %v3908, 32
      %v3913 = vpop.permute.xlu0 %3912
      %3914 = vrot.lane.b32.xlu0 %v3909, 32
      %v3915 = vpop.permute.xlu0 %3914
      %v3916 = vsel %vm1766, %v3913, %v3915
      %v3918 = vsel %vm1768, 0, %v3913
      %v3920 = vsel %vm1768, %v3915, 0
      %v3921 = vshrl.u32 %v3918, 16
      %v3923 = vrot.slane %v3921, 7
      %v3924 = vshll.u32 %v3918, 16
      %v3926 = vor.u32 %v3923, %v3924
      %v3928 = vshrl.u32 %v3916, 16
      %v3930 = vrot.slane %v3928, 7
      %v3931 = vshll.u32 %v3916, 16
      %v3933 = vor.u32 %v3930, %v3931
      %v3934 = vshrl.u32 %v3920, 16
      %v3936 = vrot.slane %v3934, 7
      %v3937 = vshll.u32 %v3920, 16
      %v3939 = vor.u32 %v3936, %v3937
      %v3943 = vsel %vm1798, 0, %v3926
      %v3944 = vsel %vm1798, 0, %v3933
      %v3945 = vsel %vm1798, 0, %v3939
      %v3946 = vsel %vm1804, %v3943, 0
      %v3947 = vsel %vm1804, %v3944, 0
      %v3948 = vsel %vm1804, %v3945, 0
      %v3949 = vld [vmem:[%s13] sm:$0x3]
      %v3950 = vld [vmem:[%s12] sm:$0xff]
      %v3951 = vld [vmem:[%s12 + $0x8] sm:$0xff]
      %v3952 = vld [vmem:[%s12 + $0x10] sm:$0xff]
      %v3953 = vld [vmem:[%s12 + $0x18] sm:$0xff]
      %v3954 = vld [vmem:[%s12 + $0x20] sm:$0xff]
      %v3955 = vld [vmem:[%s12 + $0x28] sm:$0xff]
      %v3956 = vld [vmem:[%s12 + $0x30] sm:$0xff]
      %v3957 = vld [vmem:[%s12 + $0x38] sm:$0xff]
      %v3958 = vld [vmem:[%s12 + $0x40] sm:$0xff]
      %v3959 = vld [vmem:[%s12 + $0x48] sm:$0xff]
      %v3960 = vld [vmem:[%s12 + $0x50] sm:$0xff]
      %v3961 = vld [vmem:[%s12 + $0x58] sm:$0xff]
      %v3962 = vld [vmem:[%s12 + $0x60] sm:$0xff]
      %v3963 = vld [vmem:[%s12 + $0x68] sm:$0xff]
      %v3964 = vld [vmem:[%s12 + $0x70] sm:$0xff]
      %v3965 = vld [vmem:[%s12 + $0x78] sm:$0xff]
      %v3966 = vld [vmem:[%s12 + $0x80] sm:$0xff]
      %v3967 = vld [vmem:[%s12 + $0x88] sm:$0xff]
      %v3968 = vld [vmem:[%s12 + $0x90] sm:$0xff]
      %v3969 = vld [vmem:[%s12 + $0x98] sm:$0xff]
      %v3970 = vld [vmem:[%s12 + $0xa0] sm:$0xff]
      %v3971 = vld [vmem:[%s12 + $0xa8] sm:$0xff]
      %v3972 = vld [vmem:[%s12 + $0xb0] sm:$0xff]
      %v3973 = vld [vmem:[%s12 + $0xb8] sm:$0xff]
      %v3974 = vld [vmem:[%s12 + $0xc0] sm:$0xff]
      %v3975 = vld [vmem:[%s12 + $0xc8] sm:$0xff]
      %v3976 = vld [vmem:[%s12 + $0xd0] sm:$0xff]
      %v3977 = vld [vmem:[%s12 + $0xd8] sm:$0xff]
      %v3978 = vld [vmem:[%s12 + $0xe0] sm:$0xff]
      %v3979 = vld [vmem:[%s12 + $0xe8] sm:$0xff]
      %v3980 = vld [vmem:[%s12 + $0xf0] sm:$0xff]
      %v3981 = vld [vmem:[%s12 + $0xf8] sm:$0xff]
      %v3982 = vld [vmem:[%s12 + $0x100] sm:$0xff]
      %v3983 = vld [vmem:[%s12 + $0x108] sm:$0xff]
      %v3984 = vld [vmem:[%s12 + $0x110] sm:$0xff]
      %v3985 = vld [vmem:[%s12 + $0x118] sm:$0xff]
      %v3986 = vld [vmem:[%s12 + $0x120] sm:$0xff]
      %v3987 = vld [vmem:[%s12 + $0x128] sm:$0xff]
      %v3988 = vld [vmem:[%s12 + $0x130] sm:$0xff]
      %v3989 = vld [vmem:[%s12 + $0x138] sm:$0xff]
      %v4030 = vunpack.c.l.b16 %v3950
      %v4031 = vunpack.c.h.b16 %v3950
      %v4032 = vunpack.c.l.b16 %v3951
      %v4033 = vunpack.c.h.b16 %v3951
      %v4034 = vunpack.c.l.b16 %v3952
      %v4035 = vunpack.c.h.b16 %v3952
      %v4036 = vunpack.c.l.b16 %v3953
      %v4037 = vunpack.c.h.b16 %v3953
      %v4038 = vunpack.c.l.b16 %v3954
      %v4039 = vunpack.c.h.b16 %v3954
      %v4040 = vunpack.c.l.b16 %v3955
      %v4041 = vunpack.c.h.b16 %v3955
      %v4042 = vunpack.c.l.b16 %v3956
      %v4043 = vunpack.c.h.b16 %v3956
      %v4044 = vunpack.c.l.b16 %v3957
      %v4045 = vunpack.c.h.b16 %v3957
      %v4046 = vunpack.c.l.b16 %v3958
      %v4047 = vunpack.c.h.b16 %v3958
      %v4048 = vunpack.c.l.b16 %v3959
      %v4049 = vunpack.c.h.b16 %v3959
      %v4050 = vunpack.c.l.b16 %v3960
      %v4051 = vunpack.c.h.b16 %v3960
      %v4052 = vunpack.c.l.b16 %v3961
      %v4053 = vunpack.c.h.b16 %v3961
      %v4054 = vunpack.c.l.b16 %v3962
      %v4055 = vunpack.c.h.b16 %v3962
      %v4056 = vunpack.c.l.b16 %v3963
      %v4057 = vunpack.c.h.b16 %v3963
      %v4058 = vunpack.c.l.b16 %v3964
      %v4059 = vunpack.c.h.b16 %v3964
      %v4060 = vunpack.c.l.b16 %v3965
      %v4061 = vunpack.c.h.b16 %v3965
      %v4062 = vunpack.c.l.b16 %v3966
      %v4063 = vunpack.c.h.b16 %v3966
      %v4064 = vunpack.c.l.b16 %v3967
      %v4065 = vunpack.c.h.b16 %v3967
      %v4066 = vunpack.c.l.b16 %v3968
      %v4067 = vunpack.c.h.b16 %v3968
      %v4068 = vunpack.c.l.b16 %v3969
      %v4069 = vunpack.c.h.b16 %v3969
      %v4070 = vunpack.c.l.b16 %v3970
      %v4071 = vunpack.c.h.b16 %v3970
      %v4072 = vunpack.c.l.b16 %v3971
      %v4073 = vunpack.c.h.b16 %v3971
      %v4074 = vunpack.c.l.b16 %v3972
      %v4075 = vunpack.c.h.b16 %v3972
      %v4076 = vunpack.c.l.b16 %v3973
      %v4077 = vunpack.c.h.b16 %v3973
      %v4078 = vunpack.c.l.b16 %v3974
      %v4079 = vunpack.c.h.b16 %v3974
      %v4080 = vunpack.c.l.b16 %v3975
      %v4081 = vunpack.c.h.b16 %v3975
      %v4082 = vunpack.c.l.b16 %v3976
      %v4083 = vunpack.c.h.b16 %v3976
      %v4084 = vunpack.c.l.b16 %v3977
      %v4085 = vunpack.c.h.b16 %v3977
      %v4086 = vunpack.c.l.b16 %v3978
      %v4087 = vunpack.c.h.b16 %v3978
      %v4088 = vunpack.c.l.b16 %v3979
      %v4089 = vunpack.c.h.b16 %v3979
      %v4090 = vunpack.c.l.b16 %v3980
      %v4091 = vunpack.c.h.b16 %v3980
      %v4092 = vunpack.c.l.b16 %v3981
      %v4093 = vunpack.c.h.b16 %v3981
      %v4094 = vunpack.c.l.b16 %v3982
      %v4095 = vunpack.c.h.b16 %v3982
      %v4096 = vunpack.c.l.b16 %v3983
      %v4097 = vunpack.c.h.b16 %v3983
      %v4098 = vunpack.c.l.b16 %v3984
      %v4099 = vunpack.c.h.b16 %v3984
      %v4100 = vunpack.c.l.b16 %v3985
      %v4101 = vunpack.c.h.b16 %v3985
      %v4102 = vunpack.c.l.b16 %v3986
      %v4103 = vunpack.c.h.b16 %v3986
      %v4104 = vunpack.c.l.b16 %v3987
      %v4105 = vunpack.c.h.b16 %v3987
      %v4106 = vunpack.c.l.b16 %v3988
      %v4107 = vunpack.c.h.b16 %v3988
      %v4108 = vunpack.c.l.b16 %v3989
      %v4109 = vunpack.c.h.b16 %v3989
      %v4110 = vpack.c.b16 %v4032, %v4030
      %v4111 = vpack.c.b16 %v4033, %v4031
      %v4112 = vpack.c.b16 %v4036, %v4034
      %v4113 = vpack.c.b16 %v4037, %v4035
      %v4114 = vpack.c.b16 %v4040, %v4038
      %v4115 = vpack.c.b16 %v4041, %v4039
      %v4116 = vpack.c.b16 %v4044, %v4042
      %v4117 = vpack.c.b16 %v4045, %v4043
      %v4118 = vpack.c.b16 %v4048, %v4046
      %v4119 = vpack.c.b16 %v4049, %v4047
      %v4120 = vpack.c.b16 %v4052, %v4050
      %v4121 = vpack.c.b16 %v4053, %v4051
      %v4122 = vpack.c.b16 %v4056, %v4054
      %v4123 = vpack.c.b16 %v4057, %v4055
      %v4124 = vpack.c.b16 %v4060, %v4058
      %v4125 = vpack.c.b16 %v4061, %v4059
      %v4126 = vpack.c.b16 %v4064, %v4062
      %v4127 = vpack.c.b16 %v4065, %v4063
      %v4128 = vpack.c.b16 %v4068, %v4066
      %v4129 = vpack.c.b16 %v4069, %v4067
      %v4130 = vpack.c.b16 %v4072, %v4070
      %v4131 = vpack.c.b16 %v4073, %v4071
      %v4132 = vpack.c.b16 %v4076, %v4074
      %v4133 = vpack.c.b16 %v4077, %v4075
      %v4134 = vpack.c.b16 %v4080, %v4078
      %v4135 = vpack.c.b16 %v4081, %v4079
      %v4136 = vpack.c.b16 %v4084, %v4082
      %v4137 = vpack.c.b16 %v4085, %v4083
      %v4138 = vpack.c.b16 %v4088, %v4086
      %v4139 = vpack.c.b16 %v4089, %v4087
      %v4140 = vpack.c.b16 %v4092, %v4090
      %v4141 = vpack.c.b16 %v4093, %v4091
      %v4142 = vpack.c.b16 %v4096, %v4094
      %v4143 = vpack.c.b16 %v4097, %v4095
      %v4144 = vpack.c.b16 %v4100, %v4098
      %v4145 = vpack.c.b16 %v4101, %v4099
      %v4146 = vpack.c.b16 %v4104, %v4102
      %v4147 = vpack.c.b16 %v4105, %v4103
      %v4148 = vpack.c.b16 %v4108, %v4106
      %v4149 = vpack.c.b16 %v4109, %v4107
      %v4191 = vsel %vm2049, %v3948, 0
      %4193 = vmatprep.subr.bf16.mxu0 %v4125
      %4194 = vmatpush1.bf16.msra.mxu0 %v4124
      %4195 = vmatprep.subr.bf16.mxu0 %v4123
      %4196 = vmatpush1.bf16.msra.mxu0 %v4122
      %4197 = vmatprep.subr.bf16.mxu0 %v4121
      %4198 = vmatpush1.bf16.msra.mxu0 %v4120
      %4199 = vmatprep.subr.bf16.mxu0 %v4119
      %4200 = vmatpush1.bf16.msra.mxu0 %v4118
      %4201 = vmatprep.subr.bf16.mxu0 %v4117
      %4202 = vmatpush1.bf16.msra.mxu0 %v4116
      %4203 = vmatprep.subr.bf16.mxu0 %v4115
      %4204 = vmatpush1.bf16.msra.mxu0 %v4114
      %4205 = vmatprep.subr.bf16.mxu0 %v4113
      %4206 = vmatpush1.bf16.msra.mxu0 %v4112
      %4207 = vmatprep.subr.bf16.mxu0 %v4111
      %4208 = vmatpush1.bf16.msra.mxu0 %v4110
      %4209 = vmatprep.subr.bf16.mxu0 %v4141
      %4210 = vmatpush2.bf16.msra.mxu0 %v4140
      %4211 = vmatprep.subr.bf16.mxu0 %v4139
      %4212 = vmatpush2.bf16.msra.mxu0 %v4138
      %4213 = vmatprep.subr.bf16.mxu0 %v4137
      %4214 = vmatpush2.bf16.msra.mxu0 %v4136
      %4215 = vmatprep.subr.bf16.mxu0 %v4135
      %4216 = vmatpush2.bf16.msra.mxu0 %v4134
      %4217 = vmatprep.subr.bf16.mxu0 %v4133
      %4218 = vmatpush2.bf16.msra.mxu0 %v4132
      %4219 = vmatprep.subr.bf16.mxu0 %v4131
      %4220 = vmatpush2.bf16.msra.mxu0 %v4130
      %4221 = vmatprep.subr.bf16.mxu0 %v4129
      %4222 = vmatpush2.bf16.msra.mxu0 %v4128
      %4223 = vmatprep.subr.bf16.mxu0 %v4127
      %4224 = vmatpush2.bf16.msra.mxu0 %v4126
      %4225 = vmatprep.mubr.bf16.mxu0 %v3947
      %4226 = vmatmul.mubr.bf16.gmra.mxu0 %v3946
      %v4227 = vpop.f32.mrf.mxu0
      %v4228 = vadd.f32 0.0, %v4227
      %v4229 = vpop.f32.mrf.mxu0
      %v4230 = vadd.f32 0.0, %v4229
      %v4231 = vpop.f32.mrf.mxu0
      %v4232 = vpop.f32.mrf.mxu0
      %4233 = vdwg.mxu0
      %4234 = vmatprep.subr.bf16.mxu0 0
      %4235 = vmatpush1.bf16.msra.mxu0 0
      %4236 = vmatprep.subr.bf16.mxu0 0
      %4237 = vmatpush1.bf16.msra.mxu0 0
      %4238 = vmatprep.subr.bf16.mxu0 0
      %4239 = vmatpush1.bf16.msra.mxu0 0
      %4240 = vmatprep.subr.bf16.mxu0 0
      %4241 = vmatpush1.bf16.msra.mxu0 0
      %4242 = vmatprep.subr.bf16.mxu0 %v4149
      %4243 = vmatpush1.bf16.msra.mxu0 %v4148
      %4244 = vmatprep.subr.bf16.mxu0 %v4147
      %4245 = vmatpush1.bf16.msra.mxu0 %v4146
      %4246 = vmatprep.subr.bf16.mxu0 %v4145
      %4247 = vmatpush1.bf16.msra.mxu0 %v4144
      %4248 = vmatprep.subr.bf16.mxu0 %v4143
      %4249 = vmatpush1.bf16.msra.mxu0 %v4142
      %4250 = vmatprep.subr.bf16.mxu0 0
      %4251 = vmatpush2.bf16.msra.mxu0 0
      %4252 = vmatprep.subr.bf16.mxu0 0
      %4253 = vmatpush2.bf16.msra.mxu0 0
      %4254 = vmatprep.subr.bf16.mxu0 0
      %4255 = vmatpush2.bf16.msra.mxu0 0
      %4256 = vmatprep.subr.bf16.mxu0 0
      %4257 = vmatpush2.bf16.msra.mxu0 0
      %4258 = vmatprep.subr.bf16.mxu0 0
      %4259 = vmatpush2.bf16.msra.mxu0 0
      %4260 = vmatprep.subr.bf16.mxu0 0
      %4261 = vmatpush2.bf16.msra.mxu0 0
      %4262 = vmatprep.subr.bf16.mxu0 0
      %4263 = vmatpush2.bf16.msra.mxu0 0
      %4264 = vmatprep.subr.bf16.mxu0 0
      %4265 = vmatpush2.bf16.msra.mxu0 0
      %4266 = vmatprep.mubr.bf16.mxu0 0
      %4267 = vmatmul.mubr.bf16.gmra.mxu0 %v4191
      %v4268 = vpop.f32.mrf.mxu0
      %v4269 = vadd.f32 %v4228, %v4268
      %v4270 = vpop.f32.mrf.mxu0
      %v4271 = vadd.f32 %v4230, %v4270
      %v4272 = vpop.f32.mrf.mxu0
      %v4273 = vpop.f32.mrf.mxu0
      %4274 = vdwg.mxu0
      %v4276 = vlaneseq
      %v4277 = vshrl.u32 %v4276, 7
      %v4278 = vsub.s32 0, %v4277
      %v4279 = vrot.slane %v3949, %v4278
      %v4280 = vlaneseq
      %v4281 = vshrl.u32 %v4280, 7
      %v4282 = vsub.s32 1, %v4281
      %v4283 = vrot.slane %v3949, %v4282
      %v4286 = vadd.f32 %v4279, %v4269
      %v4287 = vadd.f32 %v4283, %v4271
      %s4288 = scalar_lea.vmem %s12, 320
      %v4289 = vld [vmem:[%s4288] sm:$0xff]
      %v4290 = vld [vmem:[%s4288 + $0x8] sm:$0xff]
      %v4291 = vld [vmem:[%s4288 + $0x10] sm:$0xff]
      %v4292 = vld [vmem:[%s4288 + $0x18] sm:$0xff]
      %v4293 = vld [vmem:[%s4288 + $0x20] sm:$0xff]
      %v4294 = vld [vmem:[%s4288 + $0x28] sm:$0xff]
      %v4295 = vld [vmem:[%s4288 + $0x30] sm:$0xff]
      %v4296 = vld [vmem:[%s4288 + $0x38] sm:$0xff]
      %v4297 = vld [vmem:[%s4288 + $0x40] sm:$0xff]
      %v4298 = vld [vmem:[%s4288 + $0x48] sm:$0xff]
      %v4299 = vld [vmem:[%s4288 + $0x50] sm:$0xff]
      %v4300 = vld [vmem:[%s4288 + $0x58] sm:$0xff]
      %v4301 = vld [vmem:[%s4288 + $0x60] sm:$0xff]
      %v4302 = vld [vmem:[%s4288 + $0x68] sm:$0xff]
      %v4303 = vld [vmem:[%s4288 + $0x70] sm:$0xff]
      %v4304 = vld [vmem:[%s4288 + $0x78] sm:$0xff]
      %v4305 = vld [vmem:[%s4288 + $0x80] sm:$0xff]
      %v4306 = vld [vmem:[%s4288 + $0x88] sm:$0xff]
      %v4307 = vld [vmem:[%s4288 + $0x90] sm:$0xff]
      %v4308 = vld [vmem:[%s4288 + $0x98] sm:$0xff]
      %v4309 = vld [vmem:[%s4288 + $0xa0] sm:$0xff]
      %v4310 = vld [vmem:[%s4288 + $0xa8] sm:$0xff]
      %v4311 = vld [vmem:[%s4288 + $0xb0] sm:$0xff]
      %v4312 = vld [vmem:[%s4288 + $0xb8] sm:$0xff]
      %v4313 = vld [vmem:[%s4288 + $0xc0] sm:$0xff]
      %v4314 = vld [vmem:[%s4288 + $0xc8] sm:$0xff]
      %v4315 = vld [vmem:[%s4288 + $0xd0] sm:$0xff]
      %v4316 = vld [vmem:[%s4288 + $0xd8] sm:$0xff]
      %v4317 = vld [vmem:[%s4288 + $0xe0] sm:$0xff]
      %v4318 = vld [vmem:[%s4288 + $0xe8] sm:$0xff]
      %v4319 = vld [vmem:[%s4288 + $0xf0] sm:$0xff]
      %v4320 = vld [vmem:[%s4288 + $0xf8] sm:$0xff]
      %v4321 = vld [vmem:[%s4288 + $0x100] sm:$0xff]
      %v4322 = vld [vmem:[%s4288 + $0x108] sm:$0xff]
      %v4323 = vld [vmem:[%s4288 + $0x110] sm:$0xff]
      %v4324 = vld [vmem:[%s4288 + $0x118] sm:$0xff]
      %v4325 = vld [vmem:[%s4288 + $0x120] sm:$0xff]
      %v4326 = vld [vmem:[%s4288 + $0x128] sm:$0xff]
      %v4327 = vld [vmem:[%s4288 + $0x130] sm:$0xff]
      %v4328 = vld [vmem:[%s4288 + $0x138] sm:$0xff]
      %v4330 = vshrl.u32 %v3946, 16
      %v4332 = vshll.u32 %v3946, 16
      %v4334 = vrot.slane %v4332, 1
      %v4335 = vor.u32 %v4330, %v4334
      %v4337 = vshrl.u32 %v3947, 16
      %v4339 = vshll.u32 %v3947, 16
      %v4341 = vrot.slane %v4339, 1
      %v4342 = vor.u32 %v4337, %v4341
      %v4343 = vshrl.u32 %v3948, 16
      %v4345 = vshll.u32 %v3948, 16
      %v4347 = vrot.slane %v4345, 1
      %v4348 = vor.u32 %v4343, %v4347
      %v4391 = vunpack.c.l.b16 %v4289
      %v4392 = vunpack.c.h.b16 %v4289
      %v4393 = vunpack.c.l.b16 %v4290
      %v4394 = vunpack.c.h.b16 %v4290
      %v4395 = vunpack.c.l.b16 %v4291
      %v4396 = vunpack.c.h.b16 %v4291
      %v4397 = vunpack.c.l.b16 %v4292
      %v4398 = vunpack.c.h.b16 %v4292
      %v4399 = vunpack.c.l.b16 %v4293
      %v4400 = vunpack.c.h.b16 %v4293
      %v4401 = vunpack.c.l.b16 %v4294
      %v4402 = vunpack.c.h.b16 %v4294
      %v4403 = vunpack.c.l.b16 %v4295
      %v4404 = vunpack.c.h.b16 %v4295
      %v4405 = vunpack.c.l.b16 %v4296
      %v4406 = vunpack.c.h.b16 %v4296
      %v4407 = vunpack.c.l.b16 %v4297
      %v4408 = vunpack.c.h.b16 %v4297
      %v4409 = vunpack.c.l.b16 %v4298
      %v4410 = vunpack.c.h.b16 %v4298
      %v4411 = vunpack.c.l.b16 %v4299
      %v4412 = vunpack.c.h.b16 %v4299
      %v4413 = vunpack.c.l.b16 %v4300
      %v4414 = vunpack.c.h.b16 %v4300
      %v4415 = vunpack.c.l.b16 %v4301
      %v4416 = vunpack.c.h.b16 %v4301
      %v4417 = vunpack.c.l.b16 %v4302
      %v4418 = vunpack.c.h.b16 %v4302
      %v4419 = vunpack.c.l.b16 %v4303
      %v4420 = vunpack.c.h.b16 %v4303
      %v4421 = vunpack.c.l.b16 %v4304
      %v4422 = vunpack.c.h.b16 %v4304
      %v4423 = vunpack.c.l.b16 %v4305
      %v4424 = vunpack.c.h.b16 %v4305
      %v4425 = vunpack.c.l.b16 %v4306
      %v4426 = vunpack.c.h.b16 %v4306
      %v4427 = vunpack.c.l.b16 %v4307
      %v4428 = vunpack.c.h.b16 %v4307
      %v4429 = vunpack.c.l.b16 %v4308
      %v4430 = vunpack.c.h.b16 %v4308
      %v4431 = vunpack.c.l.b16 %v4309
      %v4432 = vunpack.c.h.b16 %v4309
      %v4433 = vunpack.c.l.b16 %v4310
      %v4434 = vunpack.c.h.b16 %v4310
      %v4435 = vunpack.c.l.b16 %v4311
      %v4436 = vunpack.c.h.b16 %v4311
      %v4437 = vunpack.c.l.b16 %v4312
      %v4438 = vunpack.c.h.b16 %v4312
      %v4439 = vunpack.c.l.b16 %v4313
      %v4440 = vunpack.c.h.b16 %v4313
      %v4441 = vunpack.c.l.b16 %v4314
      %v4442 = vunpack.c.h.b16 %v4314
      %v4443 = vunpack.c.l.b16 %v4315
      %v4444 = vunpack.c.h.b16 %v4315
      %v4445 = vunpack.c.l.b16 %v4316
      %v4446 = vunpack.c.h.b16 %v4316
      %v4447 = vunpack.c.l.b16 %v4317
      %v4448 = vunpack.c.h.b16 %v4317
      %v4449 = vunpack.c.l.b16 %v4318
      %v4450 = vunpack.c.h.b16 %v4318
      %v4451 = vunpack.c.l.b16 %v4319
      %v4452 = vunpack.c.h.b16 %v4319
      %v4453 = vunpack.c.l.b16 %v4320
      %v4454 = vunpack.c.h.b16 %v4320
      %v4455 = vunpack.c.l.b16 %v4321
      %v4456 = vunpack.c.h.b16 %v4321
      %v4457 = vunpack.c.l.b16 %v4322
      %v4458 = vunpack.c.h.b16 %v4322
      %v4459 = vunpack.c.l.b16 %v4323
      %v4460 = vunpack.c.h.b16 %v4323
      %v4461 = vunpack.c.l.b16 %v4324
      %v4462 = vunpack.c.h.b16 %v4324
      %v4463 = vunpack.c.l.b16 %v4325
      %v4464 = vunpack.c.h.b16 %v4325
      %v4465 = vunpack.c.l.b16 %v4326
      %v4466 = vunpack.c.h.b16 %v4326
      %v4467 = vunpack.c.l.b16 %v4327
      %v4468 = vunpack.c.h.b16 %v4327
      %v4469 = vunpack.c.l.b16 %v4328
      %v4470 = vunpack.c.h.b16 %v4328
      %v4471 = vpack.c.b16 %v4393, %v4391
      %v4472 = vpack.c.b16 %v4394, %v4392
      %v4473 = vpack.c.b16 %v4397, %v4395
      %v4474 = vpack.c.b16 %v4398, %v4396
      %v4475 = vpack.c.b16 %v4401, %v4399
      %v4476 = vpack.c.b16 %v4402, %v4400
      %v4477 = vpack.c.b16 %v4405, %v4403
      %v4478 = vpack.c.b16 %v4406, %v4404
      %v4479 = vpack.c.b16 %v4409, %v4407
      %v4480 = vpack.c.b16 %v4410, %v4408
      %v4481 = vpack.c.b16 %v4413, %v4411
      %v4482 = vpack.c.b16 %v4414, %v4412
      %v4483 = vpack.c.b16 %v4417, %v4415
      %v4484 = vpack.c.b16 %v4418, %v4416
      %v4485 = vpack.c.b16 %v4421, %v4419
      %v4486 = vpack.c.b16 %v4422, %v4420
      %v4487 = vpack.c.b16 %v4425, %v4423
      %v4488 = vpack.c.b16 %v4426, %v4424
      %v4489 = vpack.c.b16 %v4429, %v4427
      %v4490 = vpack.c.b16 %v4430, %v4428
      %v4491 = vpack.c.b16 %v4433, %v4431
      %v4492 = vpack.c.b16 %v4434, %v4432
      %v4493 = vpack.c.b16 %v4437, %v4435
      %v4494 = vpack.c.b16 %v4438, %v4436
      %v4495 = vpack.c.b16 %v4441, %v4439
      %v4496 = vpack.c.b16 %v4442, %v4440
      %v4497 = vpack.c.b16 %v4445, %v4443
      %v4498 = vpack.c.b16 %v4446, %v4444
      %v4499 = vpack.c.b16 %v4449, %v4447
      %v4500 = vpack.c.b16 %v4450, %v4448
      %v4501 = vpack.c.b16 %v4453, %v4451
      %v4502 = vpack.c.b16 %v4454, %v4452
      %v4503 = vpack.c.b16 %v4457, %v4455
      %v4504 = vpack.c.b16 %v4458, %v4456
      %v4505 = vpack.c.b16 %v4461, %v4459
      %v4506 = vpack.c.b16 %v4462, %v4460
      %v4507 = vpack.c.b16 %v4465, %v4463
      %v4508 = vpack.c.b16 %v4466, %v4464
      %v4509 = vpack.c.b16 %v4469, %v4467
      %v4510 = vpack.c.b16 %v4470, %v4468
      %v4552 = vsel %vm2049, %v4348, 0
      %4554 = vmatprep.subr.bf16.mxu0 %v4486
      %4555 = vmatpush1.bf16.msra.mxu0 %v4485
      %4556 = vmatprep.subr.bf16.mxu0 %v4484
      %4557 = vmatpush1.bf16.msra.mxu0 %v4483
      %4558 = vmatprep.subr.bf16.mxu0 %v4482
      %4559 = vmatpush1.bf16.msra.mxu0 %v4481
      %4560 = vmatprep.subr.bf16.mxu0 %v4480
      %4561 = vmatpush1.bf16.msra.mxu0 %v4479
      %4562 = vmatprep.subr.bf16.mxu0 %v4478
      %4563 = vmatpush1.bf16.msra.mxu0 %v4477
      %4564 = vmatprep.subr.bf16.mxu0 %v4476
      %4565 = vmatpush1.bf16.msra.mxu0 %v4475
      %4566 = vmatprep.subr.bf16.mxu0 %v4474
      %4567 = vmatpush1.bf16.msra.mxu0 %v4473
      %4568 = vmatprep.subr.bf16.mxu0 %v4472
      %4569 = vmatpush1.bf16.msra.mxu0 %v4471
      %4570 = vmatprep.subr.bf16.mxu0 %v4502
      %4571 = vmatpush2.bf16.msra.mxu0 %v4501
      %4572 = vmatprep.subr.bf16.mxu0 %v4500
      %4573 = vmatpush2.bf16.msra.mxu0 %v4499
      %4574 = vmatprep.subr.bf16.mxu0 %v4498
      %4575 = vmatpush2.bf16.msra.mxu0 %v4497
      %4576 = vmatprep.subr.bf16.mxu0 %v4496
      %4577 = vmatpush2.bf16.msra.mxu0 %v4495
      %4578 = vmatprep.subr.bf16.mxu0 %v4494
      %4579 = vmatpush2.bf16.msra.mxu0 %v4493
      %4580 = vmatprep.subr.bf16.mxu0 %v4492
      %4581 = vmatpush2.bf16.msra.mxu0 %v4491
      %4582 = vmatprep.subr.bf16.mxu0 %v4490
      %4583 = vmatpush2.bf16.msra.mxu0 %v4489
      %4584 = vmatprep.subr.bf16.mxu0 %v4488
      %4585 = vmatpush2.bf16.msra.mxu0 %v4487
      %4586 = vmatprep.mubr.bf16.mxu0 %v4342
      %4587 = vmatmul.mubr.bf16.gmra.mxu0 %v4335
      %v4588 = vpop.f32.mrf.mxu0
      %v4589 = vadd.f32 0.0, %v4588
      %v4590 = vpop.f32.mrf.mxu0
      %v4591 = vadd.f32 0.0, %v4590
      %v4592 = vpop.f32.mrf.mxu0
      %v4593 = vpop.f32.mrf.mxu0
      %4594 = vdwg.mxu0
      %4595 = vmatprep.subr.bf16.mxu0 0
      %4596 = vmatpush1.bf16.msra.mxu0 0
      %4597 = vmatprep.subr.bf16.mxu0 0
      %4598 = vmatpush1.bf16.msra.mxu0 0
      %4599 = vmatprep.subr.bf16.mxu0 0
      %4600 = vmatpush1.bf16.msra.mxu0 0
      %4601 = vmatprep.subr.bf16.mxu0 0
      %4602 = vmatpush1.bf16.msra.mxu0 0
      %4603 = vmatprep.subr.bf16.mxu0 %v4510
      %4604 = vmatpush1.bf16.msra.mxu0 %v4509
      %4605 = vmatprep.subr.bf16.mxu0 %v4508
      %4606 = vmatpush1.bf16.msra.mxu0 %v4507
      %4607 = vmatprep.subr.bf16.mxu0 %v4506
      %4608 = vmatpush1.bf16.msra.mxu0 %v4505
      %4609 = vmatprep.subr.bf16.mxu0 %v4504
      %4610 = vmatpush1.bf16.msra.mxu0 %v4503
      %4611 = vmatprep.subr.bf16.mxu0 0
      %4612 = vmatpush2.bf16.msra.mxu0 0
      %4613 = vmatprep.subr.bf16.mxu0 0
      %4614 = vmatpush2.bf16.msra.mxu0 0
      %4615 = vmatprep.subr.bf16.mxu0 0
      %4616 = vmatpush2.bf16.msra.mxu0 0
      %4617 = vmatprep.subr.bf16.mxu0 0
      %4618 = vmatpush2.bf16.msra.mxu0 0
      %4619 = vmatprep.subr.bf16.mxu0 0
      %4620 = vmatpush2.bf16.msra.mxu0 0
      %4621 = vmatprep.subr.bf16.mxu0 0
      %4622 = vmatpush2.bf16.msra.mxu0 0
      %4623 = vmatprep.subr.bf16.mxu0 0
      %4624 = vmatpush2.bf16.msra.mxu0 0
      %4625 = vmatprep.subr.bf16.mxu0 0
      %4626 = vmatpush2.bf16.msra.mxu0 0
      %4627 = vmatprep.mubr.bf16.mxu0 0
      %4628 = vmatmul.mubr.bf16.gmra.mxu0 %v4552
      %v4629 = vpop.f32.mrf.mxu0
      %v4630 = vadd.f32 %v4589, %v4629
      %v4631 = vpop.f32.mrf.mxu0
      %v4632 = vadd.f32 %v4591, %v4631
      %v4633 = vpop.f32.mrf.mxu0
      %v4634 = vpop.f32.mrf.mxu0
      %4635 = vdwg.mxu0
      %v4636 = vadd.f32 %v4286, %v4630
      %v4637 = vadd.f32 %v4287, %v4632
      %s4638 = scalar_lea.vmem %s12, 640
      %v4639 = vld [vmem:[%s4638] sm:$0xff]
      %v4640 = vld [vmem:[%s4638 + $0x8] sm:$0xff]
      %v4641 = vld [vmem:[%s4638 + $0x10] sm:$0xff]
      %v4642 = vld [vmem:[%s4638 + $0x18] sm:$0xff]
      %v4643 = vld [vmem:[%s4638 + $0x20] sm:$0xff]
      %v4644 = vld [vmem:[%s4638 + $0x28] sm:$0xff]
      %v4645 = vld [vmem:[%s4638 + $0x30] sm:$0xff]
      %v4646 = vld [vmem:[%s4638 + $0x38] sm:$0xff]
      %v4647 = vld [vmem:[%s4638 + $0x40] sm:$0xff]
      %v4648 = vld [vmem:[%s4638 + $0x48] sm:$0xff]
      %v4649 = vld [vmem:[%s4638 + $0x50] sm:$0xff]
      %v4650 = vld [vmem:[%s4638 + $0x58] sm:$0xff]
      %v4651 = vld [vmem:[%s4638 + $0x60] sm:$0xff]
      %v4652 = vld [vmem:[%s4638 + $0x68] sm:$0xff]
      %v4653 = vld [vmem:[%s4638 + $0x70] sm:$0xff]
      %v4654 = vld [vmem:[%s4638 + $0x78] sm:$0xff]
      %v4655 = vld [vmem:[%s4638 + $0x80] sm:$0xff]
      %v4656 = vld [vmem:[%s4638 + $0x88] sm:$0xff]
      %v4657 = vld [vmem:[%s4638 + $0x90] sm:$0xff]
      %v4658 = vld [vmem:[%s4638 + $0x98] sm:$0xff]
      %v4659 = vld [vmem:[%s4638 + $0xa0] sm:$0xff]
      %v4660 = vld [vmem:[%s4638 + $0xa8] sm:$0xff]
      %v4661 = vld [vmem:[%s4638 + $0xb0] sm:$0xff]
      %v4662 = vld [vmem:[%s4638 + $0xb8] sm:$0xff]
      %v4663 = vld [vmem:[%s4638 + $0xc0] sm:$0xff]
      %v4664 = vld [vmem:[%s4638 + $0xc8] sm:$0xff]
      %v4665 = vld [vmem:[%s4638 + $0xd0] sm:$0xff]
      %v4666 = vld [vmem:[%s4638 + $0xd8] sm:$0xff]
      %v4667 = vld [vmem:[%s4638 + $0xe0] sm:$0xff]
      %v4668 = vld [vmem:[%s4638 + $0xe8] sm:$0xff]
      %v4669 = vld [vmem:[%s4638 + $0xf0] sm:$0xff]
      %v4670 = vld [vmem:[%s4638 + $0xf8] sm:$0xff]
      %v4671 = vld [vmem:[%s4638 + $0x100] sm:$0xff]
      %v4672 = vld [vmem:[%s4638 + $0x108] sm:$0xff]
      %v4673 = vld [vmem:[%s4638 + $0x110] sm:$0xff]
      %v4674 = vld [vmem:[%s4638 + $0x118] sm:$0xff]
      %v4675 = vld [vmem:[%s4638 + $0x120] sm:$0xff]
      %v4676 = vld [vmem:[%s4638 + $0x128] sm:$0xff]
      %v4677 = vld [vmem:[%s4638 + $0x130] sm:$0xff]
      %v4678 = vld [vmem:[%s4638 + $0x138] sm:$0xff]
      %v4682 = vrot.slane %v3946, 1
      %v4683 = vrot.slane %v3947, 1
      %v4684 = vrot.slane %v3948, 1
      %v4727 = vunpack.c.l.b16 %v4639
      %v4728 = vunpack.c.h.b16 %v4639
      %v4729 = vunpack.c.l.b16 %v4640
      %v4730 = vunpack.c.h.b16 %v4640
      %v4731 = vunpack.c.l.b16 %v4641
      %v4732 = vunpack.c.h.b16 %v4641
      %v4733 = vunpack.c.l.b16 %v4642
      %v4734 = vunpack.c.h.b16 %v4642
      %v4735 = vunpack.c.l.b16 %v4643
      %v4736 = vunpack.c.h.b16 %v4643
      %v4737 = vunpack.c.l.b16 %v4644
      %v4738 = vunpack.c.h.b16 %v4644
      %v4739 = vunpack.c.l.b16 %v4645
      %v4740 = vunpack.c.h.b16 %v4645
      %v4741 = vunpack.c.l.b16 %v4646
      %v4742 = vunpack.c.h.b16 %v4646
      %v4743 = vunpack.c.l.b16 %v4647
      %v4744 = vunpack.c.h.b16 %v4647
      %v4745 = vunpack.c.l.b16 %v4648
      %v4746 = vunpack.c.h.b16 %v4648
      %v4747 = vunpack.c.l.b16 %v4649
      %v4748 = vunpack.c.h.b16 %v4649
      %v4749 = vunpack.c.l.b16 %v4650
      %v4750 = vunpack.c.h.b16 %v4650
      %v4751 = vunpack.c.l.b16 %v4651
      %v4752 = vunpack.c.h.b16 %v4651
      %v4753 = vunpack.c.l.b16 %v4652
      %v4754 = vunpack.c.h.b16 %v4652
      %v4755 = vunpack.c.l.b16 %v4653
      %v4756 = vunpack.c.h.b16 %v4653
      %v4757 = vunpack.c.l.b16 %v4654
      %v4758 = vunpack.c.h.b16 %v4654
      %v4759 = vunpack.c.l.b16 %v4655
      %v4760 = vunpack.c.h.b16 %v4655
      %v4761 = vunpack.c.l.b16 %v4656
      %v4762 = vunpack.c.h.b16 %v4656
      %v4763 = vunpack.c.l.b16 %v4657
      %v4764 = vunpack.c.h.b16 %v4657
      %v4765 = vunpack.c.l.b16 %v4658
      %v4766 = vunpack.c.h.b16 %v4658
      %v4767 = vunpack.c.l.b16 %v4659
      %v4768 = vunpack.c.h.b16 %v4659
      %v4769 = vunpack.c.l.b16 %v4660
      %v4770 = vunpack.c.h.b16 %v4660
      %v4771 = vunpack.c.l.b16 %v4661
      %v4772 = vunpack.c.h.b16 %v4661
      %v4773 = vunpack.c.l.b16 %v4662
      %v4774 = vunpack.c.h.b16 %v4662
      %v4775 = vunpack.c.l.b16 %v4663
      %v4776 = vunpack.c.h.b16 %v4663
      %v4777 = vunpack.c.l.b16 %v4664
      %v4778 = vunpack.c.h.b16 %v4664
      %v4779 = vunpack.c.l.b16 %v4665
      %v4780 = vunpack.c.h.b16 %v4665
      %v4781 = vunpack.c.l.b16 %v4666
      %v4782 = vunpack.c.h.b16 %v4666
      %v4783 = vunpack.c.l.b16 %v4667
      %v4784 = vunpack.c.h.b16 %v4667
      %v4785 = vunpack.c.l.b16 %v4668
      %v4786 = vunpack.c.h.b16 %v4668
      %v4787 = vunpack.c.l.b16 %v4669
      %v4788 = vunpack.c.h.b16 %v4669
      %v4789 = vunpack.c.l.b16 %v4670
      %v4790 = vunpack.c.h.b16 %v4670
      %v4791 = vunpack.c.l.b16 %v4671
      %v4792 = vunpack.c.h.b16 %v4671
      %v4793 = vunpack.c.l.b16 %v4672
      %v4794 = vunpack.c.h.b16 %v4672
      %v4795 = vunpack.c.l.b16 %v4673
      %v4796 = vunpack.c.h.b16 %v4673
      %v4797 = vunpack.c.l.b16 %v4674
      %v4798 = vunpack.c.h.b16 %v4674
      %v4799 = vunpack.c.l.b16 %v4675
      %v4800 = vunpack.c.h.b16 %v4675
      %v4801 = vunpack.c.l.b16 %v4676
      %v4802 = vunpack.c.h.b16 %v4676
      %v4803 = vunpack.c.l.b16 %v4677
      %v4804 = vunpack.c.h.b16 %v4677
      %v4805 = vunpack.c.l.b16 %v4678
      %v4806 = vunpack.c.h.b16 %v4678
      %v4807 = vpack.c.b16 %v4729, %v4727
      %v4808 = vpack.c.b16 %v4730, %v4728
      %v4809 = vpack.c.b16 %v4733, %v4731
      %v4810 = vpack.c.b16 %v4734, %v4732
      %v4811 = vpack.c.b16 %v4737, %v4735
      %v4812 = vpack.c.b16 %v4738, %v4736
      %v4813 = vpack.c.b16 %v4741, %v4739
      %v4814 = vpack.c.b16 %v4742, %v4740
      %v4815 = vpack.c.b16 %v4745, %v4743
      %v4816 = vpack.c.b16 %v4746, %v4744
      %v4817 = vpack.c.b16 %v4749, %v4747
      %v4818 = vpack.c.b16 %v4750, %v4748
      %v4819 = vpack.c.b16 %v4753, %v4751
      %v4820 = vpack.c.b16 %v4754, %v4752
      %v4821 = vpack.c.b16 %v4757, %v4755
      %v4822 = vpack.c.b16 %v4758, %v4756
      %v4823 = vpack.c.b16 %v4761, %v4759
      %v4824 = vpack.c.b16 %v4762, %v4760
      %v4825 = vpack.c.b16 %v4765, %v4763
      %v4826 = vpack.c.b16 %v4766, %v4764
      %v4827 = vpack.c.b16 %v4769, %v4767
      %v4828 = vpack.c.b16 %v4770, %v4768
      %v4829 = vpack.c.b16 %v4773, %v4771
      %v4830 = vpack.c.b16 %v4774, %v4772
      %v4831 = vpack.c.b16 %v4777, %v4775
      %v4832 = vpack.c.b16 %v4778, %v4776
      %v4833 = vpack.c.b16 %v4781, %v4779
      %v4834 = vpack.c.b16 %v4782, %v4780
      %v4835 = vpack.c.b16 %v4785, %v4783
      %v4836 = vpack.c.b16 %v4786, %v4784
      %v4837 = vpack.c.b16 %v4789, %v4787
      %v4838 = vpack.c.b16 %v4790, %v4788
      %v4839 = vpack.c.b16 %v4793, %v4791
      %v4840 = vpack.c.b16 %v4794, %v4792
      %v4841 = vpack.c.b16 %v4797, %v4795
      %v4842 = vpack.c.b16 %v4798, %v4796
      %v4843 = vpack.c.b16 %v4801, %v4799
      %v4844 = vpack.c.b16 %v4802, %v4800
      %v4845 = vpack.c.b16 %v4805, %v4803
      %v4846 = vpack.c.b16 %v4806, %v4804
      %v4888 = vsel %vm2049, %v4684, 0
      %4890 = vmatprep.subr.bf16.mxu0 %v4822
      %4891 = vmatpush1.bf16.msra.mxu0 %v4821
      %4892 = vmatprep.subr.bf16.mxu0 %v4820
      %4893 = vmatpush1.bf16.msra.mxu0 %v4819
      %4894 = vmatprep.subr.bf16.mxu0 %v4818
      %4895 = vmatpush1.bf16.msra.mxu0 %v4817
      %4896 = vmatprep.subr.bf16.mxu0 %v4816
      %4897 = vmatpush1.bf16.msra.mxu0 %v4815
      %4898 = vmatprep.subr.bf16.mxu0 %v4814
      %4899 = vmatpush1.bf16.msra.mxu0 %v4813
      %4900 = vmatprep.subr.bf16.mxu0 %v4812
      %4901 = vmatpush1.bf16.msra.mxu0 %v4811
      %4902 = vmatprep.subr.bf16.mxu0 %v4810
      %4903 = vmatpush1.bf16.msra.mxu0 %v4809
      %4904 = vmatprep.subr.bf16.mxu0 %v4808
      %4905 = vmatpush1.bf16.msra.mxu0 %v4807
      %4906 = vmatprep.subr.bf16.mxu0 %v4838
      %4907 = vmatpush2.bf16.msra.mxu0 %v4837
      %4908 = vmatprep.subr.bf16.mxu0 %v4836
      %4909 = vmatpush2.bf16.msra.mxu0 %v4835
      %4910 = vmatprep.subr.bf16.mxu0 %v4834
      %4911 = vmatpush2.bf16.msra.mxu0 %v4833
      %4912 = vmatprep.subr.bf16.mxu0 %v4832
      %4913 = vmatpush2.bf16.msra.mxu0 %v4831
      %4914 = vmatprep.subr.bf16.mxu0 %v4830
      %4915 = vmatpush2.bf16.msra.mxu0 %v4829
      %4916 = vmatprep.subr.bf16.mxu0 %v4828
      %4917 = vmatpush2.bf16.msra.mxu0 %v4827
      %4918 = vmatprep.subr.bf16.mxu0 %v4826
      %4919 = vmatpush2.bf16.msra.mxu0 %v4825
      %4920 = vmatprep.subr.bf16.mxu0 %v4824
      %4921 = vmatpush2.bf16.msra.mxu0 %v4823
      %4922 = vmatprep.mubr.bf16.mxu0 %v4683
      %4923 = vmatmul.mubr.bf16.gmra.mxu0 %v4682
      %v4924 = vpop.f32.mrf.mxu0
      %v4925 = vadd.f32 0.0, %v4924
      %v4926 = vpop.f32.mrf.mxu0
      %v4927 = vadd.f32 0.0, %v4926
      %v4928 = vpop.f32.mrf.mxu0
      %v4929 = vpop.f32.mrf.mxu0
      %4930 = vdwg.mxu0
      %4931 = vmatprep.subr.bf16.mxu0 0
      %4932 = vmatpush1.bf16.msra.mxu0 0
      %4933 = vmatprep.subr.bf16.mxu0 0
      %4934 = vmatpush1.bf16.msra.mxu0 0
      %4935 = vmatprep.subr.bf16.mxu0 0
      %4936 = vmatpush1.bf16.msra.mxu0 0
      %4937 = vmatprep.subr.bf16.mxu0 0
      %4938 = vmatpush1.bf16.msra.mxu0 0
      %4939 = vmatprep.subr.bf16.mxu0 %v4846
      %4940 = vmatpush1.bf16.msra.mxu0 %v4845
      %4941 = vmatprep.subr.bf16.mxu0 %v4844
      %4942 = vmatpush1.bf16.msra.mxu0 %v4843
      %4943 = vmatprep.subr.bf16.mxu0 %v4842
      %4944 = vmatpush1.bf16.msra.mxu0 %v4841
      %4945 = vmatprep.subr.bf16.mxu0 %v4840
      %4946 = vmatpush1.bf16.msra.mxu0 %v4839
      %4947 = vmatprep.subr.bf16.mxu0 0
      %4948 = vmatpush2.bf16.msra.mxu0 0
      %4949 = vmatprep.subr.bf16.mxu0 0
      %4950 = vmatpush2.bf16.msra.mxu0 0
      %4951 = vmatprep.subr.bf16.mxu0 0
      %4952 = vmatpush2.bf16.msra.mxu0 0
      %4953 = vmatprep.subr.bf16.mxu0 0
      %4954 = vmatpush2.bf16.msra.mxu0 0
      %4955 = vmatprep.subr.bf16.mxu0 0
      %4956 = vmatpush2.bf16.msra.mxu0 0
      %4957 = vmatprep.subr.bf16.mxu0 0
      %4958 = vmatpush2.bf16.msra.mxu0 0
      %4959 = vmatprep.subr.bf16.mxu0 0
      %4960 = vmatpush2.bf16.msra.mxu0 0
      %4961 = vmatprep.subr.bf16.mxu0 0
      %4962 = vmatpush2.bf16.msra.mxu0 0
      %4963 = vmatprep.mubr.bf16.mxu0 0
      %4964 = vmatmul.mubr.bf16.gmra.mxu0 %v4888
      %v4965 = vpop.f32.mrf.mxu0
      %v4966 = vadd.f32 %v4925, %v4965
      %v4967 = vpop.f32.mrf.mxu0
      %v4968 = vadd.f32 %v4927, %v4967
      %v4969 = vpop.f32.mrf.mxu0
      %v4970 = vpop.f32.mrf.mxu0
      %4971 = vdwg.mxu0
      %v4972 = vadd.f32 %v4636, %v4966
      %v4973 = vadd.f32 %v4637, %v4968
      %v4974 = vadd.f32 %v4972, %v3904
      %v4975 = vadd.f32 %v4973, %v3905
      %v4976 = vmax.f32 %v4974, 0.0
      %v4977 = vmax.f32 %v4975, 0.0
      %v4978 = vpack.c.bf16 %v4976, %v4976
      %v4979 = vpack.c.bf16 %v4977, %v4977
      %v4980 = vld [vmem:[%s14] sm:$0xff]
      %v4981 = vld [vmem:[%s14 + $0x8] sm:$0xff]
      %v4982 = vld [vmem:[%s14 + $0x10] sm:$0xff]
      %v4983 = vld [vmem:[%s14 + $0x18] sm:$0xff]
      %v4984 = vld [vmem:[%s14 + $0x20] sm:$0xff]
      %v4985 = vld [vmem:[%s14 + $0x28] sm:$0xff]
      %v4986 = vld [vmem:[%s14 + $0x30] sm:$0xff]
      %v4987 = vld [vmem:[%s14 + $0x38] sm:$0xff]
      %v4988 = vld [vmem:[%s14 + $0x40] sm:$0xff]
      %v4989 = vld [vmem:[%s14 + $0x48] sm:$0xff]
      %v4990 = vld [vmem:[%s14 + $0x50] sm:$0xff]
      %v4991 = vld [vmem:[%s14 + $0x58] sm:$0xff]
      %v4992 = vld [vmem:[%s14 + $0x60] sm:$0xff]
      %v4993 = vld [vmem:[%s14 + $0x68] sm:$0xff]
      %v4994 = vld [vmem:[%s14 + $0x70] sm:$0xff]
      %v4995 = vld [vmem:[%s14 + $0x78] sm:$0xff]
      %v4996 = vld [vmem:[%s14 + $0x80] sm:$0xff]
      %v4997 = vld [vmem:[%s14 + $0x88] sm:$0xff]
      %v4998 = vld [vmem:[%s14 + $0x90] sm:$0xff]
      %v4999 = vld [vmem:[%s14 + $0x98] sm:$0xff]
      %v5000 = vld [vmem:[%s14 + $0xa0] sm:$0xff]
      %v5001 = vld [vmem:[%s14 + $0xa8] sm:$0xff]
      %v5002 = vld [vmem:[%s14 + $0xb0] sm:$0xff]
      %v5003 = vld [vmem:[%s14 + $0xb8] sm:$0xff]
      %v5004 = vld [vmem:[%s14 + $0xc0] sm:$0xff]
      %v5005 = vld [vmem:[%s14 + $0xc8] sm:$0xff]
      %v5006 = vld [vmem:[%s14 + $0xd0] sm:$0xff]
      %v5007 = vld [vmem:[%s14 + $0xd8] sm:$0xff]
      %v5008 = vld [vmem:[%s14 + $0xe0] sm:$0xff]
      %v5009 = vld [vmem:[%s14 + $0xe8] sm:$0xff]
      %v5010 = vld [vmem:[%s14 + $0xf0] sm:$0xff]
      %v5011 = vld [vmem:[%s14 + $0xf8] sm:$0xff]
      %v5012 = vld [vmem:[%s15] sm:$0x3]
      %v5014 = vlaneseq
      %v5015 = vshrl.u32 %v5014, 7
      %v5016 = vsub.s32 0, %v5015
      %v5017 = vrot.slane %v5012, %v5016
      %v5018 = vlaneseq
      %v5019 = vshrl.u32 %v5018, 7
      %v5020 = vsub.s32 1, %v5019
      %v5021 = vrot.slane %v5012, %v5020
      %v5056 = vunpack.c.l.b16 %v4980
      %v5057 = vunpack.c.h.b16 %v4980
      %v5058 = vunpack.c.l.b16 %v4981
      %v5059 = vunpack.c.h.b16 %v4981
      %v5060 = vunpack.c.l.b16 %v4982
      %v5061 = vunpack.c.h.b16 %v4982
      %v5062 = vunpack.c.l.b16 %v4983
      %v5063 = vunpack.c.h.b16 %v4983
      %v5064 = vunpack.c.l.b16 %v4984
      %v5065 = vunpack.c.h.b16 %v4984
      %v5066 = vunpack.c.l.b16 %v4985
      %v5067 = vunpack.c.h.b16 %v4985
      %v5068 = vunpack.c.l.b16 %v4986
      %v5069 = vunpack.c.h.b16 %v4986
      %v5070 = vunpack.c.l.b16 %v4987
      %v5071 = vunpack.c.h.b16 %v4987
      %v5072 = vunpack.c.l.b16 %v4988
      %v5073 = vunpack.c.h.b16 %v4988
      %v5074 = vunpack.c.l.b16 %v4989
      %v5075 = vunpack.c.h.b16 %v4989
      %v5076 = vunpack.c.l.b16 %v4990
      %v5077 = vunpack.c.h.b16 %v4990
      %v5078 = vunpack.c.l.b16 %v4991
      %v5079 = vunpack.c.h.b16 %v4991
      %v5080 = vunpack.c.l.b16 %v4992
      %v5081 = vunpack.c.h.b16 %v4992
      %v5082 = vunpack.c.l.b16 %v4993
      %v5083 = vunpack.c.h.b16 %v4993
      %v5084 = vunpack.c.l.b16 %v4994
      %v5085 = vunpack.c.h.b16 %v4994
      %v5086 = vunpack.c.l.b16 %v4995
      %v5087 = vunpack.c.h.b16 %v4995
      %v5088 = vunpack.c.l.b16 %v4996
      %v5089 = vunpack.c.h.b16 %v4996
      %v5090 = vunpack.c.l.b16 %v4997
      %v5091 = vunpack.c.h.b16 %v4997
      %v5092 = vunpack.c.l.b16 %v4998
      %v5093 = vunpack.c.h.b16 %v4998
      %v5094 = vunpack.c.l.b16 %v4999
      %v5095 = vunpack.c.h.b16 %v4999
      %v5096 = vunpack.c.l.b16 %v5000
      %v5097 = vunpack.c.h.b16 %v5000
      %v5098 = vunpack.c.l.b16 %v5001
      %v5099 = vunpack.c.h.b16 %v5001
      %v5100 = vunpack.c.l.b16 %v5002
      %v5101 = vunpack.c.h.b16 %v5002
      %v5102 = vunpack.c.l.b16 %v5003
      %v5103 = vunpack.c.h.b16 %v5003
      %v5104 = vunpack.c.l.b16 %v5004
      %v5105 = vunpack.c.h.b16 %v5004
      %v5106 = vunpack.c.l.b16 %v5005
      %v5107 = vunpack.c.h.b16 %v5005
      %v5108 = vunpack.c.l.b16 %v5006
      %v5109 = vunpack.c.h.b16 %v5006
      %v5110 = vunpack.c.l.b16 %v5007
      %v5111 = vunpack.c.h.b16 %v5007
      %v5112 = vunpack.c.l.b16 %v5008
      %v5113 = vunpack.c.h.b16 %v5008
      %v5114 = vunpack.c.l.b16 %v5009
      %v5115 = vunpack.c.h.b16 %v5009
      %v5116 = vunpack.c.l.b16 %v5010
      %v5117 = vunpack.c.h.b16 %v5010
      %v5118 = vunpack.c.l.b16 %v5011
      %v5119 = vunpack.c.h.b16 %v5011
      %v5120 = vpack.c.b16 %v5058, %v5056
      %v5121 = vpack.c.b16 %v5059, %v5057
      %v5122 = vpack.c.b16 %v5062, %v5060
      %v5123 = vpack.c.b16 %v5063, %v5061
      %v5124 = vpack.c.b16 %v5066, %v5064
      %v5125 = vpack.c.b16 %v5067, %v5065
      %v5126 = vpack.c.b16 %v5070, %v5068
      %v5127 = vpack.c.b16 %v5071, %v5069
      %v5128 = vpack.c.b16 %v5074, %v5072
      %v5129 = vpack.c.b16 %v5075, %v5073
      %v5130 = vpack.c.b16 %v5078, %v5076
      %v5131 = vpack.c.b16 %v5079, %v5077
      %v5132 = vpack.c.b16 %v5082, %v5080
      %v5133 = vpack.c.b16 %v5083, %v5081
      %v5134 = vpack.c.b16 %v5086, %v5084
      %v5135 = vpack.c.b16 %v5087, %v5085
      %v5136 = vpack.c.b16 %v5090, %v5088
      %v5137 = vpack.c.b16 %v5091, %v5089
      %v5138 = vpack.c.b16 %v5094, %v5092
      %v5139 = vpack.c.b16 %v5095, %v5093
      %v5140 = vpack.c.b16 %v5098, %v5096
      %v5141 = vpack.c.b16 %v5099, %v5097
      %v5142 = vpack.c.b16 %v5102, %v5100
      %v5143 = vpack.c.b16 %v5103, %v5101
      %v5144 = vpack.c.b16 %v5106, %v5104
      %v5145 = vpack.c.b16 %v5107, %v5105
      %v5146 = vpack.c.b16 %v5110, %v5108
      %v5147 = vpack.c.b16 %v5111, %v5109
      %v5148 = vpack.c.b16 %v5114, %v5112
      %v5149 = vpack.c.b16 %v5115, %v5113
      %v5150 = vpack.c.b16 %v5118, %v5116
      %v5151 = vpack.c.b16 %v5119, %v5117
      %5184 = vmatprep.subr.bf16.mxu0 %v5135
      %5185 = vmatpush1.bf16.msra.mxu0 %v5134
      %5186 = vmatprep.subr.bf16.mxu0 %v5133
      %5187 = vmatpush1.bf16.msra.mxu0 %v5132
      %5188 = vmatprep.subr.bf16.mxu0 %v5131
      %5189 = vmatpush1.bf16.msra.mxu0 %v5130
      %5190 = vmatprep.subr.bf16.mxu0 %v5129
      %5191 = vmatpush1.bf16.msra.mxu0 %v5128
      %5192 = vmatprep.subr.bf16.mxu0 %v5127
      %5193 = vmatpush1.bf16.msra.mxu0 %v5126
      %5194 = vmatprep.subr.bf16.mxu0 %v5125
      %5195 = vmatpush1.bf16.msra.mxu0 %v5124
      %5196 = vmatprep.subr.bf16.mxu0 %v5123
      %5197 = vmatpush1.bf16.msra.mxu0 %v5122
      %5198 = vmatprep.subr.bf16.mxu0 %v5121
      %5199 = vmatpush1.bf16.msra.mxu0 %v5120
      %5200 = vmatprep.subr.bf16.mxu0 %v5151
      %5201 = vmatpush2.bf16.msra.mxu0 %v5150
      %5202 = vmatprep.subr.bf16.mxu0 %v5149
      %5203 = vmatpush2.bf16.msra.mxu0 %v5148
      %5204 = vmatprep.subr.bf16.mxu0 %v5147
      %5205 = vmatpush2.bf16.msra.mxu0 %v5146
      %5206 = vmatprep.subr.bf16.mxu0 %v5145
      %5207 = vmatpush2.bf16.msra.mxu0 %v5144
      %5208 = vmatprep.subr.bf16.mxu0 %v5143
      %5209 = vmatpush2.bf16.msra.mxu0 %v5142
      %5210 = vmatprep.subr.bf16.mxu0 %v5141
      %5211 = vmatpush2.bf16.msra.mxu0 %v5140
      %5212 = vmatprep.subr.bf16.mxu0 %v5139
      %5213 = vmatpush2.bf16.msra.mxu0 %v5138
      %5214 = vmatprep.subr.bf16.mxu0 %v5137
      %5215 = vmatpush2.bf16.msra.mxu0 %v5136
      %5216 = vmatprep.mubr.bf16.mxu0 %v4979
      %5217 = vmatmul.mubr.bf16.gmra.mxu0 %v4978
      %v5218 = vpop.f32.mrf.mxu0
      %v5219 = vadd.f32 %v5017, %v5218
      %v5220 = vpop.f32.mrf.mxu0
      %v5221 = vadd.f32 %v5021, %v5220
      %v5222 = vpop.f32.mrf.mxu0
      %v5223 = vpop.f32.mrf.mxu0
      %5224 = vdwg.mxu0
      %v5225 = vmax.f32 %v5219, 0.0
      %v5226 = vmax.f32 %v5221, 0.0
      %v5227 = vpack.c.bf16 %v5225, %v5225
      %v5228 = vpack.c.bf16 %v5226, %v5226
      %v5231 = vunpack.c.l.b16 %v5227
      %v5232 = vunpack.c.l.b16 %v5228
      %v5233 = vpack.c.b16 %v5232, %v5231
      %5235 = vst [vmem:[%s581] sm:$0xff] %v5233
      %s5236 = scalar_lea.vmem %s14, 256
      %v5237 = vld [vmem:[%s5236] sm:$0xff]
      %v5238 = vld [vmem:[%s5236 + $0x8] sm:$0xff]
      %v5239 = vld [vmem:[%s5236 + $0x10] sm:$0xff]
      %v5240 = vld [vmem:[%s5236 + $0x18] sm:$0xff]
      %v5241 = vld [vmem:[%s5236 + $0x20] sm:$0xff]
      %v5242 = vld [vmem:[%s5236 + $0x28] sm:$0xff]
      %v5243 = vld [vmem:[%s5236 + $0x30] sm:$0xff]
      %v5244 = vld [vmem:[%s5236 + $0x38] sm:$0xff]
      %v5245 = vld [vmem:[%s5236 + $0x40] sm:$0xff]
      %v5246 = vld [vmem:[%s5236 + $0x48] sm:$0xff]
      %v5247 = vld [vmem:[%s5236 + $0x50] sm:$0xff]
      %v5248 = vld [vmem:[%s5236 + $0x58] sm:$0xff]
      %v5249 = vld [vmem:[%s5236 + $0x60] sm:$0xff]
      %v5250 = vld [vmem:[%s5236 + $0x68] sm:$0xff]
      %v5251 = vld [vmem:[%s5236 + $0x70] sm:$0xff]
      %v5252 = vld [vmem:[%s5236 + $0x78] sm:$0xff]
      %v5253 = vld [vmem:[%s5236 + $0x80] sm:$0xff]
      %v5254 = vld [vmem:[%s5236 + $0x88] sm:$0xff]
      %v5255 = vld [vmem:[%s5236 + $0x90] sm:$0xff]
      %v5256 = vld [vmem:[%s5236 + $0x98] sm:$0xff]
      %v5257 = vld [vmem:[%s5236 + $0xa0] sm:$0xff]
      %v5258 = vld [vmem:[%s5236 + $0xa8] sm:$0xff]
      %v5259 = vld [vmem:[%s5236 + $0xb0] sm:$0xff]
      %v5260 = vld [vmem:[%s5236 + $0xb8] sm:$0xff]
      %v5261 = vld [vmem:[%s5236 + $0xc0] sm:$0xff]
      %v5262 = vld [vmem:[%s5236 + $0xc8] sm:$0xff]
      %v5263 = vld [vmem:[%s5236 + $0xd0] sm:$0xff]
      %v5264 = vld [vmem:[%s5236 + $0xd8] sm:$0xff]
      %v5265 = vld [vmem:[%s5236 + $0xe0] sm:$0xff]
      %v5266 = vld [vmem:[%s5236 + $0xe8] sm:$0xff]
      %v5267 = vld [vmem:[%s5236 + $0xf0] sm:$0xff]
      %v5268 = vld [vmem:[%s5236 + $0xf8] sm:$0xff]
      %v5269 = vld [vmem:[%s15] sm:$0x3]
      %v5271 = vlaneseq
      %v5272 = vshrl.u32 %v5271, 7
      %v5273 = vsub.s32 0, %v5272
      %v5274 = vrot.slane %v5269, %v5273
      %v5275 = vlaneseq
      %v5276 = vshrl.u32 %v5275, 7
      %v5277 = vsub.s32 1, %v5276
      %v5278 = vrot.slane %v5269, %v5277
      %v5313 = vunpack.c.l.b16 %v5237
      %v5314 = vunpack.c.h.b16 %v5237
      %v5315 = vunpack.c.l.b16 %v5238
      %v5316 = vunpack.c.h.b16 %v5238
      %v5317 = vunpack.c.l.b16 %v5239
      %v5318 = vunpack.c.h.b16 %v5239
      %v5319 = vunpack.c.l.b16 %v5240
      %v5320 = vunpack.c.h.b16 %v5240
      %v5321 = vunpack.c.l.b16 %v5241
      %v5322 = vunpack.c.h.b16 %v5241
      %v5323 = vunpack.c.l.b16 %v5242
      %v5324 = vunpack.c.h.b16 %v5242
      %v5325 = vunpack.c.l.b16 %v5243
      %v5326 = vunpack.c.h.b16 %v5243
      %v5327 = vunpack.c.l.b16 %v5244
      %v5328 = vunpack.c.h.b16 %v5244
      %v5329 = vunpack.c.l.b16 %v5245
      %v5330 = vunpack.c.h.b16 %v5245
      %v5331 = vunpack.c.l.b16 %v5246
      %v5332 = vunpack.c.h.b16 %v5246
      %v5333 = vunpack.c.l.b16 %v5247
      %v5334 = vunpack.c.h.b16 %v5247
      %v5335 = vunpack.c.l.b16 %v5248
      %v5336 = vunpack.c.h.b16 %v5248
      %v5337 = vunpack.c.l.b16 %v5249
      %v5338 = vunpack.c.h.b16 %v5249
      %v5339 = vunpack.c.l.b16 %v5250
      %v5340 = vunpack.c.h.b16 %v5250
      %v5341 = vunpack.c.l.b16 %v5251
      %v5342 = vunpack.c.h.b16 %v5251
      %v5343 = vunpack.c.l.b16 %v5252
      %v5344 = vunpack.c.h.b16 %v5252
      %v5345 = vunpack.c.l.b16 %v5253
      %v5346 = vunpack.c.h.b16 %v5253
      %v5347 = vunpack.c.l.b16 %v5254
      %v5348 = vunpack.c.h.b16 %v5254
      %v5349 = vunpack.c.l.b16 %v5255
      %v5350 = vunpack.c.h.b16 %v5255
      %v5351 = vunpack.c.l.b16 %v5256
      %v5352 = vunpack.c.h.b16 %v5256
      %v5353 = vunpack.c.l.b16 %v5257
      %v5354 = vunpack.c.h.b16 %v5257
      %v5355 = vunpack.c.l.b16 %v5258
      %v5356 = vunpack.c.h.b16 %v5258
      %v5357 = vunpack.c.l.b16 %v5259
      %v5358 = vunpack.c.h.b16 %v5259
      %v5359 = vunpack.c.l.b16 %v5260
      %v5360 = vunpack.c.h.b16 %v5260
      %v5361 = vunpack.c.l.b16 %v5261
      %v5362 = vunpack.c.h.b16 %v5261
      %v5363 = vunpack.c.l.b16 %v5262
      %v5364 = vunpack.c.h.b16 %v5262
      %v5365 = vunpack.c.l.b16 %v5263
      %v5366 = vunpack.c.h.b16 %v5263
      %v5367 = vunpack.c.l.b16 %v5264
      %v5368 = vunpack.c.h.b16 %v5264
      %v5369 = vunpack.c.l.b16 %v5265
      %v5370 = vunpack.c.h.b16 %v5265
      %v5371 = vunpack.c.l.b16 %v5266
      %v5372 = vunpack.c.h.b16 %v5266
      %v5373 = vunpack.c.l.b16 %v5267
      %v5374 = vunpack.c.h.b16 %v5267
      %v5375 = vunpack.c.l.b16 %v5268
      %v5376 = vunpack.c.h.b16 %v5268
      %v5377 = vpack.c.b16 %v5315, %v5313
      %v5378 = vpack.c.b16 %v5316, %v5314
      %v5379 = vpack.c.b16 %v5319, %v5317
      %v5380 = vpack.c.b16 %v5320, %v5318
      %v5381 = vpack.c.b16 %v5323, %v5321
      %v5382 = vpack.c.b16 %v5324, %v5322
      %v5383 = vpack.c.b16 %v5327, %v5325
      %v5384 = vpack.c.b16 %v5328, %v5326
      %v5385 = vpack.c.b16 %v5331, %v5329
      %v5386 = vpack.c.b16 %v5332, %v5330
      %v5387 = vpack.c.b16 %v5335, %v5333
      %v5388 = vpack.c.b16 %v5336, %v5334
      %v5389 = vpack.c.b16 %v5339, %v5337
      %v5390 = vpack.c.b16 %v5340, %v5338
      %v5391 = vpack.c.b16 %v5343, %v5341
      %v5392 = vpack.c.b16 %v5344, %v5342
      %v5393 = vpack.c.b16 %v5347, %v5345
      %v5394 = vpack.c.b16 %v5348, %v5346
      %v5395 = vpack.c.b16 %v5351, %v5349
      %v5396 = vpack.c.b16 %v5352, %v5350
      %v5397 = vpack.c.b16 %v5355, %v5353
      %v5398 = vpack.c.b16 %v5356, %v5354
      %v5399 = vpack.c.b16 %v5359, %v5357
      %v5400 = vpack.c.b16 %v5360, %v5358
      %v5401 = vpack.c.b16 %v5363, %v5361
      %v5402 = vpack.c.b16 %v5364, %v5362
      %v5403 = vpack.c.b16 %v5367, %v5365
      %v5404 = vpack.c.b16 %v5368, %v5366
      %v5405 = vpack.c.b16 %v5371, %v5369
      %v5406 = vpack.c.b16 %v5372, %v5370
      %v5407 = vpack.c.b16 %v5375, %v5373
      %v5408 = vpack.c.b16 %v5376, %v5374
      %5441 = vmatprep.subr.bf16.mxu0 %v5392
      %5442 = vmatpush1.bf16.msra.mxu0 %v5391
      %5443 = vmatprep.subr.bf16.mxu0 %v5390
      %5444 = vmatpush1.bf16.msra.mxu0 %v5389
      %5445 = vmatprep.subr.bf16.mxu0 %v5388
      %5446 = vmatpush1.bf16.msra.mxu0 %v5387
      %5447 = vmatprep.subr.bf16.mxu0 %v5386
      %5448 = vmatpush1.bf16.msra.mxu0 %v5385
      %5449 = vmatprep.subr.bf16.mxu0 %v5384
      %5450 = vmatpush1.bf16.msra.mxu0 %v5383
      %5451 = vmatprep.subr.bf16.mxu0 %v5382
      %5452 = vmatpush1.bf16.msra.mxu0 %v5381
      %5453 = vmatprep.subr.bf16.mxu0 %v5380
      %5454 = vmatpush1.bf16.msra.mxu0 %v5379
      %5455 = vmatprep.subr.bf16.mxu0 %v5378
      %5456 = vmatpush1.bf16.msra.mxu0 %v5377
      %5457 = vmatprep.subr.bf16.mxu0 %v5408
      %5458 = vmatpush2.bf16.msra.mxu0 %v5407
      %5459 = vmatprep.subr.bf16.mxu0 %v5406
      %5460 = vmatpush2.bf16.msra.mxu0 %v5405
      %5461 = vmatprep.subr.bf16.mxu0 %v5404
      %5462 = vmatpush2.bf16.msra.mxu0 %v5403
      %5463 = vmatprep.subr.bf16.mxu0 %v5402
      %5464 = vmatpush2.bf16.msra.mxu0 %v5401
      %5465 = vmatprep.subr.bf16.mxu0 %v5400
      %5466 = vmatpush2.bf16.msra.mxu0 %v5399
      %5467 = vmatprep.subr.bf16.mxu0 %v5398
      %5468 = vmatpush2.bf16.msra.mxu0 %v5397
      %5469 = vmatprep.subr.bf16.mxu0 %v5396
      %5470 = vmatpush2.bf16.msra.mxu0 %v5395
      %5471 = vmatprep.subr.bf16.mxu0 %v5394
      %5472 = vmatpush2.bf16.msra.mxu0 %v5393
      %5473 = vmatprep.mubr.bf16.mxu0 %v4979
      %5474 = vmatmul.mubr.bf16.gmra.mxu0 %v4978
      %v5475 = vpop.f32.mrf.mxu0
      %v5476 = vadd.f32 %v5274, %v5475
      %v5477 = vpop.f32.mrf.mxu0
      %v5478 = vadd.f32 %v5278, %v5477
      %v5479 = vpop.f32.mrf.mxu0
      %v5480 = vpop.f32.mrf.mxu0
      %5481 = vdwg.mxu0
      %v5482 = vmax.f32 %v5476, 0.0
      %v5483 = vmax.f32 %v5478, 0.0
      %v5484 = vpack.c.bf16 %v5482, %v5482
      %v5485 = vpack.c.bf16 %v5483, %v5483
      %v5488 = vunpack.c.l.b16 %v5484
      %v5489 = vunpack.c.l.b16 %v5485
      %v5490 = vpack.c.b16 %v5489, %v5488
      %s5492 = scalar_lea.vmem %s581, 8
      %5493 = vst [vmem:[%s5492] sm:$0xff] %v5490
      %p5494 = scmp.lt.s32.totalorder %s27, 1
      %s5495 = scalar_select %p5494, %s27, 1
      %s5496 = smul.addr %s5495, 4
      %s5497 = smul.addr %s5496, 4
      %s5498 = scalar_lea.vmem %s16, %s5497
      // Predicated region
      $region85: #{run.3} parent=83 // pred_check
        %p5499 = pneg %p401
      $region86: #{run.3} parent=83 // pred_check_branch
        %5501 = sbr.rel (%p5499) target = $region88
      $region87: #{run.3} parent=83 // pred_region
        _
      $region88: #{run.3} parent=83 // pred_fallthru
        _
    $region84: #{run.3} parent=5 // pred_fallthru
      _
    %p5502 = scmp.le.s32.totalorder 2, %s22
    // Predicated region
    $region89: #{run.3} parent=5 // pred_check
      %p5503 = pneg %p5502
    $region90: #{run.3} parent=5 // pred_check_branch
      %5505 = sbr.rel (%p5503) target = $region92
    $region91: #{run.3} parent=5 // pred_region
      %s5506 = ssub.s32 %s22, 2
      // Predicated region
      $region93: #{run.3} parent=91 // pred_check
        %p5507 = pneg %p407
      $region94: #{run.3} parent=91 // pred_check_branch
        %5509 = sbr.rel (%p5507) target = $region96
      $region95: #{run.3} parent=91 // pred_region
        %p5510 = scmp.lt.s32.totalorder %s28, 1
        %s5511 = scalar_select %p5510, %s28, 1
        %s5512 = smul.addr %s5511, 4
        %s5513 = smul.addr %s5512, 4
        %s5514 = scalar_lea.vmem %s16, %s5513
      $region96: #{run.3} parent=91 // pred_fallthru
        _
    $region92: #{run.3} parent=5 // pred_fallthru
      _
  $region6: #{run.3} parent=0 // loop_footer
    %s26 = sadd.s32 1, %s22
  $region7: #{run.3} parent=0 // loop_footer_branch
    %21 = sbr.rel target = $region3
  $region8: #{run.3} parent=0 // loop_exit
    _

</llo_original>
